<compile_context>
chip_gen: v6e
topology: v6e:2x2x1
jax: 0.10.0
libtpu: 0.0.40
codegen_flags: <defaults>
</compile_context>

<pallas_src>
import jax
import jax.numpy as jnp
from jax import lax
from jax.experimental import pallas as pl
from jax.experimental.pallas import tpu as pltpu


# ------------------------------ fused kernel -------------------------------

def _cross_block_kernel(det_ref, aim_ref,
                        wg_ref, bg_ref, wphi_ref, bphi_ref,
                        wg2_ref, bg2_ref, wth_ref, bth_ref,
                        ww_ref, wb_ref, wq_ref, qb_ref,
                        ed_ref, ea_ref, fd_ref, fa_ref,
                        odet_ref, oaim_ref):
    B = det_ref.shape[0]
    r_d = wg_ref.shape[0]      # C // (2*Nd)
    r_a = wg2_ref.shape[0]     # C // (2*Na)
    two_nd = wg_ref.shape[2]   # 2*Nd
    two_na = wg2_ref.shape[2]  # 2*Na
    inv_nd = 1.0 / float(two_nd)
    inv_na = 1.0 / float(two_na)
    nt_dims = (((1,), (1,)), ((), ()))   # a @ b.T (contract the lane dims)

    def proj_view(x, w_ref_, b_ref_, e_ref_, r):
        # Rows of (x @ W + b), reinterpreted row-major as the (IC, 2N) view.
        # view = sum_k E_k @ (x @ W_k + b_k), with W_k / b_k the k-th 2N-wide
        # output-column chunk and E_k the one-hot matrix scattering chunk row n
        # into view row n*r + k (the flat .view() row interleave).
        acc = None
        for k in range(r):
            chunk = jnp.dot(x, w_ref_[k],
                            preferred_element_type=jnp.float32) + b_ref_[k]
            piece = jnp.dot(e_ref_[k], chunk,
                            preferred_element_type=jnp.float32)
            acc = piece if acc is None else acc + piece
        return acc

    for b in range(B):                        # B is tiny -> unrolled, no grid
        det_b = det_ref[b]                    # (Nd, C)
        aim_b = aim_ref[b]                    # (Na, C)

        gd = proj_view(det_b, wg_ref, bg_ref, ed_ref, r_d)       # (IC, 2Nd) == d_x^T
        ph = proj_view(det_b, wphi_ref, bphi_ref, ed_ref, r_d)   # (IC, 2Nd) == phi_x
        ga = proj_view(aim_b, wg2_ref, bg2_ref, ea_ref, r_a)     # (IC, 2Na) == a_x^T
        th = proj_view(aim_b, wth_ref, bth_ref, ea_ref, r_a)     # (IC, 2Na) == theta_x^T

        # (f/2Nd @ d_x)^T  = gd @ ph^T @ th / 2Nd     (f never materialised)
        m_d = lax.dot_general(gd, ph, nt_dims, preferred_element_type=jnp.float32)
        na_pre_t = jnp.dot(m_d, th, preferred_element_type=jnp.float32) * inv_nd   # (IC, 2Na)
        # (f^T/2Na @ a_x)^T = ga @ th^T @ ph / 2Na
        m_a = lax.dot_general(ga, th, nt_dims, preferred_element_type=jnp.float32)
        nd_pre_t = jnp.dot(m_a, ph, preferred_element_type=jnp.float32) * inv_na    # (IC, 2Nd)

        # W / Q Linears with the inverse axis-mix folded in:
        #   out = sum_k (F_k @ pre_t) @ W_rowchunk_k + bias + residual
        o_aim = aim_b + wb_ref[...]
        for k in range(r_a):
            sel = jnp.dot(fa_ref[k], na_pre_t, preferred_element_type=jnp.float32)  # (Na, 2Na)
            o_aim = o_aim + jnp.dot(sel, ww_ref[k], preferred_element_type=jnp.float32)
        o_det = det_b + qb_ref[...]
        for k in range(r_d):
            sel = jnp.dot(fd_ref[k], nd_pre_t, preferred_element_type=jnp.float32)  # (Nd, 2Nd)
            o_det = o_det + jnp.dot(sel, wq_ref[k], preferred_element_type=jnp.float32)

        oaim_ref[b, :, :] = o_aim.astype(oaim_ref.dtype)
        odet_ref[b, :, :] = o_det.astype(odet_ref.dtype)


# ----------------------------- parameter packing ---------------------------

def init_params(key, c):
    """Synthetic parameters. PyTorch Linear weight is (out, in); we store the
    transposed (in, out) form."""
    def linear(k, in_f, out_f):
        kw, kb = jax.random.split(k)
        w = jax.random.normal(kw, (in_f, out_f), jnp.float32) * 0.05
        b = jax.random.normal(kb, (1, out_f), jnp.float32) * 0.05
        return w, b

    keys = jax.random.split(key, 6)
    p = {}
    p["g_w"], p["g_b"] = linear(keys[0], c, c)
    p["g2_w"], p["g2_b"] = linear(keys[1], c, c)
    p["W_w"], p["W_b"] = linear(keys[2], c, c)
    p["Q_w"], p["Q_b"] = linear(keys[3], c, c)
    p["theta_w"], p["theta_b"] = linear(keys[4], c, c)
    p["phi_w"], p["phi_b"] = linear(keys[5], c, c)
    return p


def pack_cross_block_params(params, num_prop_detect, num_prop_aim):
    """Pack weights once for the fused kernel: output-column chunks for the
    projections, row chunks for W/Q, and one-hot interleave matrices that
    implement the flat .view() row remix as tiny matmuls."""
    c = params["g_w"].shape[0]
    assert c % 2 == 0, "inplanes must be even (inter_channels = C // 2)"
    ic = c // 2
    two_nd = 2 * num_prop_detect
    two_na = 2 * num_prop_aim
    # TODO(synk): the fused kernel folds the axis-mixing .view()s into chunked
    # weights + one-hot interleaves; shapes where 2*num_prop does not divide
    # inplanes would need the flat reshape at the XLA boundary instead.
    assert c % two_nd == 0 and c % two_na == 0, \
        "fused kernel requires 2*num_prop_detect and 2*num_prop_aim to divide inplanes"
    r_d = c // two_nd
    r_a = c // two_na

    def col_chunks(w, b, width, r):
        wc = jnp.stack([w[:, k * width:(k + 1) * width] for k in range(r)])  # (r, C, width)
        bc = jnp.stack([b[:, k * width:(k + 1) * width] for k in range(r)])  # (r, 1, width)
        return wc, bc

    def row_chunks(w, width, r):
        return jnp.stack([w[k * width:(k + 1) * width, :] for k in range(r)])  # (r, width, C)

    def interleave(nprop, r):
        i = jnp.arange(ic)[:, None]
        n = jnp.arange(nprop)[None, :]
        e = jnp.stack([(i == n * r + k).astype(jnp.float32) for k in range(r)])  # (r, IC, nprop)
        return e, jnp.transpose(e, (0, 2, 1))                                    # (r, nprop, IC)

    packed = {}
    packed["wg"], packed["bg"] = col_chunks(params["g_w"], params["g_b"], two_nd, r_d)
    packed["wphi"], packed["bphi"] = col_chunks(params["phi_w"], params["phi_b"], two_nd, r_d)
    packed["wg2"], packed["bg2"] = col_chunks(params["g2_w"], params["g2_b"], two_na, r_a)
    packed["wth"], packed["bth"] = col_chunks(params["theta_w"], params["theta_b"], two_na, r_a)
    packed["ww"] = row_chunks(params["W_w"], two_na, r_a)
    packed["wq"] = row_chunks(params["Q_w"], two_nd, r_d)
    packed["wb"] = params["W_b"]
    packed["qb"] = params["Q_b"]
    packed["ed"], packed["fd"] = interleave(num_prop_detect, r_d)
    packed["ea"], packed["fa"] = interleave(num_prop_aim, r_a)
    return packed


# ------------------------------ module wrapper ------------------------------

def cross_block_forward(packed, detect, aim):
    """detect: (B, Nd, C), aim: (B, Na, C) -> (non_det, non_aim)."""
    B, Nd, C = detect.shape
    _, Na, _ = aim.shape
    vmem = pl.BlockSpec(memory_space=pltpu.MemorySpace.VMEM)
    args = (detect, aim,
            packed["wg"], packed["bg"], packed["wphi"], packed["bphi"],
            packed["wg2"], packed["bg2"], packed["wth"], packed["bth"],
            packed["ww"], packed["wb"], packed["wq"], packed["qb"],
            packed["ed"], packed["ea"], packed["fd"], packed["fa"])
    non_det, non_aim = pl.pallas_call(
        _cross_block_kernel,
        out_shape=(jax.ShapeDtypeStruct((B, Nd, C), detect.dtype),
                   jax.ShapeDtypeStruct((B, Na, C), aim.dtype)),
        in_specs=[vmem] * len(args),
        out_specs=(vmem, vmem),
    )(*args)
    return non_det, non_aim


# ------------------------- pure-JAX reference check -------------------------

def cross_block_reference(params, detect, aim):
    B, Nd, C = detect.shape
    _, Na, _ = aim.shape
    IC = C // 2
    lin = lambda x, w, b: jnp.matmul(x, w) + b
    d_x = lin(detect, params["g_w"], params["g_b"]).reshape(B, IC, -1).transpose(0, 2, 1)
    a_x = lin(aim, params["g2_w"], params["g2_b"]).reshape(B, IC, -1).transpose(0, 2, 1)
    theta_x = lin(aim, params["theta_w"], params["theta_b"]).reshape(B, IC, -1).transpose(0, 2, 1)
    phi_x = lin(detect, params["phi_w"], params["phi_b"]).reshape(B, IC, -1)
    f = jnp.matmul(theta_x, phi_x)
    f_div_C = f / f.shape[-1]
    ft = jnp.transpose(f, (0, 2, 1))
    fi_div_C = ft / ft.shape[-1]
    non_aim = jnp.matmul(f_div_C, d_x).transpose(0, 2, 1).reshape(B, Na, C)
    non_aim = lin(non_aim, params["W_w"], params["W_b"]) + aim
    non_det = jnp.matmul(fi_div_C, a_x).transpose(0, 2, 1).reshape(B, Nd, C)
    non_det = lin(non_det, params["Q_w"], params["Q_b"]) + detect
    return non_det, non_aim


# --------------------------------- main ------------------------------------

if __name__ == "__main__":
    inplanes = 64
    B, Nd, Na = 2, 16, 8

    key = jax.random.PRNGKey(0)
    k_par, k_det, k_aim = jax.random.split(key, 3)

    params = init_params(k_par, inplanes)
    packed = pack_cross_block_params(params, Nd, Na)
    detect = jax.random.normal(k_det, (B, Nd, inplanes), jnp.float32)
    aim = jax.random.normal(k_aim, (B, Na, inplanes), jnp.float32)

    fwd = jax.jit(cross_block_forward)
    non_det, non_aim = jax.block_until_ready(fwd(packed, detect, aim))

    # reference at highest matmul precision; the in-kernel dots run at the
    # default Mosaic MXU precision, so compare with a slightly loose tolerance.
    with jax.default_matmul_precision("highest"):
        ref_det, ref_aim = cross_block_reference(params, detect, aim)

    assert non_det.shape == (B, Nd, inplanes)
    assert non_aim.shape == (B, Na, inplanes)
    assert jnp.allclose(non_det, ref_det, atol=2e-3, rtol=2e-3)
    assert jnp.allclose(non_aim, ref_aim, atol=2e-3, rtol=2e-3)

    print("KERNEL_OK")
</pallas_src>

<mosaic_0001>
module attributes {stable_mosaic.version = 11 : i64} {
  func.func @_cross_block_kernel(%arg0: memref<2x16x64xf32, #tpu.memory_space<vmem>>, %arg1: memref<2x8x64xf32, #tpu.memory_space<vmem>>, %arg2: memref<2x64x32xf32, #tpu.memory_space<vmem>>, %arg3: memref<2x1x32xf32, #tpu.memory_space<vmem>>, %arg4: memref<2x64x32xf32, #tpu.memory_space<vmem>>, %arg5: memref<2x1x32xf32, #tpu.memory_space<vmem>>, %arg6: memref<4x64x16xf32, #tpu.memory_space<vmem>>, %arg7: memref<4x1x16xf32, #tpu.memory_space<vmem>>, %arg8: memref<4x64x16xf32, #tpu.memory_space<vmem>>, %arg9: memref<4x1x16xf32, #tpu.memory_space<vmem>>, %arg10: memref<4x16x64xf32, #tpu.memory_space<vmem>>, %arg11: memref<1x64xf32, #tpu.memory_space<vmem>>, %arg12: memref<2x32x64xf32, #tpu.memory_space<vmem>>, %arg13: memref<1x64xf32, #tpu.memory_space<vmem>>, %arg14: memref<2x32x16xf32, #tpu.memory_space<vmem>>, %arg15: memref<4x32x8xf32, #tpu.memory_space<vmem>>, %arg16: memref<2x16x32xf32, #tpu.memory_space<vmem>>, %arg17: memref<4x8x32xf32, #tpu.memory_space<vmem>>, %arg18: memref<2x16x64xf32, #tpu.memory_space<vmem>>, %arg19: memref<2x8x64xf32, #tpu.memory_space<vmem>>) attributes {dimension_semantics = [], scalar_prefetch = 0 : i64, scratch_operands = 0 : i64, tpu.core_type = #tpu.core_type<tc>} {
    %c0 = arith.constant 0 : index
    %c0_0 = arith.constant 0 : index
    %c0_1 = arith.constant 0 : index
    %0 = vector.load %arg0[%c0, %c0_0, %c0_1] : memref<2x16x64xf32, #tpu.memory_space<vmem>>, vector<1x16x64xf32>
    %1 = vector.shape_cast %0 : vector<1x16x64xf32> to vector<16x64xf32>
    %c0_2 = arith.constant 0 : index
    %c0_3 = arith.constant 0 : index
    %c0_4 = arith.constant 0 : index
    %2 = vector.load %arg1[%c0_2, %c0_3, %c0_4] : memref<2x8x64xf32, #tpu.memory_space<vmem>>, vector<1x8x64xf32>
    %3 = vector.shape_cast %2 : vector<1x8x64xf32> to vector<8x64xf32>
    %c0_5 = arith.constant 0 : index
    %c0_6 = arith.constant 0 : index
    %c0_7 = arith.constant 0 : index
    %4 = vector.load %arg2[%c0_5, %c0_6, %c0_7] : memref<2x64x32xf32, #tpu.memory_space<vmem>>, vector<1x64x32xf32>
    %5 = vector.shape_cast %4 : vector<1x64x32xf32> to vector<64x32xf32>
    %cst = arith.constant dense<0.000000e+00> : vector<16x32xf32>
    %6 = tpu.matmul %1, %5, %cst {dimension_numbers = #tpu.dot_dimension_numbers<[1], [0], [0], [1], [0, 0, 1, 1], [], []>} : vector<16x64xf32>, vector<64x32xf32>, vector<16x32xf32> -> vector<16x32xf32>
    %c0_8 = arith.constant 0 : index
    %c0_9 = arith.constant 0 : index
    %c0_10 = arith.constant 0 : index
    %7 = vector.load %arg3[%c0_8, %c0_9, %c0_10] : memref<2x1x32xf32, #tpu.memory_space<vmem>>, vector<1x1x32xf32>
    %8 = vector.shape_cast %7 : vector<1x1x32xf32> to vector<1x32xf32>
    %9 = vector.broadcast %8 : vector<1x32xf32> to vector<16x32xf32>
    %10 = arith.addf %6, %9 : vector<16x32xf32>
    %c0_11 = arith.constant 0 : index
    %c0_12 = arith.constant 0 : index
    %c0_13 = arith.constant 0 : index
    %11 = vector.load %arg14[%c0_11, %c0_12, %c0_13] : memref<2x32x16xf32, #tpu.memory_space<vmem>>, vector<1x32x16xf32>
    %12 = vector.shape_cast %11 : vector<1x32x16xf32> to vector<32x16xf32>
    %cst_14 = arith.constant dense<0.000000e+00> : vector<32x32xf32>
    %13 = tpu.matmul %12, %10, %cst_14 {dimension_numbers = #tpu.dot_dimension_numbers<[1], [0], [0], [1], [0, 0, 1, 1], [], []>} : vector<32x16xf32>, vector<16x32xf32>, vector<32x32xf32> -> vector<32x32xf32>
    %c1 = arith.constant 1 : index
    %c0_15 = arith.constant 0 : index
    %c0_16 = arith.constant 0 : index
    %14 = vector.load %arg2[%c1, %c0_15, %c0_16] : memref<2x64x32xf32, #tpu.memory_space<vmem>>, vector<1x64x32xf32>
    %15 = vector.shape_cast %14 : vector<1x64x32xf32> to vector<64x32xf32>
    %cst_17 = arith.constant dense<0.000000e+00> : vector<16x32xf32>
    %16 = tpu.matmul %1, %15, %cst_17 {dimension_numbers = #tpu.dot_dimension_numbers<[1], [0], [0], [1], [0, 0, 1, 1], [], []>} : vector<16x64xf32>, vector<64x32xf32>, vector<16x32xf32> -> vector<16x32xf32>
    %c1_18 = arith.constant 1 : index
    %c0_19 = arith.constant 0 : index
    %c0_20 = arith.constant 0 : index
    %17 = vector.load %arg3[%c1_18, %c0_19, %c0_20] : memref<2x1x32xf32, #tpu.memory_space<vmem>>, vector<1x1x32xf32>
    %18 = vector.shape_cast %17 : vector<1x1x32xf32> to vector<1x32xf32>
    %19 = vector.broadcast %18 : vector<1x32xf32> to vector<16x32xf32>
    %20 = arith.addf %16, %19 : vector<16x32xf32>
    %c1_21 = arith.constant 1 : index
    %c0_22 = arith.constant 0 : index
    %c0_23 = arith.constant 0 : index
    %21 = vector.load %arg14[%c1_21, %c0_22, %c0_23] : memref<2x32x16xf32, #tpu.memory_space<vmem>>, vector<1x32x16xf32>
    %22 = vector.shape_cast %21 : vector<1x32x16xf32> to vector<32x16xf32>
    %cst_24 = arith.constant dense<0.000000e+00> : vector<32x32xf32>
    %23 = tpu.matmul %22, %20, %cst_24 {dimension_numbers = #tpu.dot_dimension_numbers<[1], [0], [0], [1], [0, 0, 1, 1], [], []>} : vector<32x16xf32>, vector<16x32xf32>, vector<32x32xf32> -> vector<32x32xf32>
    %24 = arith.addf %13, %23 : vector<32x32xf32>
    %c0_25 = arith.constant 0 : index
    %c0_26 = arith.constant 0 : index
    %c0_27 = arith.constant 0 : index
    %25 = vector.load %arg4[%c0_25, %c0_26, %c0_27] : memref<2x64x32xf32, #tpu.memory_space<vmem>>, vector<1x64x32xf32>
    %26 = vector.shape_cast %25 : vector<1x64x32xf32> to vector<64x32xf32>
    %cst_28 = arith.constant dense<0.000000e+00> : vector<16x32xf32>
    %27 = tpu.matmul %1, %26, %cst_28 {dimension_numbers = #tpu.dot_dimension_numbers<[1], [0], [0], [1], [0, 0, 1, 1], [], []>} : vector<16x64xf32>, vector<64x32xf32>, vector<16x32xf32> -> vector<16x32xf32>
    %c0_29 = arith.constant 0 : index
    %c0_30 = arith.constant 0 : index
    %c0_31 = arith.constant 0 : index
    %28 = vector.load %arg5[%c0_29, %c0_30, %c0_31] : memref<2x1x32xf32, #tpu.memory_space<vmem>>, vector<1x1x32xf32>
    %29 = vector.shape_cast %28 : vector<1x1x32xf32> to vector<1x32xf32>
    %30 = vector.broadcast %29 : vector<1x32xf32> to vector<16x32xf32>
    %31 = arith.addf %27, %30 : vector<16x32xf32>
    %c0_32 = arith.constant 0 : index
    %c0_33 = arith.constant 0 : index
    %c0_34 = arith.constant 0 : index
    %32 = vector.load %arg14[%c0_32, %c0_33, %c0_34] : memref<2x32x16xf32, #tpu.memory_space<vmem>>, vector<1x32x16xf32>
    %33 = vector.shape_cast %32 : vector<1x32x16xf32> to vector<32x16xf32>
    %cst_35 = arith.constant dense<0.000000e+00> : vector<32x32xf32>
    %34 = tpu.matmul %33, %31, %cst_35 {dimension_numbers = #tpu.dot_dimension_numbers<[1], [0], [0], [1], [0, 0, 1, 1], [], []>} : vector<32x16xf32>, vector<16x32xf32>, vector<32x32xf32> -> vector<32x32xf32>
    %c1_36 = arith.constant 1 : index
    %c0_37 = arith.constant 0 : index
    %c0_38 = arith.constant 0 : index
    %35 = vector.load %arg4[%c1_36, %c0_37, %c0_38] : memref<2x64x32xf32, #tpu.memory_space<vmem>>, vector<1x64x32xf32>
    %36 = vector.shape_cast %35 : vector<1x64x32xf32> to vector<64x32xf32>
    %cst_39 = arith.constant dense<0.000000e+00> : vector<16x32xf32>
    %37 = tpu.matmul %1, %36, %cst_39 {dimension_numbers = #tpu.dot_dimension_numbers<[1], [0], [0], [1], [0, 0, 1, 1], [], []>} : vector<16x64xf32>, vector<64x32xf32>, vector<16x32xf32> -> vector<16x32xf32>
    %c1_40 = arith.constant 1 : index
    %c0_41 = arith.constant 0 : index
    %c0_42 = arith.constant 0 : index
    %38 = vector.load %arg5[%c1_40, %c0_41, %c0_42] : memref<2x1x32xf32, #tpu.memory_space<vmem>>, vector<1x1x32xf32>
    %39 = vector.shape_cast %38 : vector<1x1x32xf32> to vector<1x32xf32>
    %40 = vector.broadcast %39 : vector<1x32xf32> to vector<16x32xf32>
    %41 = arith.addf %37, %40 : vector<16x32xf32>
    %c1_43 = arith.constant 1 : index
    %c0_44 = arith.constant 0 : index
    %c0_45 = arith.constant 0 : index
    %42 = vector.load %arg14[%c1_43, %c0_44, %c0_45] : memref<2x32x16xf32, #tpu.memory_space<vmem>>, vector<1x32x16xf32>
    %43 = vector.shape_cast %42 : vector<1x32x16xf32> to vector<32x16xf32>
    %cst_46 = arith.constant dense<0.000000e+00> : vector<32x32xf32>
    %44 = tpu.matmul %43, %41, %cst_46 {dimension_numbers = #tpu.dot_dimension_numbers<[1], [0], [0], [1], [0, 0, 1, 1], [], []>} : vector<32x16xf32>, vector<16x32xf32>, vector<32x32xf32> -> vector<32x32xf32>
    %45 = arith.addf %34, %44 : vector<32x32xf32>
    %c0_47 = arith.constant 0 : index
    %c0_48 = arith.constant 0 : index
    %c0_49 = arith.constant 0 : index
    %46 = vector.load %arg6[%c0_47, %c0_48, %c0_49] : memref<4x64x16xf32, #tpu.memory_space<vmem>>, vector<1x64x16xf32>
    %47 = vector.shape_cast %46 : vector<1x64x16xf32> to vector<64x16xf32>
    %cst_50 = arith.constant dense<0.000000e+00> : vector<8x16xf32>
    %48 = tpu.matmul %3, %47, %cst_50 {dimension_numbers = #tpu.dot_dimension_numbers<[1], [0], [0], [1], [0, 0, 1, 1], [], []>} : vector<8x64xf32>, vector<64x16xf32>, vector<8x16xf32> -> vector<8x16xf32>
    %c0_51 = arith.constant 0 : index
    %c0_52 = arith.constant 0 : index
    %c0_53 = arith.constant 0 : index
    %49 = vector.load %arg7[%c0_51, %c0_52, %c0_53] : memref<4x1x16xf32, #tpu.memory_space<vmem>>, vector<1x1x16xf32>
    %50 = vector.shape_cast %49 : vector<1x1x16xf32> to vector<1x16xf32>
    %51 = vector.broadcast %50 : vector<1x16xf32> to vector<8x16xf32>
    %52 = arith.addf %48, %51 : vector<8x16xf32>
    %c0_54 = arith.constant 0 : index
    %c0_55 = arith.constant 0 : index
    %c0_56 = arith.constant 0 : index
    %53 = vector.load %arg15[%c0_54, %c0_55, %c0_56] : memref<4x32x8xf32, #tpu.memory_space<vmem>>, vector<1x32x8xf32>
    %54 = vector.shape_cast %53 : vector<1x32x8xf32> to vector<32x8xf32>
    %cst_57 = arith.constant dense<0.000000e+00> : vector<32x16xf32>
    %55 = tpu.matmul %54, %52, %cst_57 {dimension_numbers = #tpu.dot_dimension_numbers<[1], [0], [0], [1], [0, 0, 1, 1], [], []>} : vector<32x8xf32>, vector<8x16xf32>, vector<32x16xf32> -> vector<32x16xf32>
    %c1_58 = arith.constant 1 : index
    %c0_59 = arith.constant 0 : index
    %c0_60 = arith.constant 0 : index
    %56 = vector.load %arg6[%c1_58, %c0_59, %c0_60] : memref<4x64x16xf32, #tpu.memory_space<vmem>>, vector<1x64x16xf32>
    %57 = vector.shape_cast %56 : vector<1x64x16xf32> to vector<64x16xf32>
    %cst_61 = arith.constant dense<0.000000e+00> : vector<8x16xf32>
    %58 = tpu.matmul %3, %57, %cst_61 {dimension_numbers = #tpu.dot_dimension_numbers<[1], [0], [0], [1], [0, 0, 1, 1], [], []>} : vector<8x64xf32>, vector<64x16xf32>, vector<8x16xf32> -> vector<8x16xf32>
    %c1_62 = arith.constant 1 : index
    %c0_63 = arith.constant 0 : index
    %c0_64 = arith.constant 0 : index
    %59 = vector.load %arg7[%c1_62, %c0_63, %c0_64] : memref<4x1x16xf32, #tpu.memory_space<vmem>>, vector<1x1x16xf32>
    %60 = vector.shape_cast %59 : vector<1x1x16xf32> to vector<1x16xf32>
    %61 = vector.broadcast %60 : vector<1x16xf32> to vector<8x16xf32>
    %62 = arith.addf %58, %61 : vector<8x16xf32>
    %c1_65 = arith.constant 1 : index
    %c0_66 = arith.constant 0 : index
    %c0_67 = arith.constant 0 : index
    %63 = vector.load %arg15[%c1_65, %c0_66, %c0_67] : memref<4x32x8xf32, #tpu.memory_space<vmem>>, vector<1x32x8xf32>
    %64 = vector.shape_cast %63 : vector<1x32x8xf32> to vector<32x8xf32>
    %cst_68 = arith.constant dense<0.000000e+00> : vector<32x16xf32>
    %65 = tpu.matmul %64, %62, %cst_68 {dimension_numbers = #tpu.dot_dimension_numbers<[1], [0], [0], [1], [0, 0, 1, 1], [], []>} : vector<32x8xf32>, vector<8x16xf32>, vector<32x16xf32> -> vector<32x16xf32>
    %66 = arith.addf %55, %65 : vector<32x16xf32>
    %c2 = arith.constant 2 : index
    %c0_69 = arith.constant 0 : index
    %c0_70 = arith.constant 0 : index
    %67 = vector.load %arg6[%c2, %c0_69, %c0_70] : memref<4x64x16xf32, #tpu.memory_space<vmem>>, vector<1x64x16xf32>
    %68 = vector.shape_cast %67 : vector<1x64x16xf32> to vector<64x16xf32>
    %cst_71 = arith.constant dense<0.000000e+00> : vector<8x16xf32>
    %69 = tpu.matmul %3, %68, %cst_71 {dimension_numbers = #tpu.dot_dimension_numbers<[1], [0], [0], [1], [0, 0, 1, 1], [], []>} : vector<8x64xf32>, vector<64x16xf32>, vector<8x16xf32> -> vector<8x16xf32>
    %c2_72 = arith.constant 2 : index
    %c0_73 = arith.constant 0 : index
    %c0_74 = arith.constant 0 : index
    %70 = vector.load %arg7[%c2_72, %c0_73, %c0_74] : memref<4x1x16xf32, #tpu.memory_space<vmem>>, vector<1x1x16xf32>
    %71 = vector.shape_cast %70 : vector<1x1x16xf32> to vector<1x16xf32>
    %72 = vector.broadcast %71 : vector<1x16xf32> to vector<8x16xf32>
    %73 = arith.addf %69, %72 : vector<8x16xf32>
    %c2_75 = arith.constant 2 : index
    %c0_76 = arith.constant 0 : index
    %c0_77 = arith.constant 0 : index
    %74 = vector.load %arg15[%c2_75, %c0_76, %c0_77] : memref<4x32x8xf32, #tpu.memory_space<vmem>>, vector<1x32x8xf32>
    %75 = vector.shape_cast %74 : vector<1x32x8xf32> to vector<32x8xf32>
    %cst_78 = arith.constant dense<0.000000e+00> : vector<32x16xf32>
    %76 = tpu.matmul %75, %73, %cst_78 {dimension_numbers = #tpu.dot_dimension_numbers<[1], [0], [0], [1], [0, 0, 1, 1], [], []>} : vector<32x8xf32>, vector<8x16xf32>, vector<32x16xf32> -> vector<32x16xf32>
    %77 = arith.addf %66, %76 : vector<32x16xf32>
    %c3 = arith.constant 3 : index
    %c0_79 = arith.constant 0 : index
    %c0_80 = arith.constant 0 : index
    %78 = vector.load %arg6[%c3, %c0_79, %c0_80] : memref<4x64x16xf32, #tpu.memory_space<vmem>>, vector<1x64x16xf32>
    %79 = vector.shape_cast %78 : vector<1x64x16xf32> to vector<64x16xf32>
    %cst_81 = arith.constant dense<0.000000e+00> : vector<8x16xf32>
    %80 = tpu.matmul %3, %79, %cst_81 {dimension_numbers = #tpu.dot_dimension_numbers<[1], [0], [0], [1], [0, 0, 1, 1], [], []>} : vector<8x64xf32>, vector<64x16xf32>, vector<8x16xf32> -> vector<8x16xf32>
    %c3_82 = arith.constant 3 : index
    %c0_83 = arith.constant 0 : index
    %c0_84 = arith.constant 0 : index
    %81 = vector.load %arg7[%c3_82, %c0_83, %c0_84] : memref<4x1x16xf32, #tpu.memory_space<vmem>>, vector<1x1x16xf32>
    %82 = vector.shape_cast %81 : vector<1x1x16xf32> to vector<1x16xf32>
    %83 = vector.broadcast %82 : vector<1x16xf32> to vector<8x16xf32>
    %84 = arith.addf %80, %83 : vector<8x16xf32>
    %c3_85 = arith.constant 3 : index
    %c0_86 = arith.constant 0 : index
    %c0_87 = arith.constant 0 : index
    %85 = vector.load %arg15[%c3_85, %c0_86, %c0_87] : memref<4x32x8xf32, #tpu.memory_space<vmem>>, vector<1x32x8xf32>
    %86 = vector.shape_cast %85 : vector<1x32x8xf32> to vector<32x8xf32>
    %cst_88 = arith.constant dense<0.000000e+00> : vector<32x16xf32>
    %87 = tpu.matmul %86, %84, %cst_88 {dimension_numbers = #tpu.dot_dimension_numbers<[1], [0], [0], [1], [0, 0, 1, 1], [], []>} : vector<32x8xf32>, vector<8x16xf32>, vector<32x16xf32> -> vector<32x16xf32>
    %88 = arith.addf %77, %87 : vector<32x16xf32>
    %c0_89 = arith.constant 0 : index
    %c0_90 = arith.constant 0 : index
    %c0_91 = arith.constant 0 : index
    %89 = vector.load %arg8[%c0_89, %c0_90, %c0_91] : memref<4x64x16xf32, #tpu.memory_space<vmem>>, vector<1x64x16xf32>
    %90 = vector.shape_cast %89 : vector<1x64x16xf32> to vector<64x16xf32>
    %cst_92 = arith.constant dense<0.000000e+00> : vector<8x16xf32>
    %91 = tpu.matmul %3, %90, %cst_92 {dimension_numbers = #tpu.dot_dimension_numbers<[1], [0], [0], [1], [0, 0, 1, 1], [], []>} : vector<8x64xf32>, vector<64x16xf32>, vector<8x16xf32> -> vector<8x16xf32>
    %c0_93 = arith.constant 0 : index
    %c0_94 = arith.constant 0 : index
    %c0_95 = arith.constant 0 : index
    %92 = vector.load %arg9[%c0_93, %c0_94, %c0_95] : memref<4x1x16xf32, #tpu.memory_space<vmem>>, vector<1x1x16xf32>
    %93 = vector.shape_cast %92 : vector<1x1x16xf32> to vector<1x16xf32>
    %94 = vector.broadcast %93 : vector<1x16xf32> to vector<8x16xf32>
    %95 = arith.addf %91, %94 : vector<8x16xf32>
    %c0_96 = arith.constant 0 : index
    %c0_97 = arith.constant 0 : index
    %c0_98 = arith.constant 0 : index
    %96 = vector.load %arg15[%c0_96, %c0_97, %c0_98] : memref<4x32x8xf32, #tpu.memory_space<vmem>>, vector<1x32x8xf32>
    %97 = vector.shape_cast %96 : vector<1x32x8xf32> to vector<32x8xf32>
    %cst_99 = arith.constant dense<0.000000e+00> : vector<32x16xf32>
    %98 = tpu.matmul %97, %95, %cst_99 {dimension_numbers = #tpu.dot_dimension_numbers<[1], [0], [0], [1], [0, 0, 1, 1], [], []>} : vector<32x8xf32>, vector<8x16xf32>, vector<32x16xf32> -> vector<32x16xf32>
    %c1_100 = arith.constant 1 : index
    %c0_101 = arith.constant 0 : index
    %c0_102 = arith.constant 0 : index
    %99 = vector.load %arg8[%c1_100, %c0_101, %c0_102] : memref<4x64x16xf32, #tpu.memory_space<vmem>>, vector<1x64x16xf32>
    %100 = vector.shape_cast %99 : vector<1x64x16xf32> to vector<64x16xf32>
    %cst_103 = arith.constant dense<0.000000e+00> : vector<8x16xf32>
    %101 = tpu.matmul %3, %100, %cst_103 {dimension_numbers = #tpu.dot_dimension_numbers<[1], [0], [0], [1], [0, 0, 1, 1], [], []>} : vector<8x64xf32>, vector<64x16xf32>, vector<8x16xf32> -> vector<8x16xf32>
    %c1_104 = arith.constant 1 : index
    %c0_105 = arith.constant 0 : index
    %c0_106 = arith.constant 0 : index
    %102 = vector.load %arg9[%c1_104, %c0_105, %c0_106] : memref<4x1x16xf32, #tpu.memory_space<vmem>>, vector<1x1x16xf32>
    %103 = vector.shape_cast %102 : vector<1x1x16xf32> to vector<1x16xf32>
    %104 = vector.broadcast %103 : vector<1x16xf32> to vector<8x16xf32>
    %105 = arith.addf %101, %104 : vector<8x16xf32>
    %c1_107 = arith.constant 1 : index
    %c0_108 = arith.constant 0 : index
    %c0_109 = arith.constant 0 : index
    %106 = vector.load %arg15[%c1_107, %c0_108, %c0_109] : memref<4x32x8xf32, #tpu.memory_space<vmem>>, vector<1x32x8xf32>
    %107 = vector.shape_cast %106 : vector<1x32x8xf32> to vector<32x8xf32>
    %cst_110 = arith.constant dense<0.000000e+00> : vector<32x16xf32>
    %108 = tpu.matmul %107, %105, %cst_110 {dimension_numbers = #tpu.dot_dimension_numbers<[1], [0], [0], [1], [0, 0, 1, 1], [], []>} : vector<32x8xf32>, vector<8x16xf32>, vector<32x16xf32> -> vector<32x16xf32>
    %109 = arith.addf %98, %108 : vector<32x16xf32>
    %c2_111 = arith.constant 2 : index
    %c0_112 = arith.constant 0 : index
    %c0_113 = arith.constant 0 : index
    %110 = vector.load %arg8[%c2_111, %c0_112, %c0_113] : memref<4x64x16xf32, #tpu.memory_space<vmem>>, vector<1x64x16xf32>
    %111 = vector.shape_cast %110 : vector<1x64x16xf32> to vector<64x16xf32>
    %cst_114 = arith.constant dense<0.000000e+00> : vector<8x16xf32>
    %112 = tpu.matmul %3, %111, %cst_114 {dimension_numbers = #tpu.dot_dimension_numbers<[1], [0], [0], [1], [0, 0, 1, 1], [], []>} : vector<8x64xf32>, vector<64x16xf32>, vector<8x16xf32> -> vector<8x16xf32>
    %c2_115 = arith.constant 2 : index
    %c0_116 = arith.constant 0 : index
    %c0_117 = arith.constant 0 : index
    %113 = vector.load %arg9[%c2_115, %c0_116, %c0_117] : memref<4x1x16xf32, #tpu.memory_space<vmem>>, vector<1x1x16xf32>
    %114 = vector.shape_cast %113 : vector<1x1x16xf32> to vector<1x16xf32>
    %115 = vector.broadcast %114 : vector<1x16xf32> to vector<8x16xf32>
    %116 = arith.addf %112, %115 : vector<8x16xf32>
    %c2_118 = arith.constant 2 : index
    %c0_119 = arith.constant 0 : index
    %c0_120 = arith.constant 0 : index
    %117 = vector.load %arg15[%c2_118, %c0_119, %c0_120] : memref<4x32x8xf32, #tpu.memory_space<vmem>>, vector<1x32x8xf32>
    %118 = vector.shape_cast %117 : vector<1x32x8xf32> to vector<32x8xf32>
    %cst_121 = arith.constant dense<0.000000e+00> : vector<32x16xf32>
    %119 = tpu.matmul %118, %116, %cst_121 {dimension_numbers = #tpu.dot_dimension_numbers<[1], [0], [0], [1], [0, 0, 1, 1], [], []>} : vector<32x8xf32>, vector<8x16xf32>, vector<32x16xf32> -> vector<32x16xf32>
    %120 = arith.addf %109, %119 : vector<32x16xf32>
    %c3_122 = arith.constant 3 : index
    %c0_123 = arith.constant 0 : index
    %c0_124 = arith.constant 0 : index
    %121 = vector.load %arg8[%c3_122, %c0_123, %c0_124] : memref<4x64x16xf32, #tpu.memory_space<vmem>>, vector<1x64x16xf32>
    %122 = vector.shape_cast %121 : vector<1x64x16xf32> to vector<64x16xf32>
    %cst_125 = arith.constant dense<0.000000e+00> : vector<8x16xf32>
    %123 = tpu.matmul %3, %122, %cst_125 {dimension_numbers = #tpu.dot_dimension_numbers<[1], [0], [0], [1], [0, 0, 1, 1], [], []>} : vector<8x64xf32>, vector<64x16xf32>, vector<8x16xf32> -> vector<8x16xf32>
    %c3_126 = arith.constant 3 : index
    %c0_127 = arith.constant 0 : index
    %c0_128 = arith.constant 0 : index
    %124 = vector.load %arg9[%c3_126, %c0_127, %c0_128] : memref<4x1x16xf32, #tpu.memory_space<vmem>>, vector<1x1x16xf32>
    %125 = vector.shape_cast %124 : vector<1x1x16xf32> to vector<1x16xf32>
    %126 = vector.broadcast %125 : vector<1x16xf32> to vector<8x16xf32>
    %127 = arith.addf %123, %126 : vector<8x16xf32>
    %c3_129 = arith.constant 3 : index
    %c0_130 = arith.constant 0 : index
    %c0_131 = arith.constant 0 : index
    %128 = vector.load %arg15[%c3_129, %c0_130, %c0_131] : memref<4x32x8xf32, #tpu.memory_space<vmem>>, vector<1x32x8xf32>
    %129 = vector.shape_cast %128 : vector<1x32x8xf32> to vector<32x8xf32>
    %cst_132 = arith.constant dense<0.000000e+00> : vector<32x16xf32>
    %130 = tpu.matmul %129, %127, %cst_132 {dimension_numbers = #tpu.dot_dimension_numbers<[1], [0], [0], [1], [0, 0, 1, 1], [], []>} : vector<32x8xf32>, vector<8x16xf32>, vector<32x16xf32> -> vector<32x16xf32>
    %131 = arith.addf %120, %130 : vector<32x16xf32>
    %cst_133 = arith.constant dense<0.000000e+00> : vector<32x32xf32>
    %132 = tpu.matmul %24, %45, %cst_133 {dimension_numbers = #tpu.dot_dimension_numbers<[1], [1], [0], [0], [0, 0, 1, 0], [], []>} : vector<32x32xf32>, vector<32x32xf32>, vector<32x32xf32> -> vector<32x32xf32>
    %cst_134 = arith.constant dense<0.000000e+00> : vector<32x16xf32>
    %133 = tpu.matmul %132, %131, %cst_134 {dimension_numbers = #tpu.dot_dimension_numbers<[1], [0], [0], [1], [0, 0, 1, 1], [], []>} : vector<32x32xf32>, vector<32x16xf32>, vector<32x16xf32> -> vector<32x16xf32>
    %cst_135 = arith.constant 3.125000e-02 : f32
    %134 = vector.broadcast %cst_135 : f32 to vector<32x16xf32>
    %135 = arith.mulf %133, %134 : vector<32x16xf32>
    %cst_136 = arith.constant dense<0.000000e+00> : vector<32x32xf32>
    %136 = tpu.matmul %88, %131, %cst_136 {dimension_numbers = #tpu.dot_dimension_numbers<[1], [1], [0], [0], [0, 0, 1, 0], [], []>} : vector<32x16xf32>, vector<32x16xf32>, vector<32x32xf32> -> vector<32x32xf32>
    %cst_137 = arith.constant dense<0.000000e+00> : vector<32x32xf32>
    %137 = tpu.matmul %136, %45, %cst_137 {dimension_numbers = #tpu.dot_dimension_numbers<[1], [0], [0], [1], [0, 0, 1, 1], [], []>} : vector<32x32xf32>, vector<32x32xf32>, vector<32x32xf32> -> vector<32x32xf32>
    %cst_138 = arith.constant 6.250000e-02 : f32
    %138 = vector.broadcast %cst_138 : f32 to vector<32x32xf32>
    %139 = arith.mulf %137, %138 : vector<32x32xf32>
    %c0_139 = arith.constant 0 : index
    %c0_140 = arith.constant 0 : index
    %140 = vector.load %arg11[%c0_139, %c0_140] : memref<1x64xf32, #tpu.memory_space<vmem>>, vector<1x64xf32>
    %141 = vector.broadcast %140 : vector<1x64xf32> to vector<8x64xf32>
    %142 = arith.addf %3, %141 : vector<8x64xf32>
    %c0_141 = arith.constant 0 : index
    %c0_142 = arith.constant 0 : index
    %c0_143 = arith.constant 0 : index
    %143 = vector.load %arg17[%c0_141, %c0_142, %c0_143] : memref<4x8x32xf32, #tpu.memory_space<vmem>>, vector<1x8x32xf32>
    %144 = vector.shape_cast %143 : vector<1x8x32xf32> to vector<8x32xf32>
    %cst_144 = arith.constant dense<0.000000e+00> : vector<8x16xf32>
    %145 = tpu.matmul %144, %135, %cst_144 {dimension_numbers = #tpu.dot_dimension_numbers<[1], [0], [0], [1], [0, 0, 1, 1], [], []>} : vector<8x32xf32>, vector<32x16xf32>, vector<8x16xf32> -> vector<8x16xf32>
    %c0_145 = arith.constant 0 : index
    %c0_146 = arith.constant 0 : index
    %c0_147 = arith.constant 0 : index
    %146 = vector.load %arg10[%c0_145, %c0_146, %c0_147] : memref<4x16x64xf32, #tpu.memory_space<vmem>>, vector<1x16x64xf32>
    %147 = vector.shape_cast %146 : vector<1x16x64xf32> to vector<16x64xf32>
    %cst_148 = arith.constant dense<0.000000e+00> : vector<8x64xf32>
    %148 = tpu.matmul %145, %147, %cst_148 {dimension_numbers = #tpu.dot_dimension_numbers<[1], [0], [0], [1], [0, 0, 1, 1], [], []>} : vector<8x16xf32>, vector<16x64xf32>, vector<8x64xf32> -> vector<8x64xf32>
    %149 = arith.addf %142, %148 : vector<8x64xf32>
    %c1_149 = arith.constant 1 : index
    %c0_150 = arith.constant 0 : index
    %c0_151 = arith.constant 0 : index
    %150 = vector.load %arg17[%c1_149, %c0_150, %c0_151] : memref<4x8x32xf32, #tpu.memory_space<vmem>>, vector<1x8x32xf32>
    %151 = vector.shape_cast %150 : vector<1x8x32xf32> to vector<8x32xf32>
    %cst_152 = arith.constant dense<0.000000e+00> : vector<8x16xf32>
    %152 = tpu.matmul %151, %135, %cst_152 {dimension_numbers = #tpu.dot_dimension_numbers<[1], [0], [0], [1], [0, 0, 1, 1], [], []>} : vector<8x32xf32>, vector<32x16xf32>, vector<8x16xf32> -> vector<8x16xf32>
    %c1_153 = arith.constant 1 : index
    %c0_154 = arith.constant 0 : index
    %c0_155 = arith.constant 0 : index
    %153 = vector.load %arg10[%c1_153, %c0_154, %c0_155] : memref<4x16x64xf32, #tpu.memory_space<vmem>>, vector<1x16x64xf32>
    %154 = vector.shape_cast %153 : vector<1x16x64xf32> to vector<16x64xf32>
    %cst_156 = arith.constant dense<0.000000e+00> : vector<8x64xf32>
    %155 = tpu.matmul %152, %154, %cst_156 {dimension_numbers = #tpu.dot_dimension_numbers<[1], [0], [0], [1], [0, 0, 1, 1], [], []>} : vector<8x16xf32>, vector<16x64xf32>, vector<8x64xf32> -> vector<8x64xf32>
    %156 = arith.addf %149, %155 : vector<8x64xf32>
    %c2_157 = arith.constant 2 : index
    %c0_158 = arith.constant 0 : index
    %c0_159 = arith.constant 0 : index
    %157 = vector.load %arg17[%c2_157, %c0_158, %c0_159] : memref<4x8x32xf32, #tpu.memory_space<vmem>>, vector<1x8x32xf32>
    %158 = vector.shape_cast %157 : vector<1x8x32xf32> to vector<8x32xf32>
    %cst_160 = arith.constant dense<0.000000e+00> : vector<8x16xf32>
    %159 = tpu.matmul %158, %135, %cst_160 {dimension_numbers = #tpu.dot_dimension_numbers<[1], [0], [0], [1], [0, 0, 1, 1], [], []>} : vector<8x32xf32>, vector<32x16xf32>, vector<8x16xf32> -> vector<8x16xf32>
    %c2_161 = arith.constant 2 : index
    %c0_162 = arith.constant 0 : index
    %c0_163 = arith.constant 0 : index
    %160 = vector.load %arg10[%c2_161, %c0_162, %c0_163] : memref<4x16x64xf32, #tpu.memory_space<vmem>>, vector<1x16x64xf32>
    %161 = vector.shape_cast %160 : vector<1x16x64xf32> to vector<16x64xf32>
    %cst_164 = arith.constant dense<0.000000e+00> : vector<8x64xf32>
    %162 = tpu.matmul %159, %161, %cst_164 {dimension_numbers = #tpu.dot_dimension_numbers<[1], [0], [0], [1], [0, 0, 1, 1], [], []>} : vector<8x16xf32>, vector<16x64xf32>, vector<8x64xf32> -> vector<8x64xf32>
    %163 = arith.addf %156, %162 : vector<8x64xf32>
    %c3_165 = arith.constant 3 : index
    %c0_166 = arith.constant 0 : index
    %c0_167 = arith.constant 0 : index
    %164 = vector.load %arg17[%c3_165, %c0_166, %c0_167] : memref<4x8x32xf32, #tpu.memory_space<vmem>>, vector<1x8x32xf32>
    %165 = vector.shape_cast %164 : vector<1x8x32xf32> to vector<8x32xf32>
    %cst_168 = arith.constant dense<0.000000e+00> : vector<8x16xf32>
    %166 = tpu.matmul %165, %135, %cst_168 {dimension_numbers = #tpu.dot_dimension_numbers<[1], [0], [0], [1], [0, 0, 1, 1], [], []>} : vector<8x32xf32>, vector<32x16xf32>, vector<8x16xf32> -> vector<8x16xf32>
    %c3_169 = arith.constant 3 : index
    %c0_170 = arith.constant 0 : index
    %c0_171 = arith.constant 0 : index
    %167 = vector.load %arg10[%c3_169, %c0_170, %c0_171] : memref<4x16x64xf32, #tpu.memory_space<vmem>>, vector<1x16x64xf32>
    %168 = vector.shape_cast %167 : vector<1x16x64xf32> to vector<16x64xf32>
    %cst_172 = arith.constant dense<0.000000e+00> : vector<8x64xf32>
    %169 = tpu.matmul %166, %168, %cst_172 {dimension_numbers = #tpu.dot_dimension_numbers<[1], [0], [0], [1], [0, 0, 1, 1], [], []>} : vector<8x16xf32>, vector<16x64xf32>, vector<8x64xf32> -> vector<8x64xf32>
    %170 = arith.addf %163, %169 : vector<8x64xf32>
    %c0_173 = arith.constant 0 : index
    %c0_174 = arith.constant 0 : index
    %171 = vector.load %arg13[%c0_173, %c0_174] : memref<1x64xf32, #tpu.memory_space<vmem>>, vector<1x64xf32>
    %172 = vector.broadcast %171 : vector<1x64xf32> to vector<16x64xf32>
    %173 = arith.addf %1, %172 : vector<16x64xf32>
    %c0_175 = arith.constant 0 : index
    %c0_176 = arith.constant 0 : index
    %c0_177 = arith.constant 0 : index
    %174 = vector.load %arg16[%c0_175, %c0_176, %c0_177] : memref<2x16x32xf32, #tpu.memory_space<vmem>>, vector<1x16x32xf32>
    %175 = vector.shape_cast %174 : vector<1x16x32xf32> to vector<16x32xf32>
    %cst_178 = arith.constant dense<0.000000e+00> : vector<16x32xf32>
    %176 = tpu.matmul %175, %139, %cst_178 {dimension_numbers = #tpu.dot_dimension_numbers<[1], [0], [0], [1], [0, 0, 1, 1], [], []>} : vector<16x32xf32>, vector<32x32xf32>, vector<16x32xf32> -> vector<16x32xf32>
    %c0_179 = arith.constant 0 : index
    %c0_180 = arith.constant 0 : index
    %c0_181 = arith.constant 0 : index
    %177 = vector.load %arg12[%c0_179, %c0_180, %c0_181] : memref<2x32x64xf32, #tpu.memory_space<vmem>>, vector<1x32x64xf32>
    %178 = vector.shape_cast %177 : vector<1x32x64xf32> to vector<32x64xf32>
    %cst_182 = arith.constant dense<0.000000e+00> : vector<16x64xf32>
    %179 = tpu.matmul %176, %178, %cst_182 {dimension_numbers = #tpu.dot_dimension_numbers<[1], [0], [0], [1], [0, 0, 1, 1], [], []>} : vector<16x32xf32>, vector<32x64xf32>, vector<16x64xf32> -> vector<16x64xf32>
    %180 = arith.addf %173, %179 : vector<16x64xf32>
    %c1_183 = arith.constant 1 : index
    %c0_184 = arith.constant 0 : index
    %c0_185 = arith.constant 0 : index
    %181 = vector.load %arg16[%c1_183, %c0_184, %c0_185] : memref<2x16x32xf32, #tpu.memory_space<vmem>>, vector<1x16x32xf32>
    %182 = vector.shape_cast %181 : vector<1x16x32xf32> to vector<16x32xf32>
    %cst_186 = arith.constant dense<0.000000e+00> : vector<16x32xf32>
    %183 = tpu.matmul %182, %139, %cst_186 {dimension_numbers = #tpu.dot_dimension_numbers<[1], [0], [0], [1], [0, 0, 1, 1], [], []>} : vector<16x32xf32>, vector<32x32xf32>, vector<16x32xf32> -> vector<16x32xf32>
    %c1_187 = arith.constant 1 : index
    %c0_188 = arith.constant 0 : index
    %c0_189 = arith.constant 0 : index
    %184 = vector.load %arg12[%c1_187, %c0_188, %c0_189] : memref<2x32x64xf32, #tpu.memory_space<vmem>>, vector<1x32x64xf32>
    %185 = vector.shape_cast %184 : vector<1x32x64xf32> to vector<32x64xf32>
    %cst_190 = arith.constant dense<0.000000e+00> : vector<16x64xf32>
    %186 = tpu.matmul %183, %185, %cst_190 {dimension_numbers = #tpu.dot_dimension_numbers<[1], [0], [0], [1], [0, 0, 1, 1], [], []>} : vector<16x32xf32>, vector<32x64xf32>, vector<16x64xf32> -> vector<16x64xf32>
    %187 = arith.addf %180, %186 : vector<16x64xf32>
    %c0_191 = arith.constant 0 : index
    %c0_192 = arith.constant 0 : index
    %c0_193 = arith.constant 0 : index
    %188 = vector.load %arg19[%c0_191, %c0_192, %c0_193] : memref<2x8x64xf32, #tpu.memory_space<vmem>>, vector<1x8x64xf32>
    %189 = vector.shape_cast %188 : vector<1x8x64xf32> to vector<8x64xf32>
    %190 = vector.shape_cast %170 : vector<8x64xf32> to vector<1x8x64xf32>
    tpu.vector_store %arg19[%c0_191, %c0_192, %c0_193], %190 {strides = array<i32>} : memref<2x8x64xf32, #tpu.memory_space<vmem>>, vector<1x8x64xf32>,
    %c0_194 = arith.constant 0 : index
    %c0_195 = arith.constant 0 : index
    %c0_196 = arith.constant 0 : index
    %191 = vector.load %arg18[%c0_194, %c0_195, %c0_196] : memref<2x16x64xf32, #tpu.memory_space<vmem>>, vector<1x16x64xf32>
    %192 = vector.shape_cast %191 : vector<1x16x64xf32> to vector<16x64xf32>
    %193 = vector.shape_cast %187 : vector<16x64xf32> to vector<1x16x64xf32>
    tpu.vector_store %arg18[%c0_194, %c0_195, %c0_196], %193 {strides = array<i32>} : memref<2x16x64xf32, #tpu.memory_space<vmem>>, vector<1x16x64xf32>,
    %c1_197 = arith.constant 1 : index
    %c0_198 = arith.constant 0 : index
    %c0_199 = arith.constant 0 : index
    %194 = vector.load %arg0[%c1_197, %c0_198, %c0_199] : memref<2x16x64xf32, #tpu.memory_space<vmem>>, vector<1x16x64xf32>
    %195 = vector.shape_cast %194 : vector<1x16x64xf32> to vector<16x64xf32>
    %c1_200 = arith.constant 1 : index
    %c0_201 = arith.constant 0 : index
    %c0_202 = arith.constant 0 : index
    %196 = vector.load %arg1[%c1_200, %c0_201, %c0_202] : memref<2x8x64xf32, #tpu.memory_space<vmem>>, vector<1x8x64xf32>
    %197 = vector.shape_cast %196 : vector<1x8x64xf32> to vector<8x64xf32>
    %c0_203 = arith.constant 0 : index
    %c0_204 = arith.constant 0 : index
    %c0_205 = arith.constant 0 : index
    %198 = vector.load %arg2[%c0_203, %c0_204, %c0_205] : memref<2x64x32xf32, #tpu.memory_space<vmem>>, vector<1x64x32xf32>
    %199 = vector.shape_cast %198 : vector<1x64x32xf32> to vector<64x32xf32>
    %cst_206 = arith.constant dense<0.000000e+00> : vector<16x32xf32>
    %200 = tpu.matmul %195, %199, %cst_206 {dimension_numbers = #tpu.dot_dimension_numbers<[1], [0], [0], [1], [0, 0, 1, 1], [], []>} : vector<16x64xf32>, vector<64x32xf32>, vector<16x32xf32> -> vector<16x32xf32>
    %c0_207 = arith.constant 0 : index
    %c0_208 = arith.constant 0 : index
    %c0_209 = arith.constant 0 : index
    %201 = vector.load %arg3[%c0_207, %c0_208, %c0_209] : memref<2x1x32xf32, #tpu.memory_space<vmem>>, vector<1x1x32xf32>
    %202 = vector.shape_cast %201 : vector<1x1x32xf32> to vector<1x32xf32>
    %203 = vector.broadcast %202 : vector<1x32xf32> to vector<16x32xf32>
    %204 = arith.addf %200, %203 : vector<16x32xf32>
    %c0_210 = arith.constant 0 : index
    %c0_211 = arith.constant 0 : index
    %c0_212 = arith.constant 0 : index
    %205 = vector.load %arg14[%c0_210, %c0_211, %c0_212] : memref<2x32x16xf32, #tpu.memory_space<vmem>>, vector<1x32x16xf32>
    %206 = vector.shape_cast %205 : vector<1x32x16xf32> to vector<32x16xf32>
    %cst_213 = arith.constant dense<0.000000e+00> : vector<32x32xf32>
    %207 = tpu.matmul %206, %204, %cst_213 {dimension_numbers = #tpu.dot_dimension_numbers<[1], [0], [0], [1], [0, 0, 1, 1], [], []>} : vector<32x16xf32>, vector<16x32xf32>, vector<32x32xf32> -> vector<32x32xf32>
    %c1_214 = arith.constant 1 : index
    %c0_215 = arith.constant 0 : index
    %c0_216 = arith.constant 0 : index
    %208 = vector.load %arg2[%c1_214, %c0_215, %c0_216] : memref<2x64x32xf32, #tpu.memory_space<vmem>>, vector<1x64x32xf32>
    %209 = vector.shape_cast %208 : vector<1x64x32xf32> to vector<64x32xf32>
    %cst_217 = arith.constant dense<0.000000e+00> : vector<16x32xf32>
    %210 = tpu.matmul %195, %209, %cst_217 {dimension_numbers = #tpu.dot_dimension_numbers<[1], [0], [0], [1], [0, 0, 1, 1], [], []>} : vector<16x64xf32>, vector<64x32xf32>, vector<16x32xf32> -> vector<16x32xf32>
    %c1_218 = arith.constant 1 : index
    %c0_219 = arith.constant 0 : index
    %c0_220 = arith.constant 0 : index
    %211 = vector.load %arg3[%c1_218, %c0_219, %c0_220] : memref<2x1x32xf32, #tpu.memory_space<vmem>>, vector<1x1x32xf32>
    %212 = vector.shape_cast %211 : vector<1x1x32xf32> to vector<1x32xf32>
    %213 = vector.broadcast %212 : vector<1x32xf32> to vector<16x32xf32>
    %214 = arith.addf %210, %213 : vector<16x32xf32>
    %c1_221 = arith.constant 1 : index
    %c0_222 = arith.constant 0 : index
    %c0_223 = arith.constant 0 : index
    %215 = vector.load %arg14[%c1_221, %c0_222, %c0_223] : memref<2x32x16xf32, #tpu.memory_space<vmem>>, vector<1x32x16xf32>
    %216 = vector.shape_cast %215 : vector<1x32x16xf32> to vector<32x16xf32>
    %cst_224 = arith.constant dense<0.000000e+00> : vector<32x32xf32>
    %217 = tpu.matmul %216, %214, %cst_224 {dimension_numbers = #tpu.dot_dimension_numbers<[1], [0], [0], [1], [0, 0, 1, 1], [], []>} : vector<32x16xf32>, vector<16x32xf32>, vector<32x32xf32> -> vector<32x32xf32>
    %218 = arith.addf %207, %217 : vector<32x32xf32>
    %c0_225 = arith.constant 0 : index
    %c0_226 = arith.constant 0 : index
    %c0_227 = arith.constant 0 : index
    %219 = vector.load %arg4[%c0_225, %c0_226, %c0_227] : memref<2x64x32xf32, #tpu.memory_space<vmem>>, vector<1x64x32xf32>
    %220 = vector.shape_cast %219 : vector<1x64x32xf32> to vector<64x32xf32>
    %cst_228 = arith.constant dense<0.000000e+00> : vector<16x32xf32>
    %221 = tpu.matmul %195, %220, %cst_228 {dimension_numbers = #tpu.dot_dimension_numbers<[1], [0], [0], [1], [0, 0, 1, 1], [], []>} : vector<16x64xf32>, vector<64x32xf32>, vector<16x32xf32> -> vector<16x32xf32>
    %c0_229 = arith.constant 0 : index
    %c0_230 = arith.constant 0 : index
    %c0_231 = arith.constant 0 : index
    %222 = vector.load %arg5[%c0_229, %c0_230, %c0_231] : memref<2x1x32xf32, #tpu.memory_space<vmem>>, vector<1x1x32xf32>
    %223 = vector.shape_cast %222 : vector<1x1x32xf32> to vector<1x32xf32>
    %224 = vector.broadcast %223 : vector<1x32xf32> to vector<16x32xf32>
    %225 = arith.addf %221, %224 : vector<16x32xf32>
    %c0_232 = arith.constant 0 : index
    %c0_233 = arith.constant 0 : index
    %c0_234 = arith.constant 0 : index
    %226 = vector.load %arg14[%c0_232, %c0_233, %c0_234] : memref<2x32x16xf32, #tpu.memory_space<vmem>>, vector<1x32x16xf32>
    %227 = vector.shape_cast %226 : vector<1x32x16xf32> to vector<32x16xf32>
    %cst_235 = arith.constant dense<0.000000e+00> : vector<32x32xf32>
    %228 = tpu.matmul %227, %225, %cst_235 {dimension_numbers = #tpu.dot_dimension_numbers<[1], [0], [0], [1], [0, 0, 1, 1], [], []>} : vector<32x16xf32>, vector<16x32xf32>, vector<32x32xf32> -> vector<32x32xf32>
    %c1_236 = arith.constant 1 : index
    %c0_237 = arith.constant 0 : index
    %c0_238 = arith.constant 0 : index
    %229 = vector.load %arg4[%c1_236, %c0_237, %c0_238] : memref<2x64x32xf32, #tpu.memory_space<vmem>>, vector<1x64x32xf32>
    %230 = vector.shape_cast %229 : vector<1x64x32xf32> to vector<64x32xf32>
    %cst_239 = arith.constant dense<0.000000e+00> : vector<16x32xf32>
    %231 = tpu.matmul %195, %230, %cst_239 {dimension_numbers = #tpu.dot_dimension_numbers<[1], [0], [0], [1], [0, 0, 1, 1], [], []>} : vector<16x64xf32>, vector<64x32xf32>, vector<16x32xf32> -> vector<16x32xf32>
    %c1_240 = arith.constant 1 : index
    %c0_241 = arith.constant 0 : index
    %c0_242 = arith.constant 0 : index
    %232 = vector.load %arg5[%c1_240, %c0_241, %c0_242] : memref<2x1x32xf32, #tpu.memory_space<vmem>>, vector<1x1x32xf32>
    %233 = vector.shape_cast %232 : vector<1x1x32xf32> to vector<1x32xf32>
    %234 = vector.broadcast %233 : vector<1x32xf32> to vector<16x32xf32>
    %235 = arith.addf %231, %234 : vector<16x32xf32>
    %c1_243 = arith.constant 1 : index
    %c0_244 = arith.constant 0 : index
    %c0_245 = arith.constant 0 : index
    %236 = vector.load %arg14[%c1_243, %c0_244, %c0_245] : memref<2x32x16xf32, #tpu.memory_space<vmem>>, vector<1x32x16xf32>
    %237 = vector.shape_cast %236 : vector<1x32x16xf32> to vector<32x16xf32>
    %cst_246 = arith.constant dense<0.000000e+00> : vector<32x32xf32>
    %238 = tpu.matmul %237, %235, %cst_246 {dimension_numbers = #tpu.dot_dimension_numbers<[1], [0], [0], [1], [0, 0, 1, 1], [], []>} : vector<32x16xf32>, vector<16x32xf32>, vector<32x32xf32> -> vector<32x32xf32>
    %239 = arith.addf %228, %238 : vector<32x32xf32>
    %c0_247 = arith.constant 0 : index
    %c0_248 = arith.constant 0 : index
    %c0_249 = arith.constant 0 : index
    %240 = vector.load %arg6[%c0_247, %c0_248, %c0_249] : memref<4x64x16xf32, #tpu.memory_space<vmem>>, vector<1x64x16xf32>
    %241 = vector.shape_cast %240 : vector<1x64x16xf32> to vector<64x16xf32>
    %cst_250 = arith.constant dense<0.000000e+00> : vector<8x16xf32>
    %242 = tpu.matmul %197, %241, %cst_250 {dimension_numbers = #tpu.dot_dimension_numbers<[1], [0], [0], [1], [0, 0, 1, 1], [], []>} : vector<8x64xf32>, vector<64x16xf32>, vector<8x16xf32> -> vector<8x16xf32>
    %c0_251 = arith.constant 0 : index
    %c0_252 = arith.constant 0 : index
    %c0_253 = arith.constant 0 : index
    %243 = vector.load %arg7[%c0_251, %c0_252, %c0_253] : memref<4x1x16xf32, #tpu.memory_space<vmem>>, vector<1x1x16xf32>
    %244 = vector.shape_cast %243 : vector<1x1x16xf32> to vector<1x16xf32>
    %245 = vector.broadcast %244 : vector<1x16xf32> to vector<8x16xf32>
    %246 = arith.addf %242, %245 : vector<8x16xf32>
    %c0_254 = arith.constant 0 : index
    %c0_255 = arith.constant 0 : index
    %c0_256 = arith.constant 0 : index
    %247 = vector.load %arg15[%c0_254, %c0_255, %c0_256] : memref<4x32x8xf32, #tpu.memory_space<vmem>>, vector<1x32x8xf32>
    %248 = vector.shape_cast %247 : vector<1x32x8xf32> to vector<32x8xf32>
    %cst_257 = arith.constant dense<0.000000e+00> : vector<32x16xf32>
    %249 = tpu.matmul %248, %246, %cst_257 {dimension_numbers = #tpu.dot_dimension_numbers<[1], [0], [0], [1], [0, 0, 1, 1], [], []>} : vector<32x8xf32>, vector<8x16xf32>, vector<32x16xf32> -> vector<32x16xf32>
    %c1_258 = arith.constant 1 : index
    %c0_259 = arith.constant 0 : index
    %c0_260 = arith.constant 0 : index
    %250 = vector.load %arg6[%c1_258, %c0_259, %c0_260] : memref<4x64x16xf32, #tpu.memory_space<vmem>>, vector<1x64x16xf32>
    %251 = vector.shape_cast %250 : vector<1x64x16xf32> to vector<64x16xf32>
    %cst_261 = arith.constant dense<0.000000e+00> : vector<8x16xf32>
    %252 = tpu.matmul %197, %251, %cst_261 {dimension_numbers = #tpu.dot_dimension_numbers<[1], [0], [0], [1], [0, 0, 1, 1], [], []>} : vector<8x64xf32>, vector<64x16xf32>, vector<8x16xf32> -> vector<8x16xf32>
    %c1_262 = arith.constant 1 : index
    %c0_263 = arith.constant 0 : index
    %c0_264 = arith.constant 0 : index
    %253 = vector.load %arg7[%c1_262, %c0_263, %c0_264] : memref<4x1x16xf32, #tpu.memory_space<vmem>>, vector<1x1x16xf32>
    %254 = vector.shape_cast %253 : vector<1x1x16xf32> to vector<1x16xf32>
    %255 = vector.broadcast %254 : vector<1x16xf32> to vector<8x16xf32>
    %256 = arith.addf %252, %255 : vector<8x16xf32>
    %c1_265 = arith.constant 1 : index
    %c0_266 = arith.constant 0 : index
    %c0_267 = arith.constant 0 : index
    %257 = vector.load %arg15[%c1_265, %c0_266, %c0_267] : memref<4x32x8xf32, #tpu.memory_space<vmem>>, vector<1x32x8xf32>
    %258 = vector.shape_cast %257 : vector<1x32x8xf32> to vector<32x8xf32>
    %cst_268 = arith.constant dense<0.000000e+00> : vector<32x16xf32>
    %259 = tpu.matmul %258, %256, %cst_268 {dimension_numbers = #tpu.dot_dimension_numbers<[1], [0], [0], [1], [0, 0, 1, 1], [], []>} : vector<32x8xf32>, vector<8x16xf32>, vector<32x16xf32> -> vector<32x16xf32>
    %260 = arith.addf %249, %259 : vector<32x16xf32>
    %c2_269 = arith.constant 2 : index
    %c0_270 = arith.constant 0 : index
    %c0_271 = arith.constant 0 : index
    %261 = vector.load %arg6[%c2_269, %c0_270, %c0_271] : memref<4x64x16xf32, #tpu.memory_space<vmem>>, vector<1x64x16xf32>
    %262 = vector.shape_cast %261 : vector<1x64x16xf32> to vector<64x16xf32>
    %cst_272 = arith.constant dense<0.000000e+00> : vector<8x16xf32>
    %263 = tpu.matmul %197, %262, %cst_272 {dimension_numbers = #tpu.dot_dimension_numbers<[1], [0], [0], [1], [0, 0, 1, 1], [], []>} : vector<8x64xf32>, vector<64x16xf32>, vector<8x16xf32> -> vector<8x16xf32>
    %c2_273 = arith.constant 2 : index
    %c0_274 = arith.constant 0 : index
    %c0_275 = arith.constant 0 : index
    %264 = vector.load %arg7[%c2_273, %c0_274, %c0_275] : memref<4x1x16xf32, #tpu.memory_space<vmem>>, vector<1x1x16xf32>
    %265 = vector.shape_cast %264 : vector<1x1x16xf32> to vector<1x16xf32>
    %266 = vector.broadcast %265 : vector<1x16xf32> to vector<8x16xf32>
    %267 = arith.addf %263, %266 : vector<8x16xf32>
    %c2_276 = arith.constant 2 : index
    %c0_277 = arith.constant 0 : index
    %c0_278 = arith.constant 0 : index
    %268 = vector.load %arg15[%c2_276, %c0_277, %c0_278] : memref<4x32x8xf32, #tpu.memory_space<vmem>>, vector<1x32x8xf32>
    %269 = vector.shape_cast %268 : vector<1x32x8xf32> to vector<32x8xf32>
    %cst_279 = arith.constant dense<0.000000e+00> : vector<32x16xf32>
    %270 = tpu.matmul %269, %267, %cst_279 {dimension_numbers = #tpu.dot_dimension_numbers<[1], [0], [0], [1], [0, 0, 1, 1], [], []>} : vector<32x8xf32>, vector<8x16xf32>, vector<32x16xf32> -> vector<32x16xf32>
    %271 = arith.addf %260, %270 : vector<32x16xf32>
    %c3_280 = arith.constant 3 : index
    %c0_281 = arith.constant 0 : index
    %c0_282 = arith.constant 0 : index
    %272 = vector.load %arg6[%c3_280, %c0_281, %c0_282] : memref<4x64x16xf32, #tpu.memory_space<vmem>>, vector<1x64x16xf32>
    %273 = vector.shape_cast %272 : vector<1x64x16xf32> to vector<64x16xf32>
    %cst_283 = arith.constant dense<0.000000e+00> : vector<8x16xf32>
    %274 = tpu.matmul %197, %273, %cst_283 {dimension_numbers = #tpu.dot_dimension_numbers<[1], [0], [0], [1], [0, 0, 1, 1], [], []>} : vector<8x64xf32>, vector<64x16xf32>, vector<8x16xf32> -> vector<8x16xf32>
    %c3_284 = arith.constant 3 : index
    %c0_285 = arith.constant 0 : index
    %c0_286 = arith.constant 0 : index
    %275 = vector.load %arg7[%c3_284, %c0_285, %c0_286] : memref<4x1x16xf32, #tpu.memory_space<vmem>>, vector<1x1x16xf32>
    %276 = vector.shape_cast %275 : vector<1x1x16xf32> to vector<1x16xf32>
    %277 = vector.broadcast %276 : vector<1x16xf32> to vector<8x16xf32>
    %278 = arith.addf %274, %277 : vector<8x16xf32>
    %c3_287 = arith.constant 3 : index
    %c0_288 = arith.constant 0 : index
    %c0_289 = arith.constant 0 : index
    %279 = vector.load %arg15[%c3_287, %c0_288, %c0_289] : memref<4x32x8xf32, #tpu.memory_space<vmem>>, vector<1x32x8xf32>
    %280 = vector.shape_cast %279 : vector<1x32x8xf32> to vector<32x8xf32>
    %cst_290 = arith.constant dense<0.000000e+00> : vector<32x16xf32>
    %281 = tpu.matmul %280, %278, %cst_290 {dimension_numbers = #tpu.dot_dimension_numbers<[1], [0], [0], [1], [0, 0, 1, 1], [], []>} : vector<32x8xf32>, vector<8x16xf32>, vector<32x16xf32> -> vector<32x16xf32>
    %282 = arith.addf %271, %281 : vector<32x16xf32>
    %c0_291 = arith.constant 0 : index
    %c0_292 = arith.constant 0 : index
    %c0_293 = arith.constant 0 : index
    %283 = vector.load %arg8[%c0_291, %c0_292, %c0_293] : memref<4x64x16xf32, #tpu.memory_space<vmem>>, vector<1x64x16xf32>
    %284 = vector.shape_cast %283 : vector<1x64x16xf32> to vector<64x16xf32>
    %cst_294 = arith.constant dense<0.000000e+00> : vector<8x16xf32>
    %285 = tpu.matmul %197, %284, %cst_294 {dimension_numbers = #tpu.dot_dimension_numbers<[1], [0], [0], [1], [0, 0, 1, 1], [], []>} : vector<8x64xf32>, vector<64x16xf32>, vector<8x16xf32> -> vector<8x16xf32>
    %c0_295 = arith.constant 0 : index
    %c0_296 = arith.constant 0 : index
    %c0_297 = arith.constant 0 : index
    %286 = vector.load %arg9[%c0_295, %c0_296, %c0_297] : memref<4x1x16xf32, #tpu.memory_space<vmem>>, vector<1x1x16xf32>
    %287 = vector.shape_cast %286 : vector<1x1x16xf32> to vector<1x16xf32>
    %288 = vector.broadcast %287 : vector<1x16xf32> to vector<8x16xf32>
    %289 = arith.addf %285, %288 : vector<8x16xf32>
    %c0_298 = arith.constant 0 : index
    %c0_299 = arith.constant 0 : index
    %c0_300 = arith.constant 0 : index
    %290 = vector.load %arg15[%c0_298, %c0_299, %c0_300] : memref<4x32x8xf32, #tpu.memory_space<vmem>>, vector<1x32x8xf32>
    %291 = vector.shape_cast %290 : vector<1x32x8xf32> to vector<32x8xf32>
    %cst_301 = arith.constant dense<0.000000e+00> : vector<32x16xf32>
    %292 = tpu.matmul %291, %289, %cst_301 {dimension_numbers = #tpu.dot_dimension_numbers<[1], [0], [0], [1], [0, 0, 1, 1], [], []>} : vector<32x8xf32>, vector<8x16xf32>, vector<32x16xf32> -> vector<32x16xf32>
    %c1_302 = arith.constant 1 : index
    %c0_303 = arith.constant 0 : index
    %c0_304 = arith.constant 0 : index
    %293 = vector.load %arg8[%c1_302, %c0_303, %c0_304] : memref<4x64x16xf32, #tpu.memory_space<vmem>>, vector<1x64x16xf32>
    %294 = vector.shape_cast %293 : vector<1x64x16xf32> to vector<64x16xf32>
    %cst_305 = arith.constant dense<0.000000e+00> : vector<8x16xf32>
    %295 = tpu.matmul %197, %294, %cst_305 {dimension_numbers = #tpu.dot_dimension_numbers<[1], [0], [0], [1], [0, 0, 1, 1], [], []>} : vector<8x64xf32>, vector<64x16xf32>, vector<8x16xf32> -> vector<8x16xf32>
    %c1_306 = arith.constant 1 : index
    %c0_307 = arith.constant 0 : index
    %c0_308 = arith.constant 0 : index
    %296 = vector.load %arg9[%c1_306, %c0_307, %c0_308] : memref<4x1x16xf32, #tpu.memory_space<vmem>>, vector<1x1x16xf32>
    %297 = vector.shape_cast %296 : vector<1x1x16xf32> to vector<1x16xf32>
    %298 = vector.broadcast %297 : vector<1x16xf32> to vector<8x16xf32>
    %299 = arith.addf %295, %298 : vector<8x16xf32>
    %c1_309 = arith.constant 1 : index
    %c0_310 = arith.constant 0 : index
    %c0_311 = arith.constant 0 : index
    %300 = vector.load %arg15[%c1_309, %c0_310, %c0_311] : memref<4x32x8xf32, #tpu.memory_space<vmem>>, vector<1x32x8xf32>
    %301 = vector.shape_cast %300 : vector<1x32x8xf32> to vector<32x8xf32>
    %cst_312 = arith.constant dense<0.000000e+00> : vector<32x16xf32>
    %302 = tpu.matmul %301, %299, %cst_312 {dimension_numbers = #tpu.dot_dimension_numbers<[1], [0], [0], [1], [0, 0, 1, 1], [], []>} : vector<32x8xf32>, vector<8x16xf32>, vector<32x16xf32> -> vector<32x16xf32>
    %303 = arith.addf %292, %302 : vector<32x16xf32>
    %c2_313 = arith.constant 2 : index
    %c0_314 = arith.constant 0 : index
    %c0_315 = arith.constant 0 : index
    %304 = vector.load %arg8[%c2_313, %c0_314, %c0_315] : memref<4x64x16xf32, #tpu.memory_space<vmem>>, vector<1x64x16xf32>
    %305 = vector.shape_cast %304 : vector<1x64x16xf32> to vector<64x16xf32>
    %cst_316 = arith.constant dense<0.000000e+00> : vector<8x16xf32>
    %306 = tpu.matmul %197, %305, %cst_316 {dimension_numbers = #tpu.dot_dimension_numbers<[1], [0], [0], [1], [0, 0, 1, 1], [], []>} : vector<8x64xf32>, vector<64x16xf32>, vector<8x16xf32> -> vector<8x16xf32>
    %c2_317 = arith.constant 2 : index
    %c0_318 = arith.constant 0 : index
    %c0_319 = arith.constant 0 : index
    %307 = vector.load %arg9[%c2_317, %c0_318, %c0_319] : memref<4x1x16xf32, #tpu.memory_space<vmem>>, vector<1x1x16xf32>
    %308 = vector.shape_cast %307 : vector<1x1x16xf32> to vector<1x16xf32>
    %309 = vector.broadcast %308 : vector<1x16xf32> to vector<8x16xf32>
    %310 = arith.addf %306, %309 : vector<8x16xf32>
    %c2_320 = arith.constant 2 : index
    %c0_321 = arith.constant 0 : index
    %c0_322 = arith.constant 0 : index
    %311 = vector.load %arg15[%c2_320, %c0_321, %c0_322] : memref<4x32x8xf32, #tpu.memory_space<vmem>>, vector<1x32x8xf32>
    %312 = vector.shape_cast %311 : vector<1x32x8xf32> to vector<32x8xf32>
    %cst_323 = arith.constant dense<0.000000e+00> : vector<32x16xf32>
    %313 = tpu.matmul %312, %310, %cst_323 {dimension_numbers = #tpu.dot_dimension_numbers<[1], [0], [0], [1], [0, 0, 1, 1], [], []>} : vector<32x8xf32>, vector<8x16xf32>, vector<32x16xf32> -> vector<32x16xf32>
    %314 = arith.addf %303, %313 : vector<32x16xf32>
    %c3_324 = arith.constant 3 : index
    %c0_325 = arith.constant 0 : index
    %c0_326 = arith.constant 0 : index
    %315 = vector.load %arg8[%c3_324, %c0_325, %c0_326] : memref<4x64x16xf32, #tpu.memory_space<vmem>>, vector<1x64x16xf32>
    %316 = vector.shape_cast %315 : vector<1x64x16xf32> to vector<64x16xf32>
    %cst_327 = arith.constant dense<0.000000e+00> : vector<8x16xf32>
    %317 = tpu.matmul %197, %316, %cst_327 {dimension_numbers = #tpu.dot_dimension_numbers<[1], [0], [0], [1], [0, 0, 1, 1], [], []>} : vector<8x64xf32>, vector<64x16xf32>, vector<8x16xf32> -> vector<8x16xf32>
    %c3_328 = arith.constant 3 : index
    %c0_329 = arith.constant 0 : index
    %c0_330 = arith.constant 0 : index
    %318 = vector.load %arg9[%c3_328, %c0_329, %c0_330] : memref<4x1x16xf32, #tpu.memory_space<vmem>>, vector<1x1x16xf32>
    %319 = vector.shape_cast %318 : vector<1x1x16xf32> to vector<1x16xf32>
    %320 = vector.broadcast %319 : vector<1x16xf32> to vector<8x16xf32>
    %321 = arith.addf %317, %320 : vector<8x16xf32>
    %c3_331 = arith.constant 3 : index
    %c0_332 = arith.constant 0 : index
    %c0_333 = arith.constant 0 : index
    %322 = vector.load %arg15[%c3_331, %c0_332, %c0_333] : memref<4x32x8xf32, #tpu.memory_space<vmem>>, vector<1x32x8xf32>
    %323 = vector.shape_cast %322 : vector<1x32x8xf32> to vector<32x8xf32>
    %cst_334 = arith.constant dense<0.000000e+00> : vector<32x16xf32>
    %324 = tpu.matmul %323, %321, %cst_334 {dimension_numbers = #tpu.dot_dimension_numbers<[1], [0], [0], [1], [0, 0, 1, 1], [], []>} : vector<32x8xf32>, vector<8x16xf32>, vector<32x16xf32> -> vector<32x16xf32>
    %325 = arith.addf %314, %324 : vector<32x16xf32>
    %cst_335 = arith.constant dense<0.000000e+00> : vector<32x32xf32>
    %326 = tpu.matmul %218, %239, %cst_335 {dimension_numbers = #tpu.dot_dimension_numbers<[1], [1], [0], [0], [0, 0, 1, 0], [], []>} : vector<32x32xf32>, vector<32x32xf32>, vector<32x32xf32> -> vector<32x32xf32>
    %cst_336 = arith.constant dense<0.000000e+00> : vector<32x16xf32>
    %327 = tpu.matmul %326, %325, %cst_336 {dimension_numbers = #tpu.dot_dimension_numbers<[1], [0], [0], [1], [0, 0, 1, 1], [], []>} : vector<32x32xf32>, vector<32x16xf32>, vector<32x16xf32> -> vector<32x16xf32>
    %cst_337 = arith.constant 3.125000e-02 : f32
    %328 = vector.broadcast %cst_337 : f32 to vector<32x16xf32>
    %329 = arith.mulf %327, %328 : vector<32x16xf32>
    %cst_338 = arith.constant dense<0.000000e+00> : vector<32x32xf32>
    %330 = tpu.matmul %282, %325, %cst_338 {dimension_numbers = #tpu.dot_dimension_numbers<[1], [1], [0], [0], [0, 0, 1, 0], [], []>} : vector<32x16xf32>, vector<32x16xf32>, vector<32x32xf32> -> vector<32x32xf32>
    %cst_339 = arith.constant dense<0.000000e+00> : vector<32x32xf32>
    %331 = tpu.matmul %330, %239, %cst_339 {dimension_numbers = #tpu.dot_dimension_numbers<[1], [0], [0], [1], [0, 0, 1, 1], [], []>} : vector<32x32xf32>, vector<32x32xf32>, vector<32x32xf32> -> vector<32x32xf32>
    %cst_340 = arith.constant 6.250000e-02 : f32
    %332 = vector.broadcast %cst_340 : f32 to vector<32x32xf32>
    %333 = arith.mulf %331, %332 : vector<32x32xf32>
    %c0_341 = arith.constant 0 : index
    %c0_342 = arith.constant 0 : index
    %334 = vector.load %arg11[%c0_341, %c0_342] : memref<1x64xf32, #tpu.memory_space<vmem>>, vector<1x64xf32>
    %335 = vector.broadcast %334 : vector<1x64xf32> to vector<8x64xf32>
    %336 = arith.addf %197, %335 : vector<8x64xf32>
    %c0_343 = arith.constant 0 : index
    %c0_344 = arith.constant 0 : index
    %c0_345 = arith.constant 0 : index
    %337 = vector.load %arg17[%c0_343, %c0_344, %c0_345] : memref<4x8x32xf32, #tpu.memory_space<vmem>>, vector<1x8x32xf32>
    %338 = vector.shape_cast %337 : vector<1x8x32xf32> to vector<8x32xf32>
    %cst_346 = arith.constant dense<0.000000e+00> : vector<8x16xf32>
    %339 = tpu.matmul %338, %329, %cst_346 {dimension_numbers = #tpu.dot_dimension_numbers<[1], [0], [0], [1], [0, 0, 1, 1], [], []>} : vector<8x32xf32>, vector<32x16xf32>, vector<8x16xf32> -> vector<8x16xf32>
    %c0_347 = arith.constant 0 : index
    %c0_348 = arith.constant 0 : index
    %c0_349 = arith.constant 0 : index
    %340 = vector.load %arg10[%c0_347, %c0_348, %c0_349] : memref<4x16x64xf32, #tpu.memory_space<vmem>>, vector<1x16x64xf32>
    %341 = vector.shape_cast %340 : vector<1x16x64xf32> to vector<16x64xf32>
    %cst_350 = arith.constant dense<0.000000e+00> : vector<8x64xf32>
    %342 = tpu.matmul %339, %341, %cst_350 {dimension_numbers = #tpu.dot_dimension_numbers<[1], [0], [0], [1], [0, 0, 1, 1], [], []>} : vector<8x16xf32>, vector<16x64xf32>, vector<8x64xf32> -> vector<8x64xf32>
    %343 = arith.addf %336, %342 : vector<8x64xf32>
    %c1_351 = arith.constant 1 : index
    %c0_352 = arith.constant 0 : index
    %c0_353 = arith.constant 0 : index
    %344 = vector.load %arg17[%c1_351, %c0_352, %c0_353] : memref<4x8x32xf32, #tpu.memory_space<vmem>>, vector<1x8x32xf32>
    %345 = vector.shape_cast %344 : vector<1x8x32xf32> to vector<8x32xf32>
    %cst_354 = arith.constant dense<0.000000e+00> : vector<8x16xf32>
    %346 = tpu.matmul %345, %329, %cst_354 {dimension_numbers = #tpu.dot_dimension_numbers<[1], [0], [0], [1], [0, 0, 1, 1], [], []>} : vector<8x32xf32>, vector<32x16xf32>, vector<8x16xf32> -> vector<8x16xf32>
    %c1_355 = arith.constant 1 : index
    %c0_356 = arith.constant 0 : index
    %c0_357 = arith.constant 0 : index
    %347 = vector.load %arg10[%c1_355, %c0_356, %c0_357] : memref<4x16x64xf32, #tpu.memory_space<vmem>>, vector<1x16x64xf32>
    %348 = vector.shape_cast %347 : vector<1x16x64xf32> to vector<16x64xf32>
    %cst_358 = arith.constant dense<0.000000e+00> : vector<8x64xf32>
    %349 = tpu.matmul %346, %348, %cst_358 {dimension_numbers = #tpu.dot_dimension_numbers<[1], [0], [0], [1], [0, 0, 1, 1], [], []>} : vector<8x16xf32>, vector<16x64xf32>, vector<8x64xf32> -> vector<8x64xf32>
    %350 = arith.addf %343, %349 : vector<8x64xf32>
    %c2_359 = arith.constant 2 : index
    %c0_360 = arith.constant 0 : index
    %c0_361 = arith.constant 0 : index
    %351 = vector.load %arg17[%c2_359, %c0_360, %c0_361] : memref<4x8x32xf32, #tpu.memory_space<vmem>>, vector<1x8x32xf32>
    %352 = vector.shape_cast %351 : vector<1x8x32xf32> to vector<8x32xf32>
    %cst_362 = arith.constant dense<0.000000e+00> : vector<8x16xf32>
    %353 = tpu.matmul %352, %329, %cst_362 {dimension_numbers = #tpu.dot_dimension_numbers<[1], [0], [0], [1], [0, 0, 1, 1], [], []>} : vector<8x32xf32>, vector<32x16xf32>, vector<8x16xf32> -> vector<8x16xf32>
    %c2_363 = arith.constant 2 : index
    %c0_364 = arith.constant 0 : index
    %c0_365 = arith.constant 0 : index
    %354 = vector.load %arg10[%c2_363, %c0_364, %c0_365] : memref<4x16x64xf32, #tpu.memory_space<vmem>>, vector<1x16x64xf32>
    %355 = vector.shape_cast %354 : vector<1x16x64xf32> to vector<16x64xf32>
    %cst_366 = arith.constant dense<0.000000e+00> : vector<8x64xf32>
    %356 = tpu.matmul %353, %355, %cst_366 {dimension_numbers = #tpu.dot_dimension_numbers<[1], [0], [0], [1], [0, 0, 1, 1], [], []>} : vector<8x16xf32>, vector<16x64xf32>, vector<8x64xf32> -> vector<8x64xf32>
    %357 = arith.addf %350, %356 : vector<8x64xf32>
    %c3_367 = arith.constant 3 : index
    %c0_368 = arith.constant 0 : index
    %c0_369 = arith.constant 0 : index
    %358 = vector.load %arg17[%c3_367, %c0_368, %c0_369] : memref<4x8x32xf32, #tpu.memory_space<vmem>>, vector<1x8x32xf32>
    %359 = vector.shape_cast %358 : vector<1x8x32xf32> to vector<8x32xf32>
    %cst_370 = arith.constant dense<0.000000e+00> : vector<8x16xf32>
    %360 = tpu.matmul %359, %329, %cst_370 {dimension_numbers = #tpu.dot_dimension_numbers<[1], [0], [0], [1], [0, 0, 1, 1], [], []>} : vector<8x32xf32>, vector<32x16xf32>, vector<8x16xf32> -> vector<8x16xf32>
    %c3_371 = arith.constant 3 : index
    %c0_372 = arith.constant 0 : index
    %c0_373 = arith.constant 0 : index
    %361 = vector.load %arg10[%c3_371, %c0_372, %c0_373] : memref<4x16x64xf32, #tpu.memory_space<vmem>>, vector<1x16x64xf32>
    %362 = vector.shape_cast %361 : vector<1x16x64xf32> to vector<16x64xf32>
    %cst_374 = arith.constant dense<0.000000e+00> : vector<8x64xf32>
    %363 = tpu.matmul %360, %362, %cst_374 {dimension_numbers = #tpu.dot_dimension_numbers<[1], [0], [0], [1], [0, 0, 1, 1], [], []>} : vector<8x16xf32>, vector<16x64xf32>, vector<8x64xf32> -> vector<8x64xf32>
    %364 = arith.addf %357, %363 : vector<8x64xf32>
    %c0_375 = arith.constant 0 : index
    %c0_376 = arith.constant 0 : index
    %365 = vector.load %arg13[%c0_375, %c0_376] : memref<1x64xf32, #tpu.memory_space<vmem>>, vector<1x64xf32>
    %366 = vector.broadcast %365 : vector<1x64xf32> to vector<16x64xf32>
    %367 = arith.addf %195, %366 : vector<16x64xf32>
    %c0_377 = arith.constant 0 : index
    %c0_378 = arith.constant 0 : index
    %c0_379 = arith.constant 0 : index
    %368 = vector.load %arg16[%c0_377, %c0_378, %c0_379] : memref<2x16x32xf32, #tpu.memory_space<vmem>>, vector<1x16x32xf32>
    %369 = vector.shape_cast %368 : vector<1x16x32xf32> to vector<16x32xf32>
    %cst_380 = arith.constant dense<0.000000e+00> : vector<16x32xf32>
    %370 = tpu.matmul %369, %333, %cst_380 {dimension_numbers = #tpu.dot_dimension_numbers<[1], [0], [0], [1], [0, 0, 1, 1], [], []>} : vector<16x32xf32>, vector<32x32xf32>, vector<16x32xf32> -> vector<16x32xf32>
    %c0_381 = arith.constant 0 : index
    %c0_382 = arith.constant 0 : index
    %c0_383 = arith.constant 0 : index
    %371 = vector.load %arg12[%c0_381, %c0_382, %c0_383] : memref<2x32x64xf32, #tpu.memory_space<vmem>>, vector<1x32x64xf32>
    %372 = vector.shape_cast %371 : vector<1x32x64xf32> to vector<32x64xf32>
    %cst_384 = arith.constant dense<0.000000e+00> : vector<16x64xf32>
    %373 = tpu.matmul %370, %372, %cst_384 {dimension_numbers = #tpu.dot_dimension_numbers<[1], [0], [0], [1], [0, 0, 1, 1], [], []>} : vector<16x32xf32>, vector<32x64xf32>, vector<16x64xf32> -> vector<16x64xf32>
    %374 = arith.addf %367, %373 : vector<16x64xf32>
    %c1_385 = arith.constant 1 : index
    %c0_386 = arith.constant 0 : index
    %c0_387 = arith.constant 0 : index
    %375 = vector.load %arg16[%c1_385, %c0_386, %c0_387] : memref<2x16x32xf32, #tpu.memory_space<vmem>>, vector<1x16x32xf32>
    %376 = vector.shape_cast %375 : vector<1x16x32xf32> to vector<16x32xf32>
    %cst_388 = arith.constant dense<0.000000e+00> : vector<16x32xf32>
    %377 = tpu.matmul %376, %333, %cst_388 {dimension_numbers = #tpu.dot_dimension_numbers<[1], [0], [0], [1], [0, 0, 1, 1], [], []>} : vector<16x32xf32>, vector<32x32xf32>, vector<16x32xf32> -> vector<16x32xf32>
    %c1_389 = arith.constant 1 : index
    %c0_390 = arith.constant 0 : index
    %c0_391 = arith.constant 0 : index
    %378 = vector.load %arg12[%c1_389, %c0_390, %c0_391] : memref<2x32x64xf32, #tpu.memory_space<vmem>>, vector<1x32x64xf32>
    %379 = vector.shape_cast %378 : vector<1x32x64xf32> to vector<32x64xf32>
    %cst_392 = arith.constant dense<0.000000e+00> : vector<16x64xf32>
    %380 = tpu.matmul %377, %379, %cst_392 {dimension_numbers = #tpu.dot_dimension_numbers<[1], [0], [0], [1], [0, 0, 1, 1], [], []>} : vector<16x32xf32>, vector<32x64xf32>, vector<16x64xf32> -> vector<16x64xf32>
    %381 = arith.addf %374, %380 : vector<16x64xf32>
    %c1_393 = arith.constant 1 : index
    %c0_394 = arith.constant 0 : index
    %c0_395 = arith.constant 0 : index
    %382 = vector.load %arg19[%c1_393, %c0_394, %c0_395] : memref<2x8x64xf32, #tpu.memory_space<vmem>>, vector<1x8x64xf32>
    %383 = vector.shape_cast %382 : vector<1x8x64xf32> to vector<8x64xf32>
    %384 = vector.shape_cast %364 : vector<8x64xf32> to vector<1x8x64xf32>
    tpu.vector_store %arg19[%c1_393, %c0_394, %c0_395], %384 {strides = array<i32>} : memref<2x8x64xf32, #tpu.memory_space<vmem>>, vector<1x8x64xf32>,
    %c1_396 = arith.constant 1 : index
    %c0_397 = arith.constant 0 : index
    %c0_398 = arith.constant 0 : index
    %385 = vector.load %arg18[%c1_396, %c0_397, %c0_398] : memref<2x16x64xf32, #tpu.memory_space<vmem>>, vector<1x16x64xf32>
    %386 = vector.shape_cast %385 : vector<1x16x64xf32> to vector<16x64xf32>
    %387 = vector.shape_cast %381 : vector<16x64xf32> to vector<1x16x64xf32>
    tpu.vector_store %arg18[%c1_396, %c0_397, %c0_398], %387 {strides = array<i32>} : memref<2x16x64xf32, #tpu.memory_space<vmem>>, vector<1x16x64xf32>,
    return
  }
}

</mosaic_0001>

<llo_original>
// kernel: cross_block_forward.1
$region0: #{cross_block_forward.1}
  #allocation0 [shape = 'u32[]', space=smem, size = 0x4, offset = 0x4, fixed_abs, tag = 'smem constant byte address 0x4 - core index']
  #allocation1 [shape = 'u32[144,128]{1,0:T(1,128)}', space=vmem, size = 0x12000, scoped, tag = 'internal scratch']
  %s0 = inlined_call_operand.vmem [shape: f32[2,16,64], index: 0, kind: input, shape index: {}]
  %s1 = inlined_call_operand.vmem [shape: f32[2,8,64], index: 1, kind: input, shape index: {}]
  %s2 = inlined_call_operand.vmem [shape: f32[2,64,32], index: 2, kind: input, shape index: {}]
  %s3 = inlined_call_operand.vmem [shape: f32[2,1,32], index: 3, kind: input, shape index: {}]
  %s4 = inlined_call_operand.vmem [shape: f32[2,64,32], index: 4, kind: input, shape index: {}]
  %s5 = inlined_call_operand.vmem [shape: f32[2,1,32], index: 5, kind: input, shape index: {}]
  %s6 = inlined_call_operand.vmem [shape: f32[4,64,16], index: 6, kind: input, shape index: {}]
  %s7 = inlined_call_operand.vmem [shape: f32[4,1,16], index: 7, kind: input, shape index: {}]
  %s8 = inlined_call_operand.vmem [shape: f32[4,64,16], index: 8, kind: input, shape index: {}]
  %s9 = inlined_call_operand.vmem [shape: f32[4,1,16], index: 9, kind: input, shape index: {}]
  %s10 = inlined_call_operand.vmem [shape: f32[4,16,64], index: 10, kind: input, shape index: {}]
  %s11 = inlined_call_operand.vmem [shape: f32[1,64], index: 11, kind: input, shape index: {}]
  %s12 = inlined_call_operand.vmem [shape: f32[2,32,64], index: 12, kind: input, shape index: {}]
  %s13 = inlined_call_operand.vmem [shape: f32[1,64], index: 13, kind: input, shape index: {}]
  %s14 = inlined_call_operand.vmem [shape: f32[2,32,16], index: 14, kind: input, shape index: {}]
  %s15 = inlined_call_operand.vmem [shape: f32[4,32,8], index: 15, kind: input, shape index: {}]
  %s16 = inlined_call_operand.vmem [shape: f32[2,16,32], index: 16, kind: input, shape index: {}]
  %s17 = inlined_call_operand.vmem [shape: f32[4,8,32], index: 17, kind: input, shape index: {}]
  %s18 = inlined_call_operand.hbm [shape: f32[2,16,64], index: 18, kind: output, shape index: {0}]
  %s19 = inlined_call_operand.hbm [shape: f32[2,8,64], index: 19, kind: output, shape index: {1}]
  %20 = xla_tuple %s18, %s19
  %s21 = sld [smem:[#allocation0]]
  $region90: #{cross_block_forward.1} parent=0
    _
  %s23 = ssub.s32 1, %s21
  %s24 = scalar_select 0, %s23, %s21
  $region1: #{cross_block_forward.1} parent=0
    #allocation2 [shape = 'u8[16384]{0}', space=vmem, size = 0x4000, scoped, tag = 'output window, operand 0, single buffered']
    #allocation3 [shape = 's32[1]{0}', space=sflag, size = 0x4, scoped, tag = 'scoped memory for cross_block_forward.1']
    #allocation4 [shape = 'u8[8192]{0}', space=vmem, size = 0x2000, scoped, tag = 'output window, operand 1, single buffered']
    #allocation5 [shape = 's32[1]{0}', space=sflag, size = 0x4, scoped, tag = 'scoped memory for cross_block_forward.1']
    %25 = vsyncpa [#allocation3], 0
    %26 = vsyncpa [#allocation5], 0
    // Predicated region
    $region2: #{cross_block_forward.1} parent=1 // pred_check
      _
    $region3: #{cross_block_forward.1} parent=1 // pred_check_branch
      %28 = sbr.rel (0) target = $region5
    $region4: #{cross_block_forward.1} parent=1 // pred_region
      _
    $region5: #{cross_block_forward.1} parent=1 // pred_fallthru
      _
    // Predicated region
    $region6: #{cross_block_forward.1} parent=1 // pred_check
      _
    $region7: #{cross_block_forward.1} parent=1 // pred_check_branch
      %30 = sbr.rel (0) target = $region9
    $region8: #{cross_block_forward.1} parent=1 // pred_region
      _
    $region9: #{cross_block_forward.1} parent=1 // pred_fallthru
      _
    // Predicated region
    $region10: #{cross_block_forward.1} parent=1 // pred_check
      _
    $region11: #{cross_block_forward.1} parent=1 // pred_check_branch
      %32 = sbr.rel (0) target = $region13
    $region12: #{cross_block_forward.1} parent=1 // pred_region
      _
    $region13: #{cross_block_forward.1} parent=1 // pred_fallthru
      _
    // Predicated region
    $region14: #{cross_block_forward.1} parent=1 // pred_check
      _
    $region15: #{cross_block_forward.1} parent=1 // pred_check_branch
      %34 = sbr.rel (0) target = $region17
    $region16: #{cross_block_forward.1} parent=1 // pred_region
      _
    $region17: #{cross_block_forward.1} parent=1 // pred_fallthru
      _
    // Predicated region
    $region18: #{cross_block_forward.1} parent=1 // pred_check
      _
    $region19: #{cross_block_forward.1} parent=1 // pred_check_branch
      %36 = sbr.rel (0) target = $region21
    $region20: #{cross_block_forward.1} parent=1 // pred_region
      _
    $region21: #{cross_block_forward.1} parent=1 // pred_fallthru
      _
    // Predicated region
    $region22: #{cross_block_forward.1} parent=1 // pred_check
      _
    $region23: #{cross_block_forward.1} parent=1 // pred_check_branch
      %38 = sbr.rel (0) target = $region25
    $region24: #{cross_block_forward.1} parent=1 // pred_region
      _
    $region25: #{cross_block_forward.1} parent=1 // pred_fallthru
      _
    // Predicated region
    $region26: #{cross_block_forward.1} parent=1 // pred_check
      _
    $region27: #{cross_block_forward.1} parent=1 // pred_check_branch
      %40 = sbr.rel (0) target = $region29
    $region28: #{cross_block_forward.1} parent=1 // pred_region
      _
    $region29: #{cross_block_forward.1} parent=1 // pred_fallthru
      _
    // Predicated region
    $region30: #{cross_block_forward.1} parent=1 // pred_check
      _
    $region31: #{cross_block_forward.1} parent=1 // pred_check_branch
      %42 = sbr.rel (0) target = $region33
    $region32: #{cross_block_forward.1} parent=1 // pred_region
      _
    $region33: #{cross_block_forward.1} parent=1 // pred_fallthru
      _
    // Predicated region
    $region34: #{cross_block_forward.1} parent=1 // pred_check
      _
    $region35: #{cross_block_forward.1} parent=1 // pred_check_branch
      %44 = sbr.rel (0) target = $region37
    $region36: #{cross_block_forward.1} parent=1 // pred_region
      _
    $region37: #{cross_block_forward.1} parent=1 // pred_fallthru
      _
    // Predicated region
    $region38: #{cross_block_forward.1} parent=1 // pred_check
      _
    $region39: #{cross_block_forward.1} parent=1 // pred_check_branch
      %46 = sbr.rel (0) target = $region41
    $region40: #{cross_block_forward.1} parent=1 // pred_region
      _
    $region41: #{cross_block_forward.1} parent=1 // pred_fallthru
      _
    // Predicated region
    $region42: #{cross_block_forward.1} parent=1 // pred_check
      _
    $region43: #{cross_block_forward.1} parent=1 // pred_check_branch
      %48 = sbr.rel (0) target = $region45
    $region44: #{cross_block_forward.1} parent=1 // pred_region
      _
    $region45: #{cross_block_forward.1} parent=1 // pred_fallthru
      _
    // Predicated region
    $region46: #{cross_block_forward.1} parent=1 // pred_check
      _
    $region47: #{cross_block_forward.1} parent=1 // pred_check_branch
      %50 = sbr.rel (0) target = $region49
    $region48: #{cross_block_forward.1} parent=1 // pred_region
      _
    $region49: #{cross_block_forward.1} parent=1 // pred_fallthru
      _
    // Predicated region
    $region50: #{cross_block_forward.1} parent=1 // pred_check
      _
    $region51: #{cross_block_forward.1} parent=1 // pred_check_branch
      %52 = sbr.rel (0) target = $region53
    $region52: #{cross_block_forward.1} parent=1 // pred_region
      _
    $region53: #{cross_block_forward.1} parent=1 // pred_fallthru
      _
    // Predicated region
    $region54: #{cross_block_forward.1} parent=1 // pred_check
      _
    $region55: #{cross_block_forward.1} parent=1 // pred_check_branch
      %54 = sbr.rel (0) target = $region57
    $region56: #{cross_block_forward.1} parent=1 // pred_region
      _
    $region57: #{cross_block_forward.1} parent=1 // pred_fallthru
      _
    // Predicated region
    $region58: #{cross_block_forward.1} parent=1 // pred_check
      _
    $region59: #{cross_block_forward.1} parent=1 // pred_check_branch
      %56 = sbr.rel (0) target = $region61
    $region60: #{cross_block_forward.1} parent=1 // pred_region
      _
    $region61: #{cross_block_forward.1} parent=1 // pred_fallthru
      _
    // Predicated region
    $region62: #{cross_block_forward.1} parent=1 // pred_check
      _
    $region63: #{cross_block_forward.1} parent=1 // pred_check_branch
      %58 = sbr.rel (0) target = $region65
    $region64: #{cross_block_forward.1} parent=1 // pred_region
      _
    $region65: #{cross_block_forward.1} parent=1 // pred_fallthru
      _
    // Predicated region
    $region66: #{cross_block_forward.1} parent=1 // pred_check
      _
    $region67: #{cross_block_forward.1} parent=1 // pred_check_branch
      %60 = sbr.rel (0) target = $region69
    $region68: #{cross_block_forward.1} parent=1 // pred_region
      _
    $region69: #{cross_block_forward.1} parent=1 // pred_fallthru
      _
    // Predicated region
    $region70: #{cross_block_forward.1} parent=1 // pred_check
      _
    $region71: #{cross_block_forward.1} parent=1 // pred_check_branch
      %62 = sbr.rel (0) target = $region73
    $region72: #{cross_block_forward.1} parent=1 // pred_region
      _
    $region73: #{cross_block_forward.1} parent=1 // pred_fallthru
      _
    %v63 = vld [vmem:[%s0] sm:$0xff]
    %v64 = vld [vmem:[%s0 + $0x8] sm:$0xff]
    %v65 = vld [vmem:[%s1] sm:$0xff]
    %v66 = vld [vmem:[%s2] sm:$0xff]
    %v67 = vld [vmem:[%s2 + $0x8] sm:$0xff]
    %v68 = vld [vmem:[%s2 + $0x10] sm:$0xff]
    %v69 = vld [vmem:[%s2 + $0x18] sm:$0xff]
    %v70 = vld [vmem:[%s2 + $0x20] sm:$0xff]
    %v71 = vld [vmem:[%s2 + $0x28] sm:$0xff]
    %v72 = vld [vmem:[%s2 + $0x30] sm:$0xff]
    %v73 = vld [vmem:[%s2 + $0x38] sm:$0xff]
    %v74 = vld [vmem:[%s3] sm:$0x1]
    %v76 = vlaneseq
    %v77 = vshrl.u32 %v76, 7
    %v78 = vsub.s32 0, %v77
    %v79 = vrot.slane %v74, %v78
    %vm81 = vcmask 523264
    %v83 = vsel %vm81, %v63, 0
    %v86 = vsel %vm81, %v64, 0
    %88 = vmatprep.subr.mxu0 0.0
    %89 = vmatpush1.msra.mxu0 0.0
    %90 = vmatprep.subr.mxu0 0.0
    %91 = vmatpush1.msra.mxu0 0.0
    %92 = vmatprep.subr.mxu0 0.0
    %93 = vmatpush1.msra.mxu0 0.0
    %94 = vmatprep.subr.mxu0 0.0
    %95 = vmatpush1.msra.mxu0 0.0
    %96 = vmatprep.subr.mxu0 0.0
    %97 = vmatpush1.msra.mxu0 0.0
    %98 = vmatprep.subr.mxu0 0.0
    %99 = vmatpush1.msra.mxu0 0.0
    %100 = vmatprep.subr.mxu0 0.0
    %101 = vmatpush1.msra.mxu0 0.0
    %102 = vmatprep.subr.mxu0 0.0
    %103 = vmatpush1.msra.mxu0 0.0
    %104 = vmatprep.subr.mxu0 0.0
    %105 = vmatpush1.msra.mxu0 %v73
    %106 = vmatprep.subr.mxu0 0.0
    %107 = vmatpush1.msra.mxu0 %v72
    %108 = vmatprep.subr.mxu0 0.0
    %109 = vmatpush1.msra.mxu0 %v71
    %110 = vmatprep.subr.mxu0 0.0
    %111 = vmatpush1.msra.mxu0 %v70
    %112 = vmatprep.subr.mxu0 0.0
    %113 = vmatpush1.msra.mxu0 %v69
    %114 = vmatprep.subr.mxu0 0.0
    %115 = vmatpush1.msra.mxu0 %v68
    %116 = vmatprep.subr.mxu0 0.0
    %117 = vmatpush1.msra.mxu0 %v67
    %118 = vmatprep.subr.mxu0 0.0
    %119 = vmatpush1.msra.mxu0 %v66
    %120 = vmatprep.subr.mxu0 0.0
    %121 = vmatpush2.msra.mxu0 0.0
    %122 = vmatprep.subr.mxu0 0.0
    %123 = vmatpush2.msra.mxu0 0.0
    %124 = vmatprep.subr.mxu0 0.0
    %125 = vmatpush2.msra.mxu0 0.0
    %126 = vmatprep.subr.mxu0 0.0
    %127 = vmatpush2.msra.mxu0 0.0
    %128 = vmatprep.subr.mxu0 0.0
    %129 = vmatpush2.msra.mxu0 0.0
    %130 = vmatprep.subr.mxu0 0.0
    %131 = vmatpush2.msra.mxu0 0.0
    %132 = vmatprep.subr.mxu0 0.0
    %133 = vmatpush2.msra.mxu0 0.0
    %134 = vmatprep.subr.mxu0 0.0
    %135 = vmatpush2.msra.mxu0 0.0
    %136 = vmatprep.subr.mxu0 0.0
    %137 = vmatpush2.msra.mxu0 0.0
    %138 = vmatprep.subr.mxu0 0.0
    %139 = vmatpush2.msra.mxu0 0.0
    %140 = vmatprep.subr.mxu0 0.0
    %141 = vmatpush2.msra.mxu0 0.0
    %142 = vmatprep.subr.mxu0 0.0
    %143 = vmatpush2.msra.mxu0 0.0
    %144 = vmatprep.subr.mxu0 0.0
    %145 = vmatpush2.msra.mxu0 0.0
    %146 = vmatprep.subr.mxu0 0.0
    %147 = vmatpush2.msra.mxu0 0.0
    %148 = vmatprep.subr.mxu0 0.0
    %149 = vmatpush2.msra.mxu0 0.0
    %150 = vmatprep.subr.mxu0 0.0
    %151 = vmatpush2.msra.mxu0 0.0
    %152 = vmatprep.mubr.f32.mxu0 0.0
    %153 = vmatmul.mubr.f32.gmra.mxu0 %v83
    %v154 = vpop.f32.mrf.mxu0
    %v155 = vadd.f32 %v79, %v154
    %v156 = vpop.f32.mrf.mxu0
    %157 = vmatprep.mubr.f32.mxu0 0.0
    %158 = vmatmul.mubr.f32.gmra.mxu0 %v86
    %v159 = vpop.f32.mrf.mxu0
    %v160 = vadd.f32 %v79, %v159
    %v161 = vpop.f32.mrf.mxu0
    %162 = vdwg.mxu0
    %v163 = vld [vmem:[%s14] sm:$0xff]
    %v164 = vld [vmem:[%s14 + $0x8] sm:$0xff]
    %v165 = vld [vmem:[%s14 + $0x10] sm:$0xff]
    %v166 = vld [vmem:[%s14 + $0x18] sm:$0xff]
    %s167 = scalar_lea.vmem %s2, 64
    %v168 = vld [vmem:[%s167] sm:$0xff]
    %v169 = vld [vmem:[%s167 + $0x8] sm:$0xff]
    %v170 = vld [vmem:[%s167 + $0x10] sm:$0xff]
    %v171 = vld [vmem:[%s167 + $0x18] sm:$0xff]
    %v172 = vld [vmem:[%s167 + $0x20] sm:$0xff]
    %v173 = vld [vmem:[%s167 + $0x28] sm:$0xff]
    %v174 = vld [vmem:[%s167 + $0x30] sm:$0xff]
    %v175 = vld [vmem:[%s167 + $0x38] sm:$0xff]
    %s176 = scalar_lea.vmem %s3, 1
    %v177 = vld [vmem:[%s176] sm:$0x1]
    %v179 = vlaneseq
    %v180 = vshrl.u32 %v179, 7
    %v181 = vsub.s32 0, %v180
    %v182 = vrot.slane %v177, %v181
    %184 = vmatprep.subr.mxu0 0.0
    %185 = vmatpush1.msra.mxu0 0.0
    %186 = vmatprep.subr.mxu0 0.0
    %187 = vmatpush1.msra.mxu0 0.0
    %188 = vmatprep.subr.mxu0 0.0
    %189 = vmatpush1.msra.mxu0 0.0
    %190 = vmatprep.subr.mxu0 0.0
    %191 = vmatpush1.msra.mxu0 0.0
    %192 = vmatprep.subr.mxu0 0.0
    %193 = vmatpush1.msra.mxu0 0.0
    %194 = vmatprep.subr.mxu0 0.0
    %195 = vmatpush1.msra.mxu0 0.0
    %196 = vmatprep.subr.mxu0 0.0
    %197 = vmatpush1.msra.mxu0 0.0
    %198 = vmatprep.subr.mxu0 0.0
    %199 = vmatpush1.msra.mxu0 0.0
    %200 = vmatprep.subr.mxu0 0.0
    %201 = vmatpush1.msra.mxu0 %v175
    %202 = vmatprep.subr.mxu0 0.0
    %203 = vmatpush1.msra.mxu0 %v174
    %204 = vmatprep.subr.mxu0 0.0
    %205 = vmatpush1.msra.mxu0 %v173
    %206 = vmatprep.subr.mxu0 0.0
    %207 = vmatpush1.msra.mxu0 %v172
    %208 = vmatprep.subr.mxu0 0.0
    %209 = vmatpush1.msra.mxu0 %v171
    %210 = vmatprep.subr.mxu0 0.0
    %211 = vmatpush1.msra.mxu0 %v170
    %212 = vmatprep.subr.mxu0 0.0
    %213 = vmatpush1.msra.mxu0 %v169
    %214 = vmatprep.subr.mxu0 0.0
    %215 = vmatpush1.msra.mxu0 %v168
    %216 = vmatprep.subr.mxu0 0.0
    %217 = vmatpush2.msra.mxu0 0.0
    %218 = vmatprep.subr.mxu0 0.0
    %219 = vmatpush2.msra.mxu0 0.0
    %220 = vmatprep.subr.mxu0 0.0
    %221 = vmatpush2.msra.mxu0 0.0
    %222 = vmatprep.subr.mxu0 0.0
    %223 = vmatpush2.msra.mxu0 0.0
    %224 = vmatprep.subr.mxu0 0.0
    %225 = vmatpush2.msra.mxu0 0.0
    %226 = vmatprep.subr.mxu0 0.0
    %227 = vmatpush2.msra.mxu0 0.0
    %228 = vmatprep.subr.mxu0 0.0
    %229 = vmatpush2.msra.mxu0 0.0
    %230 = vmatprep.subr.mxu0 0.0
    %231 = vmatpush2.msra.mxu0 0.0
    %232 = vmatprep.subr.mxu0 0.0
    %233 = vmatpush2.msra.mxu0 0.0
    %234 = vmatprep.subr.mxu0 0.0
    %235 = vmatpush2.msra.mxu0 0.0
    %236 = vmatprep.subr.mxu0 0.0
    %237 = vmatpush2.msra.mxu0 0.0
    %238 = vmatprep.subr.mxu0 0.0
    %239 = vmatpush2.msra.mxu0 0.0
    %240 = vmatprep.subr.mxu0 0.0
    %241 = vmatpush2.msra.mxu0 0.0
    %242 = vmatprep.subr.mxu0 0.0
    %243 = vmatpush2.msra.mxu0 0.0
    %244 = vmatprep.subr.mxu0 0.0
    %245 = vmatpush2.msra.mxu0 0.0
    %246 = vmatprep.subr.mxu0 0.0
    %247 = vmatpush2.msra.mxu0 0.0
    %248 = vmatprep.mubr.f32.mxu0 0.0
    %249 = vmatmul.mubr.f32.gmra.mxu0 %v83
    %v250 = vpop.f32.mrf.mxu0
    %v251 = vadd.f32 %v182, %v250
    %v252 = vpop.f32.mrf.mxu0
    %253 = vmatprep.mubr.f32.mxu0 0.0
    %254 = vmatmul.mubr.f32.gmra.mxu0 %v86
    %v255 = vpop.f32.mrf.mxu0
    %v256 = vadd.f32 %v182, %v255
    %v257 = vpop.f32.mrf.mxu0
    %258 = vdwg.mxu0
    %s259 = scalar_lea.vmem %s14, 32
    %v260 = vld [vmem:[%s259] sm:$0xff]
    %v261 = vld [vmem:[%s259 + $0x8] sm:$0xff]
    %v262 = vld [vmem:[%s259 + $0x10] sm:$0xff]
    %v263 = vld [vmem:[%s259 + $0x18] sm:$0xff]
    %vm264 = vcmask 130048
    %v266 = vsel %vm264, %v260, 0
    %v269 = vsel %vm264, %v261, 0
    %v272 = vsel %vm264, %v262, 0
    %v275 = vsel %vm264, %v263, 0
    %277 = vmatprep.subr.mxu0 0.0
    %278 = vmatpush1.msra.mxu0 0.0
    %279 = vmatprep.subr.mxu0 0.0
    %280 = vmatpush1.msra.mxu0 0.0
    %281 = vmatprep.subr.mxu0 0.0
    %282 = vmatpush1.msra.mxu0 0.0
    %283 = vmatprep.subr.mxu0 0.0
    %284 = vmatpush1.msra.mxu0 0.0
    %285 = vmatprep.subr.mxu0 0.0
    %286 = vmatpush1.msra.mxu0 0.0
    %287 = vmatprep.subr.mxu0 0.0
    %288 = vmatpush1.msra.mxu0 0.0
    %289 = vmatprep.subr.mxu0 0.0
    %290 = vmatpush1.msra.mxu0 0.0
    %291 = vmatprep.subr.mxu0 0.0
    %292 = vmatpush1.msra.mxu0 0.0
    %293 = vmatprep.subr.mxu0 0.0
    %294 = vmatpush1.msra.mxu0 0.0
    %295 = vmatprep.subr.mxu0 0.0
    %296 = vmatpush1.msra.mxu0 0.0
    %297 = vmatprep.subr.mxu0 0.0
    %298 = vmatpush1.msra.mxu0 0.0
    %299 = vmatprep.subr.mxu0 0.0
    %300 = vmatpush1.msra.mxu0 0.0
    %301 = vmatprep.subr.mxu0 0.0
    %302 = vmatpush1.msra.mxu0 0.0
    %303 = vmatprep.subr.mxu0 0.0
    %304 = vmatpush1.msra.mxu0 0.0
    %305 = vmatprep.subr.mxu0 0.0
    %306 = vmatpush1.msra.mxu0 %v256
    %307 = vmatprep.subr.mxu0 0.0
    %308 = vmatpush1.msra.mxu0 %v251
    %309 = vmatprep.subr.mxu0 0.0
    %310 = vmatpush2.msra.mxu0 0.0
    %311 = vmatprep.subr.mxu0 0.0
    %312 = vmatpush2.msra.mxu0 0.0
    %313 = vmatprep.subr.mxu0 0.0
    %314 = vmatpush2.msra.mxu0 0.0
    %315 = vmatprep.subr.mxu0 0.0
    %316 = vmatpush2.msra.mxu0 0.0
    %317 = vmatprep.subr.mxu0 0.0
    %318 = vmatpush2.msra.mxu0 0.0
    %319 = vmatprep.subr.mxu0 0.0
    %320 = vmatpush2.msra.mxu0 0.0
    %321 = vmatprep.subr.mxu0 0.0
    %322 = vmatpush2.msra.mxu0 0.0
    %323 = vmatprep.subr.mxu0 0.0
    %324 = vmatpush2.msra.mxu0 0.0
    %325 = vmatprep.subr.mxu0 0.0
    %326 = vmatpush2.msra.mxu0 0.0
    %327 = vmatprep.subr.mxu0 0.0
    %328 = vmatpush2.msra.mxu0 0.0
    %329 = vmatprep.subr.mxu0 0.0
    %330 = vmatpush2.msra.mxu0 0.0
    %331 = vmatprep.subr.mxu0 0.0
    %332 = vmatpush2.msra.mxu0 0.0
    %333 = vmatprep.subr.mxu0 0.0
    %334 = vmatpush2.msra.mxu0 0.0
    %335 = vmatprep.subr.mxu0 0.0
    %336 = vmatpush2.msra.mxu0 0.0
    %337 = vmatprep.subr.mxu0 0.0
    %338 = vmatpush2.msra.mxu0 0.0
    %339 = vmatprep.subr.mxu0 0.0
    %340 = vmatpush2.msra.mxu0 0.0
    %341 = vmatprep.mubr.f32.mxu0 0.0
    %342 = vmatmul.mubr.f32.gmra.mxu0 %v266
    %v343 = vpop.f32.mrf.mxu0
    %v344 = vadd.f32 0.0, %v343
    %v345 = vpop.f32.mrf.mxu0
    %346 = vmatprep.mubr.f32.mxu0 0.0
    %347 = vmatmul.mubr.f32.gmra.mxu0 %v269
    %v348 = vpop.f32.mrf.mxu0
    %v349 = vadd.f32 0.0, %v348
    %v350 = vpop.f32.mrf.mxu0
    %351 = vmatprep.mubr.f32.mxu0 0.0
    %352 = vmatmul.mubr.f32.gmra.mxu0 %v272
    %v353 = vpop.f32.mrf.mxu0
    %v354 = vadd.f32 0.0, %v353
    %v355 = vpop.f32.mrf.mxu0
    %356 = vmatprep.mubr.f32.mxu0 0.0
    %357 = vmatmul.mubr.f32.gmra.mxu0 %v275
    %v358 = vpop.f32.mrf.mxu0
    %v359 = vadd.f32 0.0, %v358
    %v360 = vpop.f32.mrf.mxu0
    %361 = vdwg.mxu0
    %v363 = vsel %vm264, %v163, 0
    %v366 = vsel %vm264, %v164, 0
    %v369 = vsel %vm264, %v165, 0
    %v372 = vsel %vm264, %v166, 0
    %374 = vmatprep.subr.mxu0 0.0
    %375 = vmatpush1.msra.mxu0 0.0
    %376 = vmatprep.subr.mxu0 0.0
    %377 = vmatpush1.msra.mxu0 0.0
    %378 = vmatprep.subr.mxu0 0.0
    %379 = vmatpush1.msra.mxu0 0.0
    %380 = vmatprep.subr.mxu0 0.0
    %381 = vmatpush1.msra.mxu0 0.0
    %382 = vmatprep.subr.mxu0 0.0
    %383 = vmatpush1.msra.mxu0 0.0
    %384 = vmatprep.subr.mxu0 0.0
    %385 = vmatpush1.msra.mxu0 0.0
    %386 = vmatprep.subr.mxu0 0.0
    %387 = vmatpush1.msra.mxu0 0.0
    %388 = vmatprep.subr.mxu0 0.0
    %389 = vmatpush1.msra.mxu0 0.0
    %390 = vmatprep.subr.mxu0 0.0
    %391 = vmatpush1.msra.mxu0 0.0
    %392 = vmatprep.subr.mxu0 0.0
    %393 = vmatpush1.msra.mxu0 0.0
    %394 = vmatprep.subr.mxu0 0.0
    %395 = vmatpush1.msra.mxu0 0.0
    %396 = vmatprep.subr.mxu0 0.0
    %397 = vmatpush1.msra.mxu0 0.0
    %398 = vmatprep.subr.mxu0 0.0
    %399 = vmatpush1.msra.mxu0 0.0
    %400 = vmatprep.subr.mxu0 0.0
    %401 = vmatpush1.msra.mxu0 0.0
    %402 = vmatprep.subr.mxu0 0.0
    %403 = vmatpush1.msra.mxu0 %v160
    %404 = vmatprep.subr.mxu0 0.0
    %405 = vmatpush1.msra.mxu0 %v155
    %406 = vmatprep.subr.mxu0 0.0
    %407 = vmatpush2.msra.mxu0 0.0
    %408 = vmatprep.subr.mxu0 0.0
    %409 = vmatpush2.msra.mxu0 0.0
    %410 = vmatprep.subr.mxu0 0.0
    %411 = vmatpush2.msra.mxu0 0.0
    %412 = vmatprep.subr.mxu0 0.0
    %413 = vmatpush2.msra.mxu0 0.0
    %414 = vmatprep.subr.mxu0 0.0
    %415 = vmatpush2.msra.mxu0 0.0
    %416 = vmatprep.subr.mxu0 0.0
    %417 = vmatpush2.msra.mxu0 0.0
    %418 = vmatprep.subr.mxu0 0.0
    %419 = vmatpush2.msra.mxu0 0.0
    %420 = vmatprep.subr.mxu0 0.0
    %421 = vmatpush2.msra.mxu0 0.0
    %422 = vmatprep.subr.mxu0 0.0
    %423 = vmatpush2.msra.mxu0 0.0
    %424 = vmatprep.subr.mxu0 0.0
    %425 = vmatpush2.msra.mxu0 0.0
    %426 = vmatprep.subr.mxu0 0.0
    %427 = vmatpush2.msra.mxu0 0.0
    %428 = vmatprep.subr.mxu0 0.0
    %429 = vmatpush2.msra.mxu0 0.0
    %430 = vmatprep.subr.mxu0 0.0
    %431 = vmatpush2.msra.mxu0 0.0
    %432 = vmatprep.subr.mxu0 0.0
    %433 = vmatpush2.msra.mxu0 0.0
    %434 = vmatprep.subr.mxu0 0.0
    %435 = vmatpush2.msra.mxu0 0.0
    %436 = vmatprep.subr.mxu0 0.0
    %437 = vmatpush2.msra.mxu0 0.0
    %438 = vmatprep.mubr.f32.mxu0 0.0
    %439 = vmatmul.mubr.f32.gmra.mxu0 %v363
    %v440 = vpop.f32.mrf.mxu0
    %v441 = vadd.f32 %v344, %v440
    %v442 = vpop.f32.mrf.mxu0
    %443 = vmatprep.mubr.f32.mxu0 0.0
    %444 = vmatmul.mubr.f32.gmra.mxu0 %v366
    %v445 = vpop.f32.mrf.mxu0
    %v446 = vadd.f32 %v349, %v445
    %v447 = vpop.f32.mrf.mxu0
    %448 = vmatprep.mubr.f32.mxu0 0.0
    %449 = vmatmul.mubr.f32.gmra.mxu0 %v369
    %v450 = vpop.f32.mrf.mxu0
    %v451 = vadd.f32 %v354, %v450
    %v452 = vpop.f32.mrf.mxu0
    %453 = vmatprep.mubr.f32.mxu0 0.0
    %454 = vmatmul.mubr.f32.gmra.mxu0 %v372
    %v455 = vpop.f32.mrf.mxu0
    %v456 = vadd.f32 %v359, %v455
    %v457 = vpop.f32.mrf.mxu0
    %458 = vdwg.mxu0
    %v459 = vld [vmem:[%s4] sm:$0xff]
    %v460 = vld [vmem:[%s4 + $0x8] sm:$0xff]
    %v461 = vld [vmem:[%s4 + $0x10] sm:$0xff]
    %v462 = vld [vmem:[%s4 + $0x18] sm:$0xff]
    %v463 = vld [vmem:[%s4 + $0x20] sm:$0xff]
    %v464 = vld [vmem:[%s4 + $0x28] sm:$0xff]
    %v465 = vld [vmem:[%s4 + $0x30] sm:$0xff]
    %v466 = vld [vmem:[%s4 + $0x38] sm:$0xff]
    %v467 = vld [vmem:[%s5] sm:$0x1]
    %v469 = vlaneseq
    %v470 = vshrl.u32 %v469, 7
    %v471 = vsub.s32 0, %v470
    %v472 = vrot.slane %v467, %v471
    %474 = vmatprep.subr.mxu0 0.0
    %475 = vmatpush1.msra.mxu0 0.0
    %476 = vmatprep.subr.mxu0 0.0
    %477 = vmatpush1.msra.mxu0 0.0
    %478 = vmatprep.subr.mxu0 0.0
    %479 = vmatpush1.msra.mxu0 0.0
    %480 = vmatprep.subr.mxu0 0.0
    %481 = vmatpush1.msra.mxu0 0.0
    %482 = vmatprep.subr.mxu0 0.0
    %483 = vmatpush1.msra.mxu0 0.0
    %484 = vmatprep.subr.mxu0 0.0
    %485 = vmatpush1.msra.mxu0 0.0
    %486 = vmatprep.subr.mxu0 0.0
    %487 = vmatpush1.msra.mxu0 0.0
    %488 = vmatprep.subr.mxu0 0.0
    %489 = vmatpush1.msra.mxu0 0.0
    %490 = vmatprep.subr.mxu0 0.0
    %491 = vmatpush1.msra.mxu0 %v466
    %492 = vmatprep.subr.mxu0 0.0
    %493 = vmatpush1.msra.mxu0 %v465
    %494 = vmatprep.subr.mxu0 0.0
    %495 = vmatpush1.msra.mxu0 %v464
    %496 = vmatprep.subr.mxu0 0.0
    %497 = vmatpush1.msra.mxu0 %v463
    %498 = vmatprep.subr.mxu0 0.0
    %499 = vmatpush1.msra.mxu0 %v462
    %500 = vmatprep.subr.mxu0 0.0
    %501 = vmatpush1.msra.mxu0 %v461
    %502 = vmatprep.subr.mxu0 0.0
    %503 = vmatpush1.msra.mxu0 %v460
    %504 = vmatprep.subr.mxu0 0.0
    %505 = vmatpush1.msra.mxu0 %v459
    %506 = vmatprep.subr.mxu0 0.0
    %507 = vmatpush2.msra.mxu0 0.0
    %508 = vmatprep.subr.mxu0 0.0
    %509 = vmatpush2.msra.mxu0 0.0
    %510 = vmatprep.subr.mxu0 0.0
    %511 = vmatpush2.msra.mxu0 0.0
    %512 = vmatprep.subr.mxu0 0.0
    %513 = vmatpush2.msra.mxu0 0.0
    %514 = vmatprep.subr.mxu0 0.0
    %515 = vmatpush2.msra.mxu0 0.0
    %516 = vmatprep.subr.mxu0 0.0
    %517 = vmatpush2.msra.mxu0 0.0
    %518 = vmatprep.subr.mxu0 0.0
    %519 = vmatpush2.msra.mxu0 0.0
    %520 = vmatprep.subr.mxu0 0.0
    %521 = vmatpush2.msra.mxu0 0.0
    %522 = vmatprep.subr.mxu0 0.0
    %523 = vmatpush2.msra.mxu0 0.0
    %524 = vmatprep.subr.mxu0 0.0
    %525 = vmatpush2.msra.mxu0 0.0
    %526 = vmatprep.subr.mxu0 0.0
    %527 = vmatpush2.msra.mxu0 0.0
    %528 = vmatprep.subr.mxu0 0.0
    %529 = vmatpush2.msra.mxu0 0.0
    %530 = vmatprep.subr.mxu0 0.0
    %531 = vmatpush2.msra.mxu0 0.0
    %532 = vmatprep.subr.mxu0 0.0
    %533 = vmatpush2.msra.mxu0 0.0
    %534 = vmatprep.subr.mxu0 0.0
    %535 = vmatpush2.msra.mxu0 0.0
    %536 = vmatprep.subr.mxu0 0.0
    %537 = vmatpush2.msra.mxu0 0.0
    %538 = vmatprep.mubr.f32.mxu0 0.0
    %539 = vmatmul.mubr.f32.gmra.mxu0 %v83
    %v540 = vpop.f32.mrf.mxu0
    %v541 = vadd.f32 %v472, %v540
    %v542 = vpop.f32.mrf.mxu0
    %543 = vmatprep.mubr.f32.mxu0 0.0
    %544 = vmatmul.mubr.f32.gmra.mxu0 %v86
    %v545 = vpop.f32.mrf.mxu0
    %v546 = vadd.f32 %v472, %v545
    %v547 = vpop.f32.mrf.mxu0
    %548 = vdwg.mxu0
    %s549 = scalar_lea.vmem %s4, 64
    %v550 = vld [vmem:[%s549] sm:$0xff]
    %v551 = vld [vmem:[%s549 + $0x8] sm:$0xff]
    %v552 = vld [vmem:[%s549 + $0x10] sm:$0xff]
    %v553 = vld [vmem:[%s549 + $0x18] sm:$0xff]
    %v554 = vld [vmem:[%s549 + $0x20] sm:$0xff]
    %v555 = vld [vmem:[%s549 + $0x28] sm:$0xff]
    %v556 = vld [vmem:[%s549 + $0x30] sm:$0xff]
    %v557 = vld [vmem:[%s549 + $0x38] sm:$0xff]
    %s558 = scalar_lea.vmem %s5, 1
    %v559 = vld [vmem:[%s558] sm:$0x1]
    %v561 = vlaneseq
    %v562 = vshrl.u32 %v561, 7
    %v563 = vsub.s32 0, %v562
    %v564 = vrot.slane %v559, %v563
    %566 = vmatprep.subr.mxu0 0.0
    %567 = vmatpush1.msra.mxu0 0.0
    %568 = vmatprep.subr.mxu0 0.0
    %569 = vmatpush1.msra.mxu0 0.0
    %570 = vmatprep.subr.mxu0 0.0
    %571 = vmatpush1.msra.mxu0 0.0
    %572 = vmatprep.subr.mxu0 0.0
    %573 = vmatpush1.msra.mxu0 0.0
    %574 = vmatprep.subr.mxu0 0.0
    %575 = vmatpush1.msra.mxu0 0.0
    %576 = vmatprep.subr.mxu0 0.0
    %577 = vmatpush1.msra.mxu0 0.0
    %578 = vmatprep.subr.mxu0 0.0
    %579 = vmatpush1.msra.mxu0 0.0
    %580 = vmatprep.subr.mxu0 0.0
    %581 = vmatpush1.msra.mxu0 0.0
    %582 = vmatprep.subr.mxu0 0.0
    %583 = vmatpush1.msra.mxu0 %v557
    %584 = vmatprep.subr.mxu0 0.0
    %585 = vmatpush1.msra.mxu0 %v556
    %586 = vmatprep.subr.mxu0 0.0
    %587 = vmatpush1.msra.mxu0 %v555
    %588 = vmatprep.subr.mxu0 0.0
    %589 = vmatpush1.msra.mxu0 %v554
    %590 = vmatprep.subr.mxu0 0.0
    %591 = vmatpush1.msra.mxu0 %v553
    %592 = vmatprep.subr.mxu0 0.0
    %593 = vmatpush1.msra.mxu0 %v552
    %594 = vmatprep.subr.mxu0 0.0
    %595 = vmatpush1.msra.mxu0 %v551
    %596 = vmatprep.subr.mxu0 0.0
    %597 = vmatpush1.msra.mxu0 %v550
    %598 = vmatprep.subr.mxu0 0.0
    %599 = vmatpush2.msra.mxu0 0.0
    %600 = vmatprep.subr.mxu0 0.0
    %601 = vmatpush2.msra.mxu0 0.0
    %602 = vmatprep.subr.mxu0 0.0
    %603 = vmatpush2.msra.mxu0 0.0
    %604 = vmatprep.subr.mxu0 0.0
    %605 = vmatpush2.msra.mxu0 0.0
    %606 = vmatprep.subr.mxu0 0.0
    %607 = vmatpush2.msra.mxu0 0.0
    %608 = vmatprep.subr.mxu0 0.0
    %609 = vmatpush2.msra.mxu0 0.0
    %610 = vmatprep.subr.mxu0 0.0
    %611 = vmatpush2.msra.mxu0 0.0
    %612 = vmatprep.subr.mxu0 0.0
    %613 = vmatpush2.msra.mxu0 0.0
    %614 = vmatprep.subr.mxu0 0.0
    %615 = vmatpush2.msra.mxu0 0.0
    %616 = vmatprep.subr.mxu0 0.0
    %617 = vmatpush2.msra.mxu0 0.0
    %618 = vmatprep.subr.mxu0 0.0
    %619 = vmatpush2.msra.mxu0 0.0
    %620 = vmatprep.subr.mxu0 0.0
    %621 = vmatpush2.msra.mxu0 0.0
    %622 = vmatprep.subr.mxu0 0.0
    %623 = vmatpush2.msra.mxu0 0.0
    %624 = vmatprep.subr.mxu0 0.0
    %625 = vmatpush2.msra.mxu0 0.0
    %626 = vmatprep.subr.mxu0 0.0
    %627 = vmatpush2.msra.mxu0 0.0
    %628 = vmatprep.subr.mxu0 0.0
    %629 = vmatpush2.msra.mxu0 0.0
    %630 = vmatprep.mubr.f32.mxu0 0.0
    %631 = vmatmul.mubr.f32.gmra.mxu0 %v83
    %v632 = vpop.f32.mrf.mxu0
    %v633 = vadd.f32 %v564, %v632
    %v634 = vpop.f32.mrf.mxu0
    %635 = vmatprep.mubr.f32.mxu0 0.0
    %636 = vmatmul.mubr.f32.gmra.mxu0 %v86
    %v637 = vpop.f32.mrf.mxu0
    %v638 = vadd.f32 %v564, %v637
    %v639 = vpop.f32.mrf.mxu0
    %640 = vdwg.mxu0
    %641 = vmatprep.subr.mxu0 0.0
    %642 = vmatpush1.msra.mxu0 0.0
    %643 = vmatprep.subr.mxu0 0.0
    %644 = vmatpush1.msra.mxu0 0.0
    %645 = vmatprep.subr.mxu0 0.0
    %646 = vmatpush1.msra.mxu0 0.0
    %647 = vmatprep.subr.mxu0 0.0
    %648 = vmatpush1.msra.mxu0 0.0
    %649 = vmatprep.subr.mxu0 0.0
    %650 = vmatpush1.msra.mxu0 0.0
    %651 = vmatprep.subr.mxu0 0.0
    %652 = vmatpush1.msra.mxu0 0.0
    %653 = vmatprep.subr.mxu0 0.0
    %654 = vmatpush1.msra.mxu0 0.0
    %655 = vmatprep.subr.mxu0 0.0
    %656 = vmatpush1.msra.mxu0 0.0
    %657 = vmatprep.subr.mxu0 0.0
    %658 = vmatpush1.msra.mxu0 0.0
    %659 = vmatprep.subr.mxu0 0.0
    %660 = vmatpush1.msra.mxu0 0.0
    %661 = vmatprep.subr.mxu0 0.0
    %662 = vmatpush1.msra.mxu0 0.0
    %663 = vmatprep.subr.mxu0 0.0
    %664 = vmatpush1.msra.mxu0 0.0
    %665 = vmatprep.subr.mxu0 0.0
    %666 = vmatpush1.msra.mxu0 0.0
    %667 = vmatprep.subr.mxu0 0.0
    %668 = vmatpush1.msra.mxu0 0.0
    %669 = vmatprep.subr.mxu0 0.0
    %670 = vmatpush1.msra.mxu0 %v638
    %671 = vmatprep.subr.mxu0 0.0
    %672 = vmatpush1.msra.mxu0 %v633
    %673 = vmatprep.subr.mxu0 0.0
    %674 = vmatpush2.msra.mxu0 0.0
    %675 = vmatprep.subr.mxu0 0.0
    %676 = vmatpush2.msra.mxu0 0.0
    %677 = vmatprep.subr.mxu0 0.0
    %678 = vmatpush2.msra.mxu0 0.0
    %679 = vmatprep.subr.mxu0 0.0
    %680 = vmatpush2.msra.mxu0 0.0
    %681 = vmatprep.subr.mxu0 0.0
    %682 = vmatpush2.msra.mxu0 0.0
    %683 = vmatprep.subr.mxu0 0.0
    %684 = vmatpush2.msra.mxu0 0.0
    %685 = vmatprep.subr.mxu0 0.0
    %686 = vmatpush2.msra.mxu0 0.0
    %687 = vmatprep.subr.mxu0 0.0
    %688 = vmatpush2.msra.mxu0 0.0
    %689 = vmatprep.subr.mxu0 0.0
    %690 = vmatpush2.msra.mxu0 0.0
    %691 = vmatprep.subr.mxu0 0.0
    %692 = vmatpush2.msra.mxu0 0.0
    %693 = vmatprep.subr.mxu0 0.0
    %694 = vmatpush2.msra.mxu0 0.0
    %695 = vmatprep.subr.mxu0 0.0
    %696 = vmatpush2.msra.mxu0 0.0
    %697 = vmatprep.subr.mxu0 0.0
    %698 = vmatpush2.msra.mxu0 0.0
    %699 = vmatprep.subr.mxu0 0.0
    %700 = vmatpush2.msra.mxu0 0.0
    %701 = vmatprep.subr.mxu0 0.0
    %702 = vmatpush2.msra.mxu0 0.0
    %703 = vmatprep.subr.mxu0 0.0
    %704 = vmatpush2.msra.mxu0 0.0
    %705 = vmatprep.mubr.f32.mxu0 0.0
    %706 = vmatmul.mubr.f32.gmra.mxu0 %v266
    %v707 = vpop.f32.mrf.mxu0
    %v708 = vadd.f32 0.0, %v707
    %v709 = vpop.f32.mrf.mxu0
    %710 = vmatprep.mubr.f32.mxu0 0.0
    %711 = vmatmul.mubr.f32.gmra.mxu0 %v269
    %v712 = vpop.f32.mrf.mxu0
    %v713 = vadd.f32 0.0, %v712
    %v714 = vpop.f32.mrf.mxu0
    %715 = vmatprep.mubr.f32.mxu0 0.0
    %716 = vmatmul.mubr.f32.gmra.mxu0 %v272
    %v717 = vpop.f32.mrf.mxu0
    %v718 = vadd.f32 0.0, %v717
    %v719 = vpop.f32.mrf.mxu0
    %720 = vmatprep.mubr.f32.mxu0 0.0
    %721 = vmatmul.mubr.f32.gmra.mxu0 %v275
    %v722 = vpop.f32.mrf.mxu0
    %v723 = vadd.f32 0.0, %v722
    %v724 = vpop.f32.mrf.mxu0
    %725 = vdwg.mxu0
    %726 = vmatprep.subr.mxu0 0.0
    %727 = vmatpush1.msra.mxu0 0.0
    %728 = vmatprep.subr.mxu0 0.0
    %729 = vmatpush1.msra.mxu0 0.0
    %730 = vmatprep.subr.mxu0 0.0
    %731 = vmatpush1.msra.mxu0 0.0
    %732 = vmatprep.subr.mxu0 0.0
    %733 = vmatpush1.msra.mxu0 0.0
    %734 = vmatprep.subr.mxu0 0.0
    %735 = vmatpush1.msra.mxu0 0.0
    %736 = vmatprep.subr.mxu0 0.0
    %737 = vmatpush1.msra.mxu0 0.0
    %738 = vmatprep.subr.mxu0 0.0
    %739 = vmatpush1.msra.mxu0 0.0
    %740 = vmatprep.subr.mxu0 0.0
    %741 = vmatpush1.msra.mxu0 0.0
    %742 = vmatprep.subr.mxu0 0.0
    %743 = vmatpush1.msra.mxu0 0.0
    %744 = vmatprep.subr.mxu0 0.0
    %745 = vmatpush1.msra.mxu0 0.0
    %746 = vmatprep.subr.mxu0 0.0
    %747 = vmatpush1.msra.mxu0 0.0
    %748 = vmatprep.subr.mxu0 0.0
    %749 = vmatpush1.msra.mxu0 0.0
    %750 = vmatprep.subr.mxu0 0.0
    %751 = vmatpush1.msra.mxu0 0.0
    %752 = vmatprep.subr.mxu0 0.0
    %753 = vmatpush1.msra.mxu0 0.0
    %754 = vmatprep.subr.mxu0 0.0
    %755 = vmatpush1.msra.mxu0 %v546
    %756 = vmatprep.subr.mxu0 0.0
    %757 = vmatpush1.msra.mxu0 %v541
    %758 = vmatprep.subr.mxu0 0.0
    %759 = vmatpush2.msra.mxu0 0.0
    %760 = vmatprep.subr.mxu0 0.0
    %761 = vmatpush2.msra.mxu0 0.0
    %762 = vmatprep.subr.mxu0 0.0
    %763 = vmatpush2.msra.mxu0 0.0
    %764 = vmatprep.subr.mxu0 0.0
    %765 = vmatpush2.msra.mxu0 0.0
    %766 = vmatprep.subr.mxu0 0.0
    %767 = vmatpush2.msra.mxu0 0.0
    %768 = vmatprep.subr.mxu0 0.0
    %769 = vmatpush2.msra.mxu0 0.0
    %770 = vmatprep.subr.mxu0 0.0
    %771 = vmatpush2.msra.mxu0 0.0
    %772 = vmatprep.subr.mxu0 0.0
    %773 = vmatpush2.msra.mxu0 0.0
    %774 = vmatprep.subr.mxu0 0.0
    %775 = vmatpush2.msra.mxu0 0.0
    %776 = vmatprep.subr.mxu0 0.0
    %777 = vmatpush2.msra.mxu0 0.0
    %778 = vmatprep.subr.mxu0 0.0
    %779 = vmatpush2.msra.mxu0 0.0
    %780 = vmatprep.subr.mxu0 0.0
    %781 = vmatpush2.msra.mxu0 0.0
    %782 = vmatprep.subr.mxu0 0.0
    %783 = vmatpush2.msra.mxu0 0.0
    %784 = vmatprep.subr.mxu0 0.0
    %785 = vmatpush2.msra.mxu0 0.0
    %786 = vmatprep.subr.mxu0 0.0
    %787 = vmatpush2.msra.mxu0 0.0
    %788 = vmatprep.subr.mxu0 0.0
    %789 = vmatpush2.msra.mxu0 0.0
    %790 = vmatprep.mubr.f32.mxu0 0.0
    %791 = vmatmul.mubr.f32.gmra.mxu0 %v363
    %v792 = vpop.f32.mrf.mxu0
    %v793 = vadd.f32 %v708, %v792
    %v794 = vpop.f32.mrf.mxu0
    %795 = vmatprep.mubr.f32.mxu0 0.0
    %796 = vmatmul.mubr.f32.gmra.mxu0 %v366
    %v797 = vpop.f32.mrf.mxu0
    %v798 = vadd.f32 %v713, %v797
    %v799 = vpop.f32.mrf.mxu0
    %800 = vmatprep.mubr.f32.mxu0 0.0
    %801 = vmatmul.mubr.f32.gmra.mxu0 %v369
    %v802 = vpop.f32.mrf.mxu0
    %v803 = vadd.f32 %v718, %v802
    %v804 = vpop.f32.mrf.mxu0
    %805 = vmatprep.mubr.f32.mxu0 0.0
    %806 = vmatmul.mubr.f32.gmra.mxu0 %v372
    %v807 = vpop.f32.mrf.mxu0
    %v808 = vadd.f32 %v723, %v807
    %v809 = vpop.f32.mrf.mxu0
    %810 = vdwg.mxu0
    %v811 = vld [vmem:[%s6] sm:$0xff]
    %v812 = vld [vmem:[%s6 + $0x8] sm:$0xff]
    %v813 = vld [vmem:[%s6 + $0x10] sm:$0xff]
    %v814 = vld [vmem:[%s6 + $0x18] sm:$0xff]
    %v815 = vld [vmem:[%s6 + $0x20] sm:$0xff]
    %v816 = vld [vmem:[%s6 + $0x28] sm:$0xff]
    %v817 = vld [vmem:[%s6 + $0x30] sm:$0xff]
    %v818 = vld [vmem:[%s6 + $0x38] sm:$0xff]
    %v819 = vld [vmem:[%s7] sm:$0x1]
    %v821 = vlaneseq
    %v822 = vshrl.u32 %v821, 7
    %v823 = vsub.s32 0, %v822
    %v824 = vrot.slane %v819, %v823
    %v827 = vsel %vm81, %v65, 0
    %829 = vmatprep.subr.mxu0 0.0
    %830 = vmatpush1.msra.mxu0 0.0
    %831 = vmatprep.subr.mxu0 0.0
    %832 = vmatpush1.msra.mxu0 0.0
    %833 = vmatprep.subr.mxu0 0.0
    %834 = vmatpush1.msra.mxu0 0.0
    %835 = vmatprep.subr.mxu0 0.0
    %836 = vmatpush1.msra.mxu0 0.0
    %837 = vmatprep.subr.mxu0 0.0
    %838 = vmatpush1.msra.mxu0 0.0
    %839 = vmatprep.subr.mxu0 0.0
    %840 = vmatpush1.msra.mxu0 0.0
    %841 = vmatprep.subr.mxu0 0.0
    %842 = vmatpush1.msra.mxu0 0.0
    %843 = vmatprep.subr.mxu0 0.0
    %844 = vmatpush1.msra.mxu0 0.0
    %845 = vmatprep.subr.mxu0 0.0
    %846 = vmatpush1.msra.mxu0 %v818
    %847 = vmatprep.subr.mxu0 0.0
    %848 = vmatpush1.msra.mxu0 %v817
    %849 = vmatprep.subr.mxu0 0.0
    %850 = vmatpush1.msra.mxu0 %v816
    %851 = vmatprep.subr.mxu0 0.0
    %852 = vmatpush1.msra.mxu0 %v815
    %853 = vmatprep.subr.mxu0 0.0
    %854 = vmatpush1.msra.mxu0 %v814
    %855 = vmatprep.subr.mxu0 0.0
    %856 = vmatpush1.msra.mxu0 %v813
    %857 = vmatprep.subr.mxu0 0.0
    %858 = vmatpush1.msra.mxu0 %v812
    %859 = vmatprep.subr.mxu0 0.0
    %860 = vmatpush1.msra.mxu0 %v811
    %861 = vmatprep.subr.mxu0 0.0
    %862 = vmatpush2.msra.mxu0 0.0
    %863 = vmatprep.subr.mxu0 0.0
    %864 = vmatpush2.msra.mxu0 0.0
    %865 = vmatprep.subr.mxu0 0.0
    %866 = vmatpush2.msra.mxu0 0.0
    %867 = vmatprep.subr.mxu0 0.0
    %868 = vmatpush2.msra.mxu0 0.0
    %869 = vmatprep.subr.mxu0 0.0
    %870 = vmatpush2.msra.mxu0 0.0
    %871 = vmatprep.subr.mxu0 0.0
    %872 = vmatpush2.msra.mxu0 0.0
    %873 = vmatprep.subr.mxu0 0.0
    %874 = vmatpush2.msra.mxu0 0.0
    %875 = vmatprep.subr.mxu0 0.0
    %876 = vmatpush2.msra.mxu0 0.0
    %877 = vmatprep.subr.mxu0 0.0
    %878 = vmatpush2.msra.mxu0 0.0
    %879 = vmatprep.subr.mxu0 0.0
    %880 = vmatpush2.msra.mxu0 0.0
    %881 = vmatprep.subr.mxu0 0.0
    %882 = vmatpush2.msra.mxu0 0.0
    %883 = vmatprep.subr.mxu0 0.0
    %884 = vmatpush2.msra.mxu0 0.0
    %885 = vmatprep.subr.mxu0 0.0
    %886 = vmatpush2.msra.mxu0 0.0
    %887 = vmatprep.subr.mxu0 0.0
    %888 = vmatpush2.msra.mxu0 0.0
    %889 = vmatprep.subr.mxu0 0.0
    %890 = vmatpush2.msra.mxu0 0.0
    %891 = vmatprep.subr.mxu0 0.0
    %892 = vmatpush2.msra.mxu0 0.0
    %893 = vmatprep.mubr.f32.mxu0 0.0
    %894 = vmatmul.mubr.f32.gmra.mxu0 %v827
    %v895 = vpop.f32.mrf.mxu0
    %v896 = vadd.f32 %v824, %v895
    %v897 = vpop.f32.mrf.mxu0
    %898 = vdwg.mxu0
    %v899 = vld [vmem:[%s15] sm:$0xff]
    %v900 = vld [vmem:[%s15 + $0x8] sm:$0xff]
    %v901 = vld [vmem:[%s15 + $0x10] sm:$0xff]
    %v902 = vld [vmem:[%s15 + $0x18] sm:$0xff]
    %s903 = scalar_lea.vmem %s6, 64
    %v904 = vld [vmem:[%s903] sm:$0xff]
    %v905 = vld [vmem:[%s903 + $0x8] sm:$0xff]
    %v906 = vld [vmem:[%s903 + $0x10] sm:$0xff]
    %v907 = vld [vmem:[%s903 + $0x18] sm:$0xff]
    %v908 = vld [vmem:[%s903 + $0x20] sm:$0xff]
    %v909 = vld [vmem:[%s903 + $0x28] sm:$0xff]
    %v910 = vld [vmem:[%s903 + $0x30] sm:$0xff]
    %v911 = vld [vmem:[%s903 + $0x38] sm:$0xff]
    %s912 = scalar_lea.vmem %s7, 1
    %v913 = vld [vmem:[%s912] sm:$0x1]
    %v915 = vlaneseq
    %v916 = vshrl.u32 %v915, 7
    %v917 = vsub.s32 0, %v916
    %v918 = vrot.slane %v913, %v917
    %920 = vmatprep.subr.mxu0 0.0
    %921 = vmatpush1.msra.mxu0 0.0
    %922 = vmatprep.subr.mxu0 0.0
    %923 = vmatpush1.msra.mxu0 0.0
    %924 = vmatprep.subr.mxu0 0.0
    %925 = vmatpush1.msra.mxu0 0.0
    %926 = vmatprep.subr.mxu0 0.0
    %927 = vmatpush1.msra.mxu0 0.0
    %928 = vmatprep.subr.mxu0 0.0
    %929 = vmatpush1.msra.mxu0 0.0
    %930 = vmatprep.subr.mxu0 0.0
    %931 = vmatpush1.msra.mxu0 0.0
    %932 = vmatprep.subr.mxu0 0.0
    %933 = vmatpush1.msra.mxu0 0.0
    %934 = vmatprep.subr.mxu0 0.0
    %935 = vmatpush1.msra.mxu0 0.0
    %936 = vmatprep.subr.mxu0 0.0
    %937 = vmatpush1.msra.mxu0 %v911
    %938 = vmatprep.subr.mxu0 0.0
    %939 = vmatpush1.msra.mxu0 %v910
    %940 = vmatprep.subr.mxu0 0.0
    %941 = vmatpush1.msra.mxu0 %v909
    %942 = vmatprep.subr.mxu0 0.0
    %943 = vmatpush1.msra.mxu0 %v908
    %944 = vmatprep.subr.mxu0 0.0
    %945 = vmatpush1.msra.mxu0 %v907
    %946 = vmatprep.subr.mxu0 0.0
    %947 = vmatpush1.msra.mxu0 %v906
    %948 = vmatprep.subr.mxu0 0.0
    %949 = vmatpush1.msra.mxu0 %v905
    %950 = vmatprep.subr.mxu0 0.0
    %951 = vmatpush1.msra.mxu0 %v904
    %952 = vmatprep.subr.mxu0 0.0
    %953 = vmatpush2.msra.mxu0 0.0
    %954 = vmatprep.subr.mxu0 0.0
    %955 = vmatpush2.msra.mxu0 0.0
    %956 = vmatprep.subr.mxu0 0.0
    %957 = vmatpush2.msra.mxu0 0.0
    %958 = vmatprep.subr.mxu0 0.0
    %959 = vmatpush2.msra.mxu0 0.0
    %960 = vmatprep.subr.mxu0 0.0
    %961 = vmatpush2.msra.mxu0 0.0
    %962 = vmatprep.subr.mxu0 0.0
    %963 = vmatpush2.msra.mxu0 0.0
    %964 = vmatprep.subr.mxu0 0.0
    %965 = vmatpush2.msra.mxu0 0.0
    %966 = vmatprep.subr.mxu0 0.0
    %967 = vmatpush2.msra.mxu0 0.0
    %968 = vmatprep.subr.mxu0 0.0
    %969 = vmatpush2.msra.mxu0 0.0
    %970 = vmatprep.subr.mxu0 0.0
    %971 = vmatpush2.msra.mxu0 0.0
    %972 = vmatprep.subr.mxu0 0.0
    %973 = vmatpush2.msra.mxu0 0.0
    %974 = vmatprep.subr.mxu0 0.0
    %975 = vmatpush2.msra.mxu0 0.0
    %976 = vmatprep.subr.mxu0 0.0
    %977 = vmatpush2.msra.mxu0 0.0
    %978 = vmatprep.subr.mxu0 0.0
    %979 = vmatpush2.msra.mxu0 0.0
    %980 = vmatprep.subr.mxu0 0.0
    %981 = vmatpush2.msra.mxu0 0.0
    %982 = vmatprep.subr.mxu0 0.0
    %983 = vmatpush2.msra.mxu0 0.0
    %984 = vmatprep.mubr.f32.mxu0 0.0
    %985 = vmatmul.mubr.f32.gmra.mxu0 %v827
    %v986 = vpop.f32.mrf.mxu0
    %v987 = vadd.f32 %v918, %v986
    %v988 = vpop.f32.mrf.mxu0
    %989 = vdwg.mxu0
    %s990 = scalar_lea.vmem %s15, 32
    %v991 = vld [vmem:[%s990] sm:$0xff]
    %v992 = vld [vmem:[%s990 + $0x8] sm:$0xff]
    %v993 = vld [vmem:[%s990 + $0x10] sm:$0xff]
    %v994 = vld [vmem:[%s990 + $0x18] sm:$0xff]
    %vm995 = vcmask 64512
    %v997 = vsel %vm995, %v991, 0
    %v1000 = vsel %vm995, %v992, 0
    %v1003 = vsel %vm995, %v993, 0
    %v1006 = vsel %vm995, %v994, 0
    %1008 = vmatprep.subr.mxu0 0.0
    %1009 = vmatpush1.msra.mxu0 0.0
    %1010 = vmatprep.subr.mxu0 0.0
    %1011 = vmatpush1.msra.mxu0 0.0
    %1012 = vmatprep.subr.mxu0 0.0
    %1013 = vmatpush1.msra.mxu0 0.0
    %1014 = vmatprep.subr.mxu0 0.0
    %1015 = vmatpush1.msra.mxu0 0.0
    %1016 = vmatprep.subr.mxu0 0.0
    %1017 = vmatpush1.msra.mxu0 0.0
    %1018 = vmatprep.subr.mxu0 0.0
    %1019 = vmatpush1.msra.mxu0 0.0
    %1020 = vmatprep.subr.mxu0 0.0
    %1021 = vmatpush1.msra.mxu0 0.0
    %1022 = vmatprep.subr.mxu0 0.0
    %1023 = vmatpush1.msra.mxu0 0.0
    %1024 = vmatprep.subr.mxu0 0.0
    %1025 = vmatpush1.msra.mxu0 0.0
    %1026 = vmatprep.subr.mxu0 0.0
    %1027 = vmatpush1.msra.mxu0 0.0
    %1028 = vmatprep.subr.mxu0 0.0
    %1029 = vmatpush1.msra.mxu0 0.0
    %1030 = vmatprep.subr.mxu0 0.0
    %1031 = vmatpush1.msra.mxu0 0.0
    %1032 = vmatprep.subr.mxu0 0.0
    %1033 = vmatpush1.msra.mxu0 0.0
    %1034 = vmatprep.subr.mxu0 0.0
    %1035 = vmatpush1.msra.mxu0 0.0
    %1036 = vmatprep.subr.mxu0 0.0
    %1037 = vmatpush1.msra.mxu0 0.0
    %1038 = vmatprep.subr.mxu0 0.0
    %1039 = vmatpush1.msra.mxu0 %v987
    %1040 = vmatprep.subr.mxu0 0.0
    %1041 = vmatpush2.msra.mxu0 0.0
    %1042 = vmatprep.subr.mxu0 0.0
    %1043 = vmatpush2.msra.mxu0 0.0
    %1044 = vmatprep.subr.mxu0 0.0
    %1045 = vmatpush2.msra.mxu0 0.0
    %1046 = vmatprep.subr.mxu0 0.0
    %1047 = vmatpush2.msra.mxu0 0.0
    %1048 = vmatprep.subr.mxu0 0.0
    %1049 = vmatpush2.msra.mxu0 0.0
    %1050 = vmatprep.subr.mxu0 0.0
    %1051 = vmatpush2.msra.mxu0 0.0
    %1052 = vmatprep.subr.mxu0 0.0
    %1053 = vmatpush2.msra.mxu0 0.0
    %1054 = vmatprep.subr.mxu0 0.0
    %1055 = vmatpush2.msra.mxu0 0.0
    %1056 = vmatprep.subr.mxu0 0.0
    %1057 = vmatpush2.msra.mxu0 0.0
    %1058 = vmatprep.subr.mxu0 0.0
    %1059 = vmatpush2.msra.mxu0 0.0
    %1060 = vmatprep.subr.mxu0 0.0
    %1061 = vmatpush2.msra.mxu0 0.0
    %1062 = vmatprep.subr.mxu0 0.0
    %1063 = vmatpush2.msra.mxu0 0.0
    %1064 = vmatprep.subr.mxu0 0.0
    %1065 = vmatpush2.msra.mxu0 0.0
    %1066 = vmatprep.subr.mxu0 0.0
    %1067 = vmatpush2.msra.mxu0 0.0
    %1068 = vmatprep.subr.mxu0 0.0
    %1069 = vmatpush2.msra.mxu0 0.0
    %1070 = vmatprep.subr.mxu0 0.0
    %1071 = vmatpush2.msra.mxu0 0.0
    %1072 = vmatprep.mubr.f32.mxu0 0.0
    %1073 = vmatmul.mubr.f32.gmra.mxu0 %v997
    %v1074 = vpop.f32.mrf.mxu0
    %v1075 = vadd.f32 0.0, %v1074
    %v1076 = vpop.f32.mrf.mxu0
    %1077 = vmatprep.mubr.f32.mxu0 0.0
    %1078 = vmatmul.mubr.f32.gmra.mxu0 %v1000
    %v1079 = vpop.f32.mrf.mxu0
    %v1080 = vadd.f32 0.0, %v1079
    %v1081 = vpop.f32.mrf.mxu0
    %1082 = vmatprep.mubr.f32.mxu0 0.0
    %1083 = vmatmul.mubr.f32.gmra.mxu0 %v1003
    %v1084 = vpop.f32.mrf.mxu0
    %v1085 = vadd.f32 0.0, %v1084
    %v1086 = vpop.f32.mrf.mxu0
    %1087 = vmatprep.mubr.f32.mxu0 0.0
    %1088 = vmatmul.mubr.f32.gmra.mxu0 %v1006
    %v1089 = vpop.f32.mrf.mxu0
    %v1090 = vadd.f32 0.0, %v1089
    %v1091 = vpop.f32.mrf.mxu0
    %1092 = vdwg.mxu0
    %v1094 = vsel %vm995, %v899, 0
    %v1097 = vsel %vm995, %v900, 0
    %v1100 = vsel %vm995, %v901, 0
    %v1103 = vsel %vm995, %v902, 0
    %1105 = vmatprep.subr.mxu0 0.0
    %1106 = vmatpush1.msra.mxu0 0.0
    %1107 = vmatprep.subr.mxu0 0.0
    %1108 = vmatpush1.msra.mxu0 0.0
    %1109 = vmatprep.subr.mxu0 0.0
    %1110 = vmatpush1.msra.mxu0 0.0
    %1111 = vmatprep.subr.mxu0 0.0
    %1112 = vmatpush1.msra.mxu0 0.0
    %1113 = vmatprep.subr.mxu0 0.0
    %1114 = vmatpush1.msra.mxu0 0.0
    %1115 = vmatprep.subr.mxu0 0.0
    %1116 = vmatpush1.msra.mxu0 0.0
    %1117 = vmatprep.subr.mxu0 0.0
    %1118 = vmatpush1.msra.mxu0 0.0
    %1119 = vmatprep.subr.mxu0 0.0
    %1120 = vmatpush1.msra.mxu0 0.0
    %1121 = vmatprep.subr.mxu0 0.0
    %1122 = vmatpush1.msra.mxu0 0.0
    %1123 = vmatprep.subr.mxu0 0.0
    %1124 = vmatpush1.msra.mxu0 0.0
    %1125 = vmatprep.subr.mxu0 0.0
    %1126 = vmatpush1.msra.mxu0 0.0
    %1127 = vmatprep.subr.mxu0 0.0
    %1128 = vmatpush1.msra.mxu0 0.0
    %1129 = vmatprep.subr.mxu0 0.0
    %1130 = vmatpush1.msra.mxu0 0.0
    %1131 = vmatprep.subr.mxu0 0.0
    %1132 = vmatpush1.msra.mxu0 0.0
    %1133 = vmatprep.subr.mxu0 0.0
    %1134 = vmatpush1.msra.mxu0 0.0
    %1135 = vmatprep.subr.mxu0 0.0
    %1136 = vmatpush1.msra.mxu0 %v896
    %1137 = vmatprep.subr.mxu0 0.0
    %1138 = vmatpush2.msra.mxu0 0.0
    %1139 = vmatprep.subr.mxu0 0.0
    %1140 = vmatpush2.msra.mxu0 0.0
    %1141 = vmatprep.subr.mxu0 0.0
    %1142 = vmatpush2.msra.mxu0 0.0
    %1143 = vmatprep.subr.mxu0 0.0
    %1144 = vmatpush2.msra.mxu0 0.0
    %1145 = vmatprep.subr.mxu0 0.0
    %1146 = vmatpush2.msra.mxu0 0.0
    %1147 = vmatprep.subr.mxu0 0.0
    %1148 = vmatpush2.msra.mxu0 0.0
    %1149 = vmatprep.subr.mxu0 0.0
    %1150 = vmatpush2.msra.mxu0 0.0
    %1151 = vmatprep.subr.mxu0 0.0
    %1152 = vmatpush2.msra.mxu0 0.0
    %1153 = vmatprep.subr.mxu0 0.0
    %1154 = vmatpush2.msra.mxu0 0.0
    %1155 = vmatprep.subr.mxu0 0.0
    %1156 = vmatpush2.msra.mxu0 0.0
    %1157 = vmatprep.subr.mxu0 0.0
    %1158 = vmatpush2.msra.mxu0 0.0
    %1159 = vmatprep.subr.mxu0 0.0
    %1160 = vmatpush2.msra.mxu0 0.0
    %1161 = vmatprep.subr.mxu0 0.0
    %1162 = vmatpush2.msra.mxu0 0.0
    %1163 = vmatprep.subr.mxu0 0.0
    %1164 = vmatpush2.msra.mxu0 0.0
    %1165 = vmatprep.subr.mxu0 0.0
    %1166 = vmatpush2.msra.mxu0 0.0
    %1167 = vmatprep.subr.mxu0 0.0
    %1168 = vmatpush2.msra.mxu0 0.0
    %1169 = vmatprep.mubr.f32.mxu0 0.0
    %1170 = vmatmul.mubr.f32.gmra.mxu0 %v1094
    %v1171 = vpop.f32.mrf.mxu0
    %v1172 = vadd.f32 %v1075, %v1171
    %v1173 = vpop.f32.mrf.mxu0
    %1174 = vmatprep.mubr.f32.mxu0 0.0
    %1175 = vmatmul.mubr.f32.gmra.mxu0 %v1097
    %v1176 = vpop.f32.mrf.mxu0
    %v1177 = vadd.f32 %v1080, %v1176
    %v1178 = vpop.f32.mrf.mxu0
    %1179 = vmatprep.mubr.f32.mxu0 0.0
    %1180 = vmatmul.mubr.f32.gmra.mxu0 %v1100
    %v1181 = vpop.f32.mrf.mxu0
    %v1182 = vadd.f32 %v1085, %v1181
    %v1183 = vpop.f32.mrf.mxu0
    %1184 = vmatprep.mubr.f32.mxu0 0.0
    %1185 = vmatmul.mubr.f32.gmra.mxu0 %v1103
    %v1186 = vpop.f32.mrf.mxu0
    %v1187 = vadd.f32 %v1090, %v1186
    %v1188 = vpop.f32.mrf.mxu0
    %1189 = vdwg.mxu0
    %s1190 = scalar_lea.vmem %s6, 128
    %v1191 = vld [vmem:[%s1190] sm:$0xff]
    %v1192 = vld [vmem:[%s1190 + $0x8] sm:$0xff]
    %v1193 = vld [vmem:[%s1190 + $0x10] sm:$0xff]
    %v1194 = vld [vmem:[%s1190 + $0x18] sm:$0xff]
    %v1195 = vld [vmem:[%s1190 + $0x20] sm:$0xff]
    %v1196 = vld [vmem:[%s1190 + $0x28] sm:$0xff]
    %v1197 = vld [vmem:[%s1190 + $0x30] sm:$0xff]
    %v1198 = vld [vmem:[%s1190 + $0x38] sm:$0xff]
    %s1199 = scalar_lea.vmem %s7, 2
    %v1200 = vld [vmem:[%s1199] sm:$0x1]
    %v1202 = vlaneseq
    %v1203 = vshrl.u32 %v1202, 7
    %v1204 = vsub.s32 0, %v1203
    %v1205 = vrot.slane %v1200, %v1204
    %1207 = vmatprep.subr.mxu0 0.0
    %1208 = vmatpush1.msra.mxu0 0.0
    %1209 = vmatprep.subr.mxu0 0.0
    %1210 = vmatpush1.msra.mxu0 0.0
    %1211 = vmatprep.subr.mxu0 0.0
    %1212 = vmatpush1.msra.mxu0 0.0
    %1213 = vmatprep.subr.mxu0 0.0
    %1214 = vmatpush1.msra.mxu0 0.0
    %1215 = vmatprep.subr.mxu0 0.0
    %1216 = vmatpush1.msra.mxu0 0.0
    %1217 = vmatprep.subr.mxu0 0.0
    %1218 = vmatpush1.msra.mxu0 0.0
    %1219 = vmatprep.subr.mxu0 0.0
    %1220 = vmatpush1.msra.mxu0 0.0
    %1221 = vmatprep.subr.mxu0 0.0
    %1222 = vmatpush1.msra.mxu0 0.0
    %1223 = vmatprep.subr.mxu0 0.0
    %1224 = vmatpush1.msra.mxu0 %v1198
    %1225 = vmatprep.subr.mxu0 0.0
    %1226 = vmatpush1.msra.mxu0 %v1197
    %1227 = vmatprep.subr.mxu0 0.0
    %1228 = vmatpush1.msra.mxu0 %v1196
    %1229 = vmatprep.subr.mxu0 0.0
    %1230 = vmatpush1.msra.mxu0 %v1195
    %1231 = vmatprep.subr.mxu0 0.0
    %1232 = vmatpush1.msra.mxu0 %v1194
    %1233 = vmatprep.subr.mxu0 0.0
    %1234 = vmatpush1.msra.mxu0 %v1193
    %1235 = vmatprep.subr.mxu0 0.0
    %1236 = vmatpush1.msra.mxu0 %v1192
    %1237 = vmatprep.subr.mxu0 0.0
    %1238 = vmatpush1.msra.mxu0 %v1191
    %1239 = vmatprep.subr.mxu0 0.0
    %1240 = vmatpush2.msra.mxu0 0.0
    %1241 = vmatprep.subr.mxu0 0.0
    %1242 = vmatpush2.msra.mxu0 0.0
    %1243 = vmatprep.subr.mxu0 0.0
    %1244 = vmatpush2.msra.mxu0 0.0
    %1245 = vmatprep.subr.mxu0 0.0
    %1246 = vmatpush2.msra.mxu0 0.0
    %1247 = vmatprep.subr.mxu0 0.0
    %1248 = vmatpush2.msra.mxu0 0.0
    %1249 = vmatprep.subr.mxu0 0.0
    %1250 = vmatpush2.msra.mxu0 0.0
    %1251 = vmatprep.subr.mxu0 0.0
    %1252 = vmatpush2.msra.mxu0 0.0
    %1253 = vmatprep.subr.mxu0 0.0
    %1254 = vmatpush2.msra.mxu0 0.0
    %1255 = vmatprep.subr.mxu0 0.0
    %1256 = vmatpush2.msra.mxu0 0.0
    %1257 = vmatprep.subr.mxu0 0.0
    %1258 = vmatpush2.msra.mxu0 0.0
    %1259 = vmatprep.subr.mxu0 0.0
    %1260 = vmatpush2.msra.mxu0 0.0
    %1261 = vmatprep.subr.mxu0 0.0
    %1262 = vmatpush2.msra.mxu0 0.0
    %1263 = vmatprep.subr.mxu0 0.0
    %1264 = vmatpush2.msra.mxu0 0.0
    %1265 = vmatprep.subr.mxu0 0.0
    %1266 = vmatpush2.msra.mxu0 0.0
    %1267 = vmatprep.subr.mxu0 0.0
    %1268 = vmatpush2.msra.mxu0 0.0
    %1269 = vmatprep.subr.mxu0 0.0
    %1270 = vmatpush2.msra.mxu0 0.0
    %1271 = vmatprep.mubr.f32.mxu0 0.0
    %1272 = vmatmul.mubr.f32.gmra.mxu0 %v827
    %v1273 = vpop.f32.mrf.mxu0
    %v1274 = vadd.f32 %v1205, %v1273
    %v1275 = vpop.f32.mrf.mxu0
    %1276 = vdwg.mxu0
    %s1277 = scalar_lea.vmem %s15, 64
    %v1278 = vld [vmem:[%s1277] sm:$0xff]
    %v1279 = vld [vmem:[%s1277 + $0x8] sm:$0xff]
    %v1280 = vld [vmem:[%s1277 + $0x10] sm:$0xff]
    %v1281 = vld [vmem:[%s1277 + $0x18] sm:$0xff]
    %v1283 = vsel %vm995, %v1278, 0
    %v1286 = vsel %vm995, %v1279, 0
    %v1289 = vsel %vm995, %v1280, 0
    %v1292 = vsel %vm995, %v1281, 0
    %1294 = vmatprep.subr.mxu0 0.0
    %1295 = vmatpush1.msra.mxu0 0.0
    %1296 = vmatprep.subr.mxu0 0.0
    %1297 = vmatpush1.msra.mxu0 0.0
    %1298 = vmatprep.subr.mxu0 0.0
    %1299 = vmatpush1.msra.mxu0 0.0
    %1300 = vmatprep.subr.mxu0 0.0
    %1301 = vmatpush1.msra.mxu0 0.0
    %1302 = vmatprep.subr.mxu0 0.0
    %1303 = vmatpush1.msra.mxu0 0.0
    %1304 = vmatprep.subr.mxu0 0.0
    %1305 = vmatpush1.msra.mxu0 0.0
    %1306 = vmatprep.subr.mxu0 0.0
    %1307 = vmatpush1.msra.mxu0 0.0
    %1308 = vmatprep.subr.mxu0 0.0
    %1309 = vmatpush1.msra.mxu0 0.0
    %1310 = vmatprep.subr.mxu0 0.0
    %1311 = vmatpush1.msra.mxu0 0.0
    %1312 = vmatprep.subr.mxu0 0.0
    %1313 = vmatpush1.msra.mxu0 0.0
    %1314 = vmatprep.subr.mxu0 0.0
    %1315 = vmatpush1.msra.mxu0 0.0
    %1316 = vmatprep.subr.mxu0 0.0
    %1317 = vmatpush1.msra.mxu0 0.0
    %1318 = vmatprep.subr.mxu0 0.0
    %1319 = vmatpush1.msra.mxu0 0.0
    %1320 = vmatprep.subr.mxu0 0.0
    %1321 = vmatpush1.msra.mxu0 0.0
    %1322 = vmatprep.subr.mxu0 0.0
    %1323 = vmatpush1.msra.mxu0 0.0
    %1324 = vmatprep.subr.mxu0 0.0
    %1325 = vmatpush1.msra.mxu0 %v1274
    %1326 = vmatprep.subr.mxu0 0.0
    %1327 = vmatpush2.msra.mxu0 0.0
    %1328 = vmatprep.subr.mxu0 0.0
    %1329 = vmatpush2.msra.mxu0 0.0
    %1330 = vmatprep.subr.mxu0 0.0
    %1331 = vmatpush2.msra.mxu0 0.0
    %1332 = vmatprep.subr.mxu0 0.0
    %1333 = vmatpush2.msra.mxu0 0.0
    %1334 = vmatprep.subr.mxu0 0.0
    %1335 = vmatpush2.msra.mxu0 0.0
    %1336 = vmatprep.subr.mxu0 0.0
    %1337 = vmatpush2.msra.mxu0 0.0
    %1338 = vmatprep.subr.mxu0 0.0
    %1339 = vmatpush2.msra.mxu0 0.0
    %1340 = vmatprep.subr.mxu0 0.0
    %1341 = vmatpush2.msra.mxu0 0.0
    %1342 = vmatprep.subr.mxu0 0.0
    %1343 = vmatpush2.msra.mxu0 0.0
    %1344 = vmatprep.subr.mxu0 0.0
    %1345 = vmatpush2.msra.mxu0 0.0
    %1346 = vmatprep.subr.mxu0 0.0
    %1347 = vmatpush2.msra.mxu0 0.0
    %1348 = vmatprep.subr.mxu0 0.0
    %1349 = vmatpush2.msra.mxu0 0.0
    %1350 = vmatprep.subr.mxu0 0.0
    %1351 = vmatpush2.msra.mxu0 0.0
    %1352 = vmatprep.subr.mxu0 0.0
    %1353 = vmatpush2.msra.mxu0 0.0
    %1354 = vmatprep.subr.mxu0 0.0
    %1355 = vmatpush2.msra.mxu0 0.0
    %1356 = vmatprep.subr.mxu0 0.0
    %1357 = vmatpush2.msra.mxu0 0.0
    %1358 = vmatprep.mubr.f32.mxu0 0.0
    %1359 = vmatmul.mubr.f32.gmra.mxu0 %v1283
    %v1360 = vpop.f32.mrf.mxu0
    %v1361 = vadd.f32 0.0, %v1360
    %v1362 = vpop.f32.mrf.mxu0
    %1363 = vmatprep.mubr.f32.mxu0 0.0
    %1364 = vmatmul.mubr.f32.gmra.mxu0 %v1286
    %v1365 = vpop.f32.mrf.mxu0
    %v1366 = vadd.f32 0.0, %v1365
    %v1367 = vpop.f32.mrf.mxu0
    %1368 = vmatprep.mubr.f32.mxu0 0.0
    %1369 = vmatmul.mubr.f32.gmra.mxu0 %v1289
    %v1370 = vpop.f32.mrf.mxu0
    %v1371 = vadd.f32 0.0, %v1370
    %v1372 = vpop.f32.mrf.mxu0
    %1373 = vmatprep.mubr.f32.mxu0 0.0
    %1374 = vmatmul.mubr.f32.gmra.mxu0 %v1292
    %v1375 = vpop.f32.mrf.mxu0
    %v1376 = vadd.f32 0.0, %v1375
    %v1377 = vpop.f32.mrf.mxu0
    %1378 = vdwg.mxu0
    %v1379 = vadd.f32 %v1172, %v1361
    %v1380 = vadd.f32 %v1177, %v1366
    %v1381 = vadd.f32 %v1182, %v1371
    %v1382 = vadd.f32 %v1187, %v1376
    %s1383 = scalar_lea.vmem %s6, 192
    %v1384 = vld [vmem:[%s1383] sm:$0xff]
    %v1385 = vld [vmem:[%s1383 + $0x8] sm:$0xff]
    %v1386 = vld [vmem:[%s1383 + $0x10] sm:$0xff]
    %v1387 = vld [vmem:[%s1383 + $0x18] sm:$0xff]
    %v1388 = vld [vmem:[%s1383 + $0x20] sm:$0xff]
    %v1389 = vld [vmem:[%s1383 + $0x28] sm:$0xff]
    %v1390 = vld [vmem:[%s1383 + $0x30] sm:$0xff]
    %v1391 = vld [vmem:[%s1383 + $0x38] sm:$0xff]
    %s1392 = scalar_lea.vmem %s7, 3
    %v1393 = vld [vmem:[%s1392] sm:$0x1]
    %v1395 = vlaneseq
    %v1396 = vshrl.u32 %v1395, 7
    %v1397 = vsub.s32 0, %v1396
    %v1398 = vrot.slane %v1393, %v1397
    %1400 = vmatprep.subr.mxu0 0.0
    %1401 = vmatpush1.msra.mxu0 0.0
    %1402 = vmatprep.subr.mxu0 0.0
    %1403 = vmatpush1.msra.mxu0 0.0
    %1404 = vmatprep.subr.mxu0 0.0
    %1405 = vmatpush1.msra.mxu0 0.0
    %1406 = vmatprep.subr.mxu0 0.0
    %1407 = vmatpush1.msra.mxu0 0.0
    %1408 = vmatprep.subr.mxu0 0.0
    %1409 = vmatpush1.msra.mxu0 0.0
    %1410 = vmatprep.subr.mxu0 0.0
    %1411 = vmatpush1.msra.mxu0 0.0
    %1412 = vmatprep.subr.mxu0 0.0
    %1413 = vmatpush1.msra.mxu0 0.0
    %1414 = vmatprep.subr.mxu0 0.0
    %1415 = vmatpush1.msra.mxu0 0.0
    %1416 = vmatprep.subr.mxu0 0.0
    %1417 = vmatpush1.msra.mxu0 %v1391
    %1418 = vmatprep.subr.mxu0 0.0
    %1419 = vmatpush1.msra.mxu0 %v1390
    %1420 = vmatprep.subr.mxu0 0.0
    %1421 = vmatpush1.msra.mxu0 %v1389
    %1422 = vmatprep.subr.mxu0 0.0
    %1423 = vmatpush1.msra.mxu0 %v1388
    %1424 = vmatprep.subr.mxu0 0.0
    %1425 = vmatpush1.msra.mxu0 %v1387
    %1426 = vmatprep.subr.mxu0 0.0
    %1427 = vmatpush1.msra.mxu0 %v1386
    %1428 = vmatprep.subr.mxu0 0.0
    %1429 = vmatpush1.msra.mxu0 %v1385
    %1430 = vmatprep.subr.mxu0 0.0
    %1431 = vmatpush1.msra.mxu0 %v1384
    %1432 = vmatprep.subr.mxu0 0.0
    %1433 = vmatpush2.msra.mxu0 0.0
    %1434 = vmatprep.subr.mxu0 0.0
    %1435 = vmatpush2.msra.mxu0 0.0
    %1436 = vmatprep.subr.mxu0 0.0
    %1437 = vmatpush2.msra.mxu0 0.0
    %1438 = vmatprep.subr.mxu0 0.0
    %1439 = vmatpush2.msra.mxu0 0.0
    %1440 = vmatprep.subr.mxu0 0.0
    %1441 = vmatpush2.msra.mxu0 0.0
    %1442 = vmatprep.subr.mxu0 0.0
    %1443 = vmatpush2.msra.mxu0 0.0
    %1444 = vmatprep.subr.mxu0 0.0
    %1445 = vmatpush2.msra.mxu0 0.0
    %1446 = vmatprep.subr.mxu0 0.0
    %1447 = vmatpush2.msra.mxu0 0.0
    %1448 = vmatprep.subr.mxu0 0.0
    %1449 = vmatpush2.msra.mxu0 0.0
    %1450 = vmatprep.subr.mxu0 0.0
    %1451 = vmatpush2.msra.mxu0 0.0
    %1452 = vmatprep.subr.mxu0 0.0
    %1453 = vmatpush2.msra.mxu0 0.0
    %1454 = vmatprep.subr.mxu0 0.0
    %1455 = vmatpush2.msra.mxu0 0.0
    %1456 = vmatprep.subr.mxu0 0.0
    %1457 = vmatpush2.msra.mxu0 0.0
    %1458 = vmatprep.subr.mxu0 0.0
    %1459 = vmatpush2.msra.mxu0 0.0
    %1460 = vmatprep.subr.mxu0 0.0
    %1461 = vmatpush2.msra.mxu0 0.0
    %1462 = vmatprep.subr.mxu0 0.0
    %1463 = vmatpush2.msra.mxu0 0.0
    %1464 = vmatprep.mubr.f32.mxu0 0.0
    %1465 = vmatmul.mubr.f32.gmra.mxu0 %v827
    %v1466 = vpop.f32.mrf.mxu0
    %v1467 = vadd.f32 %v1398, %v1466
    %v1468 = vpop.f32.mrf.mxu0
    %1469 = vdwg.mxu0
    %s1470 = scalar_lea.vmem %s15, 96
    %v1471 = vld [vmem:[%s1470] sm:$0xff]
    %v1472 = vld [vmem:[%s1470 + $0x8] sm:$0xff]
    %v1473 = vld [vmem:[%s1470 + $0x10] sm:$0xff]
    %v1474 = vld [vmem:[%s1470 + $0x18] sm:$0xff]
    %v1476 = vsel %vm995, %v1471, 0
    %v1479 = vsel %vm995, %v1472, 0
    %v1482 = vsel %vm995, %v1473, 0
    %v1485 = vsel %vm995, %v1474, 0
    %1487 = vmatprep.subr.mxu0 0.0
    %1488 = vmatpush1.msra.mxu0 0.0
    %1489 = vmatprep.subr.mxu0 0.0
    %1490 = vmatpush1.msra.mxu0 0.0
    %1491 = vmatprep.subr.mxu0 0.0
    %1492 = vmatpush1.msra.mxu0 0.0
    %1493 = vmatprep.subr.mxu0 0.0
    %1494 = vmatpush1.msra.mxu0 0.0
    %1495 = vmatprep.subr.mxu0 0.0
    %1496 = vmatpush1.msra.mxu0 0.0
    %1497 = vmatprep.subr.mxu0 0.0
    %1498 = vmatpush1.msra.mxu0 0.0
    %1499 = vmatprep.subr.mxu0 0.0
    %1500 = vmatpush1.msra.mxu0 0.0
    %1501 = vmatprep.subr.mxu0 0.0
    %1502 = vmatpush1.msra.mxu0 0.0
    %1503 = vmatprep.subr.mxu0 0.0
    %1504 = vmatpush1.msra.mxu0 0.0
    %1505 = vmatprep.subr.mxu0 0.0
    %1506 = vmatpush1.msra.mxu0 0.0
    %1507 = vmatprep.subr.mxu0 0.0
    %1508 = vmatpush1.msra.mxu0 0.0
    %1509 = vmatprep.subr.mxu0 0.0
    %1510 = vmatpush1.msra.mxu0 0.0
    %1511 = vmatprep.subr.mxu0 0.0
    %1512 = vmatpush1.msra.mxu0 0.0
    %1513 = vmatprep.subr.mxu0 0.0
    %1514 = vmatpush1.msra.mxu0 0.0
    %1515 = vmatprep.subr.mxu0 0.0
    %1516 = vmatpush1.msra.mxu0 0.0
    %1517 = vmatprep.subr.mxu0 0.0
    %1518 = vmatpush1.msra.mxu0 %v1467
    %1519 = vmatprep.subr.mxu0 0.0
    %1520 = vmatpush2.msra.mxu0 0.0
    %1521 = vmatprep.subr.mxu0 0.0
    %1522 = vmatpush2.msra.mxu0 0.0
    %1523 = vmatprep.subr.mxu0 0.0
    %1524 = vmatpush2.msra.mxu0 0.0
    %1525 = vmatprep.subr.mxu0 0.0
    %1526 = vmatpush2.msra.mxu0 0.0
    %1527 = vmatprep.subr.mxu0 0.0
    %1528 = vmatpush2.msra.mxu0 0.0
    %1529 = vmatprep.subr.mxu0 0.0
    %1530 = vmatpush2.msra.mxu0 0.0
    %1531 = vmatprep.subr.mxu0 0.0
    %1532 = vmatpush2.msra.mxu0 0.0
    %1533 = vmatprep.subr.mxu0 0.0
    %1534 = vmatpush2.msra.mxu0 0.0
    %1535 = vmatprep.subr.mxu0 0.0
    %1536 = vmatpush2.msra.mxu0 0.0
    %1537 = vmatprep.subr.mxu0 0.0
    %1538 = vmatpush2.msra.mxu0 0.0
    %1539 = vmatprep.subr.mxu0 0.0
    %1540 = vmatpush2.msra.mxu0 0.0
    %1541 = vmatprep.subr.mxu0 0.0
    %1542 = vmatpush2.msra.mxu0 0.0
    %1543 = vmatprep.subr.mxu0 0.0
    %1544 = vmatpush2.msra.mxu0 0.0
    %1545 = vmatprep.subr.mxu0 0.0
    %1546 = vmatpush2.msra.mxu0 0.0
    %1547 = vmatprep.subr.mxu0 0.0
    %1548 = vmatpush2.msra.mxu0 0.0
    %1549 = vmatprep.subr.mxu0 0.0
    %1550 = vmatpush2.msra.mxu0 0.0
    %1551 = vmatprep.mubr.f32.mxu0 0.0
    %1552 = vmatmul.mubr.f32.gmra.mxu0 %v1476
    %v1553 = vpop.f32.mrf.mxu0
    %v1554 = vadd.f32 0.0, %v1553
    %v1555 = vpop.f32.mrf.mxu0
    %1556 = vmatprep.mubr.f32.mxu0 0.0
    %1557 = vmatmul.mubr.f32.gmra.mxu0 %v1479
    %v1558 = vpop.f32.mrf.mxu0
    %v1559 = vadd.f32 0.0, %v1558
    %v1560 = vpop.f32.mrf.mxu0
    %1561 = vmatprep.mubr.f32.mxu0 0.0
    %1562 = vmatmul.mubr.f32.gmra.mxu0 %v1482
    %v1563 = vpop.f32.mrf.mxu0
    %v1564 = vadd.f32 0.0, %v1563
    %v1565 = vpop.f32.mrf.mxu0
    %1566 = vmatprep.mubr.f32.mxu0 0.0
    %1567 = vmatmul.mubr.f32.gmra.mxu0 %v1485
    %v1568 = vpop.f32.mrf.mxu0
    %v1569 = vadd.f32 0.0, %v1568
    %v1570 = vpop.f32.mrf.mxu0
    %1571 = vdwg.mxu0
    %v1572 = vadd.f32 %v1379, %v1554
    %v1573 = vadd.f32 %v1380, %v1559
    %v1574 = vadd.f32 %v1381, %v1564
    %v1575 = vadd.f32 %v1382, %v1569
    %v1576 = vld [vmem:[%s8] sm:$0xff]
    %v1577 = vld [vmem:[%s8 + $0x8] sm:$0xff]
    %v1578 = vld [vmem:[%s8 + $0x10] sm:$0xff]
    %v1579 = vld [vmem:[%s8 + $0x18] sm:$0xff]
    %v1580 = vld [vmem:[%s8 + $0x20] sm:$0xff]
    %v1581 = vld [vmem:[%s8 + $0x28] sm:$0xff]
    %v1582 = vld [vmem:[%s8 + $0x30] sm:$0xff]
    %v1583 = vld [vmem:[%s8 + $0x38] sm:$0xff]
    %v1584 = vld [vmem:[%s9] sm:$0x1]
    %v1586 = vlaneseq
    %v1587 = vshrl.u32 %v1586, 7
    %v1588 = vsub.s32 0, %v1587
    %v1589 = vrot.slane %v1584, %v1588
    %1591 = vmatprep.subr.mxu0 0.0
    %1592 = vmatpush1.msra.mxu0 0.0
    %1593 = vmatprep.subr.mxu0 0.0
    %1594 = vmatpush1.msra.mxu0 0.0
    %1595 = vmatprep.subr.mxu0 0.0
    %1596 = vmatpush1.msra.mxu0 0.0
    %1597 = vmatprep.subr.mxu0 0.0
    %1598 = vmatpush1.msra.mxu0 0.0
    %1599 = vmatprep.subr.mxu0 0.0
    %1600 = vmatpush1.msra.mxu0 0.0
    %1601 = vmatprep.subr.mxu0 0.0
    %1602 = vmatpush1.msra.mxu0 0.0
    %1603 = vmatprep.subr.mxu0 0.0
    %1604 = vmatpush1.msra.mxu0 0.0
    %1605 = vmatprep.subr.mxu0 0.0
    %1606 = vmatpush1.msra.mxu0 0.0
    %1607 = vmatprep.subr.mxu0 0.0
    %1608 = vmatpush1.msra.mxu0 %v1583
    %1609 = vmatprep.subr.mxu0 0.0
    %1610 = vmatpush1.msra.mxu0 %v1582
    %1611 = vmatprep.subr.mxu0 0.0
    %1612 = vmatpush1.msra.mxu0 %v1581
    %1613 = vmatprep.subr.mxu0 0.0
    %1614 = vmatpush1.msra.mxu0 %v1580
    %1615 = vmatprep.subr.mxu0 0.0
    %1616 = vmatpush1.msra.mxu0 %v1579
    %1617 = vmatprep.subr.mxu0 0.0
    %1618 = vmatpush1.msra.mxu0 %v1578
    %1619 = vmatprep.subr.mxu0 0.0
    %1620 = vmatpush1.msra.mxu0 %v1577
    %1621 = vmatprep.subr.mxu0 0.0
    %1622 = vmatpush1.msra.mxu0 %v1576
    %1623 = vmatprep.subr.mxu0 0.0
    %1624 = vmatpush2.msra.mxu0 0.0
    %1625 = vmatprep.subr.mxu0 0.0
    %1626 = vmatpush2.msra.mxu0 0.0
    %1627 = vmatprep.subr.mxu0 0.0
    %1628 = vmatpush2.msra.mxu0 0.0
    %1629 = vmatprep.subr.mxu0 0.0
    %1630 = vmatpush2.msra.mxu0 0.0
    %1631 = vmatprep.subr.mxu0 0.0
    %1632 = vmatpush2.msra.mxu0 0.0
    %1633 = vmatprep.subr.mxu0 0.0
    %1634 = vmatpush2.msra.mxu0 0.0
    %1635 = vmatprep.subr.mxu0 0.0
    %1636 = vmatpush2.msra.mxu0 0.0
    %1637 = vmatprep.subr.mxu0 0.0
    %1638 = vmatpush2.msra.mxu0 0.0
    %1639 = vmatprep.subr.mxu0 0.0
    %1640 = vmatpush2.msra.mxu0 0.0
    %1641 = vmatprep.subr.mxu0 0.0
    %1642 = vmatpush2.msra.mxu0 0.0
    %1643 = vmatprep.subr.mxu0 0.0
    %1644 = vmatpush2.msra.mxu0 0.0
    %1645 = vmatprep.subr.mxu0 0.0
    %1646 = vmatpush2.msra.mxu0 0.0
    %1647 = vmatprep.subr.mxu0 0.0
    %1648 = vmatpush2.msra.mxu0 0.0
    %1649 = vmatprep.subr.mxu0 0.0
    %1650 = vmatpush2.msra.mxu0 0.0
    %1651 = vmatprep.subr.mxu0 0.0
    %1652 = vmatpush2.msra.mxu0 0.0
    %1653 = vmatprep.subr.mxu0 0.0
    %1654 = vmatpush2.msra.mxu0 0.0
    %1655 = vmatprep.mubr.f32.mxu0 0.0
    %1656 = vmatmul.mubr.f32.gmra.mxu0 %v827
    %v1657 = vpop.f32.mrf.mxu0
    %v1658 = vadd.f32 %v1589, %v1657
    %v1659 = vpop.f32.mrf.mxu0
    %1660 = vdwg.mxu0
    %s1661 = scalar_lea.vmem %s8, 64
    %v1662 = vld [vmem:[%s1661] sm:$0xff]
    %v1663 = vld [vmem:[%s1661 + $0x8] sm:$0xff]
    %v1664 = vld [vmem:[%s1661 + $0x10] sm:$0xff]
    %v1665 = vld [vmem:[%s1661 + $0x18] sm:$0xff]
    %v1666 = vld [vmem:[%s1661 + $0x20] sm:$0xff]
    %v1667 = vld [vmem:[%s1661 + $0x28] sm:$0xff]
    %v1668 = vld [vmem:[%s1661 + $0x30] sm:$0xff]
    %v1669 = vld [vmem:[%s1661 + $0x38] sm:$0xff]
    %s1670 = scalar_lea.vmem %s9, 1
    %v1671 = vld [vmem:[%s1670] sm:$0x1]
    %v1673 = vlaneseq
    %v1674 = vshrl.u32 %v1673, 7
    %v1675 = vsub.s32 0, %v1674
    %v1676 = vrot.slane %v1671, %v1675
    %1678 = vmatprep.subr.mxu0 0.0
    %1679 = vmatpush1.msra.mxu0 0.0
    %1680 = vmatprep.subr.mxu0 0.0
    %1681 = vmatpush1.msra.mxu0 0.0
    %1682 = vmatprep.subr.mxu0 0.0
    %1683 = vmatpush1.msra.mxu0 0.0
    %1684 = vmatprep.subr.mxu0 0.0
    %1685 = vmatpush1.msra.mxu0 0.0
    %1686 = vmatprep.subr.mxu0 0.0
    %1687 = vmatpush1.msra.mxu0 0.0
    %1688 = vmatprep.subr.mxu0 0.0
    %1689 = vmatpush1.msra.mxu0 0.0
    %1690 = vmatprep.subr.mxu0 0.0
    %1691 = vmatpush1.msra.mxu0 0.0
    %1692 = vmatprep.subr.mxu0 0.0
    %1693 = vmatpush1.msra.mxu0 0.0
    %1694 = vmatprep.subr.mxu0 0.0
    %1695 = vmatpush1.msra.mxu0 %v1669
    %1696 = vmatprep.subr.mxu0 0.0
    %1697 = vmatpush1.msra.mxu0 %v1668
    %1698 = vmatprep.subr.mxu0 0.0
    %1699 = vmatpush1.msra.mxu0 %v1667
    %1700 = vmatprep.subr.mxu0 0.0
    %1701 = vmatpush1.msra.mxu0 %v1666
    %1702 = vmatprep.subr.mxu0 0.0
    %1703 = vmatpush1.msra.mxu0 %v1665
    %1704 = vmatprep.subr.mxu0 0.0
    %1705 = vmatpush1.msra.mxu0 %v1664
    %1706 = vmatprep.subr.mxu0 0.0
    %1707 = vmatpush1.msra.mxu0 %v1663
    %1708 = vmatprep.subr.mxu0 0.0
    %1709 = vmatpush1.msra.mxu0 %v1662
    %1710 = vmatprep.subr.mxu0 0.0
    %1711 = vmatpush2.msra.mxu0 0.0
    %1712 = vmatprep.subr.mxu0 0.0
    %1713 = vmatpush2.msra.mxu0 0.0
    %1714 = vmatprep.subr.mxu0 0.0
    %1715 = vmatpush2.msra.mxu0 0.0
    %1716 = vmatprep.subr.mxu0 0.0
    %1717 = vmatpush2.msra.mxu0 0.0
    %1718 = vmatprep.subr.mxu0 0.0
    %1719 = vmatpush2.msra.mxu0 0.0
    %1720 = vmatprep.subr.mxu0 0.0
    %1721 = vmatpush2.msra.mxu0 0.0
    %1722 = vmatprep.subr.mxu0 0.0
    %1723 = vmatpush2.msra.mxu0 0.0
    %1724 = vmatprep.subr.mxu0 0.0
    %1725 = vmatpush2.msra.mxu0 0.0
    %1726 = vmatprep.subr.mxu0 0.0
    %1727 = vmatpush2.msra.mxu0 0.0
    %1728 = vmatprep.subr.mxu0 0.0
    %1729 = vmatpush2.msra.mxu0 0.0
    %1730 = vmatprep.subr.mxu0 0.0
    %1731 = vmatpush2.msra.mxu0 0.0
    %1732 = vmatprep.subr.mxu0 0.0
    %1733 = vmatpush2.msra.mxu0 0.0
    %1734 = vmatprep.subr.mxu0 0.0
    %1735 = vmatpush2.msra.mxu0 0.0
    %1736 = vmatprep.subr.mxu0 0.0
    %1737 = vmatpush2.msra.mxu0 0.0
    %1738 = vmatprep.subr.mxu0 0.0
    %1739 = vmatpush2.msra.mxu0 0.0
    %1740 = vmatprep.subr.mxu0 0.0
    %1741 = vmatpush2.msra.mxu0 0.0
    %1742 = vmatprep.mubr.f32.mxu0 0.0
    %1743 = vmatmul.mubr.f32.gmra.mxu0 %v827
    %v1744 = vpop.f32.mrf.mxu0
    %v1745 = vadd.f32 %v1676, %v1744
    %v1746 = vpop.f32.mrf.mxu0
    %1747 = vdwg.mxu0
    %1748 = vmatprep.subr.mxu0 0.0
    %1749 = vmatpush1.msra.mxu0 0.0
    %1750 = vmatprep.subr.mxu0 0.0
    %1751 = vmatpush1.msra.mxu0 0.0
    %1752 = vmatprep.subr.mxu0 0.0
    %1753 = vmatpush1.msra.mxu0 0.0
    %1754 = vmatprep.subr.mxu0 0.0
    %1755 = vmatpush1.msra.mxu0 0.0
    %1756 = vmatprep.subr.mxu0 0.0
    %1757 = vmatpush1.msra.mxu0 0.0
    %1758 = vmatprep.subr.mxu0 0.0
    %1759 = vmatpush1.msra.mxu0 0.0
    %1760 = vmatprep.subr.mxu0 0.0
    %1761 = vmatpush1.msra.mxu0 0.0
    %1762 = vmatprep.subr.mxu0 0.0
    %1763 = vmatpush1.msra.mxu0 0.0
    %1764 = vmatprep.subr.mxu0 0.0
    %1765 = vmatpush1.msra.mxu0 0.0
    %1766 = vmatprep.subr.mxu0 0.0
    %1767 = vmatpush1.msra.mxu0 0.0
    %1768 = vmatprep.subr.mxu0 0.0
    %1769 = vmatpush1.msra.mxu0 0.0
    %1770 = vmatprep.subr.mxu0 0.0
    %1771 = vmatpush1.msra.mxu0 0.0
    %1772 = vmatprep.subr.mxu0 0.0
    %1773 = vmatpush1.msra.mxu0 0.0
    %1774 = vmatprep.subr.mxu0 0.0
    %1775 = vmatpush1.msra.mxu0 0.0
    %1776 = vmatprep.subr.mxu0 0.0
    %1777 = vmatpush1.msra.mxu0 0.0
    %1778 = vmatprep.subr.mxu0 0.0
    %1779 = vmatpush1.msra.mxu0 %v1745
    %1780 = vmatprep.subr.mxu0 0.0
    %1781 = vmatpush2.msra.mxu0 0.0
    %1782 = vmatprep.subr.mxu0 0.0
    %1783 = vmatpush2.msra.mxu0 0.0
    %1784 = vmatprep.subr.mxu0 0.0
    %1785 = vmatpush2.msra.mxu0 0.0
    %1786 = vmatprep.subr.mxu0 0.0
    %1787 = vmatpush2.msra.mxu0 0.0
    %1788 = vmatprep.subr.mxu0 0.0
    %1789 = vmatpush2.msra.mxu0 0.0
    %1790 = vmatprep.subr.mxu0 0.0
    %1791 = vmatpush2.msra.mxu0 0.0
    %1792 = vmatprep.subr.mxu0 0.0
    %1793 = vmatpush2.msra.mxu0 0.0
    %1794 = vmatprep.subr.mxu0 0.0
    %1795 = vmatpush2.msra.mxu0 0.0
    %1796 = vmatprep.subr.mxu0 0.0
    %1797 = vmatpush2.msra.mxu0 0.0
    %1798 = vmatprep.subr.mxu0 0.0
    %1799 = vmatpush2.msra.mxu0 0.0
    %1800 = vmatprep.subr.mxu0 0.0
    %1801 = vmatpush2.msra.mxu0 0.0
    %1802 = vmatprep.subr.mxu0 0.0
    %1803 = vmatpush2.msra.mxu0 0.0
    %1804 = vmatprep.subr.mxu0 0.0
    %1805 = vmatpush2.msra.mxu0 0.0
    %1806 = vmatprep.subr.mxu0 0.0
    %1807 = vmatpush2.msra.mxu0 0.0
    %1808 = vmatprep.subr.mxu0 0.0
    %1809 = vmatpush2.msra.mxu0 0.0
    %1810 = vmatprep.subr.mxu0 0.0
    %1811 = vmatpush2.msra.mxu0 0.0
    %1812 = vmatprep.mubr.f32.mxu0 0.0
    %1813 = vmatmul.mubr.f32.gmra.mxu0 %v997
    %v1814 = vpop.f32.mrf.mxu0
    %v1815 = vadd.f32 0.0, %v1814
    %v1816 = vpop.f32.mrf.mxu0
    %1817 = vmatprep.mubr.f32.mxu0 0.0
    %1818 = vmatmul.mubr.f32.gmra.mxu0 %v1000
    %v1819 = vpop.f32.mrf.mxu0
    %v1820 = vadd.f32 0.0, %v1819
    %v1821 = vpop.f32.mrf.mxu0
    %1822 = vmatprep.mubr.f32.mxu0 0.0
    %1823 = vmatmul.mubr.f32.gmra.mxu0 %v1003
    %v1824 = vpop.f32.mrf.mxu0
    %v1825 = vadd.f32 0.0, %v1824
    %v1826 = vpop.f32.mrf.mxu0
    %1827 = vmatprep.mubr.f32.mxu0 0.0
    %1828 = vmatmul.mubr.f32.gmra.mxu0 %v1006
    %v1829 = vpop.f32.mrf.mxu0
    %v1830 = vadd.f32 0.0, %v1829
    %v1831 = vpop.f32.mrf.mxu0
    %1832 = vdwg.mxu0
    %1833 = vmatprep.subr.mxu0 0.0
    %1834 = vmatpush1.msra.mxu0 0.0
    %1835 = vmatprep.subr.mxu0 0.0
    %1836 = vmatpush1.msra.mxu0 0.0
    %1837 = vmatprep.subr.mxu0 0.0
    %1838 = vmatpush1.msra.mxu0 0.0
    %1839 = vmatprep.subr.mxu0 0.0
    %1840 = vmatpush1.msra.mxu0 0.0
    %1841 = vmatprep.subr.mxu0 0.0
    %1842 = vmatpush1.msra.mxu0 0.0
    %1843 = vmatprep.subr.mxu0 0.0
    %1844 = vmatpush1.msra.mxu0 0.0
    %1845 = vmatprep.subr.mxu0 0.0
    %1846 = vmatpush1.msra.mxu0 0.0
    %1847 = vmatprep.subr.mxu0 0.0
    %1848 = vmatpush1.msra.mxu0 0.0
    %1849 = vmatprep.subr.mxu0 0.0
    %1850 = vmatpush1.msra.mxu0 0.0
    %1851 = vmatprep.subr.mxu0 0.0
    %1852 = vmatpush1.msra.mxu0 0.0
    %1853 = vmatprep.subr.mxu0 0.0
    %1854 = vmatpush1.msra.mxu0 0.0
    %1855 = vmatprep.subr.mxu0 0.0
    %1856 = vmatpush1.msra.mxu0 0.0
    %1857 = vmatprep.subr.mxu0 0.0
    %1858 = vmatpush1.msra.mxu0 0.0
    %1859 = vmatprep.subr.mxu0 0.0
    %1860 = vmatpush1.msra.mxu0 0.0
    %1861 = vmatprep.subr.mxu0 0.0
    %1862 = vmatpush1.msra.mxu0 0.0
    %1863 = vmatprep.subr.mxu0 0.0
    %1864 = vmatpush1.msra.mxu0 %v1658
    %1865 = vmatprep.subr.mxu0 0.0
    %1866 = vmatpush2.msra.mxu0 0.0
    %1867 = vmatprep.subr.mxu0 0.0
    %1868 = vmatpush2.msra.mxu0 0.0
    %1869 = vmatprep.subr.mxu0 0.0
    %1870 = vmatpush2.msra.mxu0 0.0
    %1871 = vmatprep.subr.mxu0 0.0
    %1872 = vmatpush2.msra.mxu0 0.0
    %1873 = vmatprep.subr.mxu0 0.0
    %1874 = vmatpush2.msra.mxu0 0.0
    %1875 = vmatprep.subr.mxu0 0.0
    %1876 = vmatpush2.msra.mxu0 0.0
    %1877 = vmatprep.subr.mxu0 0.0
    %1878 = vmatpush2.msra.mxu0 0.0
    %1879 = vmatprep.subr.mxu0 0.0
    %1880 = vmatpush2.msra.mxu0 0.0
    %1881 = vmatprep.subr.mxu0 0.0
    %1882 = vmatpush2.msra.mxu0 0.0
    %1883 = vmatprep.subr.mxu0 0.0
    %1884 = vmatpush2.msra.mxu0 0.0
    %1885 = vmatprep.subr.mxu0 0.0
    %1886 = vmatpush2.msra.mxu0 0.0
    %1887 = vmatprep.subr.mxu0 0.0
    %1888 = vmatpush2.msra.mxu0 0.0
    %1889 = vmatprep.subr.mxu0 0.0
    %1890 = vmatpush2.msra.mxu0 0.0
    %1891 = vmatprep.subr.mxu0 0.0
    %1892 = vmatpush2.msra.mxu0 0.0
    %1893 = vmatprep.subr.mxu0 0.0
    %1894 = vmatpush2.msra.mxu0 0.0
    %1895 = vmatprep.subr.mxu0 0.0
    %1896 = vmatpush2.msra.mxu0 0.0
    %1897 = vmatprep.mubr.f32.mxu0 0.0
    %1898 = vmatmul.mubr.f32.gmra.mxu0 %v1094
    %v1899 = vpop.f32.mrf.mxu0
    %v1900 = vadd.f32 %v1815, %v1899
    %v1901 = vpop.f32.mrf.mxu0
    %1902 = vmatprep.mubr.f32.mxu0 0.0
    %1903 = vmatmul.mubr.f32.gmra.mxu0 %v1097
    %v1904 = vpop.f32.mrf.mxu0
    %v1905 = vadd.f32 %v1820, %v1904
    %v1906 = vpop.f32.mrf.mxu0
    %1907 = vmatprep.mubr.f32.mxu0 0.0
    %1908 = vmatmul.mubr.f32.gmra.mxu0 %v1100
    %v1909 = vpop.f32.mrf.mxu0
    %v1910 = vadd.f32 %v1825, %v1909
    %v1911 = vpop.f32.mrf.mxu0
    %1912 = vmatprep.mubr.f32.mxu0 0.0
    %1913 = vmatmul.mubr.f32.gmra.mxu0 %v1103
    %v1914 = vpop.f32.mrf.mxu0
    %v1915 = vadd.f32 %v1830, %v1914
    %v1916 = vpop.f32.mrf.mxu0
    %1917 = vdwg.mxu0
    %s1918 = scalar_lea.vmem %s8, 128
    %v1919 = vld [vmem:[%s1918] sm:$0xff]
    %v1920 = vld [vmem:[%s1918 + $0x8] sm:$0xff]
    %v1921 = vld [vmem:[%s1918 + $0x10] sm:$0xff]
    %v1922 = vld [vmem:[%s1918 + $0x18] sm:$0xff]
    %v1923 = vld [vmem:[%s1918 + $0x20] sm:$0xff]
    %v1924 = vld [vmem:[%s1918 + $0x28] sm:$0xff]
    %v1925 = vld [vmem:[%s1918 + $0x30] sm:$0xff]
    %v1926 = vld [vmem:[%s1918 + $0x38] sm:$0xff]
    %s1927 = scalar_lea.vmem %s9, 2
    %v1928 = vld [vmem:[%s1927] sm:$0x1]
    %v1930 = vlaneseq
    %v1931 = vshrl.u32 %v1930, 7
    %v1932 = vsub.s32 0, %v1931
    %v1933 = vrot.slane %v1928, %v1932
    %1935 = vmatprep.subr.mxu0 0.0
    %1936 = vmatpush1.msra.mxu0 0.0
    %1937 = vmatprep.subr.mxu0 0.0
    %1938 = vmatpush1.msra.mxu0 0.0
    %1939 = vmatprep.subr.mxu0 0.0
    %1940 = vmatpush1.msra.mxu0 0.0
    %1941 = vmatprep.subr.mxu0 0.0
    %1942 = vmatpush1.msra.mxu0 0.0
    %1943 = vmatprep.subr.mxu0 0.0
    %1944 = vmatpush1.msra.mxu0 0.0
    %1945 = vmatprep.subr.mxu0 0.0
    %1946 = vmatpush1.msra.mxu0 0.0
    %1947 = vmatprep.subr.mxu0 0.0
    %1948 = vmatpush1.msra.mxu0 0.0
    %1949 = vmatprep.subr.mxu0 0.0
    %1950 = vmatpush1.msra.mxu0 0.0
    %1951 = vmatprep.subr.mxu0 0.0
    %1952 = vmatpush1.msra.mxu0 %v1926
    %1953 = vmatprep.subr.mxu0 0.0
    %1954 = vmatpush1.msra.mxu0 %v1925
    %1955 = vmatprep.subr.mxu0 0.0
    %1956 = vmatpush1.msra.mxu0 %v1924
    %1957 = vmatprep.subr.mxu0 0.0
    %1958 = vmatpush1.msra.mxu0 %v1923
    %1959 = vmatprep.subr.mxu0 0.0
    %1960 = vmatpush1.msra.mxu0 %v1922
    %1961 = vmatprep.subr.mxu0 0.0
    %1962 = vmatpush1.msra.mxu0 %v1921
    %1963 = vmatprep.subr.mxu0 0.0
    %1964 = vmatpush1.msra.mxu0 %v1920
    %1965 = vmatprep.subr.mxu0 0.0
    %1966 = vmatpush1.msra.mxu0 %v1919
    %1967 = vmatprep.subr.mxu0 0.0
    %1968 = vmatpush2.msra.mxu0 0.0
    %1969 = vmatprep.subr.mxu0 0.0
    %1970 = vmatpush2.msra.mxu0 0.0
    %1971 = vmatprep.subr.mxu0 0.0
    %1972 = vmatpush2.msra.mxu0 0.0
    %1973 = vmatprep.subr.mxu0 0.0
    %1974 = vmatpush2.msra.mxu0 0.0
    %1975 = vmatprep.subr.mxu0 0.0
    %1976 = vmatpush2.msra.mxu0 0.0
    %1977 = vmatprep.subr.mxu0 0.0
    %1978 = vmatpush2.msra.mxu0 0.0
    %1979 = vmatprep.subr.mxu0 0.0
    %1980 = vmatpush2.msra.mxu0 0.0
    %1981 = vmatprep.subr.mxu0 0.0
    %1982 = vmatpush2.msra.mxu0 0.0
    %1983 = vmatprep.subr.mxu0 0.0
    %1984 = vmatpush2.msra.mxu0 0.0
    %1985 = vmatprep.subr.mxu0 0.0
    %1986 = vmatpush2.msra.mxu0 0.0
    %1987 = vmatprep.subr.mxu0 0.0
    %1988 = vmatpush2.msra.mxu0 0.0
    %1989 = vmatprep.subr.mxu0 0.0
    %1990 = vmatpush2.msra.mxu0 0.0
    %1991 = vmatprep.subr.mxu0 0.0
    %1992 = vmatpush2.msra.mxu0 0.0
    %1993 = vmatprep.subr.mxu0 0.0
    %1994 = vmatpush2.msra.mxu0 0.0
    %1995 = vmatprep.subr.mxu0 0.0
    %1996 = vmatpush2.msra.mxu0 0.0
    %1997 = vmatprep.subr.mxu0 0.0
    %1998 = vmatpush2.msra.mxu0 0.0
    %1999 = vmatprep.mubr.f32.mxu0 0.0
    %2000 = vmatmul.mubr.f32.gmra.mxu0 %v827
    %v2001 = vpop.f32.mrf.mxu0
    %v2002 = vadd.f32 %v1933, %v2001
    %v2003 = vpop.f32.mrf.mxu0
    %2004 = vdwg.mxu0
    %2005 = vmatprep.subr.mxu0 0.0
    %2006 = vmatpush1.msra.mxu0 0.0
    %2007 = vmatprep.subr.mxu0 0.0
    %2008 = vmatpush1.msra.mxu0 0.0
    %2009 = vmatprep.subr.mxu0 0.0
    %2010 = vmatpush1.msra.mxu0 0.0
    %2011 = vmatprep.subr.mxu0 0.0
    %2012 = vmatpush1.msra.mxu0 0.0
    %2013 = vmatprep.subr.mxu0 0.0
    %2014 = vmatpush1.msra.mxu0 0.0
    %2015 = vmatprep.subr.mxu0 0.0
    %2016 = vmatpush1.msra.mxu0 0.0
    %2017 = vmatprep.subr.mxu0 0.0
    %2018 = vmatpush1.msra.mxu0 0.0
    %2019 = vmatprep.subr.mxu0 0.0
    %2020 = vmatpush1.msra.mxu0 0.0
    %2021 = vmatprep.subr.mxu0 0.0
    %2022 = vmatpush1.msra.mxu0 0.0
    %2023 = vmatprep.subr.mxu0 0.0
    %2024 = vmatpush1.msra.mxu0 0.0
    %2025 = vmatprep.subr.mxu0 0.0
    %2026 = vmatpush1.msra.mxu0 0.0
    %2027 = vmatprep.subr.mxu0 0.0
    %2028 = vmatpush1.msra.mxu0 0.0
    %2029 = vmatprep.subr.mxu0 0.0
    %2030 = vmatpush1.msra.mxu0 0.0
    %2031 = vmatprep.subr.mxu0 0.0
    %2032 = vmatpush1.msra.mxu0 0.0
    %2033 = vmatprep.subr.mxu0 0.0
    %2034 = vmatpush1.msra.mxu0 0.0
    %2035 = vmatprep.subr.mxu0 0.0
    %2036 = vmatpush1.msra.mxu0 %v2002
    %2037 = vmatprep.subr.mxu0 0.0
    %2038 = vmatpush2.msra.mxu0 0.0
    %2039 = vmatprep.subr.mxu0 0.0
    %2040 = vmatpush2.msra.mxu0 0.0
    %2041 = vmatprep.subr.mxu0 0.0
    %2042 = vmatpush2.msra.mxu0 0.0
    %2043 = vmatprep.subr.mxu0 0.0
    %2044 = vmatpush2.msra.mxu0 0.0
    %2045 = vmatprep.subr.mxu0 0.0
    %2046 = vmatpush2.msra.mxu0 0.0
    %2047 = vmatprep.subr.mxu0 0.0
    %2048 = vmatpush2.msra.mxu0 0.0
    %2049 = vmatprep.subr.mxu0 0.0
    %2050 = vmatpush2.msra.mxu0 0.0
    %2051 = vmatprep.subr.mxu0 0.0
    %2052 = vmatpush2.msra.mxu0 0.0
    %2053 = vmatprep.subr.mxu0 0.0
    %2054 = vmatpush2.msra.mxu0 0.0
    %2055 = vmatprep.subr.mxu0 0.0
    %2056 = vmatpush2.msra.mxu0 0.0
    %2057 = vmatprep.subr.mxu0 0.0
    %2058 = vmatpush2.msra.mxu0 0.0
    %2059 = vmatprep.subr.mxu0 0.0
    %2060 = vmatpush2.msra.mxu0 0.0
    %2061 = vmatprep.subr.mxu0 0.0
    %2062 = vmatpush2.msra.mxu0 0.0
    %2063 = vmatprep.subr.mxu0 0.0
    %2064 = vmatpush2.msra.mxu0 0.0
    %2065 = vmatprep.subr.mxu0 0.0
    %2066 = vmatpush2.msra.mxu0 0.0
    %2067 = vmatprep.subr.mxu0 0.0
    %2068 = vmatpush2.msra.mxu0 0.0
    %2069 = vmatprep.mubr.f32.mxu0 0.0
    %2070 = vmatmul.mubr.f32.gmra.mxu0 %v1283
    %v2071 = vpop.f32.mrf.mxu0
    %v2072 = vadd.f32 0.0, %v2071
    %v2073 = vpop.f32.mrf.mxu0
    %2074 = vmatprep.mubr.f32.mxu0 0.0
    %2075 = vmatmul.mubr.f32.gmra.mxu0 %v1286
    %v2076 = vpop.f32.mrf.mxu0
    %v2077 = vadd.f32 0.0, %v2076
    %v2078 = vpop.f32.mrf.mxu0
    %2079 = vmatprep.mubr.f32.mxu0 0.0
    %2080 = vmatmul.mubr.f32.gmra.mxu0 %v1289
    %v2081 = vpop.f32.mrf.mxu0
    %v2082 = vadd.f32 0.0, %v2081
    %v2083 = vpop.f32.mrf.mxu0
    %2084 = vmatprep.mubr.f32.mxu0 0.0
    %2085 = vmatmul.mubr.f32.gmra.mxu0 %v1292
    %v2086 = vpop.f32.mrf.mxu0
    %v2087 = vadd.f32 0.0, %v2086
    %v2088 = vpop.f32.mrf.mxu0
    %2089 = vdwg.mxu0
    %v2090 = vadd.f32 %v1900, %v2072
    %v2091 = vadd.f32 %v1905, %v2077
    %v2092 = vadd.f32 %v1910, %v2082
    %v2093 = vadd.f32 %v1915, %v2087
    %s2094 = scalar_lea.vmem %s8, 192
    %v2095 = vld [vmem:[%s2094] sm:$0xff]
    %v2096 = vld [vmem:[%s2094 + $0x8] sm:$0xff]
    %v2097 = vld [vmem:[%s2094 + $0x10] sm:$0xff]
    %v2098 = vld [vmem:[%s2094 + $0x18] sm:$0xff]
    %v2099 = vld [vmem:[%s2094 + $0x20] sm:$0xff]
    %v2100 = vld [vmem:[%s2094 + $0x28] sm:$0xff]
    %v2101 = vld [vmem:[%s2094 + $0x30] sm:$0xff]
    %v2102 = vld [vmem:[%s2094 + $0x38] sm:$0xff]
    %s2103 = scalar_lea.vmem %s9, 3
    %v2104 = vld [vmem:[%s2103] sm:$0x1]
    %v2106 = vlaneseq
    %v2107 = vshrl.u32 %v2106, 7
    %v2108 = vsub.s32 0, %v2107
    %v2109 = vrot.slane %v2104, %v2108
    %2111 = vmatprep.subr.mxu0 0.0
    %2112 = vmatpush1.msra.mxu0 0.0
    %2113 = vmatprep.subr.mxu0 0.0
    %2114 = vmatpush1.msra.mxu0 0.0
    %2115 = vmatprep.subr.mxu0 0.0
    %2116 = vmatpush1.msra.mxu0 0.0
    %2117 = vmatprep.subr.mxu0 0.0
    %2118 = vmatpush1.msra.mxu0 0.0
    %2119 = vmatprep.subr.mxu0 0.0
    %2120 = vmatpush1.msra.mxu0 0.0
    %2121 = vmatprep.subr.mxu0 0.0
    %2122 = vmatpush1.msra.mxu0 0.0
    %2123 = vmatprep.subr.mxu0 0.0
    %2124 = vmatpush1.msra.mxu0 0.0
    %2125 = vmatprep.subr.mxu0 0.0
    %2126 = vmatpush1.msra.mxu0 0.0
    %2127 = vmatprep.subr.mxu0 0.0
    %2128 = vmatpush1.msra.mxu0 %v2102
    %2129 = vmatprep.subr.mxu0 0.0
    %2130 = vmatpush1.msra.mxu0 %v2101
    %2131 = vmatprep.subr.mxu0 0.0
    %2132 = vmatpush1.msra.mxu0 %v2100
    %2133 = vmatprep.subr.mxu0 0.0
    %2134 = vmatpush1.msra.mxu0 %v2099
    %2135 = vmatprep.subr.mxu0 0.0
    %2136 = vmatpush1.msra.mxu0 %v2098
    %2137 = vmatprep.subr.mxu0 0.0
    %2138 = vmatpush1.msra.mxu0 %v2097
    %2139 = vmatprep.subr.mxu0 0.0
    %2140 = vmatpush1.msra.mxu0 %v2096
    %2141 = vmatprep.subr.mxu0 0.0
    %2142 = vmatpush1.msra.mxu0 %v2095
    %2143 = vmatprep.subr.mxu0 0.0
    %2144 = vmatpush2.msra.mxu0 0.0
    %2145 = vmatprep.subr.mxu0 0.0
    %2146 = vmatpush2.msra.mxu0 0.0
    %2147 = vmatprep.subr.mxu0 0.0
    %2148 = vmatpush2.msra.mxu0 0.0
    %2149 = vmatprep.subr.mxu0 0.0
    %2150 = vmatpush2.msra.mxu0 0.0
    %2151 = vmatprep.subr.mxu0 0.0
    %2152 = vmatpush2.msra.mxu0 0.0
    %2153 = vmatprep.subr.mxu0 0.0
    %2154 = vmatpush2.msra.mxu0 0.0
    %2155 = vmatprep.subr.mxu0 0.0
    %2156 = vmatpush2.msra.mxu0 0.0
    %2157 = vmatprep.subr.mxu0 0.0
    %2158 = vmatpush2.msra.mxu0 0.0
    %2159 = vmatprep.subr.mxu0 0.0
    %2160 = vmatpush2.msra.mxu0 0.0
    %2161 = vmatprep.subr.mxu0 0.0
    %2162 = vmatpush2.msra.mxu0 0.0
    %2163 = vmatprep.subr.mxu0 0.0
    %2164 = vmatpush2.msra.mxu0 0.0
    %2165 = vmatprep.subr.mxu0 0.0
    %2166 = vmatpush2.msra.mxu0 0.0
    %2167 = vmatprep.subr.mxu0 0.0
    %2168 = vmatpush2.msra.mxu0 0.0
    %2169 = vmatprep.subr.mxu0 0.0
    %2170 = vmatpush2.msra.mxu0 0.0
    %2171 = vmatprep.subr.mxu0 0.0
    %2172 = vmatpush2.msra.mxu0 0.0
    %2173 = vmatprep.subr.mxu0 0.0
    %2174 = vmatpush2.msra.mxu0 0.0
    %2175 = vmatprep.mubr.f32.mxu0 0.0
    %2176 = vmatmul.mubr.f32.gmra.mxu0 %v827
    %v2177 = vpop.f32.mrf.mxu0
    %v2178 = vadd.f32 %v2109, %v2177
    %v2179 = vpop.f32.mrf.mxu0
    %2180 = vdwg.mxu0
    %2181 = vmatprep.subr.mxu0 0.0
    %2182 = vmatpush1.msra.mxu0 0.0
    %2183 = vmatprep.subr.mxu0 0.0
    %2184 = vmatpush1.msra.mxu0 0.0
    %2185 = vmatprep.subr.mxu0 0.0
    %2186 = vmatpush1.msra.mxu0 0.0
    %2187 = vmatprep.subr.mxu0 0.0
    %2188 = vmatpush1.msra.mxu0 0.0
    %2189 = vmatprep.subr.mxu0 0.0
    %2190 = vmatpush1.msra.mxu0 0.0
    %2191 = vmatprep.subr.mxu0 0.0
    %2192 = vmatpush1.msra.mxu0 0.0
    %2193 = vmatprep.subr.mxu0 0.0
    %2194 = vmatpush1.msra.mxu0 0.0
    %2195 = vmatprep.subr.mxu0 0.0
    %2196 = vmatpush1.msra.mxu0 0.0
    %2197 = vmatprep.subr.mxu0 0.0
    %2198 = vmatpush1.msra.mxu0 0.0
    %2199 = vmatprep.subr.mxu0 0.0
    %2200 = vmatpush1.msra.mxu0 0.0
    %2201 = vmatprep.subr.mxu0 0.0
    %2202 = vmatpush1.msra.mxu0 0.0
    %2203 = vmatprep.subr.mxu0 0.0
    %2204 = vmatpush1.msra.mxu0 0.0
    %2205 = vmatprep.subr.mxu0 0.0
    %2206 = vmatpush1.msra.mxu0 0.0
    %2207 = vmatprep.subr.mxu0 0.0
    %2208 = vmatpush1.msra.mxu0 0.0
    %2209 = vmatprep.subr.mxu0 0.0
    %2210 = vmatpush1.msra.mxu0 0.0
    %2211 = vmatprep.subr.mxu0 0.0
    %2212 = vmatpush1.msra.mxu0 %v2178
    %2213 = vmatprep.subr.mxu0 0.0
    %2214 = vmatpush2.msra.mxu0 0.0
    %2215 = vmatprep.subr.mxu0 0.0
    %2216 = vmatpush2.msra.mxu0 0.0
    %2217 = vmatprep.subr.mxu0 0.0
    %2218 = vmatpush2.msra.mxu0 0.0
    %2219 = vmatprep.subr.mxu0 0.0
    %2220 = vmatpush2.msra.mxu0 0.0
    %2221 = vmatprep.subr.mxu0 0.0
    %2222 = vmatpush2.msra.mxu0 0.0
    %2223 = vmatprep.subr.mxu0 0.0
    %2224 = vmatpush2.msra.mxu0 0.0
    %2225 = vmatprep.subr.mxu0 0.0
    %2226 = vmatpush2.msra.mxu0 0.0
    %2227 = vmatprep.subr.mxu0 0.0
    %2228 = vmatpush2.msra.mxu0 0.0
    %2229 = vmatprep.subr.mxu0 0.0
    %2230 = vmatpush2.msra.mxu0 0.0
    %2231 = vmatprep.subr.mxu0 0.0
    %2232 = vmatpush2.msra.mxu0 0.0
    %2233 = vmatprep.subr.mxu0 0.0
    %2234 = vmatpush2.msra.mxu0 0.0
    %2235 = vmatprep.subr.mxu0 0.0
    %2236 = vmatpush2.msra.mxu0 0.0
    %2237 = vmatprep.subr.mxu0 0.0
    %2238 = vmatpush2.msra.mxu0 0.0
    %2239 = vmatprep.subr.mxu0 0.0
    %2240 = vmatpush2.msra.mxu0 0.0
    %2241 = vmatprep.subr.mxu0 0.0
    %2242 = vmatpush2.msra.mxu0 0.0
    %2243 = vmatprep.subr.mxu0 0.0
    %2244 = vmatpush2.msra.mxu0 0.0
    %2245 = vmatprep.mubr.f32.mxu0 0.0
    %2246 = vmatmul.mubr.f32.gmra.mxu0 %v1476
    %v2247 = vpop.f32.mrf.mxu0
    %v2248 = vadd.f32 0.0, %v2247
    %v2249 = vpop.f32.mrf.mxu0
    %2250 = vmatprep.mubr.f32.mxu0 0.0
    %2251 = vmatmul.mubr.f32.gmra.mxu0 %v1479
    %v2252 = vpop.f32.mrf.mxu0
    %v2253 = vadd.f32 0.0, %v2252
    %v2254 = vpop.f32.mrf.mxu0
    %2255 = vmatprep.mubr.f32.mxu0 0.0
    %2256 = vmatmul.mubr.f32.gmra.mxu0 %v1482
    %v2257 = vpop.f32.mrf.mxu0
    %v2258 = vadd.f32 0.0, %v2257
    %v2259 = vpop.f32.mrf.mxu0
    %2260 = vmatprep.mubr.f32.mxu0 0.0
    %2261 = vmatmul.mubr.f32.gmra.mxu0 %v1485
    %v2262 = vpop.f32.mrf.mxu0
    %v2263 = vadd.f32 0.0, %v2262
    %v2264 = vpop.f32.mrf.mxu0
    %2265 = vdwg.mxu0
    %v2266 = vadd.f32 %v2090, %v2248
    %v2267 = vadd.f32 %v2091, %v2253
    %v2268 = vadd.f32 %v2092, %v2258
    %v2269 = vadd.f32 %v2093, %v2263
    %vm2270 = vcmask 261120
    %v2272 = vsel %vm2270, %v441, 0
    %v2275 = vsel %vm2270, %v446, 0
    %v2278 = vsel %vm2270, %v451, 0
    %v2281 = vsel %vm2270, %v456, 0
    %v2284 = vsel %vm2270, %v793, 0
    %v2287 = vsel %vm2270, %v798, 0
    %v2290 = vsel %vm2270, %v803, 0
    %v2293 = vsel %vm2270, %v808, 0
    %2295 = vmatprep.subr.mxu0 0.0
    %2296 = vmatpush1.xpose.msra.mxu0 0.0
    %2297 = vmatprep.subr.mxu0 0.0
    %2298 = vmatpush1.xpose.msra.mxu0 0.0
    %2299 = vmatprep.subr.mxu0 0.0
    %2300 = vmatpush1.xpose.msra.mxu0 0.0
    %2301 = vmatprep.subr.mxu0 0.0
    %2302 = vmatpush1.xpose.msra.mxu0 0.0
    %2303 = vmatprep.subr.mxu0 0.0
    %2304 = vmatpush1.xpose.msra.mxu0 0.0
    %2305 = vmatprep.subr.mxu0 0.0
    %2306 = vmatpush1.xpose.msra.mxu0 0.0
    %2307 = vmatprep.subr.mxu0 0.0
    %2308 = vmatpush1.xpose.msra.mxu0 0.0
    %2309 = vmatprep.subr.mxu0 0.0
    %2310 = vmatpush1.xpose.msra.mxu0 0.0
    %2311 = vmatprep.subr.mxu0 0.0
    %2312 = vmatpush1.xpose.msra.mxu0 0.0
    %2313 = vmatprep.subr.mxu0 0.0
    %2314 = vmatpush1.xpose.msra.mxu0 0.0
    %2315 = vmatprep.subr.mxu0 0.0
    %2316 = vmatpush1.xpose.msra.mxu0 0.0
    %2317 = vmatprep.subr.mxu0 0.0
    %2318 = vmatpush1.xpose.msra.mxu0 0.0
    %2319 = vmatprep.subr.mxu0 0.0
    %2320 = vmatpush1.xpose.msra.mxu0 %v2293
    %2321 = vmatprep.subr.mxu0 0.0
    %2322 = vmatpush1.xpose.msra.mxu0 %v2290
    %2323 = vmatprep.subr.mxu0 0.0
    %2324 = vmatpush1.xpose.msra.mxu0 %v2287
    %2325 = vmatprep.subr.mxu0 0.0
    %2326 = vmatpush1.xpose.msra.mxu0 %v2284
    %2327 = vmatprep.subr.mxu0 0.0
    %2328 = vmatpush2.xpose.msra.mxu0 0.0
    %2329 = vmatprep.subr.mxu0 0.0
    %2330 = vmatpush2.xpose.msra.mxu0 0.0
    %2331 = vmatprep.subr.mxu0 0.0
    %2332 = vmatpush2.xpose.msra.mxu0 0.0
    %2333 = vmatprep.subr.mxu0 0.0
    %2334 = vmatpush2.xpose.msra.mxu0 0.0
    %2335 = vmatprep.subr.mxu0 0.0
    %2336 = vmatpush2.xpose.msra.mxu0 0.0
    %2337 = vmatprep.subr.mxu0 0.0
    %2338 = vmatpush2.xpose.msra.mxu0 0.0
    %2339 = vmatprep.subr.mxu0 0.0
    %2340 = vmatpush2.xpose.msra.mxu0 0.0
    %2341 = vmatprep.subr.mxu0 0.0
    %2342 = vmatpush2.xpose.msra.mxu0 0.0
    %2343 = vmatprep.subr.mxu0 0.0
    %2344 = vmatpush2.xpose.msra.mxu0 0.0
    %2345 = vmatprep.subr.mxu0 0.0
    %2346 = vmatpush2.xpose.msra.mxu0 0.0
    %2347 = vmatprep.subr.mxu0 0.0
    %2348 = vmatpush2.xpose.msra.mxu0 0.0
    %2349 = vmatprep.subr.mxu0 0.0
    %2350 = vmatpush2.xpose.msra.mxu0 0.0
    %2351 = vmatprep.subr.mxu0 0.0
    %2352 = vmatpush2.xpose.msra.mxu0 0.0
    %2353 = vmatprep.subr.mxu0 0.0
    %2354 = vmatpush2.xpose.msra.mxu0 0.0
    %2355 = vmatprep.subr.mxu0 0.0
    %2356 = vmatpush2.xpose.msra.mxu0 0.0
    %2357 = vmatprep.subr.mxu0 0.0
    %2358 = vmatpush2.xpose.msra.mxu0 0.0
    %2359 = vmatprep.mubr.f32.mxu0 0.0
    %2360 = vmatmul.mubr.f32.gmra.mxu0 %v2272
    %v2361 = vpop.f32.mrf.mxu0
    %v2362 = vadd.f32 0.0, %v2361
    %v2363 = vpop.f32.mrf.mxu0
    %2364 = vmatprep.mubr.f32.mxu0 0.0
    %2365 = vmatmul.mubr.f32.gmra.mxu0 %v2275
    %v2366 = vpop.f32.mrf.mxu0
    %v2367 = vadd.f32 0.0, %v2366
    %v2368 = vpop.f32.mrf.mxu0
    %2369 = vmatprep.mubr.f32.mxu0 0.0
    %2370 = vmatmul.mubr.f32.gmra.mxu0 %v2278
    %v2371 = vpop.f32.mrf.mxu0
    %v2372 = vadd.f32 0.0, %v2371
    %v2373 = vpop.f32.mrf.mxu0
    %2374 = vmatprep.mubr.f32.mxu0 0.0
    %2375 = vmatmul.mubr.f32.gmra.mxu0 %v2281
    %v2376 = vpop.f32.mrf.mxu0
    %v2377 = vadd.f32 0.0, %v2376
    %v2378 = vpop.f32.mrf.mxu0
    %2379 = vdwg.mxu0
    %v2381 = vsel %vm2270, %v2362, 0
    %v2384 = vsel %vm2270, %v2367, 0
    %v2387 = vsel %vm2270, %v2372, 0
    %v2390 = vsel %vm2270, %v2377, 0
    %2392 = vmatprep.subr.mxu0 0.0
    %2393 = vmatpush1.msra.mxu0 0.0
    %2394 = vmatprep.subr.mxu0 0.0
    %2395 = vmatpush1.msra.mxu0 0.0
    %2396 = vmatprep.subr.mxu0 0.0
    %2397 = vmatpush1.msra.mxu0 0.0
    %2398 = vmatprep.subr.mxu0 0.0
    %2399 = vmatpush1.msra.mxu0 0.0
    %2400 = vmatprep.subr.mxu0 0.0
    %2401 = vmatpush1.msra.mxu0 0.0
    %2402 = vmatprep.subr.mxu0 0.0
    %2403 = vmatpush1.msra.mxu0 0.0
    %2404 = vmatprep.subr.mxu0 0.0
    %2405 = vmatpush1.msra.mxu0 0.0
    %2406 = vmatprep.subr.mxu0 0.0
    %2407 = vmatpush1.msra.mxu0 0.0
    %2408 = vmatprep.subr.mxu0 0.0
    %2409 = vmatpush1.msra.mxu0 0.0
    %2410 = vmatprep.subr.mxu0 0.0
    %2411 = vmatpush1.msra.mxu0 0.0
    %2412 = vmatprep.subr.mxu0 0.0
    %2413 = vmatpush1.msra.mxu0 0.0
    %2414 = vmatprep.subr.mxu0 0.0
    %2415 = vmatpush1.msra.mxu0 0.0
    %2416 = vmatprep.subr.mxu0 0.0
    %2417 = vmatpush1.msra.mxu0 %v2269
    %2418 = vmatprep.subr.mxu0 0.0
    %2419 = vmatpush1.msra.mxu0 %v2268
    %2420 = vmatprep.subr.mxu0 0.0
    %2421 = vmatpush1.msra.mxu0 %v2267
    %2422 = vmatprep.subr.mxu0 0.0
    %2423 = vmatpush1.msra.mxu0 %v2266
    %2424 = vmatprep.subr.mxu0 0.0
    %2425 = vmatpush2.msra.mxu0 0.0
    %2426 = vmatprep.subr.mxu0 0.0
    %2427 = vmatpush2.msra.mxu0 0.0
    %2428 = vmatprep.subr.mxu0 0.0
    %2429 = vmatpush2.msra.mxu0 0.0
    %2430 = vmatprep.subr.mxu0 0.0
    %2431 = vmatpush2.msra.mxu0 0.0
    %2432 = vmatprep.subr.mxu0 0.0
    %2433 = vmatpush2.msra.mxu0 0.0
    %2434 = vmatprep.subr.mxu0 0.0
    %2435 = vmatpush2.msra.mxu0 0.0
    %2436 = vmatprep.subr.mxu0 0.0
    %2437 = vmatpush2.msra.mxu0 0.0
    %2438 = vmatprep.subr.mxu0 0.0
    %2439 = vmatpush2.msra.mxu0 0.0
    %2440 = vmatprep.subr.mxu0 0.0
    %2441 = vmatpush2.msra.mxu0 0.0
    %2442 = vmatprep.subr.mxu0 0.0
    %2443 = vmatpush2.msra.mxu0 0.0
    %2444 = vmatprep.subr.mxu0 0.0
    %2445 = vmatpush2.msra.mxu0 0.0
    %2446 = vmatprep.subr.mxu0 0.0
    %2447 = vmatpush2.msra.mxu0 0.0
    %2448 = vmatprep.subr.mxu0 0.0
    %2449 = vmatpush2.msra.mxu0 0.0
    %2450 = vmatprep.subr.mxu0 0.0
    %2451 = vmatpush2.msra.mxu0 0.0
    %2452 = vmatprep.subr.mxu0 0.0
    %2453 = vmatpush2.msra.mxu0 0.0
    %2454 = vmatprep.subr.mxu0 0.0
    %2455 = vmatpush2.msra.mxu0 0.0
    %2456 = vmatprep.mubr.f32.mxu0 0.0
    %2457 = vmatmul.mubr.f32.gmra.mxu0 %v2381
    %v2458 = vpop.f32.mrf.mxu0
    %v2459 = vadd.f32 0.0, %v2458
    %v2460 = vpop.f32.mrf.mxu0
    %2461 = vmatprep.mubr.f32.mxu0 0.0
    %2462 = vmatmul.mubr.f32.gmra.mxu0 %v2384
    %v2463 = vpop.f32.mrf.mxu0
    %v2464 = vadd.f32 0.0, %v2463
    %v2465 = vpop.f32.mrf.mxu0
    %2466 = vmatprep.mubr.f32.mxu0 0.0
    %2467 = vmatmul.mubr.f32.gmra.mxu0 %v2387
    %v2468 = vpop.f32.mrf.mxu0
    %v2469 = vadd.f32 0.0, %v2468
    %v2470 = vpop.f32.mrf.mxu0
    %2471 = vmatprep.mubr.f32.mxu0 0.0
    %2472 = vmatmul.mubr.f32.gmra.mxu0 %v2390
    %v2473 = vpop.f32.mrf.mxu0
    %v2474 = vadd.f32 0.0, %v2473
    %v2475 = vpop.f32.mrf.mxu0
    %2476 = vdwg.mxu0
    %v2477 = vmul.f32 %v2459, 0.03125
    %v2478 = vmul.f32 %v2464, 0.03125
    %v2479 = vmul.f32 %v2469, 0.03125
    %v2480 = vmul.f32 %v2474, 0.03125
    %v2482 = vsel %vm264, %v1572, 0
    %v2485 = vsel %vm264, %v1573, 0
    %v2488 = vsel %vm264, %v1574, 0
    %v2491 = vsel %vm264, %v1575, 0
    %v2494 = vsel %vm264, %v2266, 0
    %v2497 = vsel %vm264, %v2267, 0
    %v2500 = vsel %vm264, %v2268, 0
    %v2503 = vsel %vm264, %v2269, 0
    %2505 = vmatprep.subr.mxu0 0.0
    %2506 = vmatpush1.xpose.msra.mxu0 0.0
    %2507 = vmatprep.subr.mxu0 0.0
    %2508 = vmatpush1.xpose.msra.mxu0 0.0
    %2509 = vmatprep.subr.mxu0 0.0
    %2510 = vmatpush1.xpose.msra.mxu0 0.0
    %2511 = vmatprep.subr.mxu0 0.0
    %2512 = vmatpush1.xpose.msra.mxu0 0.0
    %2513 = vmatprep.subr.mxu0 0.0
    %2514 = vmatpush1.xpose.msra.mxu0 0.0
    %2515 = vmatprep.subr.mxu0 0.0
    %2516 = vmatpush1.xpose.msra.mxu0 0.0
    %2517 = vmatprep.subr.mxu0 0.0
    %2518 = vmatpush1.xpose.msra.mxu0 0.0
    %2519 = vmatprep.subr.mxu0 0.0
    %2520 = vmatpush1.xpose.msra.mxu0 0.0
    %2521 = vmatprep.subr.mxu0 0.0
    %2522 = vmatpush1.xpose.msra.mxu0 0.0
    %2523 = vmatprep.subr.mxu0 0.0
    %2524 = vmatpush1.xpose.msra.mxu0 0.0
    %2525 = vmatprep.subr.mxu0 0.0
    %2526 = vmatpush1.xpose.msra.mxu0 0.0
    %2527 = vmatprep.subr.mxu0 0.0
    %2528 = vmatpush1.xpose.msra.mxu0 0.0
    %2529 = vmatprep.subr.mxu0 0.0
    %2530 = vmatpush1.xpose.msra.mxu0 %v2503
    %2531 = vmatprep.subr.mxu0 0.0
    %2532 = vmatpush1.xpose.msra.mxu0 %v2500
    %2533 = vmatprep.subr.mxu0 0.0
    %2534 = vmatpush1.xpose.msra.mxu0 %v2497
    %2535 = vmatprep.subr.mxu0 0.0
    %2536 = vmatpush1.xpose.msra.mxu0 %v2494
    %2537 = vmatprep.subr.mxu0 0.0
    %2538 = vmatpush2.xpose.msra.mxu0 0.0
    %2539 = vmatprep.subr.mxu0 0.0
    %2540 = vmatpush2.xpose.msra.mxu0 0.0
    %2541 = vmatprep.subr.mxu0 0.0
    %2542 = vmatpush2.xpose.msra.mxu0 0.0
    %2543 = vmatprep.subr.mxu0 0.0
    %2544 = vmatpush2.xpose.msra.mxu0 0.0
    %2545 = vmatprep.subr.mxu0 0.0
    %2546 = vmatpush2.xpose.msra.mxu0 0.0
    %2547 = vmatprep.subr.mxu0 0.0
    %2548 = vmatpush2.xpose.msra.mxu0 0.0
    %2549 = vmatprep.subr.mxu0 0.0
    %2550 = vmatpush2.xpose.msra.mxu0 0.0
    %2551 = vmatprep.subr.mxu0 0.0
    %2552 = vmatpush2.xpose.msra.mxu0 0.0
    %2553 = vmatprep.subr.mxu0 0.0
    %2554 = vmatpush2.xpose.msra.mxu0 0.0
    %2555 = vmatprep.subr.mxu0 0.0
    %2556 = vmatpush2.xpose.msra.mxu0 0.0
    %2557 = vmatprep.subr.mxu0 0.0
    %2558 = vmatpush2.xpose.msra.mxu0 0.0
    %2559 = vmatprep.subr.mxu0 0.0
    %2560 = vmatpush2.xpose.msra.mxu0 0.0
    %2561 = vmatprep.subr.mxu0 0.0
    %2562 = vmatpush2.xpose.msra.mxu0 0.0
    %2563 = vmatprep.subr.mxu0 0.0
    %2564 = vmatpush2.xpose.msra.mxu0 0.0
    %2565 = vmatprep.subr.mxu0 0.0
    %2566 = vmatpush2.xpose.msra.mxu0 0.0
    %2567 = vmatprep.subr.mxu0 0.0
    %2568 = vmatpush2.xpose.msra.mxu0 0.0
    %2569 = vmatprep.mubr.f32.mxu0 0.0
    %2570 = vmatmul.mubr.f32.gmra.mxu0 %v2482
    %v2571 = vpop.f32.mrf.mxu0
    %v2572 = vadd.f32 0.0, %v2571
    %v2573 = vpop.f32.mrf.mxu0
    %2574 = vmatprep.mubr.f32.mxu0 0.0
    %2575 = vmatmul.mubr.f32.gmra.mxu0 %v2485
    %v2576 = vpop.f32.mrf.mxu0
    %v2577 = vadd.f32 0.0, %v2576
    %v2578 = vpop.f32.mrf.mxu0
    %2579 = vmatprep.mubr.f32.mxu0 0.0
    %2580 = vmatmul.mubr.f32.gmra.mxu0 %v2488
    %v2581 = vpop.f32.mrf.mxu0
    %v2582 = vadd.f32 0.0, %v2581
    %v2583 = vpop.f32.mrf.mxu0
    %2584 = vmatprep.mubr.f32.mxu0 0.0
    %2585 = vmatmul.mubr.f32.gmra.mxu0 %v2491
    %v2586 = vpop.f32.mrf.mxu0
    %v2587 = vadd.f32 0.0, %v2586
    %v2588 = vpop.f32.mrf.mxu0
    %2589 = vdwg.mxu0
    %v2591 = vsel %vm2270, %v2572, 0
    %v2594 = vsel %vm2270, %v2577, 0
    %v2597 = vsel %vm2270, %v2582, 0
    %v2600 = vsel %vm2270, %v2587, 0
    %2602 = vmatprep.subr.mxu0 0.0
    %2603 = vmatpush1.msra.mxu0 0.0
    %2604 = vmatprep.subr.mxu0 0.0
    %2605 = vmatpush1.msra.mxu0 0.0
    %2606 = vmatprep.subr.mxu0 0.0
    %2607 = vmatpush1.msra.mxu0 0.0
    %2608 = vmatprep.subr.mxu0 0.0
    %2609 = vmatpush1.msra.mxu0 0.0
    %2610 = vmatprep.subr.mxu0 0.0
    %2611 = vmatpush1.msra.mxu0 0.0
    %2612 = vmatprep.subr.mxu0 0.0
    %2613 = vmatpush1.msra.mxu0 0.0
    %2614 = vmatprep.subr.mxu0 0.0
    %2615 = vmatpush1.msra.mxu0 0.0
    %2616 = vmatprep.subr.mxu0 0.0
    %2617 = vmatpush1.msra.mxu0 0.0
    %2618 = vmatprep.subr.mxu0 0.0
    %2619 = vmatpush1.msra.mxu0 0.0
    %2620 = vmatprep.subr.mxu0 0.0
    %2621 = vmatpush1.msra.mxu0 0.0
    %2622 = vmatprep.subr.mxu0 0.0
    %2623 = vmatpush1.msra.mxu0 0.0
    %2624 = vmatprep.subr.mxu0 0.0
    %2625 = vmatpush1.msra.mxu0 0.0
    %2626 = vmatprep.subr.mxu0 0.0
    %2627 = vmatpush1.msra.mxu0 %v808
    %2628 = vmatprep.subr.mxu0 0.0
    %2629 = vmatpush1.msra.mxu0 %v803
    %2630 = vmatprep.subr.mxu0 0.0
    %2631 = vmatpush1.msra.mxu0 %v798
    %2632 = vmatprep.subr.mxu0 0.0
    %2633 = vmatpush1.msra.mxu0 %v793
    %2634 = vmatprep.subr.mxu0 0.0
    %2635 = vmatpush2.msra.mxu0 0.0
    %2636 = vmatprep.subr.mxu0 0.0
    %2637 = vmatpush2.msra.mxu0 0.0
    %2638 = vmatprep.subr.mxu0 0.0
    %2639 = vmatpush2.msra.mxu0 0.0
    %2640 = vmatprep.subr.mxu0 0.0
    %2641 = vmatpush2.msra.mxu0 0.0
    %2642 = vmatprep.subr.mxu0 0.0
    %2643 = vmatpush2.msra.mxu0 0.0
    %2644 = vmatprep.subr.mxu0 0.0
    %2645 = vmatpush2.msra.mxu0 0.0
    %2646 = vmatprep.subr.mxu0 0.0
    %2647 = vmatpush2.msra.mxu0 0.0
    %2648 = vmatprep.subr.mxu0 0.0
    %2649 = vmatpush2.msra.mxu0 0.0
    %2650 = vmatprep.subr.mxu0 0.0
    %2651 = vmatpush2.msra.mxu0 0.0
    %2652 = vmatprep.subr.mxu0 0.0
    %2653 = vmatpush2.msra.mxu0 0.0
    %2654 = vmatprep.subr.mxu0 0.0
    %2655 = vmatpush2.msra.mxu0 0.0
    %2656 = vmatprep.subr.mxu0 0.0
    %2657 = vmatpush2.msra.mxu0 0.0
    %2658 = vmatprep.subr.mxu0 0.0
    %2659 = vmatpush2.msra.mxu0 0.0
    %2660 = vmatprep.subr.mxu0 0.0
    %2661 = vmatpush2.msra.mxu0 0.0
    %2662 = vmatprep.subr.mxu0 0.0
    %2663 = vmatpush2.msra.mxu0 0.0
    %2664 = vmatprep.subr.mxu0 0.0
    %2665 = vmatpush2.msra.mxu0 0.0
    %2666 = vmatprep.mubr.f32.mxu0 0.0
    %2667 = vmatmul.mubr.f32.gmra.mxu0 %v2591
    %v2668 = vpop.f32.mrf.mxu0
    %v2669 = vadd.f32 0.0, %v2668
    %v2670 = vpop.f32.mrf.mxu0
    %2671 = vmatprep.mubr.f32.mxu0 0.0
    %2672 = vmatmul.mubr.f32.gmra.mxu0 %v2594
    %v2673 = vpop.f32.mrf.mxu0
    %v2674 = vadd.f32 0.0, %v2673
    %v2675 = vpop.f32.mrf.mxu0
    %2676 = vmatprep.mubr.f32.mxu0 0.0
    %2677 = vmatmul.mubr.f32.gmra.mxu0 %v2597
    %v2678 = vpop.f32.mrf.mxu0
    %v2679 = vadd.f32 0.0, %v2678
    %v2680 = vpop.f32.mrf.mxu0
    %2681 = vmatprep.mubr.f32.mxu0 0.0
    %2682 = vmatmul.mubr.f32.gmra.mxu0 %v2600
    %v2683 = vpop.f32.mrf.mxu0
    %v2684 = vadd.f32 0.0, %v2683
    %v2685 = vpop.f32.mrf.mxu0
    %2686 = vdwg.mxu0
    %v2687 = vmul.f32 %v2669, 0.0625
    %v2688 = vmul.f32 %v2674, 0.0625
    %v2689 = vmul.f32 %v2679, 0.0625
    %v2690 = vmul.f32 %v2684, 0.0625
    %v2691 = vld [vmem:[%s11] sm:$0x1]
    %v2693 = vlaneseq
    %v2694 = vshrl.u32 %v2693, 7
    %v2695 = vsub.s32 0, %v2694
    %v2696 = vrot.slane %v2691, %v2695
    %v2698 = vadd.f32 %v65, %v2696
    %v2699 = vld [vmem:[%s17] sm:$0xff]
    %v2701 = vsel %vm2270, %v2699, 0
    %2703 = vmatprep.subr.mxu0 0.0
    %2704 = vmatpush1.msra.mxu0 0.0
    %2705 = vmatprep.subr.mxu0 0.0
    %2706 = vmatpush1.msra.mxu0 0.0
    %2707 = vmatprep.subr.mxu0 0.0
    %2708 = vmatpush1.msra.mxu0 0.0
    %2709 = vmatprep.subr.mxu0 0.0
    %2710 = vmatpush1.msra.mxu0 0.0
    %2711 = vmatprep.subr.mxu0 0.0
    %2712 = vmatpush1.msra.mxu0 0.0
    %2713 = vmatprep.subr.mxu0 0.0
    %2714 = vmatpush1.msra.mxu0 0.0
    %2715 = vmatprep.subr.mxu0 0.0
    %2716 = vmatpush1.msra.mxu0 0.0
    %2717 = vmatprep.subr.mxu0 0.0
    %2718 = vmatpush1.msra.mxu0 0.0
    %2719 = vmatprep.subr.mxu0 0.0
    %2720 = vmatpush1.msra.mxu0 0.0
    %2721 = vmatprep.subr.mxu0 0.0
    %2722 = vmatpush1.msra.mxu0 0.0
    %2723 = vmatprep.subr.mxu0 0.0
    %2724 = vmatpush1.msra.mxu0 0.0
    %2725 = vmatprep.subr.mxu0 0.0
    %2726 = vmatpush1.msra.mxu0 0.0
    %2727 = vmatprep.subr.mxu0 0.0
    %2728 = vmatpush1.msra.mxu0 %v2480
    %2729 = vmatprep.subr.mxu0 0.0
    %2730 = vmatpush1.msra.mxu0 %v2479
    %2731 = vmatprep.subr.mxu0 0.0
    %2732 = vmatpush1.msra.mxu0 %v2478
    %2733 = vmatprep.subr.mxu0 0.0
    %2734 = vmatpush1.msra.mxu0 %v2477
    %2735 = vmatprep.subr.mxu0 0.0
    %2736 = vmatpush2.msra.mxu0 0.0
    %2737 = vmatprep.subr.mxu0 0.0
    %2738 = vmatpush2.msra.mxu0 0.0
    %2739 = vmatprep.subr.mxu0 0.0
    %2740 = vmatpush2.msra.mxu0 0.0
    %2741 = vmatprep.subr.mxu0 0.0
    %2742 = vmatpush2.msra.mxu0 0.0
    %2743 = vmatprep.subr.mxu0 0.0
    %2744 = vmatpush2.msra.mxu0 0.0
    %2745 = vmatprep.subr.mxu0 0.0
    %2746 = vmatpush2.msra.mxu0 0.0
    %2747 = vmatprep.subr.mxu0 0.0
    %2748 = vmatpush2.msra.mxu0 0.0
    %2749 = vmatprep.subr.mxu0 0.0
    %2750 = vmatpush2.msra.mxu0 0.0
    %2751 = vmatprep.subr.mxu0 0.0
    %2752 = vmatpush2.msra.mxu0 0.0
    %2753 = vmatprep.subr.mxu0 0.0
    %2754 = vmatpush2.msra.mxu0 0.0
    %2755 = vmatprep.subr.mxu0 0.0
    %2756 = vmatpush2.msra.mxu0 0.0
    %2757 = vmatprep.subr.mxu0 0.0
    %2758 = vmatpush2.msra.mxu0 0.0
    %2759 = vmatprep.subr.mxu0 0.0
    %2760 = vmatpush2.msra.mxu0 0.0
    %2761 = vmatprep.subr.mxu0 0.0
    %2762 = vmatpush2.msra.mxu0 0.0
    %2763 = vmatprep.subr.mxu0 0.0
    %2764 = vmatpush2.msra.mxu0 0.0
    %2765 = vmatprep.subr.mxu0 0.0
    %2766 = vmatpush2.msra.mxu0 0.0
    %2767 = vmatprep.mubr.f32.mxu0 0.0
    %2768 = vmatmul.mubr.f32.gmra.mxu0 %v2701
    %v2769 = vpop.f32.mrf.mxu0
    %v2770 = vadd.f32 0.0, %v2769
    %v2771 = vpop.f32.mrf.mxu0
    %2772 = vdwg.mxu0
    %v2773 = vld [vmem:[%s10] sm:$0xff]
    %v2774 = vld [vmem:[%s10 + $0x8] sm:$0xff]
    %v2776 = vsel %vm264, %v2770, 0
    %2778 = vmatprep.subr.mxu0 0.0
    %2779 = vmatpush1.msra.mxu0 0.0
    %2780 = vmatprep.subr.mxu0 0.0
    %2781 = vmatpush1.msra.mxu0 0.0
    %2782 = vmatprep.subr.mxu0 0.0
    %2783 = vmatpush1.msra.mxu0 0.0
    %2784 = vmatprep.subr.mxu0 0.0
    %2785 = vmatpush1.msra.mxu0 0.0
    %2786 = vmatprep.subr.mxu0 0.0
    %2787 = vmatpush1.msra.mxu0 0.0
    %2788 = vmatprep.subr.mxu0 0.0
    %2789 = vmatpush1.msra.mxu0 0.0
    %2790 = vmatprep.subr.mxu0 0.0
    %2791 = vmatpush1.msra.mxu0 0.0
    %2792 = vmatprep.subr.mxu0 0.0
    %2793 = vmatpush1.msra.mxu0 0.0
    %2794 = vmatprep.subr.mxu0 0.0
    %2795 = vmatpush1.msra.mxu0 0.0
    %2796 = vmatprep.subr.mxu0 0.0
    %2797 = vmatpush1.msra.mxu0 0.0
    %2798 = vmatprep.subr.mxu0 0.0
    %2799 = vmatpush1.msra.mxu0 0.0
    %2800 = vmatprep.subr.mxu0 0.0
    %2801 = vmatpush1.msra.mxu0 0.0
    %2802 = vmatprep.subr.mxu0 0.0
    %2803 = vmatpush1.msra.mxu0 0.0
    %2804 = vmatprep.subr.mxu0 0.0
    %2805 = vmatpush1.msra.mxu0 0.0
    %2806 = vmatprep.subr.mxu0 0.0
    %2807 = vmatpush1.msra.mxu0 %v2774
    %2808 = vmatprep.subr.mxu0 0.0
    %2809 = vmatpush1.msra.mxu0 %v2773
    %2810 = vmatprep.subr.mxu0 0.0
    %2811 = vmatpush2.msra.mxu0 0.0
    %2812 = vmatprep.subr.mxu0 0.0
    %2813 = vmatpush2.msra.mxu0 0.0
    %2814 = vmatprep.subr.mxu0 0.0
    %2815 = vmatpush2.msra.mxu0 0.0
    %2816 = vmatprep.subr.mxu0 0.0
    %2817 = vmatpush2.msra.mxu0 0.0
    %2818 = vmatprep.subr.mxu0 0.0
    %2819 = vmatpush2.msra.mxu0 0.0
    %2820 = vmatprep.subr.mxu0 0.0
    %2821 = vmatpush2.msra.mxu0 0.0
    %2822 = vmatprep.subr.mxu0 0.0
    %2823 = vmatpush2.msra.mxu0 0.0
    %2824 = vmatprep.subr.mxu0 0.0
    %2825 = vmatpush2.msra.mxu0 0.0
    %2826 = vmatprep.subr.mxu0 0.0
    %2827 = vmatpush2.msra.mxu0 0.0
    %2828 = vmatprep.subr.mxu0 0.0
    %2829 = vmatpush2.msra.mxu0 0.0
    %2830 = vmatprep.subr.mxu0 0.0
    %2831 = vmatpush2.msra.mxu0 0.0
    %2832 = vmatprep.subr.mxu0 0.0
    %2833 = vmatpush2.msra.mxu0 0.0
    %2834 = vmatprep.subr.mxu0 0.0
    %2835 = vmatpush2.msra.mxu0 0.0
    %2836 = vmatprep.subr.mxu0 0.0
    %2837 = vmatpush2.msra.mxu0 0.0
    %2838 = vmatprep.subr.mxu0 0.0
    %2839 = vmatpush2.msra.mxu0 0.0
    %2840 = vmatprep.subr.mxu0 0.0
    %2841 = vmatpush2.msra.mxu0 0.0
    %2842 = vmatprep.mubr.f32.mxu0 0.0
    %2843 = vmatmul.mubr.f32.gmra.mxu0 %v2776
    %v2844 = vpop.f32.mrf.mxu0
    %v2845 = vadd.f32 0.0, %v2844
    %v2846 = vpop.f32.mrf.mxu0
    %2847 = vdwg.mxu0
    %v2848 = vadd.f32 %v2698, %v2845
    %s2849 = scalar_lea.vmem %s17, 8
    %v2850 = vld [vmem:[%s2849] sm:$0xff]
    %v2852 = vsel %vm2270, %v2850, 0
    %2854 = vmatprep.subr.mxu0 0.0
    %2855 = vmatpush1.msra.mxu0 0.0
    %2856 = vmatprep.subr.mxu0 0.0
    %2857 = vmatpush1.msra.mxu0 0.0
    %2858 = vmatprep.subr.mxu0 0.0
    %2859 = vmatpush1.msra.mxu0 0.0
    %2860 = vmatprep.subr.mxu0 0.0
    %2861 = vmatpush1.msra.mxu0 0.0
    %2862 = vmatprep.subr.mxu0 0.0
    %2863 = vmatpush1.msra.mxu0 0.0
    %2864 = vmatprep.subr.mxu0 0.0
    %2865 = vmatpush1.msra.mxu0 0.0
    %2866 = vmatprep.subr.mxu0 0.0
    %2867 = vmatpush1.msra.mxu0 0.0
    %2868 = vmatprep.subr.mxu0 0.0
    %2869 = vmatpush1.msra.mxu0 0.0
    %2870 = vmatprep.subr.mxu0 0.0
    %2871 = vmatpush1.msra.mxu0 0.0
    %2872 = vmatprep.subr.mxu0 0.0
    %2873 = vmatpush1.msra.mxu0 0.0
    %2874 = vmatprep.subr.mxu0 0.0
    %2875 = vmatpush1.msra.mxu0 0.0
    %2876 = vmatprep.subr.mxu0 0.0
    %2877 = vmatpush1.msra.mxu0 0.0
    %2878 = vmatprep.subr.mxu0 0.0
    %2879 = vmatpush1.msra.mxu0 %v2480
    %2880 = vmatprep.subr.mxu0 0.0
    %2881 = vmatpush1.msra.mxu0 %v2479
    %2882 = vmatprep.subr.mxu0 0.0
    %2883 = vmatpush1.msra.mxu0 %v2478
    %2884 = vmatprep.subr.mxu0 0.0
    %2885 = vmatpush1.msra.mxu0 %v2477
    %2886 = vmatprep.subr.mxu0 0.0
    %2887 = vmatpush2.msra.mxu0 0.0
    %2888 = vmatprep.subr.mxu0 0.0
    %2889 = vmatpush2.msra.mxu0 0.0
    %2890 = vmatprep.subr.mxu0 0.0
    %2891 = vmatpush2.msra.mxu0 0.0
    %2892 = vmatprep.subr.mxu0 0.0
    %2893 = vmatpush2.msra.mxu0 0.0
    %2894 = vmatprep.subr.mxu0 0.0
    %2895 = vmatpush2.msra.mxu0 0.0
    %2896 = vmatprep.subr.mxu0 0.0
    %2897 = vmatpush2.msra.mxu0 0.0
    %2898 = vmatprep.subr.mxu0 0.0
    %2899 = vmatpush2.msra.mxu0 0.0
    %2900 = vmatprep.subr.mxu0 0.0
    %2901 = vmatpush2.msra.mxu0 0.0
    %2902 = vmatprep.subr.mxu0 0.0
    %2903 = vmatpush2.msra.mxu0 0.0
    %2904 = vmatprep.subr.mxu0 0.0
    %2905 = vmatpush2.msra.mxu0 0.0
    %2906 = vmatprep.subr.mxu0 0.0
    %2907 = vmatpush2.msra.mxu0 0.0
    %2908 = vmatprep.subr.mxu0 0.0
    %2909 = vmatpush2.msra.mxu0 0.0
    %2910 = vmatprep.subr.mxu0 0.0
    %2911 = vmatpush2.msra.mxu0 0.0
    %2912 = vmatprep.subr.mxu0 0.0
    %2913 = vmatpush2.msra.mxu0 0.0
    %2914 = vmatprep.subr.mxu0 0.0
    %2915 = vmatpush2.msra.mxu0 0.0
    %2916 = vmatprep.subr.mxu0 0.0
    %2917 = vmatpush2.msra.mxu0 0.0
    %2918 = vmatprep.mubr.f32.mxu0 0.0
    %2919 = vmatmul.mubr.f32.gmra.mxu0 %v2852
    %v2920 = vpop.f32.mrf.mxu0
    %v2921 = vadd.f32 0.0, %v2920
    %v2922 = vpop.f32.mrf.mxu0
    %2923 = vdwg.mxu0
    %s2924 = scalar_lea.vmem %s10, 16
    %v2925 = vld [vmem:[%s2924] sm:$0xff]
    %v2926 = vld [vmem:[%s2924 + $0x8] sm:$0xff]
    %v2928 = vsel %vm264, %v2921, 0
    %2930 = vmatprep.subr.mxu0 0.0
    %2931 = vmatpush1.msra.mxu0 0.0
    %2932 = vmatprep.subr.mxu0 0.0
    %2933 = vmatpush1.msra.mxu0 0.0
    %2934 = vmatprep.subr.mxu0 0.0
    %2935 = vmatpush1.msra.mxu0 0.0
    %2936 = vmatprep.subr.mxu0 0.0
    %2937 = vmatpush1.msra.mxu0 0.0
    %2938 = vmatprep.subr.mxu0 0.0
    %2939 = vmatpush1.msra.mxu0 0.0
    %2940 = vmatprep.subr.mxu0 0.0
    %2941 = vmatpush1.msra.mxu0 0.0
    %2942 = vmatprep.subr.mxu0 0.0
    %2943 = vmatpush1.msra.mxu0 0.0
    %2944 = vmatprep.subr.mxu0 0.0
    %2945 = vmatpush1.msra.mxu0 0.0
    %2946 = vmatprep.subr.mxu0 0.0
    %2947 = vmatpush1.msra.mxu0 0.0
    %2948 = vmatprep.subr.mxu0 0.0
    %2949 = vmatpush1.msra.mxu0 0.0
    %2950 = vmatprep.subr.mxu0 0.0
    %2951 = vmatpush1.msra.mxu0 0.0
    %2952 = vmatprep.subr.mxu0 0.0
    %2953 = vmatpush1.msra.mxu0 0.0
    %2954 = vmatprep.subr.mxu0 0.0
    %2955 = vmatpush1.msra.mxu0 0.0
    %2956 = vmatprep.subr.mxu0 0.0
    %2957 = vmatpush1.msra.mxu0 0.0
    %2958 = vmatprep.subr.mxu0 0.0
    %2959 = vmatpush1.msra.mxu0 %v2926
    %2960 = vmatprep.subr.mxu0 0.0
    %2961 = vmatpush1.msra.mxu0 %v2925
    %2962 = vmatprep.subr.mxu0 0.0
    %2963 = vmatpush2.msra.mxu0 0.0
    %2964 = vmatprep.subr.mxu0 0.0
    %2965 = vmatpush2.msra.mxu0 0.0
    %2966 = vmatprep.subr.mxu0 0.0
    %2967 = vmatpush2.msra.mxu0 0.0
    %2968 = vmatprep.subr.mxu0 0.0
    %2969 = vmatpush2.msra.mxu0 0.0
    %2970 = vmatprep.subr.mxu0 0.0
    %2971 = vmatpush2.msra.mxu0 0.0
    %2972 = vmatprep.subr.mxu0 0.0
    %2973 = vmatpush2.msra.mxu0 0.0
    %2974 = vmatprep.subr.mxu0 0.0
    %2975 = vmatpush2.msra.mxu0 0.0
    %2976 = vmatprep.subr.mxu0 0.0
    %2977 = vmatpush2.msra.mxu0 0.0
    %2978 = vmatprep.subr.mxu0 0.0
    %2979 = vmatpush2.msra.mxu0 0.0
    %2980 = vmatprep.subr.mxu0 0.0
    %2981 = vmatpush2.msra.mxu0 0.0
    %2982 = vmatprep.subr.mxu0 0.0
    %2983 = vmatpush2.msra.mxu0 0.0
    %2984 = vmatprep.subr.mxu0 0.0
    %2985 = vmatpush2.msra.mxu0 0.0
    %2986 = vmatprep.subr.mxu0 0.0
    %2987 = vmatpush2.msra.mxu0 0.0
    %2988 = vmatprep.subr.mxu0 0.0
    %2989 = vmatpush2.msra.mxu0 0.0
    %2990 = vmatprep.subr.mxu0 0.0
    %2991 = vmatpush2.msra.mxu0 0.0
    %2992 = vmatprep.subr.mxu0 0.0
    %2993 = vmatpush2.msra.mxu0 0.0
    %2994 = vmatprep.mubr.f32.mxu0 0.0
    %2995 = vmatmul.mubr.f32.gmra.mxu0 %v2928
    %v2996 = vpop.f32.mrf.mxu0
    %v2997 = vadd.f32 0.0, %v2996
    %v2998 = vpop.f32.mrf.mxu0
    %2999 = vdwg.mxu0
    %v3000 = vadd.f32 %v2848, %v2997
    %s3001 = scalar_lea.vmem %s17, 16
    %v3002 = vld [vmem:[%s3001] sm:$0xff]
    %v3004 = vsel %vm2270, %v3002, 0
    %3006 = vmatprep.subr.mxu0 0.0
    %3007 = vmatpush1.msra.mxu0 0.0
    %3008 = vmatprep.subr.mxu0 0.0
    %3009 = vmatpush1.msra.mxu0 0.0
    %3010 = vmatprep.subr.mxu0 0.0
    %3011 = vmatpush1.msra.mxu0 0.0
    %3012 = vmatprep.subr.mxu0 0.0
    %3013 = vmatpush1.msra.mxu0 0.0
    %3014 = vmatprep.subr.mxu0 0.0
    %3015 = vmatpush1.msra.mxu0 0.0
    %3016 = vmatprep.subr.mxu0 0.0
    %3017 = vmatpush1.msra.mxu0 0.0
    %3018 = vmatprep.subr.mxu0 0.0
    %3019 = vmatpush1.msra.mxu0 0.0
    %3020 = vmatprep.subr.mxu0 0.0
    %3021 = vmatpush1.msra.mxu0 0.0
    %3022 = vmatprep.subr.mxu0 0.0
    %3023 = vmatpush1.msra.mxu0 0.0
    %3024 = vmatprep.subr.mxu0 0.0
    %3025 = vmatpush1.msra.mxu0 0.0
    %3026 = vmatprep.subr.mxu0 0.0
    %3027 = vmatpush1.msra.mxu0 0.0
    %3028 = vmatprep.subr.mxu0 0.0
    %3029 = vmatpush1.msra.mxu0 0.0
    %3030 = vmatprep.subr.mxu0 0.0
    %3031 = vmatpush1.msra.mxu0 %v2480
    %3032 = vmatprep.subr.mxu0 0.0
    %3033 = vmatpush1.msra.mxu0 %v2479
    %3034 = vmatprep.subr.mxu0 0.0
    %3035 = vmatpush1.msra.mxu0 %v2478
    %3036 = vmatprep.subr.mxu0 0.0
    %3037 = vmatpush1.msra.mxu0 %v2477
    %3038 = vmatprep.subr.mxu0 0.0
    %3039 = vmatpush2.msra.mxu0 0.0
    %3040 = vmatprep.subr.mxu0 0.0
    %3041 = vmatpush2.msra.mxu0 0.0
    %3042 = vmatprep.subr.mxu0 0.0
    %3043 = vmatpush2.msra.mxu0 0.0
    %3044 = vmatprep.subr.mxu0 0.0
    %3045 = vmatpush2.msra.mxu0 0.0
    %3046 = vmatprep.subr.mxu0 0.0
    %3047 = vmatpush2.msra.mxu0 0.0
    %3048 = vmatprep.subr.mxu0 0.0
    %3049 = vmatpush2.msra.mxu0 0.0
    %3050 = vmatprep.subr.mxu0 0.0
    %3051 = vmatpush2.msra.mxu0 0.0
    %3052 = vmatprep.subr.mxu0 0.0
    %3053 = vmatpush2.msra.mxu0 0.0
    %3054 = vmatprep.subr.mxu0 0.0
    %3055 = vmatpush2.msra.mxu0 0.0
    %3056 = vmatprep.subr.mxu0 0.0
    %3057 = vmatpush2.msra.mxu0 0.0
    %3058 = vmatprep.subr.mxu0 0.0
    %3059 = vmatpush2.msra.mxu0 0.0
    %3060 = vmatprep.subr.mxu0 0.0
    %3061 = vmatpush2.msra.mxu0 0.0
    %3062 = vmatprep.subr.mxu0 0.0
    %3063 = vmatpush2.msra.mxu0 0.0
    %3064 = vmatprep.subr.mxu0 0.0
    %3065 = vmatpush2.msra.mxu0 0.0
    %3066 = vmatprep.subr.mxu0 0.0
    %3067 = vmatpush2.msra.mxu0 0.0
    %3068 = vmatprep.subr.mxu0 0.0
    %3069 = vmatpush2.msra.mxu0 0.0
    %3070 = vmatprep.mubr.f32.mxu0 0.0
    %3071 = vmatmul.mubr.f32.gmra.mxu0 %v3004
    %v3072 = vpop.f32.mrf.mxu0
    %v3073 = vadd.f32 0.0, %v3072
    %v3074 = vpop.f32.mrf.mxu0
    %3075 = vdwg.mxu0
    %s3076 = scalar_lea.vmem %s10, 32
    %v3077 = vld [vmem:[%s3076] sm:$0xff]
    %v3078 = vld [vmem:[%s3076 + $0x8] sm:$0xff]
    %v3080 = vsel %vm264, %v3073, 0
    %3082 = vmatprep.subr.mxu0 0.0
    %3083 = vmatpush1.msra.mxu0 0.0
    %3084 = vmatprep.subr.mxu0 0.0
    %3085 = vmatpush1.msra.mxu0 0.0
    %3086 = vmatprep.subr.mxu0 0.0
    %3087 = vmatpush1.msra.mxu0 0.0
    %3088 = vmatprep.subr.mxu0 0.0
    %3089 = vmatpush1.msra.mxu0 0.0
    %3090 = vmatprep.subr.mxu0 0.0
    %3091 = vmatpush1.msra.mxu0 0.0
    %3092 = vmatprep.subr.mxu0 0.0
    %3093 = vmatpush1.msra.mxu0 0.0
    %3094 = vmatprep.subr.mxu0 0.0
    %3095 = vmatpush1.msra.mxu0 0.0
    %3096 = vmatprep.subr.mxu0 0.0
    %3097 = vmatpush1.msra.mxu0 0.0
    %3098 = vmatprep.subr.mxu0 0.0
    %3099 = vmatpush1.msra.mxu0 0.0
    %3100 = vmatprep.subr.mxu0 0.0
    %3101 = vmatpush1.msra.mxu0 0.0
    %3102 = vmatprep.subr.mxu0 0.0
    %3103 = vmatpush1.msra.mxu0 0.0
    %3104 = vmatprep.subr.mxu0 0.0
    %3105 = vmatpush1.msra.mxu0 0.0
    %3106 = vmatprep.subr.mxu0 0.0
    %3107 = vmatpush1.msra.mxu0 0.0
    %3108 = vmatprep.subr.mxu0 0.0
    %3109 = vmatpush1.msra.mxu0 0.0
    %3110 = vmatprep.subr.mxu0 0.0
    %3111 = vmatpush1.msra.mxu0 %v3078
    %3112 = vmatprep.subr.mxu0 0.0
    %3113 = vmatpush1.msra.mxu0 %v3077
    %3114 = vmatprep.subr.mxu0 0.0
    %3115 = vmatpush2.msra.mxu0 0.0
    %3116 = vmatprep.subr.mxu0 0.0
    %3117 = vmatpush2.msra.mxu0 0.0
    %3118 = vmatprep.subr.mxu0 0.0
    %3119 = vmatpush2.msra.mxu0 0.0
    %3120 = vmatprep.subr.mxu0 0.0
    %3121 = vmatpush2.msra.mxu0 0.0
    %3122 = vmatprep.subr.mxu0 0.0
    %3123 = vmatpush2.msra.mxu0 0.0
    %3124 = vmatprep.subr.mxu0 0.0
    %3125 = vmatpush2.msra.mxu0 0.0
    %3126 = vmatprep.subr.mxu0 0.0
    %3127 = vmatpush2.msra.mxu0 0.0
    %3128 = vmatprep.subr.mxu0 0.0
    %3129 = vmatpush2.msra.mxu0 0.0
    %3130 = vmatprep.subr.mxu0 0.0
    %3131 = vmatpush2.msra.mxu0 0.0
    %3132 = vmatprep.subr.mxu0 0.0
    %3133 = vmatpush2.msra.mxu0 0.0
    %3134 = vmatprep.subr.mxu0 0.0
    %3135 = vmatpush2.msra.mxu0 0.0
    %3136 = vmatprep.subr.mxu0 0.0
    %3137 = vmatpush2.msra.mxu0 0.0
    %3138 = vmatprep.subr.mxu0 0.0
    %3139 = vmatpush2.msra.mxu0 0.0
    %3140 = vmatprep.subr.mxu0 0.0
    %3141 = vmatpush2.msra.mxu0 0.0
    %3142 = vmatprep.subr.mxu0 0.0
    %3143 = vmatpush2.msra.mxu0 0.0
    %3144 = vmatprep.subr.mxu0 0.0
    %3145 = vmatpush2.msra.mxu0 0.0
    %3146 = vmatprep.mubr.f32.mxu0 0.0
    %3147 = vmatmul.mubr.f32.gmra.mxu0 %v3080
    %v3148 = vpop.f32.mrf.mxu0
    %v3149 = vadd.f32 0.0, %v3148
    %v3150 = vpop.f32.mrf.mxu0
    %3151 = vdwg.mxu0
    %v3152 = vadd.f32 %v3000, %v3149
    %s3153 = scalar_lea.vmem %s17, 24
    %v3154 = vld [vmem:[%s3153] sm:$0xff]
    %v3156 = vsel %vm2270, %v3154, 0
    %3158 = vmatprep.subr.mxu0 0.0
    %3159 = vmatpush1.msra.mxu0 0.0
    %3160 = vmatprep.subr.mxu0 0.0
    %3161 = vmatpush1.msra.mxu0 0.0
    %3162 = vmatprep.subr.mxu0 0.0
    %3163 = vmatpush1.msra.mxu0 0.0
    %3164 = vmatprep.subr.mxu0 0.0
    %3165 = vmatpush1.msra.mxu0 0.0
    %3166 = vmatprep.subr.mxu0 0.0
    %3167 = vmatpush1.msra.mxu0 0.0
    %3168 = vmatprep.subr.mxu0 0.0
    %3169 = vmatpush1.msra.mxu0 0.0
    %3170 = vmatprep.subr.mxu0 0.0
    %3171 = vmatpush1.msra.mxu0 0.0
    %3172 = vmatprep.subr.mxu0 0.0
    %3173 = vmatpush1.msra.mxu0 0.0
    %3174 = vmatprep.subr.mxu0 0.0
    %3175 = vmatpush1.msra.mxu0 0.0
    %3176 = vmatprep.subr.mxu0 0.0
    %3177 = vmatpush1.msra.mxu0 0.0
    %3178 = vmatprep.subr.mxu0 0.0
    %3179 = vmatpush1.msra.mxu0 0.0
    %3180 = vmatprep.subr.mxu0 0.0
    %3181 = vmatpush1.msra.mxu0 0.0
    %3182 = vmatprep.subr.mxu0 0.0
    %3183 = vmatpush1.msra.mxu0 %v2480
    %3184 = vmatprep.subr.mxu0 0.0
    %3185 = vmatpush1.msra.mxu0 %v2479
    %3186 = vmatprep.subr.mxu0 0.0
    %3187 = vmatpush1.msra.mxu0 %v2478
    %3188 = vmatprep.subr.mxu0 0.0
    %3189 = vmatpush1.msra.mxu0 %v2477
    %3190 = vmatprep.subr.mxu0 0.0
    %3191 = vmatpush2.msra.mxu0 0.0
    %3192 = vmatprep.subr.mxu0 0.0
    %3193 = vmatpush2.msra.mxu0 0.0
    %3194 = vmatprep.subr.mxu0 0.0
    %3195 = vmatpush2.msra.mxu0 0.0
    %3196 = vmatprep.subr.mxu0 0.0
    %3197 = vmatpush2.msra.mxu0 0.0
    %3198 = vmatprep.subr.mxu0 0.0
    %3199 = vmatpush2.msra.mxu0 0.0
    %3200 = vmatprep.subr.mxu0 0.0
    %3201 = vmatpush2.msra.mxu0 0.0
    %3202 = vmatprep.subr.mxu0 0.0
    %3203 = vmatpush2.msra.mxu0 0.0
    %3204 = vmatprep.subr.mxu0 0.0
    %3205 = vmatpush2.msra.mxu0 0.0
    %3206 = vmatprep.subr.mxu0 0.0
    %3207 = vmatpush2.msra.mxu0 0.0
    %3208 = vmatprep.subr.mxu0 0.0
    %3209 = vmatpush2.msra.mxu0 0.0
    %3210 = vmatprep.subr.mxu0 0.0
    %3211 = vmatpush2.msra.mxu0 0.0
    %3212 = vmatprep.subr.mxu0 0.0
    %3213 = vmatpush2.msra.mxu0 0.0
    %3214 = vmatprep.subr.mxu0 0.0
    %3215 = vmatpush2.msra.mxu0 0.0
    %3216 = vmatprep.subr.mxu0 0.0
    %3217 = vmatpush2.msra.mxu0 0.0
    %3218 = vmatprep.subr.mxu0 0.0
    %3219 = vmatpush2.msra.mxu0 0.0
    %3220 = vmatprep.subr.mxu0 0.0
    %3221 = vmatpush2.msra.mxu0 0.0
    %3222 = vmatprep.mubr.f32.mxu0 0.0
    %3223 = vmatmul.mubr.f32.gmra.mxu0 %v3156
    %v3224 = vpop.f32.mrf.mxu0
    %v3225 = vadd.f32 0.0, %v3224
    %v3226 = vpop.f32.mrf.mxu0
    %3227 = vdwg.mxu0
    %s3228 = scalar_lea.vmem %s10, 48
    %v3229 = vld [vmem:[%s3228] sm:$0xff]
    %v3230 = vld [vmem:[%s3228 + $0x8] sm:$0xff]
    %v3232 = vsel %vm264, %v3225, 0
    %3234 = vmatprep.subr.mxu0 0.0
    %3235 = vmatpush1.msra.mxu0 0.0
    %3236 = vmatprep.subr.mxu0 0.0
    %3237 = vmatpush1.msra.mxu0 0.0
    %3238 = vmatprep.subr.mxu0 0.0
    %3239 = vmatpush1.msra.mxu0 0.0
    %3240 = vmatprep.subr.mxu0 0.0
    %3241 = vmatpush1.msra.mxu0 0.0
    %3242 = vmatprep.subr.mxu0 0.0
    %3243 = vmatpush1.msra.mxu0 0.0
    %3244 = vmatprep.subr.mxu0 0.0
    %3245 = vmatpush1.msra.mxu0 0.0
    %3246 = vmatprep.subr.mxu0 0.0
    %3247 = vmatpush1.msra.mxu0 0.0
    %3248 = vmatprep.subr.mxu0 0.0
    %3249 = vmatpush1.msra.mxu0 0.0
    %3250 = vmatprep.subr.mxu0 0.0
    %3251 = vmatpush1.msra.mxu0 0.0
    %3252 = vmatprep.subr.mxu0 0.0
    %3253 = vmatpush1.msra.mxu0 0.0
    %3254 = vmatprep.subr.mxu0 0.0
    %3255 = vmatpush1.msra.mxu0 0.0
    %3256 = vmatprep.subr.mxu0 0.0
    %3257 = vmatpush1.msra.mxu0 0.0
    %3258 = vmatprep.subr.mxu0 0.0
    %3259 = vmatpush1.msra.mxu0 0.0
    %3260 = vmatprep.subr.mxu0 0.0
    %3261 = vmatpush1.msra.mxu0 0.0
    %3262 = vmatprep.subr.mxu0 0.0
    %3263 = vmatpush1.msra.mxu0 %v3230
    %3264 = vmatprep.subr.mxu0 0.0
    %3265 = vmatpush1.msra.mxu0 %v3229
    %3266 = vmatprep.subr.mxu0 0.0
    %3267 = vmatpush2.msra.mxu0 0.0
    %3268 = vmatprep.subr.mxu0 0.0
    %3269 = vmatpush2.msra.mxu0 0.0
    %3270 = vmatprep.subr.mxu0 0.0
    %3271 = vmatpush2.msra.mxu0 0.0
    %3272 = vmatprep.subr.mxu0 0.0
    %3273 = vmatpush2.msra.mxu0 0.0
    %3274 = vmatprep.subr.mxu0 0.0
    %3275 = vmatpush2.msra.mxu0 0.0
    %3276 = vmatprep.subr.mxu0 0.0
    %3277 = vmatpush2.msra.mxu0 0.0
    %3278 = vmatprep.subr.mxu0 0.0
    %3279 = vmatpush2.msra.mxu0 0.0
    %3280 = vmatprep.subr.mxu0 0.0
    %3281 = vmatpush2.msra.mxu0 0.0
    %3282 = vmatprep.subr.mxu0 0.0
    %3283 = vmatpush2.msra.mxu0 0.0
    %3284 = vmatprep.subr.mxu0 0.0
    %3285 = vmatpush2.msra.mxu0 0.0
    %3286 = vmatprep.subr.mxu0 0.0
    %3287 = vmatpush2.msra.mxu0 0.0
    %3288 = vmatprep.subr.mxu0 0.0
    %3289 = vmatpush2.msra.mxu0 0.0
    %3290 = vmatprep.subr.mxu0 0.0
    %3291 = vmatpush2.msra.mxu0 0.0
    %3292 = vmatprep.subr.mxu0 0.0
    %3293 = vmatpush2.msra.mxu0 0.0
    %3294 = vmatprep.subr.mxu0 0.0
    %3295 = vmatpush2.msra.mxu0 0.0
    %3296 = vmatprep.subr.mxu0 0.0
    %3297 = vmatpush2.msra.mxu0 0.0
    %3298 = vmatprep.mubr.f32.mxu0 0.0
    %3299 = vmatmul.mubr.f32.gmra.mxu0 %v3232
    %v3300 = vpop.f32.mrf.mxu0
    %v3301 = vadd.f32 0.0, %v3300
    %v3302 = vpop.f32.mrf.mxu0
    %3303 = vdwg.mxu0
    %v3304 = vadd.f32 %v3152, %v3301
    %v3305 = vld [vmem:[%s13] sm:$0x1]
    %v3307 = vlaneseq
    %v3308 = vshrl.u32 %v3307, 7
    %v3309 = vsub.s32 0, %v3308
    %v3310 = vrot.slane %v3305, %v3309
    %v3312 = vadd.f32 %v63, %v3310
    %v3313 = vadd.f32 %v64, %v3310
    %v3314 = vld [vmem:[%s16] sm:$0xff]
    %v3315 = vld [vmem:[%s16 + $0x8] sm:$0xff]
    %v3317 = vsel %vm2270, %v3314, 0
    %v3320 = vsel %vm2270, %v3315, 0
    %3322 = vmatprep.subr.mxu0 0.0
    %3323 = vmatpush1.msra.mxu0 0.0
    %3324 = vmatprep.subr.mxu0 0.0
    %3325 = vmatpush1.msra.mxu0 0.0
    %3326 = vmatprep.subr.mxu0 0.0
    %3327 = vmatpush1.msra.mxu0 0.0
    %3328 = vmatprep.subr.mxu0 0.0
    %3329 = vmatpush1.msra.mxu0 0.0
    %3330 = vmatprep.subr.mxu0 0.0
    %3331 = vmatpush1.msra.mxu0 0.0
    %3332 = vmatprep.subr.mxu0 0.0
    %3333 = vmatpush1.msra.mxu0 0.0
    %3334 = vmatprep.subr.mxu0 0.0
    %3335 = vmatpush1.msra.mxu0 0.0
    %3336 = vmatprep.subr.mxu0 0.0
    %3337 = vmatpush1.msra.mxu0 0.0
    %3338 = vmatprep.subr.mxu0 0.0
    %3339 = vmatpush1.msra.mxu0 0.0
    %3340 = vmatprep.subr.mxu0 0.0
    %3341 = vmatpush1.msra.mxu0 0.0
    %3342 = vmatprep.subr.mxu0 0.0
    %3343 = vmatpush1.msra.mxu0 0.0
    %3344 = vmatprep.subr.mxu0 0.0
    %3345 = vmatpush1.msra.mxu0 0.0
    %3346 = vmatprep.subr.mxu0 0.0
    %3347 = vmatpush1.msra.mxu0 %v2690
    %3348 = vmatprep.subr.mxu0 0.0
    %3349 = vmatpush1.msra.mxu0 %v2689
    %3350 = vmatprep.subr.mxu0 0.0
    %3351 = vmatpush1.msra.mxu0 %v2688
    %3352 = vmatprep.subr.mxu0 0.0
    %3353 = vmatpush1.msra.mxu0 %v2687
    %3354 = vmatprep.subr.mxu0 0.0
    %3355 = vmatpush2.msra.mxu0 0.0
    %3356 = vmatprep.subr.mxu0 0.0
    %3357 = vmatpush2.msra.mxu0 0.0
    %3358 = vmatprep.subr.mxu0 0.0
    %3359 = vmatpush2.msra.mxu0 0.0
    %3360 = vmatprep.subr.mxu0 0.0
    %3361 = vmatpush2.msra.mxu0 0.0
    %3362 = vmatprep.subr.mxu0 0.0
    %3363 = vmatpush2.msra.mxu0 0.0
    %3364 = vmatprep.subr.mxu0 0.0
    %3365 = vmatpush2.msra.mxu0 0.0
    %3366 = vmatprep.subr.mxu0 0.0
    %3367 = vmatpush2.msra.mxu0 0.0
    %3368 = vmatprep.subr.mxu0 0.0
    %3369 = vmatpush2.msra.mxu0 0.0
    %3370 = vmatprep.subr.mxu0 0.0
    %3371 = vmatpush2.msra.mxu0 0.0
    %3372 = vmatprep.subr.mxu0 0.0
    %3373 = vmatpush2.msra.mxu0 0.0
    %3374 = vmatprep.subr.mxu0 0.0
    %3375 = vmatpush2.msra.mxu0 0.0
    %3376 = vmatprep.subr.mxu0 0.0
    %3377 = vmatpush2.msra.mxu0 0.0
    %3378 = vmatprep.subr.mxu0 0.0
    %3379 = vmatpush2.msra.mxu0 0.0
    %3380 = vmatprep.subr.mxu0 0.0
    %3381 = vmatpush2.msra.mxu0 0.0
    %3382 = vmatprep.subr.mxu0 0.0
    %3383 = vmatpush2.msra.mxu0 0.0
    %3384 = vmatprep.subr.mxu0 0.0
    %3385 = vmatpush2.msra.mxu0 0.0
    %3386 = vmatprep.mubr.f32.mxu0 0.0
    %3387 = vmatmul.mubr.f32.gmra.mxu0 %v3317
    %v3388 = vpop.f32.mrf.mxu0
    %v3389 = vadd.f32 0.0, %v3388
    %v3390 = vpop.f32.mrf.mxu0
    %3391 = vmatprep.mubr.f32.mxu0 0.0
    %3392 = vmatmul.mubr.f32.gmra.mxu0 %v3320
    %v3393 = vpop.f32.mrf.mxu0
    %v3394 = vadd.f32 0.0, %v3393
    %v3395 = vpop.f32.mrf.mxu0
    %3396 = vdwg.mxu0
    %v3397 = vld [vmem:[%s12] sm:$0xff]
    %v3398 = vld [vmem:[%s12 + $0x8] sm:$0xff]
    %v3399 = vld [vmem:[%s12 + $0x10] sm:$0xff]
    %v3400 = vld [vmem:[%s12 + $0x18] sm:$0xff]
    %v3402 = vsel %vm2270, %v3389, 0
    %v3405 = vsel %vm2270, %v3394, 0
    %3407 = vmatprep.subr.mxu0 0.0
    %3408 = vmatpush1.msra.mxu0 0.0
    %3409 = vmatprep.subr.mxu0 0.0
    %3410 = vmatpush1.msra.mxu0 0.0
    %3411 = vmatprep.subr.mxu0 0.0
    %3412 = vmatpush1.msra.mxu0 0.0
    %3413 = vmatprep.subr.mxu0 0.0
    %3414 = vmatpush1.msra.mxu0 0.0
    %3415 = vmatprep.subr.mxu0 0.0
    %3416 = vmatpush1.msra.mxu0 0.0
    %3417 = vmatprep.subr.mxu0 0.0
    %3418 = vmatpush1.msra.mxu0 0.0
    %3419 = vmatprep.subr.mxu0 0.0
    %3420 = vmatpush1.msra.mxu0 0.0
    %3421 = vmatprep.subr.mxu0 0.0
    %3422 = vmatpush1.msra.mxu0 0.0
    %3423 = vmatprep.subr.mxu0 0.0
    %3424 = vmatpush1.msra.mxu0 0.0
    %3425 = vmatprep.subr.mxu0 0.0
    %3426 = vmatpush1.msra.mxu0 0.0
    %3427 = vmatprep.subr.mxu0 0.0
    %3428 = vmatpush1.msra.mxu0 0.0
    %3429 = vmatprep.subr.mxu0 0.0
    %3430 = vmatpush1.msra.mxu0 0.0
    %3431 = vmatprep.subr.mxu0 0.0
    %3432 = vmatpush1.msra.mxu0 %v3400
    %3433 = vmatprep.subr.mxu0 0.0
    %3434 = vmatpush1.msra.mxu0 %v3399
    %3435 = vmatprep.subr.mxu0 0.0
    %3436 = vmatpush1.msra.mxu0 %v3398
    %3437 = vmatprep.subr.mxu0 0.0
    %3438 = vmatpush1.msra.mxu0 %v3397
    %3439 = vmatprep.subr.mxu0 0.0
    %3440 = vmatpush2.msra.mxu0 0.0
    %3441 = vmatprep.subr.mxu0 0.0
    %3442 = vmatpush2.msra.mxu0 0.0
    %3443 = vmatprep.subr.mxu0 0.0
    %3444 = vmatpush2.msra.mxu0 0.0
    %3445 = vmatprep.subr.mxu0 0.0
    %3446 = vmatpush2.msra.mxu0 0.0
    %3447 = vmatprep.subr.mxu0 0.0
    %3448 = vmatpush2.msra.mxu0 0.0
    %3449 = vmatprep.subr.mxu0 0.0
    %3450 = vmatpush2.msra.mxu0 0.0
    %3451 = vmatprep.subr.mxu0 0.0
    %3452 = vmatpush2.msra.mxu0 0.0
    %3453 = vmatprep.subr.mxu0 0.0
    %3454 = vmatpush2.msra.mxu0 0.0
    %3455 = vmatprep.subr.mxu0 0.0
    %3456 = vmatpush2.msra.mxu0 0.0
    %3457 = vmatprep.subr.mxu0 0.0
    %3458 = vmatpush2.msra.mxu0 0.0
    %3459 = vmatprep.subr.mxu0 0.0
    %3460 = vmatpush2.msra.mxu0 0.0
    %3461 = vmatprep.subr.mxu0 0.0
    %3462 = vmatpush2.msra.mxu0 0.0
    %3463 = vmatprep.subr.mxu0 0.0
    %3464 = vmatpush2.msra.mxu0 0.0
    %3465 = vmatprep.subr.mxu0 0.0
    %3466 = vmatpush2.msra.mxu0 0.0
    %3467 = vmatprep.subr.mxu0 0.0
    %3468 = vmatpush2.msra.mxu0 0.0
    %3469 = vmatprep.subr.mxu0 0.0
    %3470 = vmatpush2.msra.mxu0 0.0
    %3471 = vmatprep.mubr.f32.mxu0 0.0
    %3472 = vmatmul.mubr.f32.gmra.mxu0 %v3402
    %v3473 = vpop.f32.mrf.mxu0
    %v3474 = vadd.f32 0.0, %v3473
    %v3475 = vpop.f32.mrf.mxu0
    %3476 = vmatprep.mubr.f32.mxu0 0.0
    %3477 = vmatmul.mubr.f32.gmra.mxu0 %v3405
    %v3478 = vpop.f32.mrf.mxu0
    %v3479 = vadd.f32 0.0, %v3478
    %v3480 = vpop.f32.mrf.mxu0
    %3481 = vdwg.mxu0
    %v3482 = vadd.f32 %v3312, %v3474
    %v3483 = vadd.f32 %v3313, %v3479
    %s3484 = scalar_lea.vmem %s16, 16
    %v3485 = vld [vmem:[%s3484] sm:$0xff]
    %v3486 = vld [vmem:[%s3484 + $0x8] sm:$0xff]
    %v3488 = vsel %vm2270, %v3485, 0
    %v3491 = vsel %vm2270, %v3486, 0
    %3493 = vmatprep.subr.mxu0 0.0
    %3494 = vmatpush1.msra.mxu0 0.0
    %3495 = vmatprep.subr.mxu0 0.0
    %3496 = vmatpush1.msra.mxu0 0.0
    %3497 = vmatprep.subr.mxu0 0.0
    %3498 = vmatpush1.msra.mxu0 0.0
    %3499 = vmatprep.subr.mxu0 0.0
    %3500 = vmatpush1.msra.mxu0 0.0
    %3501 = vmatprep.subr.mxu0 0.0
    %3502 = vmatpush1.msra.mxu0 0.0
    %3503 = vmatprep.subr.mxu0 0.0
    %3504 = vmatpush1.msra.mxu0 0.0
    %3505 = vmatprep.subr.mxu0 0.0
    %3506 = vmatpush1.msra.mxu0 0.0
    %3507 = vmatprep.subr.mxu0 0.0
    %3508 = vmatpush1.msra.mxu0 0.0
    %3509 = vmatprep.subr.mxu0 0.0
    %3510 = vmatpush1.msra.mxu0 0.0
    %3511 = vmatprep.subr.mxu0 0.0
    %3512 = vmatpush1.msra.mxu0 0.0
    %3513 = vmatprep.subr.mxu0 0.0
    %3514 = vmatpush1.msra.mxu0 0.0
    %3515 = vmatprep.subr.mxu0 0.0
    %3516 = vmatpush1.msra.mxu0 0.0
    %3517 = vmatprep.subr.mxu0 0.0
    %3518 = vmatpush1.msra.mxu0 %v2690
    %3519 = vmatprep.subr.mxu0 0.0
    %3520 = vmatpush1.msra.mxu0 %v2689
    %3521 = vmatprep.subr.mxu0 0.0
    %3522 = vmatpush1.msra.mxu0 %v2688
    %3523 = vmatprep.subr.mxu0 0.0
    %3524 = vmatpush1.msra.mxu0 %v2687
    %3525 = vmatprep.subr.mxu0 0.0
    %3526 = vmatpush2.msra.mxu0 0.0
    %3527 = vmatprep.subr.mxu0 0.0
    %3528 = vmatpush2.msra.mxu0 0.0
    %3529 = vmatprep.subr.mxu0 0.0
    %3530 = vmatpush2.msra.mxu0 0.0
    %3531 = vmatprep.subr.mxu0 0.0
    %3532 = vmatpush2.msra.mxu0 0.0
    %3533 = vmatprep.subr.mxu0 0.0
    %3534 = vmatpush2.msra.mxu0 0.0
    %3535 = vmatprep.subr.mxu0 0.0
    %3536 = vmatpush2.msra.mxu0 0.0
    %3537 = vmatprep.subr.mxu0 0.0
    %3538 = vmatpush2.msra.mxu0 0.0
    %3539 = vmatprep.subr.mxu0 0.0
    %3540 = vmatpush2.msra.mxu0 0.0
    %3541 = vmatprep.subr.mxu0 0.0
    %3542 = vmatpush2.msra.mxu0 0.0
    %3543 = vmatprep.subr.mxu0 0.0
    %3544 = vmatpush2.msra.mxu0 0.0
    %3545 = vmatprep.subr.mxu0 0.0
    %3546 = vmatpush2.msra.mxu0 0.0
    %3547 = vmatprep.subr.mxu0 0.0
    %3548 = vmatpush2.msra.mxu0 0.0
    %3549 = vmatprep.subr.mxu0 0.0
    %3550 = vmatpush2.msra.mxu0 0.0
    %3551 = vmatprep.subr.mxu0 0.0
    %3552 = vmatpush2.msra.mxu0 0.0
    %3553 = vmatprep.subr.mxu0 0.0
    %3554 = vmatpush2.msra.mxu0 0.0
    %3555 = vmatprep.subr.mxu0 0.0
    %3556 = vmatpush2.msra.mxu0 0.0
    %3557 = vmatprep.mubr.f32.mxu0 0.0
    %3558 = vmatmul.mubr.f32.gmra.mxu0 %v3488
    %v3559 = vpop.f32.mrf.mxu0
    %v3560 = vadd.f32 0.0, %v3559
    %v3561 = vpop.f32.mrf.mxu0
    %3562 = vmatprep.mubr.f32.mxu0 0.0
    %3563 = vmatmul.mubr.f32.gmra.mxu0 %v3491
    %v3564 = vpop.f32.mrf.mxu0
    %v3565 = vadd.f32 0.0, %v3564
    %v3566 = vpop.f32.mrf.mxu0
    %3567 = vdwg.mxu0
    %s3568 = scalar_lea.vmem %s12, 32
    %v3569 = vld [vmem:[%s3568] sm:$0xff]
    %v3570 = vld [vmem:[%s3568 + $0x8] sm:$0xff]
    %v3571 = vld [vmem:[%s3568 + $0x10] sm:$0xff]
    %v3572 = vld [vmem:[%s3568 + $0x18] sm:$0xff]
    %v3574 = vsel %vm2270, %v3560, 0
    %v3577 = vsel %vm2270, %v3565, 0
    %3579 = vmatprep.subr.mxu0 0.0
    %3580 = vmatpush1.msra.mxu0 0.0
    %3581 = vmatprep.subr.mxu0 0.0
    %3582 = vmatpush1.msra.mxu0 0.0
    %3583 = vmatprep.subr.mxu0 0.0
    %3584 = vmatpush1.msra.mxu0 0.0
    %3585 = vmatprep.subr.mxu0 0.0
    %3586 = vmatpush1.msra.mxu0 0.0
    %3587 = vmatprep.subr.mxu0 0.0
    %3588 = vmatpush1.msra.mxu0 0.0
    %3589 = vmatprep.subr.mxu0 0.0
    %3590 = vmatpush1.msra.mxu0 0.0
    %3591 = vmatprep.subr.mxu0 0.0
    %3592 = vmatpush1.msra.mxu0 0.0
    %3593 = vmatprep.subr.mxu0 0.0
    %3594 = vmatpush1.msra.mxu0 0.0
    %3595 = vmatprep.subr.mxu0 0.0
    %3596 = vmatpush1.msra.mxu0 0.0
    %3597 = vmatprep.subr.mxu0 0.0
    %3598 = vmatpush1.msra.mxu0 0.0
    %3599 = vmatprep.subr.mxu0 0.0
    %3600 = vmatpush1.msra.mxu0 0.0
    %3601 = vmatprep.subr.mxu0 0.0
    %3602 = vmatpush1.msra.mxu0 0.0
    %3603 = vmatprep.subr.mxu0 0.0
    %3604 = vmatpush1.msra.mxu0 %v3572
    %3605 = vmatprep.subr.mxu0 0.0
    %3606 = vmatpush1.msra.mxu0 %v3571
    %3607 = vmatprep.subr.mxu0 0.0
    %3608 = vmatpush1.msra.mxu0 %v3570
    %3609 = vmatprep.subr.mxu0 0.0
    %3610 = vmatpush1.msra.mxu0 %v3569
    %3611 = vmatprep.subr.mxu0 0.0
    %3612 = vmatpush2.msra.mxu0 0.0
    %3613 = vmatprep.subr.mxu0 0.0
    %3614 = vmatpush2.msra.mxu0 0.0
    %3615 = vmatprep.subr.mxu0 0.0
    %3616 = vmatpush2.msra.mxu0 0.0
    %3617 = vmatprep.subr.mxu0 0.0
    %3618 = vmatpush2.msra.mxu0 0.0
    %3619 = vmatprep.subr.mxu0 0.0
    %3620 = vmatpush2.msra.mxu0 0.0
    %3621 = vmatprep.subr.mxu0 0.0
    %3622 = vmatpush2.msra.mxu0 0.0
    %3623 = vmatprep.subr.mxu0 0.0
    %3624 = vmatpush2.msra.mxu0 0.0
    %3625 = vmatprep.subr.mxu0 0.0
    %3626 = vmatpush2.msra.mxu0 0.0
    %3627 = vmatprep.subr.mxu0 0.0
    %3628 = vmatpush2.msra.mxu0 0.0
    %3629 = vmatprep.subr.mxu0 0.0
    %3630 = vmatpush2.msra.mxu0 0.0
    %3631 = vmatprep.subr.mxu0 0.0
    %3632 = vmatpush2.msra.mxu0 0.0
    %3633 = vmatprep.subr.mxu0 0.0
    %3634 = vmatpush2.msra.mxu0 0.0
    %3635 = vmatprep.subr.mxu0 0.0
    %3636 = vmatpush2.msra.mxu0 0.0
    %3637 = vmatprep.subr.mxu0 0.0
    %3638 = vmatpush2.msra.mxu0 0.0
    %3639 = vmatprep.subr.mxu0 0.0
    %3640 = vmatpush2.msra.mxu0 0.0
    %3641 = vmatprep.subr.mxu0 0.0
    %3642 = vmatpush2.msra.mxu0 0.0
    %3643 = vmatprep.mubr.f32.mxu0 0.0
    %3644 = vmatmul.mubr.f32.gmra.mxu0 %v3574
    %v3645 = vpop.f32.mrf.mxu0
    %v3646 = vadd.f32 0.0, %v3645
    %v3647 = vpop.f32.mrf.mxu0
    %3648 = vmatprep.mubr.f32.mxu0 0.0
    %3649 = vmatmul.mubr.f32.gmra.mxu0 %v3577
    %v3650 = vpop.f32.mrf.mxu0
    %v3651 = vadd.f32 0.0, %v3650
    %v3652 = vpop.f32.mrf.mxu0
    %3653 = vdwg.mxu0
    %v3654 = vadd.f32 %v3482, %v3646
    %v3655 = vadd.f32 %v3483, %v3651
    %3656 = vst.msk [vmem:[#allocation4] sm:$0xff] %vm81, %v3304
    %3657 = vst.msk [vmem:[#allocation2] sm:$0xff] %vm81, %v3654
    %3658 = vst.msk [vmem:[#allocation2 + $0x8] sm:$0xff] %vm81, %v3655
    %s3659 = scalar_lea.vmem %s0, 16
    %v3660 = vld [vmem:[%s3659] sm:$0xff]
    %v3661 = vld [vmem:[%s3659 + $0x8] sm:$0xff]
    %s3662 = scalar_lea.vmem %s1, 8
    %v3663 = vld [vmem:[%s3662] sm:$0xff]
    %v3664 = vld [vmem:[%s2] sm:$0xff]
    %v3665 = vld [vmem:[%s2 + $0x8] sm:$0xff]
    %v3666 = vld [vmem:[%s2 + $0x10] sm:$0xff]
    %v3667 = vld [vmem:[%s2 + $0x18] sm:$0xff]
    %v3668 = vld [vmem:[%s2 + $0x20] sm:$0xff]
    %v3669 = vld [vmem:[%s2 + $0x28] sm:$0xff]
    %v3670 = vld [vmem:[%s2 + $0x30] sm:$0xff]
    %v3671 = vld [vmem:[%s2 + $0x38] sm:$0xff]
    %v3672 = vld [vmem:[%s3] sm:$0x1]
    %v3674 = vlaneseq
    %v3675 = vshrl.u32 %v3674, 7
    %v3676 = vsub.s32 0, %v3675
    %v3677 = vrot.slane %v3672, %v3676
    %v3680 = vsel %vm81, %v3660, 0
    %v3683 = vsel %vm81, %v3661, 0
    %3685 = vmatprep.subr.mxu0 0.0
    %3686 = vmatpush1.msra.mxu0 0.0
    %3687 = vmatprep.subr.mxu0 0.0
    %3688 = vmatpush1.msra.mxu0 0.0
    %3689 = vmatprep.subr.mxu0 0.0
    %3690 = vmatpush1.msra.mxu0 0.0
    %3691 = vmatprep.subr.mxu0 0.0
    %3692 = vmatpush1.msra.mxu0 0.0
    %3693 = vmatprep.subr.mxu0 0.0
    %3694 = vmatpush1.msra.mxu0 0.0
    %3695 = vmatprep.subr.mxu0 0.0
    %3696 = vmatpush1.msra.mxu0 0.0
    %3697 = vmatprep.subr.mxu0 0.0
    %3698 = vmatpush1.msra.mxu0 0.0
    %3699 = vmatprep.subr.mxu0 0.0
    %3700 = vmatpush1.msra.mxu0 0.0
    %3701 = vmatprep.subr.mxu0 0.0
    %3702 = vmatpush1.msra.mxu0 %v3671
    %3703 = vmatprep.subr.mxu0 0.0
    %3704 = vmatpush1.msra.mxu0 %v3670
    %3705 = vmatprep.subr.mxu0 0.0
    %3706 = vmatpush1.msra.mxu0 %v3669
    %3707 = vmatprep.subr.mxu0 0.0
    %3708 = vmatpush1.msra.mxu0 %v3668
    %3709 = vmatprep.subr.mxu0 0.0
    %3710 = vmatpush1.msra.mxu0 %v3667
    %3711 = vmatprep.subr.mxu0 0.0
    %3712 = vmatpush1.msra.mxu0 %v3666
    %3713 = vmatprep.subr.mxu0 0.0
    %3714 = vmatpush1.msra.mxu0 %v3665
    %3715 = vmatprep.subr.mxu0 0.0
    %3716 = vmatpush1.msra.mxu0 %v3664
    %3717 = vmatprep.subr.mxu0 0.0
    %3718 = vmatpush2.msra.mxu0 0.0
    %3719 = vmatprep.subr.mxu0 0.0
    %3720 = vmatpush2.msra.mxu0 0.0
    %3721 = vmatprep.subr.mxu0 0.0
    %3722 = vmatpush2.msra.mxu0 0.0
    %3723 = vmatprep.subr.mxu0 0.0
    %3724 = vmatpush2.msra.mxu0 0.0
    %3725 = vmatprep.subr.mxu0 0.0
    %3726 = vmatpush2.msra.mxu0 0.0
    %3727 = vmatprep.subr.mxu0 0.0
    %3728 = vmatpush2.msra.mxu0 0.0
    %3729 = vmatprep.subr.mxu0 0.0
    %3730 = vmatpush2.msra.mxu0 0.0
    %3731 = vmatprep.subr.mxu0 0.0
    %3732 = vmatpush2.msra.mxu0 0.0
    %3733 = vmatprep.subr.mxu0 0.0
    %3734 = vmatpush2.msra.mxu0 0.0
    %3735 = vmatprep.subr.mxu0 0.0
    %3736 = vmatpush2.msra.mxu0 0.0
    %3737 = vmatprep.subr.mxu0 0.0
    %3738 = vmatpush2.msra.mxu0 0.0
    %3739 = vmatprep.subr.mxu0 0.0
    %3740 = vmatpush2.msra.mxu0 0.0
    %3741 = vmatprep.subr.mxu0 0.0
    %3742 = vmatpush2.msra.mxu0 0.0
    %3743 = vmatprep.subr.mxu0 0.0
    %3744 = vmatpush2.msra.mxu0 0.0
    %3745 = vmatprep.subr.mxu0 0.0
    %3746 = vmatpush2.msra.mxu0 0.0
    %3747 = vmatprep.subr.mxu0 0.0
    %3748 = vmatpush2.msra.mxu0 0.0
    %3749 = vmatprep.mubr.f32.mxu0 0.0
    %3750 = vmatmul.mubr.f32.gmra.mxu0 %v3680
    %v3751 = vpop.f32.mrf.mxu0
    %v3752 = vadd.f32 %v3677, %v3751
    %v3753 = vpop.f32.mrf.mxu0
    %3754 = vmatprep.mubr.f32.mxu0 0.0
    %3755 = vmatmul.mubr.f32.gmra.mxu0 %v3683
    %v3756 = vpop.f32.mrf.mxu0
    %v3757 = vadd.f32 %v3677, %v3756
    %v3758 = vpop.f32.mrf.mxu0
    %3759 = vdwg.mxu0
    %v3760 = vld [vmem:[%s14] sm:$0xff]
    %v3761 = vld [vmem:[%s14 + $0x8] sm:$0xff]
    %v3762 = vld [vmem:[%s14 + $0x10] sm:$0xff]
    %v3763 = vld [vmem:[%s14 + $0x18] sm:$0xff]
    %v3764 = vld [vmem:[%s167] sm:$0xff]
    %v3765 = vld [vmem:[%s167 + $0x8] sm:$0xff]
    %v3766 = vld [vmem:[%s167 + $0x10] sm:$0xff]
    %v3767 = vld [vmem:[%s167 + $0x18] sm:$0xff]
    %v3768 = vld [vmem:[%s167 + $0x20] sm:$0xff]
    %v3769 = vld [vmem:[%s167 + $0x28] sm:$0xff]
    %v3770 = vld [vmem:[%s167 + $0x30] sm:$0xff]
    %v3771 = vld [vmem:[%s167 + $0x38] sm:$0xff]
    %v3772 = vld [vmem:[%s176] sm:$0x1]
    %v3774 = vlaneseq
    %v3775 = vshrl.u32 %v3774, 7
    %v3776 = vsub.s32 0, %v3775
    %v3777 = vrot.slane %v3772, %v3776
    %3779 = vmatprep.subr.mxu0 0.0
    %3780 = vmatpush1.msra.mxu0 0.0
    %3781 = vmatprep.subr.mxu0 0.0
    %3782 = vmatpush1.msra.mxu0 0.0
    %3783 = vmatprep.subr.mxu0 0.0
    %3784 = vmatpush1.msra.mxu0 0.0
    %3785 = vmatprep.subr.mxu0 0.0
    %3786 = vmatpush1.msra.mxu0 0.0
    %3787 = vmatprep.subr.mxu0 0.0
    %3788 = vmatpush1.msra.mxu0 0.0
    %3789 = vmatprep.subr.mxu0 0.0
    %3790 = vmatpush1.msra.mxu0 0.0
    %3791 = vmatprep.subr.mxu0 0.0
    %3792 = vmatpush1.msra.mxu0 0.0
    %3793 = vmatprep.subr.mxu0 0.0
    %3794 = vmatpush1.msra.mxu0 0.0
    %3795 = vmatprep.subr.mxu0 0.0
    %3796 = vmatpush1.msra.mxu0 %v3771
    %3797 = vmatprep.subr.mxu0 0.0
    %3798 = vmatpush1.msra.mxu0 %v3770
    %3799 = vmatprep.subr.mxu0 0.0
    %3800 = vmatpush1.msra.mxu0 %v3769
    %3801 = vmatprep.subr.mxu0 0.0
    %3802 = vmatpush1.msra.mxu0 %v3768
    %3803 = vmatprep.subr.mxu0 0.0
    %3804 = vmatpush1.msra.mxu0 %v3767
    %3805 = vmatprep.subr.mxu0 0.0
    %3806 = vmatpush1.msra.mxu0 %v3766
    %3807 = vmatprep.subr.mxu0 0.0
    %3808 = vmatpush1.msra.mxu0 %v3765
    %3809 = vmatprep.subr.mxu0 0.0
    %3810 = vmatpush1.msra.mxu0 %v3764
    %3811 = vmatprep.subr.mxu0 0.0
    %3812 = vmatpush2.msra.mxu0 0.0
    %3813 = vmatprep.subr.mxu0 0.0
    %3814 = vmatpush2.msra.mxu0 0.0
    %3815 = vmatprep.subr.mxu0 0.0
    %3816 = vmatpush2.msra.mxu0 0.0
    %3817 = vmatprep.subr.mxu0 0.0
    %3818 = vmatpush2.msra.mxu0 0.0
    %3819 = vmatprep.subr.mxu0 0.0
    %3820 = vmatpush2.msra.mxu0 0.0
    %3821 = vmatprep.subr.mxu0 0.0
    %3822 = vmatpush2.msra.mxu0 0.0
    %3823 = vmatprep.subr.mxu0 0.0
    %3824 = vmatpush2.msra.mxu0 0.0
    %3825 = vmatprep.subr.mxu0 0.0
    %3826 = vmatpush2.msra.mxu0 0.0
    %3827 = vmatprep.subr.mxu0 0.0
    %3828 = vmatpush2.msra.mxu0 0.0
    %3829 = vmatprep.subr.mxu0 0.0
    %3830 = vmatpush2.msra.mxu0 0.0
    %3831 = vmatprep.subr.mxu0 0.0
    %3832 = vmatpush2.msra.mxu0 0.0
    %3833 = vmatprep.subr.mxu0 0.0
    %3834 = vmatpush2.msra.mxu0 0.0
    %3835 = vmatprep.subr.mxu0 0.0
    %3836 = vmatpush2.msra.mxu0 0.0
    %3837 = vmatprep.subr.mxu0 0.0
    %3838 = vmatpush2.msra.mxu0 0.0
    %3839 = vmatprep.subr.mxu0 0.0
    %3840 = vmatpush2.msra.mxu0 0.0
    %3841 = vmatprep.subr.mxu0 0.0
    %3842 = vmatpush2.msra.mxu0 0.0
    %3843 = vmatprep.mubr.f32.mxu0 0.0
    %3844 = vmatmul.mubr.f32.gmra.mxu0 %v3680
    %v3845 = vpop.f32.mrf.mxu0
    %v3846 = vadd.f32 %v3777, %v3845
    %v3847 = vpop.f32.mrf.mxu0
    %3848 = vmatprep.mubr.f32.mxu0 0.0
    %3849 = vmatmul.mubr.f32.gmra.mxu0 %v3683
    %v3850 = vpop.f32.mrf.mxu0
    %v3851 = vadd.f32 %v3777, %v3850
    %v3852 = vpop.f32.mrf.mxu0
    %3853 = vdwg.mxu0
    %v3854 = vld [vmem:[%s259] sm:$0xff]
    %v3855 = vld [vmem:[%s259 + $0x8] sm:$0xff]
    %v3856 = vld [vmem:[%s259 + $0x10] sm:$0xff]
    %v3857 = vld [vmem:[%s259 + $0x18] sm:$0xff]
    %v3859 = vsel %vm264, %v3854, 0
    %v3862 = vsel %vm264, %v3855, 0
    %v3865 = vsel %vm264, %v3856, 0
    %v3868 = vsel %vm264, %v3857, 0
    %3870 = vmatprep.subr.mxu0 0.0
    %3871 = vmatpush1.msra.mxu0 0.0
    %3872 = vmatprep.subr.mxu0 0.0
    %3873 = vmatpush1.msra.mxu0 0.0
    %3874 = vmatprep.subr.mxu0 0.0
    %3875 = vmatpush1.msra.mxu0 0.0
    %3876 = vmatprep.subr.mxu0 0.0
    %3877 = vmatpush1.msra.mxu0 0.0
    %3878 = vmatprep.subr.mxu0 0.0
    %3879 = vmatpush1.msra.mxu0 0.0
    %3880 = vmatprep.subr.mxu0 0.0
    %3881 = vmatpush1.msra.mxu0 0.0
    %3882 = vmatprep.subr.mxu0 0.0
    %3883 = vmatpush1.msra.mxu0 0.0
    %3884 = vmatprep.subr.mxu0 0.0
    %3885 = vmatpush1.msra.mxu0 0.0
    %3886 = vmatprep.subr.mxu0 0.0
    %3887 = vmatpush1.msra.mxu0 0.0
    %3888 = vmatprep.subr.mxu0 0.0
    %3889 = vmatpush1.msra.mxu0 0.0
    %3890 = vmatprep.subr.mxu0 0.0
    %3891 = vmatpush1.msra.mxu0 0.0
    %3892 = vmatprep.subr.mxu0 0.0
    %3893 = vmatpush1.msra.mxu0 0.0
    %3894 = vmatprep.subr.mxu0 0.0
    %3895 = vmatpush1.msra.mxu0 0.0
    %3896 = vmatprep.subr.mxu0 0.0
    %3897 = vmatpush1.msra.mxu0 0.0
    %3898 = vmatprep.subr.mxu0 0.0
    %3899 = vmatpush1.msra.mxu0 %v3851
    %3900 = vmatprep.subr.mxu0 0.0
    %3901 = vmatpush1.msra.mxu0 %v3846
    %3902 = vmatprep.subr.mxu0 0.0
    %3903 = vmatpush2.msra.mxu0 0.0
    %3904 = vmatprep.subr.mxu0 0.0
    %3905 = vmatpush2.msra.mxu0 0.0
    %3906 = vmatprep.subr.mxu0 0.0
    %3907 = vmatpush2.msra.mxu0 0.0
    %3908 = vmatprep.subr.mxu0 0.0
    %3909 = vmatpush2.msra.mxu0 0.0
    %3910 = vmatprep.subr.mxu0 0.0
    %3911 = vmatpush2.msra.mxu0 0.0
    %3912 = vmatprep.subr.mxu0 0.0
    %3913 = vmatpush2.msra.mxu0 0.0
    %3914 = vmatprep.subr.mxu0 0.0
    %3915 = vmatpush2.msra.mxu0 0.0
    %3916 = vmatprep.subr.mxu0 0.0
    %3917 = vmatpush2.msra.mxu0 0.0
    %3918 = vmatprep.subr.mxu0 0.0
    %3919 = vmatpush2.msra.mxu0 0.0
    %3920 = vmatprep.subr.mxu0 0.0
    %3921 = vmatpush2.msra.mxu0 0.0
    %3922 = vmatprep.subr.mxu0 0.0
    %3923 = vmatpush2.msra.mxu0 0.0
    %3924 = vmatprep.subr.mxu0 0.0
    %3925 = vmatpush2.msra.mxu0 0.0
    %3926 = vmatprep.subr.mxu0 0.0
    %3927 = vmatpush2.msra.mxu0 0.0
    %3928 = vmatprep.subr.mxu0 0.0
    %3929 = vmatpush2.msra.mxu0 0.0
    %3930 = vmatprep.subr.mxu0 0.0
    %3931 = vmatpush2.msra.mxu0 0.0
    %3932 = vmatprep.subr.mxu0 0.0
    %3933 = vmatpush2.msra.mxu0 0.0
    %3934 = vmatprep.mubr.f32.mxu0 0.0
    %3935 = vmatmul.mubr.f32.gmra.mxu0 %v3859
    %v3936 = vpop.f32.mrf.mxu0
    %v3937 = vadd.f32 0.0, %v3936
    %v3938 = vpop.f32.mrf.mxu0
    %3939 = vmatprep.mubr.f32.mxu0 0.0
    %3940 = vmatmul.mubr.f32.gmra.mxu0 %v3862
    %v3941 = vpop.f32.mrf.mxu0
    %v3942 = vadd.f32 0.0, %v3941
    %v3943 = vpop.f32.mrf.mxu0
    %3944 = vmatprep.mubr.f32.mxu0 0.0
    %3945 = vmatmul.mubr.f32.gmra.mxu0 %v3865
    %v3946 = vpop.f32.mrf.mxu0
    %v3947 = vadd.f32 0.0, %v3946
    %v3948 = vpop.f32.mrf.mxu0
    %3949 = vmatprep.mubr.f32.mxu0 0.0
    %3950 = vmatmul.mubr.f32.gmra.mxu0 %v3868
    %v3951 = vpop.f32.mrf.mxu0
    %v3952 = vadd.f32 0.0, %v3951
    %v3953 = vpop.f32.mrf.mxu0
    %3954 = vdwg.mxu0
    %v3956 = vsel %vm264, %v3760, 0
    %v3959 = vsel %vm264, %v3761, 0
    %v3962 = vsel %vm264, %v3762, 0
    %v3965 = vsel %vm264, %v3763, 0
    %3967 = vmatprep.subr.mxu0 0.0
    %3968 = vmatpush1.msra.mxu0 0.0
    %3969 = vmatprep.subr.mxu0 0.0
    %3970 = vmatpush1.msra.mxu0 0.0
    %3971 = vmatprep.subr.mxu0 0.0
    %3972 = vmatpush1.msra.mxu0 0.0
    %3973 = vmatprep.subr.mxu0 0.0
    %3974 = vmatpush1.msra.mxu0 0.0
    %3975 = vmatprep.subr.mxu0 0.0
    %3976 = vmatpush1.msra.mxu0 0.0
    %3977 = vmatprep.subr.mxu0 0.0
    %3978 = vmatpush1.msra.mxu0 0.0
    %3979 = vmatprep.subr.mxu0 0.0
    %3980 = vmatpush1.msra.mxu0 0.0
    %3981 = vmatprep.subr.mxu0 0.0
    %3982 = vmatpush1.msra.mxu0 0.0
    %3983 = vmatprep.subr.mxu0 0.0
    %3984 = vmatpush1.msra.mxu0 0.0
    %3985 = vmatprep.subr.mxu0 0.0
    %3986 = vmatpush1.msra.mxu0 0.0
    %3987 = vmatprep.subr.mxu0 0.0
    %3988 = vmatpush1.msra.mxu0 0.0
    %3989 = vmatprep.subr.mxu0 0.0
    %3990 = vmatpush1.msra.mxu0 0.0
    %3991 = vmatprep.subr.mxu0 0.0
    %3992 = vmatpush1.msra.mxu0 0.0
    %3993 = vmatprep.subr.mxu0 0.0
    %3994 = vmatpush1.msra.mxu0 0.0
    %3995 = vmatprep.subr.mxu0 0.0
    %3996 = vmatpush1.msra.mxu0 %v3757
    %3997 = vmatprep.subr.mxu0 0.0
    %3998 = vmatpush1.msra.mxu0 %v3752
    %3999 = vmatprep.subr.mxu0 0.0
    %4000 = vmatpush2.msra.mxu0 0.0
    %4001 = vmatprep.subr.mxu0 0.0
    %4002 = vmatpush2.msra.mxu0 0.0
    %4003 = vmatprep.subr.mxu0 0.0
    %4004 = vmatpush2.msra.mxu0 0.0
    %4005 = vmatprep.subr.mxu0 0.0
    %4006 = vmatpush2.msra.mxu0 0.0
    %4007 = vmatprep.subr.mxu0 0.0
    %4008 = vmatpush2.msra.mxu0 0.0
    %4009 = vmatprep.subr.mxu0 0.0
    %4010 = vmatpush2.msra.mxu0 0.0
    %4011 = vmatprep.subr.mxu0 0.0
    %4012 = vmatpush2.msra.mxu0 0.0
    %4013 = vmatprep.subr.mxu0 0.0
    %4014 = vmatpush2.msra.mxu0 0.0
    %4015 = vmatprep.subr.mxu0 0.0
    %4016 = vmatpush2.msra.mxu0 0.0
    %4017 = vmatprep.subr.mxu0 0.0
    %4018 = vmatpush2.msra.mxu0 0.0
    %4019 = vmatprep.subr.mxu0 0.0
    %4020 = vmatpush2.msra.mxu0 0.0
    %4021 = vmatprep.subr.mxu0 0.0
    %4022 = vmatpush2.msra.mxu0 0.0
    %4023 = vmatprep.subr.mxu0 0.0
    %4024 = vmatpush2.msra.mxu0 0.0
    %4025 = vmatprep.subr.mxu0 0.0
    %4026 = vmatpush2.msra.mxu0 0.0
    %4027 = vmatprep.subr.mxu0 0.0
    %4028 = vmatpush2.msra.mxu0 0.0
    %4029 = vmatprep.subr.mxu0 0.0
    %4030 = vmatpush2.msra.mxu0 0.0
    %4031 = vmatprep.mubr.f32.mxu0 0.0
    %4032 = vmatmul.mubr.f32.gmra.mxu0 %v3956
    %v4033 = vpop.f32.mrf.mxu0
    %v4034 = vadd.f32 %v3937, %v4033
    %v4035 = vpop.f32.mrf.mxu0
    %4036 = vmatprep.mubr.f32.mxu0 0.0
    %4037 = vmatmul.mubr.f32.gmra.mxu0 %v3959
    %v4038 = vpop.f32.mrf.mxu0
    %v4039 = vadd.f32 %v3942, %v4038
    %v4040 = vpop.f32.mrf.mxu0
    %4041 = vmatprep.mubr.f32.mxu0 0.0
    %4042 = vmatmul.mubr.f32.gmra.mxu0 %v3962
    %v4043 = vpop.f32.mrf.mxu0
    %v4044 = vadd.f32 %v3947, %v4043
    %v4045 = vpop.f32.mrf.mxu0
    %4046 = vmatprep.mubr.f32.mxu0 0.0
    %4047 = vmatmul.mubr.f32.gmra.mxu0 %v3965
    %v4048 = vpop.f32.mrf.mxu0
    %v4049 = vadd.f32 %v3952, %v4048
    %v4050 = vpop.f32.mrf.mxu0
    %4051 = vdwg.mxu0
    %v4052 = vld [vmem:[%s4] sm:$0xff]
    %v4053 = vld [vmem:[%s4 + $0x8] sm:$0xff]
    %v4054 = vld [vmem:[%s4 + $0x10] sm:$0xff]
    %v4055 = vld [vmem:[%s4 + $0x18] sm:$0xff]
    %v4056 = vld [vmem:[%s4 + $0x20] sm:$0xff]
    %v4057 = vld [vmem:[%s4 + $0x28] sm:$0xff]
    %v4058 = vld [vmem:[%s4 + $0x30] sm:$0xff]
    %v4059 = vld [vmem:[%s4 + $0x38] sm:$0xff]
    %v4060 = vld [vmem:[%s5] sm:$0x1]
    %v4062 = vlaneseq
    %v4063 = vshrl.u32 %v4062, 7
    %v4064 = vsub.s32 0, %v4063
    %v4065 = vrot.slane %v4060, %v4064
    %4067 = vmatprep.subr.mxu0 0.0
    %4068 = vmatpush1.msra.mxu0 0.0
    %4069 = vmatprep.subr.mxu0 0.0
    %4070 = vmatpush1.msra.mxu0 0.0
    %4071 = vmatprep.subr.mxu0 0.0
    %4072 = vmatpush1.msra.mxu0 0.0
    %4073 = vmatprep.subr.mxu0 0.0
    %4074 = vmatpush1.msra.mxu0 0.0
    %4075 = vmatprep.subr.mxu0 0.0
    %4076 = vmatpush1.msra.mxu0 0.0
    %4077 = vmatprep.subr.mxu0 0.0
    %4078 = vmatpush1.msra.mxu0 0.0
    %4079 = vmatprep.subr.mxu0 0.0
    %4080 = vmatpush1.msra.mxu0 0.0
    %4081 = vmatprep.subr.mxu0 0.0
    %4082 = vmatpush1.msra.mxu0 0.0
    %4083 = vmatprep.subr.mxu0 0.0
    %4084 = vmatpush1.msra.mxu0 %v4059
    %4085 = vmatprep.subr.mxu0 0.0
    %4086 = vmatpush1.msra.mxu0 %v4058
    %4087 = vmatprep.subr.mxu0 0.0
    %4088 = vmatpush1.msra.mxu0 %v4057
    %4089 = vmatprep.subr.mxu0 0.0
    %4090 = vmatpush1.msra.mxu0 %v4056
    %4091 = vmatprep.subr.mxu0 0.0
    %4092 = vmatpush1.msra.mxu0 %v4055
    %4093 = vmatprep.subr.mxu0 0.0
    %4094 = vmatpush1.msra.mxu0 %v4054
    %4095 = vmatprep.subr.mxu0 0.0
    %4096 = vmatpush1.msra.mxu0 %v4053
    %4097 = vmatprep.subr.mxu0 0.0
    %4098 = vmatpush1.msra.mxu0 %v4052
    %4099 = vmatprep.subr.mxu0 0.0
    %4100 = vmatpush2.msra.mxu0 0.0
    %4101 = vmatprep.subr.mxu0 0.0
    %4102 = vmatpush2.msra.mxu0 0.0
    %4103 = vmatprep.subr.mxu0 0.0
    %4104 = vmatpush2.msra.mxu0 0.0
    %4105 = vmatprep.subr.mxu0 0.0
    %4106 = vmatpush2.msra.mxu0 0.0
    %4107 = vmatprep.subr.mxu0 0.0
    %4108 = vmatpush2.msra.mxu0 0.0
    %4109 = vmatprep.subr.mxu0 0.0
    %4110 = vmatpush2.msra.mxu0 0.0
    %4111 = vmatprep.subr.mxu0 0.0
    %4112 = vmatpush2.msra.mxu0 0.0
    %4113 = vmatprep.subr.mxu0 0.0
    %4114 = vmatpush2.msra.mxu0 0.0
    %4115 = vmatprep.subr.mxu0 0.0
    %4116 = vmatpush2.msra.mxu0 0.0
    %4117 = vmatprep.subr.mxu0 0.0
    %4118 = vmatpush2.msra.mxu0 0.0
    %4119 = vmatprep.subr.mxu0 0.0
    %4120 = vmatpush2.msra.mxu0 0.0
    %4121 = vmatprep.subr.mxu0 0.0
    %4122 = vmatpush2.msra.mxu0 0.0
    %4123 = vmatprep.subr.mxu0 0.0
    %4124 = vmatpush2.msra.mxu0 0.0
    %4125 = vmatprep.subr.mxu0 0.0
    %4126 = vmatpush2.msra.mxu0 0.0
    %4127 = vmatprep.subr.mxu0 0.0
    %4128 = vmatpush2.msra.mxu0 0.0
    %4129 = vmatprep.subr.mxu0 0.0
    %4130 = vmatpush2.msra.mxu0 0.0
    %4131 = vmatprep.mubr.f32.mxu0 0.0
    %4132 = vmatmul.mubr.f32.gmra.mxu0 %v3680
    %v4133 = vpop.f32.mrf.mxu0
    %v4134 = vadd.f32 %v4065, %v4133
    %v4135 = vpop.f32.mrf.mxu0
    %4136 = vmatprep.mubr.f32.mxu0 0.0
    %4137 = vmatmul.mubr.f32.gmra.mxu0 %v3683
    %v4138 = vpop.f32.mrf.mxu0
    %v4139 = vadd.f32 %v4065, %v4138
    %v4140 = vpop.f32.mrf.mxu0
    %4141 = vdwg.mxu0
    %v4142 = vld [vmem:[%s549] sm:$0xff]
    %v4143 = vld [vmem:[%s549 + $0x8] sm:$0xff]
    %v4144 = vld [vmem:[%s549 + $0x10] sm:$0xff]
    %v4145 = vld [vmem:[%s549 + $0x18] sm:$0xff]
    %v4146 = vld [vmem:[%s549 + $0x20] sm:$0xff]
    %v4147 = vld [vmem:[%s549 + $0x28] sm:$0xff]
    %v4148 = vld [vmem:[%s549 + $0x30] sm:$0xff]
    %v4149 = vld [vmem:[%s549 + $0x38] sm:$0xff]
    %v4150 = vld [vmem:[%s558] sm:$0x1]
    %v4152 = vlaneseq
    %v4153 = vshrl.u32 %v4152, 7
    %v4154 = vsub.s32 0, %v4153
    %v4155 = vrot.slane %v4150, %v4154
    %4157 = vmatprep.subr.mxu0 0.0
    %4158 = vmatpush1.msra.mxu0 0.0
    %4159 = vmatprep.subr.mxu0 0.0
    %4160 = vmatpush1.msra.mxu0 0.0
    %4161 = vmatprep.subr.mxu0 0.0
    %4162 = vmatpush1.msra.mxu0 0.0
    %4163 = vmatprep.subr.mxu0 0.0
    %4164 = vmatpush1.msra.mxu0 0.0
    %4165 = vmatprep.subr.mxu0 0.0
    %4166 = vmatpush1.msra.mxu0 0.0
    %4167 = vmatprep.subr.mxu0 0.0
    %4168 = vmatpush1.msra.mxu0 0.0
    %4169 = vmatprep.subr.mxu0 0.0
    %4170 = vmatpush1.msra.mxu0 0.0
    %4171 = vmatprep.subr.mxu0 0.0
    %4172 = vmatpush1.msra.mxu0 0.0
    %4173 = vmatprep.subr.mxu0 0.0
    %4174 = vmatpush1.msra.mxu0 %v4149
    %4175 = vmatprep.subr.mxu0 0.0
    %4176 = vmatpush1.msra.mxu0 %v4148
    %4177 = vmatprep.subr.mxu0 0.0
    %4178 = vmatpush1.msra.mxu0 %v4147
    %4179 = vmatprep.subr.mxu0 0.0
    %4180 = vmatpush1.msra.mxu0 %v4146
    %4181 = vmatprep.subr.mxu0 0.0
    %4182 = vmatpush1.msra.mxu0 %v4145
    %4183 = vmatprep.subr.mxu0 0.0
    %4184 = vmatpush1.msra.mxu0 %v4144
    %4185 = vmatprep.subr.mxu0 0.0
    %4186 = vmatpush1.msra.mxu0 %v4143
    %4187 = vmatprep.subr.mxu0 0.0
    %4188 = vmatpush1.msra.mxu0 %v4142
    %4189 = vmatprep.subr.mxu0 0.0
    %4190 = vmatpush2.msra.mxu0 0.0
    %4191 = vmatprep.subr.mxu0 0.0
    %4192 = vmatpush2.msra.mxu0 0.0
    %4193 = vmatprep.subr.mxu0 0.0
    %4194 = vmatpush2.msra.mxu0 0.0
    %4195 = vmatprep.subr.mxu0 0.0
    %4196 = vmatpush2.msra.mxu0 0.0
    %4197 = vmatprep.subr.mxu0 0.0
    %4198 = vmatpush2.msra.mxu0 0.0
    %4199 = vmatprep.subr.mxu0 0.0
    %4200 = vmatpush2.msra.mxu0 0.0
    %4201 = vmatprep.subr.mxu0 0.0
    %4202 = vmatpush2.msra.mxu0 0.0
    %4203 = vmatprep.subr.mxu0 0.0
    %4204 = vmatpush2.msra.mxu0 0.0
    %4205 = vmatprep.subr.mxu0 0.0
    %4206 = vmatpush2.msra.mxu0 0.0
    %4207 = vmatprep.subr.mxu0 0.0
    %4208 = vmatpush2.msra.mxu0 0.0
    %4209 = vmatprep.subr.mxu0 0.0
    %4210 = vmatpush2.msra.mxu0 0.0
    %4211 = vmatprep.subr.mxu0 0.0
    %4212 = vmatpush2.msra.mxu0 0.0
    %4213 = vmatprep.subr.mxu0 0.0
    %4214 = vmatpush2.msra.mxu0 0.0
    %4215 = vmatprep.subr.mxu0 0.0
    %4216 = vmatpush2.msra.mxu0 0.0
    %4217 = vmatprep.subr.mxu0 0.0
    %4218 = vmatpush2.msra.mxu0 0.0
    %4219 = vmatprep.subr.mxu0 0.0
    %4220 = vmatpush2.msra.mxu0 0.0
    %4221 = vmatprep.mubr.f32.mxu0 0.0
    %4222 = vmatmul.mubr.f32.gmra.mxu0 %v3680
    %v4223 = vpop.f32.mrf.mxu0
    %v4224 = vadd.f32 %v4155, %v4223
    %v4225 = vpop.f32.mrf.mxu0
    %4226 = vmatprep.mubr.f32.mxu0 0.0
    %4227 = vmatmul.mubr.f32.gmra.mxu0 %v3683
    %v4228 = vpop.f32.mrf.mxu0
    %v4229 = vadd.f32 %v4155, %v4228
    %v4230 = vpop.f32.mrf.mxu0
    %4231 = vdwg.mxu0
    %4232 = vmatprep.subr.mxu0 0.0
    %4233 = vmatpush1.msra.mxu0 0.0
    %4234 = vmatprep.subr.mxu0 0.0
    %4235 = vmatpush1.msra.mxu0 0.0
    %4236 = vmatprep.subr.mxu0 0.0
    %4237 = vmatpush1.msra.mxu0 0.0
    %4238 = vmatprep.subr.mxu0 0.0
    %4239 = vmatpush1.msra.mxu0 0.0
    %4240 = vmatprep.subr.mxu0 0.0
    %4241 = vmatpush1.msra.mxu0 0.0
    %4242 = vmatprep.subr.mxu0 0.0
    %4243 = vmatpush1.msra.mxu0 0.0
    %4244 = vmatprep.subr.mxu0 0.0
    %4245 = vmatpush1.msra.mxu0 0.0
    %4246 = vmatprep.subr.mxu0 0.0
    %4247 = vmatpush1.msra.mxu0 0.0
    %4248 = vmatprep.subr.mxu0 0.0
    %4249 = vmatpush1.msra.mxu0 0.0
    %4250 = vmatprep.subr.mxu0 0.0
    %4251 = vmatpush1.msra.mxu0 0.0
    %4252 = vmatprep.subr.mxu0 0.0
    %4253 = vmatpush1.msra.mxu0 0.0
    %4254 = vmatprep.subr.mxu0 0.0
    %4255 = vmatpush1.msra.mxu0 0.0
    %4256 = vmatprep.subr.mxu0 0.0
    %4257 = vmatpush1.msra.mxu0 0.0
    %4258 = vmatprep.subr.mxu0 0.0
    %4259 = vmatpush1.msra.mxu0 0.0
    %4260 = vmatprep.subr.mxu0 0.0
    %4261 = vmatpush1.msra.mxu0 %v4229
    %4262 = vmatprep.subr.mxu0 0.0
    %4263 = vmatpush1.msra.mxu0 %v4224
    %4264 = vmatprep.subr.mxu0 0.0
    %4265 = vmatpush2.msra.mxu0 0.0
    %4266 = vmatprep.subr.mxu0 0.0
    %4267 = vmatpush2.msra.mxu0 0.0
    %4268 = vmatprep.subr.mxu0 0.0
    %4269 = vmatpush2.msra.mxu0 0.0
    %4270 = vmatprep.subr.mxu0 0.0
    %4271 = vmatpush2.msra.mxu0 0.0
    %4272 = vmatprep.subr.mxu0 0.0
    %4273 = vmatpush2.msra.mxu0 0.0
    %4274 = vmatprep.subr.mxu0 0.0
    %4275 = vmatpush2.msra.mxu0 0.0
    %4276 = vmatprep.subr.mxu0 0.0
    %4277 = vmatpush2.msra.mxu0 0.0
    %4278 = vmatprep.subr.mxu0 0.0
    %4279 = vmatpush2.msra.mxu0 0.0
    %4280 = vmatprep.subr.mxu0 0.0
    %4281 = vmatpush2.msra.mxu0 0.0
    %4282 = vmatprep.subr.mxu0 0.0
    %4283 = vmatpush2.msra.mxu0 0.0
    %4284 = vmatprep.subr.mxu0 0.0
    %4285 = vmatpush2.msra.mxu0 0.0
    %4286 = vmatprep.subr.mxu0 0.0
    %4287 = vmatpush2.msra.mxu0 0.0
    %4288 = vmatprep.subr.mxu0 0.0
    %4289 = vmatpush2.msra.mxu0 0.0
    %4290 = vmatprep.subr.mxu0 0.0
    %4291 = vmatpush2.msra.mxu0 0.0
    %4292 = vmatprep.subr.mxu0 0.0
    %4293 = vmatpush2.msra.mxu0 0.0
    %4294 = vmatprep.subr.mxu0 0.0
    %4295 = vmatpush2.msra.mxu0 0.0
    %4296 = vmatprep.mubr.f32.mxu0 0.0
    %4297 = vmatmul.mubr.f32.gmra.mxu0 %v3859
    %v4298 = vpop.f32.mrf.mxu0
    %v4299 = vadd.f32 0.0, %v4298
    %v4300 = vpop.f32.mrf.mxu0
    %4301 = vmatprep.mubr.f32.mxu0 0.0
    %4302 = vmatmul.mubr.f32.gmra.mxu0 %v3862
    %v4303 = vpop.f32.mrf.mxu0
    %v4304 = vadd.f32 0.0, %v4303
    %v4305 = vpop.f32.mrf.mxu0
    %4306 = vmatprep.mubr.f32.mxu0 0.0
    %4307 = vmatmul.mubr.f32.gmra.mxu0 %v3865
    %v4308 = vpop.f32.mrf.mxu0
    %v4309 = vadd.f32 0.0, %v4308
    %v4310 = vpop.f32.mrf.mxu0
    %4311 = vmatprep.mubr.f32.mxu0 0.0
    %4312 = vmatmul.mubr.f32.gmra.mxu0 %v3868
    %v4313 = vpop.f32.mrf.mxu0
    %v4314 = vadd.f32 0.0, %v4313
    %v4315 = vpop.f32.mrf.mxu0
    %4316 = vdwg.mxu0
    %4317 = vmatprep.subr.mxu0 0.0
    %4318 = vmatpush1.msra.mxu0 0.0
    %4319 = vmatprep.subr.mxu0 0.0
    %4320 = vmatpush1.msra.mxu0 0.0
    %4321 = vmatprep.subr.mxu0 0.0
    %4322 = vmatpush1.msra.mxu0 0.0
    %4323 = vmatprep.subr.mxu0 0.0
    %4324 = vmatpush1.msra.mxu0 0.0
    %4325 = vmatprep.subr.mxu0 0.0
    %4326 = vmatpush1.msra.mxu0 0.0
    %4327 = vmatprep.subr.mxu0 0.0
    %4328 = vmatpush1.msra.mxu0 0.0
    %4329 = vmatprep.subr.mxu0 0.0
    %4330 = vmatpush1.msra.mxu0 0.0
    %4331 = vmatprep.subr.mxu0 0.0
    %4332 = vmatpush1.msra.mxu0 0.0
    %4333 = vmatprep.subr.mxu0 0.0
    %4334 = vmatpush1.msra.mxu0 0.0
    %4335 = vmatprep.subr.mxu0 0.0
    %4336 = vmatpush1.msra.mxu0 0.0
    %4337 = vmatprep.subr.mxu0 0.0
    %4338 = vmatpush1.msra.mxu0 0.0
    %4339 = vmatprep.subr.mxu0 0.0
    %4340 = vmatpush1.msra.mxu0 0.0
    %4341 = vmatprep.subr.mxu0 0.0
    %4342 = vmatpush1.msra.mxu0 0.0
    %4343 = vmatprep.subr.mxu0 0.0
    %4344 = vmatpush1.msra.mxu0 0.0
    %4345 = vmatprep.subr.mxu0 0.0
    %4346 = vmatpush1.msra.mxu0 %v4139
    %4347 = vmatprep.subr.mxu0 0.0
    %4348 = vmatpush1.msra.mxu0 %v4134
    %4349 = vmatprep.subr.mxu0 0.0
    %4350 = vmatpush2.msra.mxu0 0.0
    %4351 = vmatprep.subr.mxu0 0.0
    %4352 = vmatpush2.msra.mxu0 0.0
    %4353 = vmatprep.subr.mxu0 0.0
    %4354 = vmatpush2.msra.mxu0 0.0
    %4355 = vmatprep.subr.mxu0 0.0
    %4356 = vmatpush2.msra.mxu0 0.0
    %4357 = vmatprep.subr.mxu0 0.0
    %4358 = vmatpush2.msra.mxu0 0.0
    %4359 = vmatprep.subr.mxu0 0.0
    %4360 = vmatpush2.msra.mxu0 0.0
    %4361 = vmatprep.subr.mxu0 0.0
    %4362 = vmatpush2.msra.mxu0 0.0
    %4363 = vmatprep.subr.mxu0 0.0
    %4364 = vmatpush2.msra.mxu0 0.0
    %4365 = vmatprep.subr.mxu0 0.0
    %4366 = vmatpush2.msra.mxu0 0.0
    %4367 = vmatprep.subr.mxu0 0.0
    %4368 = vmatpush2.msra.mxu0 0.0
    %4369 = vmatprep.subr.mxu0 0.0
    %4370 = vmatpush2.msra.mxu0 0.0
    %4371 = vmatprep.subr.mxu0 0.0
    %4372 = vmatpush2.msra.mxu0 0.0
    %4373 = vmatprep.subr.mxu0 0.0
    %4374 = vmatpush2.msra.mxu0 0.0
    %4375 = vmatprep.subr.mxu0 0.0
    %4376 = vmatpush2.msra.mxu0 0.0
    %4377 = vmatprep.subr.mxu0 0.0
    %4378 = vmatpush2.msra.mxu0 0.0
    %4379 = vmatprep.subr.mxu0 0.0
    %4380 = vmatpush2.msra.mxu0 0.0
    %4381 = vmatprep.mubr.f32.mxu0 0.0
    %4382 = vmatmul.mubr.f32.gmra.mxu0 %v3956
    %v4383 = vpop.f32.mrf.mxu0
    %v4384 = vadd.f32 %v4299, %v4383
    %v4385 = vpop.f32.mrf.mxu0
    %4386 = vmatprep.mubr.f32.mxu0 0.0
    %4387 = vmatmul.mubr.f32.gmra.mxu0 %v3959
    %v4388 = vpop.f32.mrf.mxu0
    %v4389 = vadd.f32 %v4304, %v4388
    %v4390 = vpop.f32.mrf.mxu0
    %4391 = vmatprep.mubr.f32.mxu0 0.0
    %4392 = vmatmul.mubr.f32.gmra.mxu0 %v3962
    %v4393 = vpop.f32.mrf.mxu0
    %v4394 = vadd.f32 %v4309, %v4393
    %v4395 = vpop.f32.mrf.mxu0
    %4396 = vmatprep.mubr.f32.mxu0 0.0
    %4397 = vmatmul.mubr.f32.gmra.mxu0 %v3965
    %v4398 = vpop.f32.mrf.mxu0
    %v4399 = vadd.f32 %v4314, %v4398
    %v4400 = vpop.f32.mrf.mxu0
    %4401 = vdwg.mxu0
    %v4402 = vld [vmem:[%s6] sm:$0xff]
    %v4403 = vld [vmem:[%s6 + $0x8] sm:$0xff]
    %v4404 = vld [vmem:[%s6 + $0x10] sm:$0xff]
    %v4405 = vld [vmem:[%s6 + $0x18] sm:$0xff]
    %v4406 = vld [vmem:[%s6 + $0x20] sm:$0xff]
    %v4407 = vld [vmem:[%s6 + $0x28] sm:$0xff]
    %v4408 = vld [vmem:[%s6 + $0x30] sm:$0xff]
    %v4409 = vld [vmem:[%s6 + $0x38] sm:$0xff]
    %v4410 = vld [vmem:[%s7] sm:$0x1]
    %v4412 = vlaneseq
    %v4413 = vshrl.u32 %v4412, 7
    %v4414 = vsub.s32 0, %v4413
    %v4415 = vrot.slane %v4410, %v4414
    %v4418 = vsel %vm81, %v3663, 0
    %4420 = vmatprep.subr.mxu0 0.0
    %4421 = vmatpush1.msra.mxu0 0.0
    %4422 = vmatprep.subr.mxu0 0.0
    %4423 = vmatpush1.msra.mxu0 0.0
    %4424 = vmatprep.subr.mxu0 0.0
    %4425 = vmatpush1.msra.mxu0 0.0
    %4426 = vmatprep.subr.mxu0 0.0
    %4427 = vmatpush1.msra.mxu0 0.0
    %4428 = vmatprep.subr.mxu0 0.0
    %4429 = vmatpush1.msra.mxu0 0.0
    %4430 = vmatprep.subr.mxu0 0.0
    %4431 = vmatpush1.msra.mxu0 0.0
    %4432 = vmatprep.subr.mxu0 0.0
    %4433 = vmatpush1.msra.mxu0 0.0
    %4434 = vmatprep.subr.mxu0 0.0
    %4435 = vmatpush1.msra.mxu0 0.0
    %4436 = vmatprep.subr.mxu0 0.0
    %4437 = vmatpush1.msra.mxu0 %v4409
    %4438 = vmatprep.subr.mxu0 0.0
    %4439 = vmatpush1.msra.mxu0 %v4408
    %4440 = vmatprep.subr.mxu0 0.0
    %4441 = vmatpush1.msra.mxu0 %v4407
    %4442 = vmatprep.subr.mxu0 0.0
    %4443 = vmatpush1.msra.mxu0 %v4406
    %4444 = vmatprep.subr.mxu0 0.0
    %4445 = vmatpush1.msra.mxu0 %v4405
    %4446 = vmatprep.subr.mxu0 0.0
    %4447 = vmatpush1.msra.mxu0 %v4404
    %4448 = vmatprep.subr.mxu0 0.0
    %4449 = vmatpush1.msra.mxu0 %v4403
    %4450 = vmatprep.subr.mxu0 0.0
    %4451 = vmatpush1.msra.mxu0 %v4402
    %4452 = vmatprep.subr.mxu0 0.0
    %4453 = vmatpush2.msra.mxu0 0.0
    %4454 = vmatprep.subr.mxu0 0.0
    %4455 = vmatpush2.msra.mxu0 0.0
    %4456 = vmatprep.subr.mxu0 0.0
    %4457 = vmatpush2.msra.mxu0 0.0
    %4458 = vmatprep.subr.mxu0 0.0
    %4459 = vmatpush2.msra.mxu0 0.0
    %4460 = vmatprep.subr.mxu0 0.0
    %4461 = vmatpush2.msra.mxu0 0.0
    %4462 = vmatprep.subr.mxu0 0.0
    %4463 = vmatpush2.msra.mxu0 0.0
    %4464 = vmatprep.subr.mxu0 0.0
    %4465 = vmatpush2.msra.mxu0 0.0
    %4466 = vmatprep.subr.mxu0 0.0
    %4467 = vmatpush2.msra.mxu0 0.0
    %4468 = vmatprep.subr.mxu0 0.0
    %4469 = vmatpush2.msra.mxu0 0.0
    %4470 = vmatprep.subr.mxu0 0.0
    %4471 = vmatpush2.msra.mxu0 0.0
    %4472 = vmatprep.subr.mxu0 0.0
    %4473 = vmatpush2.msra.mxu0 0.0
    %4474 = vmatprep.subr.mxu0 0.0
    %4475 = vmatpush2.msra.mxu0 0.0
    %4476 = vmatprep.subr.mxu0 0.0
    %4477 = vmatpush2.msra.mxu0 0.0
    %4478 = vmatprep.subr.mxu0 0.0
    %4479 = vmatpush2.msra.mxu0 0.0
    %4480 = vmatprep.subr.mxu0 0.0
    %4481 = vmatpush2.msra.mxu0 0.0
    %4482 = vmatprep.subr.mxu0 0.0
    %4483 = vmatpush2.msra.mxu0 0.0
    %4484 = vmatprep.mubr.f32.mxu0 0.0
    %4485 = vmatmul.mubr.f32.gmra.mxu0 %v4418
    %v4486 = vpop.f32.mrf.mxu0
    %v4487 = vadd.f32 %v4415, %v4486
    %v4488 = vpop.f32.mrf.mxu0
    %4489 = vdwg.mxu0
    %v4490 = vld [vmem:[%s15] sm:$0xff]
    %v4491 = vld [vmem:[%s15 + $0x8] sm:$0xff]
    %v4492 = vld [vmem:[%s15 + $0x10] sm:$0xff]
    %v4493 = vld [vmem:[%s15 + $0x18] sm:$0xff]
    %v4494 = vld [vmem:[%s903] sm:$0xff]
    %v4495 = vld [vmem:[%s903 + $0x8] sm:$0xff]
    %v4496 = vld [vmem:[%s903 + $0x10] sm:$0xff]
    %v4497 = vld [vmem:[%s903 + $0x18] sm:$0xff]
    %v4498 = vld [vmem:[%s903 + $0x20] sm:$0xff]
    %v4499 = vld [vmem:[%s903 + $0x28] sm:$0xff]
    %v4500 = vld [vmem:[%s903 + $0x30] sm:$0xff]
    %v4501 = vld [vmem:[%s903 + $0x38] sm:$0xff]
    %v4502 = vld [vmem:[%s912] sm:$0x1]
    %v4504 = vlaneseq
    %v4505 = vshrl.u32 %v4504, 7
    %v4506 = vsub.s32 0, %v4505
    %v4507 = vrot.slane %v4502, %v4506
    %4509 = vmatprep.subr.mxu0 0.0
    %4510 = vmatpush1.msra.mxu0 0.0
    %4511 = vmatprep.subr.mxu0 0.0
    %4512 = vmatpush1.msra.mxu0 0.0
    %4513 = vmatprep.subr.mxu0 0.0
    %4514 = vmatpush1.msra.mxu0 0.0
    %4515 = vmatprep.subr.mxu0 0.0
    %4516 = vmatpush1.msra.mxu0 0.0
    %4517 = vmatprep.subr.mxu0 0.0
    %4518 = vmatpush1.msra.mxu0 0.0
    %4519 = vmatprep.subr.mxu0 0.0
    %4520 = vmatpush1.msra.mxu0 0.0
    %4521 = vmatprep.subr.mxu0 0.0
    %4522 = vmatpush1.msra.mxu0 0.0
    %4523 = vmatprep.subr.mxu0 0.0
    %4524 = vmatpush1.msra.mxu0 0.0
    %4525 = vmatprep.subr.mxu0 0.0
    %4526 = vmatpush1.msra.mxu0 %v4501
    %4527 = vmatprep.subr.mxu0 0.0
    %4528 = vmatpush1.msra.mxu0 %v4500
    %4529 = vmatprep.subr.mxu0 0.0
    %4530 = vmatpush1.msra.mxu0 %v4499
    %4531 = vmatprep.subr.mxu0 0.0
    %4532 = vmatpush1.msra.mxu0 %v4498
    %4533 = vmatprep.subr.mxu0 0.0
    %4534 = vmatpush1.msra.mxu0 %v4497
    %4535 = vmatprep.subr.mxu0 0.0
    %4536 = vmatpush1.msra.mxu0 %v4496
    %4537 = vmatprep.subr.mxu0 0.0
    %4538 = vmatpush1.msra.mxu0 %v4495
    %4539 = vmatprep.subr.mxu0 0.0
    %4540 = vmatpush1.msra.mxu0 %v4494
    %4541 = vmatprep.subr.mxu0 0.0
    %4542 = vmatpush2.msra.mxu0 0.0
    %4543 = vmatprep.subr.mxu0 0.0
    %4544 = vmatpush2.msra.mxu0 0.0
    %4545 = vmatprep.subr.mxu0 0.0
    %4546 = vmatpush2.msra.mxu0 0.0
    %4547 = vmatprep.subr.mxu0 0.0
    %4548 = vmatpush2.msra.mxu0 0.0
    %4549 = vmatprep.subr.mxu0 0.0
    %4550 = vmatpush2.msra.mxu0 0.0
    %4551 = vmatprep.subr.mxu0 0.0
    %4552 = vmatpush2.msra.mxu0 0.0
    %4553 = vmatprep.subr.mxu0 0.0
    %4554 = vmatpush2.msra.mxu0 0.0
    %4555 = vmatprep.subr.mxu0 0.0
    %4556 = vmatpush2.msra.mxu0 0.0
    %4557 = vmatprep.subr.mxu0 0.0
    %4558 = vmatpush2.msra.mxu0 0.0
    %4559 = vmatprep.subr.mxu0 0.0
    %4560 = vmatpush2.msra.mxu0 0.0
    %4561 = vmatprep.subr.mxu0 0.0
    %4562 = vmatpush2.msra.mxu0 0.0
    %4563 = vmatprep.subr.mxu0 0.0
    %4564 = vmatpush2.msra.mxu0 0.0
    %4565 = vmatprep.subr.mxu0 0.0
    %4566 = vmatpush2.msra.mxu0 0.0
    %4567 = vmatprep.subr.mxu0 0.0
    %4568 = vmatpush2.msra.mxu0 0.0
    %4569 = vmatprep.subr.mxu0 0.0
    %4570 = vmatpush2.msra.mxu0 0.0
    %4571 = vmatprep.subr.mxu0 0.0
    %4572 = vmatpush2.msra.mxu0 0.0
    %4573 = vmatprep.mubr.f32.mxu0 0.0
    %4574 = vmatmul.mubr.f32.gmra.mxu0 %v4418
    %v4575 = vpop.f32.mrf.mxu0
    %v4576 = vadd.f32 %v4507, %v4575
    %v4577 = vpop.f32.mrf.mxu0
    %4578 = vdwg.mxu0
    %v4579 = vld [vmem:[%s990] sm:$0xff]
    %v4580 = vld [vmem:[%s990 + $0x8] sm:$0xff]
    %v4581 = vld [vmem:[%s990 + $0x10] sm:$0xff]
    %v4582 = vld [vmem:[%s990 + $0x18] sm:$0xff]
    %v4584 = vsel %vm995, %v4579, 0
    %v4587 = vsel %vm995, %v4580, 0
    %v4590 = vsel %vm995, %v4581, 0
    %v4593 = vsel %vm995, %v4582, 0
    %4595 = vmatprep.subr.mxu0 0.0
    %4596 = vmatpush1.msra.mxu0 0.0
    %4597 = vmatprep.subr.mxu0 0.0
    %4598 = vmatpush1.msra.mxu0 0.0
    %4599 = vmatprep.subr.mxu0 0.0
    %4600 = vmatpush1.msra.mxu0 0.0
    %4601 = vmatprep.subr.mxu0 0.0
    %4602 = vmatpush1.msra.mxu0 0.0
    %4603 = vmatprep.subr.mxu0 0.0
    %4604 = vmatpush1.msra.mxu0 0.0
    %4605 = vmatprep.subr.mxu0 0.0
    %4606 = vmatpush1.msra.mxu0 0.0
    %4607 = vmatprep.subr.mxu0 0.0
    %4608 = vmatpush1.msra.mxu0 0.0
    %4609 = vmatprep.subr.mxu0 0.0
    %4610 = vmatpush1.msra.mxu0 0.0
    %4611 = vmatprep.subr.mxu0 0.0
    %4612 = vmatpush1.msra.mxu0 0.0
    %4613 = vmatprep.subr.mxu0 0.0
    %4614 = vmatpush1.msra.mxu0 0.0
    %4615 = vmatprep.subr.mxu0 0.0
    %4616 = vmatpush1.msra.mxu0 0.0
    %4617 = vmatprep.subr.mxu0 0.0
    %4618 = vmatpush1.msra.mxu0 0.0
    %4619 = vmatprep.subr.mxu0 0.0
    %4620 = vmatpush1.msra.mxu0 0.0
    %4621 = vmatprep.subr.mxu0 0.0
    %4622 = vmatpush1.msra.mxu0 0.0
    %4623 = vmatprep.subr.mxu0 0.0
    %4624 = vmatpush1.msra.mxu0 0.0
    %4625 = vmatprep.subr.mxu0 0.0
    %4626 = vmatpush1.msra.mxu0 %v4576
    %4627 = vmatprep.subr.mxu0 0.0
    %4628 = vmatpush2.msra.mxu0 0.0
    %4629 = vmatprep.subr.mxu0 0.0
    %4630 = vmatpush2.msra.mxu0 0.0
    %4631 = vmatprep.subr.mxu0 0.0
    %4632 = vmatpush2.msra.mxu0 0.0
    %4633 = vmatprep.subr.mxu0 0.0
    %4634 = vmatpush2.msra.mxu0 0.0
    %4635 = vmatprep.subr.mxu0 0.0
    %4636 = vmatpush2.msra.mxu0 0.0
    %4637 = vmatprep.subr.mxu0 0.0
    %4638 = vmatpush2.msra.mxu0 0.0
    %4639 = vmatprep.subr.mxu0 0.0
    %4640 = vmatpush2.msra.mxu0 0.0
    %4641 = vmatprep.subr.mxu0 0.0
    %4642 = vmatpush2.msra.mxu0 0.0
    %4643 = vmatprep.subr.mxu0 0.0
    %4644 = vmatpush2.msra.mxu0 0.0
    %4645 = vmatprep.subr.mxu0 0.0
    %4646 = vmatpush2.msra.mxu0 0.0
    %4647 = vmatprep.subr.mxu0 0.0
    %4648 = vmatpush2.msra.mxu0 0.0
    %4649 = vmatprep.subr.mxu0 0.0
    %4650 = vmatpush2.msra.mxu0 0.0
    %4651 = vmatprep.subr.mxu0 0.0
    %4652 = vmatpush2.msra.mxu0 0.0
    %4653 = vmatprep.subr.mxu0 0.0
    %4654 = vmatpush2.msra.mxu0 0.0
    %4655 = vmatprep.subr.mxu0 0.0
    %4656 = vmatpush2.msra.mxu0 0.0
    %4657 = vmatprep.subr.mxu0 0.0
    %4658 = vmatpush2.msra.mxu0 0.0
    %4659 = vmatprep.mubr.f32.mxu0 0.0
    %4660 = vmatmul.mubr.f32.gmra.mxu0 %v4584
    %v4661 = vpop.f32.mrf.mxu0
    %v4662 = vadd.f32 0.0, %v4661
    %v4663 = vpop.f32.mrf.mxu0
    %4664 = vmatprep.mubr.f32.mxu0 0.0
    %4665 = vmatmul.mubr.f32.gmra.mxu0 %v4587
    %v4666 = vpop.f32.mrf.mxu0
    %v4667 = vadd.f32 0.0, %v4666
    %v4668 = vpop.f32.mrf.mxu0
    %4669 = vmatprep.mubr.f32.mxu0 0.0
    %4670 = vmatmul.mubr.f32.gmra.mxu0 %v4590
    %v4671 = vpop.f32.mrf.mxu0
    %v4672 = vadd.f32 0.0, %v4671
    %v4673 = vpop.f32.mrf.mxu0
    %4674 = vmatprep.mubr.f32.mxu0 0.0
    %4675 = vmatmul.mubr.f32.gmra.mxu0 %v4593
    %v4676 = vpop.f32.mrf.mxu0
    %v4677 = vadd.f32 0.0, %v4676
    %v4678 = vpop.f32.mrf.mxu0
    %4679 = vdwg.mxu0
    %v4681 = vsel %vm995, %v4490, 0
    %v4684 = vsel %vm995, %v4491, 0
    %v4687 = vsel %vm995, %v4492, 0
    %v4690 = vsel %vm995, %v4493, 0
    %4692 = vmatprep.subr.mxu0 0.0
    %4693 = vmatpush1.msra.mxu0 0.0
    %4694 = vmatprep.subr.mxu0 0.0
    %4695 = vmatpush1.msra.mxu0 0.0
    %4696 = vmatprep.subr.mxu0 0.0
    %4697 = vmatpush1.msra.mxu0 0.0
    %4698 = vmatprep.subr.mxu0 0.0
    %4699 = vmatpush1.msra.mxu0 0.0
    %4700 = vmatprep.subr.mxu0 0.0
    %4701 = vmatpush1.msra.mxu0 0.0
    %4702 = vmatprep.subr.mxu0 0.0
    %4703 = vmatpush1.msra.mxu0 0.0
    %4704 = vmatprep.subr.mxu0 0.0
    %4705 = vmatpush1.msra.mxu0 0.0
    %4706 = vmatprep.subr.mxu0 0.0
    %4707 = vmatpush1.msra.mxu0 0.0
    %4708 = vmatprep.subr.mxu0 0.0
    %4709 = vmatpush1.msra.mxu0 0.0
    %4710 = vmatprep.subr.mxu0 0.0
    %4711 = vmatpush1.msra.mxu0 0.0
    %4712 = vmatprep.subr.mxu0 0.0
    %4713 = vmatpush1.msra.mxu0 0.0
    %4714 = vmatprep.subr.mxu0 0.0
    %4715 = vmatpush1.msra.mxu0 0.0
    %4716 = vmatprep.subr.mxu0 0.0
    %4717 = vmatpush1.msra.mxu0 0.0
    %4718 = vmatprep.subr.mxu0 0.0
    %4719 = vmatpush1.msra.mxu0 0.0
    %4720 = vmatprep.subr.mxu0 0.0
    %4721 = vmatpush1.msra.mxu0 0.0
    %4722 = vmatprep.subr.mxu0 0.0
    %4723 = vmatpush1.msra.mxu0 %v4487
    %4724 = vmatprep.subr.mxu0 0.0
    %4725 = vmatpush2.msra.mxu0 0.0
    %4726 = vmatprep.subr.mxu0 0.0
    %4727 = vmatpush2.msra.mxu0 0.0
    %4728 = vmatprep.subr.mxu0 0.0
    %4729 = vmatpush2.msra.mxu0 0.0
    %4730 = vmatprep.subr.mxu0 0.0
    %4731 = vmatpush2.msra.mxu0 0.0
    %4732 = vmatprep.subr.mxu0 0.0
    %4733 = vmatpush2.msra.mxu0 0.0
    %4734 = vmatprep.subr.mxu0 0.0
    %4735 = vmatpush2.msra.mxu0 0.0
    %4736 = vmatprep.subr.mxu0 0.0
    %4737 = vmatpush2.msra.mxu0 0.0
    %4738 = vmatprep.subr.mxu0 0.0
    %4739 = vmatpush2.msra.mxu0 0.0
    %4740 = vmatprep.subr.mxu0 0.0
    %4741 = vmatpush2.msra.mxu0 0.0
    %4742 = vmatprep.subr.mxu0 0.0
    %4743 = vmatpush2.msra.mxu0 0.0
    %4744 = vmatprep.subr.mxu0 0.0
    %4745 = vmatpush2.msra.mxu0 0.0
    %4746 = vmatprep.subr.mxu0 0.0
    %4747 = vmatpush2.msra.mxu0 0.0
    %4748 = vmatprep.subr.mxu0 0.0
    %4749 = vmatpush2.msra.mxu0 0.0
    %4750 = vmatprep.subr.mxu0 0.0
    %4751 = vmatpush2.msra.mxu0 0.0
    %4752 = vmatprep.subr.mxu0 0.0
    %4753 = vmatpush2.msra.mxu0 0.0
    %4754 = vmatprep.subr.mxu0 0.0
    %4755 = vmatpush2.msra.mxu0 0.0
    %4756 = vmatprep.mubr.f32.mxu0 0.0
    %4757 = vmatmul.mubr.f32.gmra.mxu0 %v4681
    %v4758 = vpop.f32.mrf.mxu0
    %v4759 = vadd.f32 %v4662, %v4758
    %v4760 = vpop.f32.mrf.mxu0
    %4761 = vmatprep.mubr.f32.mxu0 0.0
    %4762 = vmatmul.mubr.f32.gmra.mxu0 %v4684
    %v4763 = vpop.f32.mrf.mxu0
    %v4764 = vadd.f32 %v4667, %v4763
    %v4765 = vpop.f32.mrf.mxu0
    %4766 = vmatprep.mubr.f32.mxu0 0.0
    %4767 = vmatmul.mubr.f32.gmra.mxu0 %v4687
    %v4768 = vpop.f32.mrf.mxu0
    %v4769 = vadd.f32 %v4672, %v4768
    %v4770 = vpop.f32.mrf.mxu0
    %4771 = vmatprep.mubr.f32.mxu0 0.0
    %4772 = vmatmul.mubr.f32.gmra.mxu0 %v4690
    %v4773 = vpop.f32.mrf.mxu0
    %v4774 = vadd.f32 %v4677, %v4773
    %v4775 = vpop.f32.mrf.mxu0
    %4776 = vdwg.mxu0
    %v4777 = vld [vmem:[%s1190] sm:$0xff]
    %v4778 = vld [vmem:[%s1190 + $0x8] sm:$0xff]
    %v4779 = vld [vmem:[%s1190 + $0x10] sm:$0xff]
    %v4780 = vld [vmem:[%s1190 + $0x18] sm:$0xff]
    %v4781 = vld [vmem:[%s1190 + $0x20] sm:$0xff]
    %v4782 = vld [vmem:[%s1190 + $0x28] sm:$0xff]
    %v4783 = vld [vmem:[%s1190 + $0x30] sm:$0xff]
    %v4784 = vld [vmem:[%s1190 + $0x38] sm:$0xff]
    %v4785 = vld [vmem:[%s1199] sm:$0x1]
    %v4787 = vlaneseq
    %v4788 = vshrl.u32 %v4787, 7
    %v4789 = vsub.s32 0, %v4788
    %v4790 = vrot.slane %v4785, %v4789
    %4792 = vmatprep.subr.mxu0 0.0
    %4793 = vmatpush1.msra.mxu0 0.0
    %4794 = vmatprep.subr.mxu0 0.0
    %4795 = vmatpush1.msra.mxu0 0.0
    %4796 = vmatprep.subr.mxu0 0.0
    %4797 = vmatpush1.msra.mxu0 0.0
    %4798 = vmatprep.subr.mxu0 0.0
    %4799 = vmatpush1.msra.mxu0 0.0
    %4800 = vmatprep.subr.mxu0 0.0
    %4801 = vmatpush1.msra.mxu0 0.0
    %4802 = vmatprep.subr.mxu0 0.0
    %4803 = vmatpush1.msra.mxu0 0.0
    %4804 = vmatprep.subr.mxu0 0.0
    %4805 = vmatpush1.msra.mxu0 0.0
    %4806 = vmatprep.subr.mxu0 0.0
    %4807 = vmatpush1.msra.mxu0 0.0
    %4808 = vmatprep.subr.mxu0 0.0
    %4809 = vmatpush1.msra.mxu0 %v4784
    %4810 = vmatprep.subr.mxu0 0.0
    %4811 = vmatpush1.msra.mxu0 %v4783
    %4812 = vmatprep.subr.mxu0 0.0
    %4813 = vmatpush1.msra.mxu0 %v4782
    %4814 = vmatprep.subr.mxu0 0.0
    %4815 = vmatpush1.msra.mxu0 %v4781
    %4816 = vmatprep.subr.mxu0 0.0
    %4817 = vmatpush1.msra.mxu0 %v4780
    %4818 = vmatprep.subr.mxu0 0.0
    %4819 = vmatpush1.msra.mxu0 %v4779
    %4820 = vmatprep.subr.mxu0 0.0
    %4821 = vmatpush1.msra.mxu0 %v4778
    %4822 = vmatprep.subr.mxu0 0.0
    %4823 = vmatpush1.msra.mxu0 %v4777
    %4824 = vmatprep.subr.mxu0 0.0
    %4825 = vmatpush2.msra.mxu0 0.0
    %4826 = vmatprep.subr.mxu0 0.0
    %4827 = vmatpush2.msra.mxu0 0.0
    %4828 = vmatprep.subr.mxu0 0.0
    %4829 = vmatpush2.msra.mxu0 0.0
    %4830 = vmatprep.subr.mxu0 0.0
    %4831 = vmatpush2.msra.mxu0 0.0
    %4832 = vmatprep.subr.mxu0 0.0
    %4833 = vmatpush2.msra.mxu0 0.0
    %4834 = vmatprep.subr.mxu0 0.0
    %4835 = vmatpush2.msra.mxu0 0.0
    %4836 = vmatprep.subr.mxu0 0.0
    %4837 = vmatpush2.msra.mxu0 0.0
    %4838 = vmatprep.subr.mxu0 0.0
    %4839 = vmatpush2.msra.mxu0 0.0
    %4840 = vmatprep.subr.mxu0 0.0
    %4841 = vmatpush2.msra.mxu0 0.0
    %4842 = vmatprep.subr.mxu0 0.0
    %4843 = vmatpush2.msra.mxu0 0.0
    %4844 = vmatprep.subr.mxu0 0.0
    %4845 = vmatpush2.msra.mxu0 0.0
    %4846 = vmatprep.subr.mxu0 0.0
    %4847 = vmatpush2.msra.mxu0 0.0
    %4848 = vmatprep.subr.mxu0 0.0
    %4849 = vmatpush2.msra.mxu0 0.0
    %4850 = vmatprep.subr.mxu0 0.0
    %4851 = vmatpush2.msra.mxu0 0.0
    %4852 = vmatprep.subr.mxu0 0.0
    %4853 = vmatpush2.msra.mxu0 0.0
    %4854 = vmatprep.subr.mxu0 0.0
    %4855 = vmatpush2.msra.mxu0 0.0
    %4856 = vmatprep.mubr.f32.mxu0 0.0
    %4857 = vmatmul.mubr.f32.gmra.mxu0 %v4418
    %v4858 = vpop.f32.mrf.mxu0
    %v4859 = vadd.f32 %v4790, %v4858
    %v4860 = vpop.f32.mrf.mxu0
    %4861 = vdwg.mxu0
    %v4862 = vld [vmem:[%s1277] sm:$0xff]
    %v4863 = vld [vmem:[%s1277 + $0x8] sm:$0xff]
    %v4864 = vld [vmem:[%s1277 + $0x10] sm:$0xff]
    %v4865 = vld [vmem:[%s1277 + $0x18] sm:$0xff]
    %v4867 = vsel %vm995, %v4862, 0
    %v4870 = vsel %vm995, %v4863, 0
    %v4873 = vsel %vm995, %v4864, 0
    %v4876 = vsel %vm995, %v4865, 0
    %4878 = vmatprep.subr.mxu0 0.0
    %4879 = vmatpush1.msra.mxu0 0.0
    %4880 = vmatprep.subr.mxu0 0.0
    %4881 = vmatpush1.msra.mxu0 0.0
    %4882 = vmatprep.subr.mxu0 0.0
    %4883 = vmatpush1.msra.mxu0 0.0
    %4884 = vmatprep.subr.mxu0 0.0
    %4885 = vmatpush1.msra.mxu0 0.0
    %4886 = vmatprep.subr.mxu0 0.0
    %4887 = vmatpush1.msra.mxu0 0.0
    %4888 = vmatprep.subr.mxu0 0.0
    %4889 = vmatpush1.msra.mxu0 0.0
    %4890 = vmatprep.subr.mxu0 0.0
    %4891 = vmatpush1.msra.mxu0 0.0
    %4892 = vmatprep.subr.mxu0 0.0
    %4893 = vmatpush1.msra.mxu0 0.0
    %4894 = vmatprep.subr.mxu0 0.0
    %4895 = vmatpush1.msra.mxu0 0.0
    %4896 = vmatprep.subr.mxu0 0.0
    %4897 = vmatpush1.msra.mxu0 0.0
    %4898 = vmatprep.subr.mxu0 0.0
    %4899 = vmatpush1.msra.mxu0 0.0
    %4900 = vmatprep.subr.mxu0 0.0
    %4901 = vmatpush1.msra.mxu0 0.0
    %4902 = vmatprep.subr.mxu0 0.0
    %4903 = vmatpush1.msra.mxu0 0.0
    %4904 = vmatprep.subr.mxu0 0.0
    %4905 = vmatpush1.msra.mxu0 0.0
    %4906 = vmatprep.subr.mxu0 0.0
    %4907 = vmatpush1.msra.mxu0 0.0
    %4908 = vmatprep.subr.mxu0 0.0
    %4909 = vmatpush1.msra.mxu0 %v4859
    %4910 = vmatprep.subr.mxu0 0.0
    %4911 = vmatpush2.msra.mxu0 0.0
    %4912 = vmatprep.subr.mxu0 0.0
    %4913 = vmatpush2.msra.mxu0 0.0
    %4914 = vmatprep.subr.mxu0 0.0
    %4915 = vmatpush2.msra.mxu0 0.0
    %4916 = vmatprep.subr.mxu0 0.0
    %4917 = vmatpush2.msra.mxu0 0.0
    %4918 = vmatprep.subr.mxu0 0.0
    %4919 = vmatpush2.msra.mxu0 0.0
    %4920 = vmatprep.subr.mxu0 0.0
    %4921 = vmatpush2.msra.mxu0 0.0
    %4922 = vmatprep.subr.mxu0 0.0
    %4923 = vmatpush2.msra.mxu0 0.0
    %4924 = vmatprep.subr.mxu0 0.0
    %4925 = vmatpush2.msra.mxu0 0.0
    %4926 = vmatprep.subr.mxu0 0.0
    %4927 = vmatpush2.msra.mxu0 0.0
    %4928 = vmatprep.subr.mxu0 0.0
    %4929 = vmatpush2.msra.mxu0 0.0
    %4930 = vmatprep.subr.mxu0 0.0
    %4931 = vmatpush2.msra.mxu0 0.0
    %4932 = vmatprep.subr.mxu0 0.0
    %4933 = vmatpush2.msra.mxu0 0.0
    %4934 = vmatprep.subr.mxu0 0.0
    %4935 = vmatpush2.msra.mxu0 0.0
    %4936 = vmatprep.subr.mxu0 0.0
    %4937 = vmatpush2.msra.mxu0 0.0
    %4938 = vmatprep.subr.mxu0 0.0
    %4939 = vmatpush2.msra.mxu0 0.0
    %4940 = vmatprep.subr.mxu0 0.0
    %4941 = vmatpush2.msra.mxu0 0.0
    %4942 = vmatprep.mubr.f32.mxu0 0.0
    %4943 = vmatmul.mubr.f32.gmra.mxu0 %v4867
    %v4944 = vpop.f32.mrf.mxu0
    %v4945 = vadd.f32 0.0, %v4944
    %v4946 = vpop.f32.mrf.mxu0
    %4947 = vmatprep.mubr.f32.mxu0 0.0
    %4948 = vmatmul.mubr.f32.gmra.mxu0 %v4870
    %v4949 = vpop.f32.mrf.mxu0
    %v4950 = vadd.f32 0.0, %v4949
    %v4951 = vpop.f32.mrf.mxu0
    %4952 = vmatprep.mubr.f32.mxu0 0.0
    %4953 = vmatmul.mubr.f32.gmra.mxu0 %v4873
    %v4954 = vpop.f32.mrf.mxu0
    %v4955 = vadd.f32 0.0, %v4954
    %v4956 = vpop.f32.mrf.mxu0
    %4957 = vmatprep.mubr.f32.mxu0 0.0
    %4958 = vmatmul.mubr.f32.gmra.mxu0 %v4876
    %v4959 = vpop.f32.mrf.mxu0
    %v4960 = vadd.f32 0.0, %v4959
    %v4961 = vpop.f32.mrf.mxu0
    %4962 = vdwg.mxu0
    %v4963 = vadd.f32 %v4759, %v4945
    %v4964 = vadd.f32 %v4764, %v4950
    %v4965 = vadd.f32 %v4769, %v4955
    %v4966 = vadd.f32 %v4774, %v4960
    %v4967 = vld [vmem:[%s1383] sm:$0xff]
    %v4968 = vld [vmem:[%s1383 + $0x8] sm:$0xff]
    %v4969 = vld [vmem:[%s1383 + $0x10] sm:$0xff]
    %v4970 = vld [vmem:[%s1383 + $0x18] sm:$0xff]
    %v4971 = vld [vmem:[%s1383 + $0x20] sm:$0xff]
    %v4972 = vld [vmem:[%s1383 + $0x28] sm:$0xff]
    %v4973 = vld [vmem:[%s1383 + $0x30] sm:$0xff]
    %v4974 = vld [vmem:[%s1383 + $0x38] sm:$0xff]
    %v4975 = vld [vmem:[%s1392] sm:$0x1]
    %v4977 = vlaneseq
    %v4978 = vshrl.u32 %v4977, 7
    %v4979 = vsub.s32 0, %v4978
    %v4980 = vrot.slane %v4975, %v4979
    %4982 = vmatprep.subr.mxu0 0.0
    %4983 = vmatpush1.msra.mxu0 0.0
    %4984 = vmatprep.subr.mxu0 0.0
    %4985 = vmatpush1.msra.mxu0 0.0
    %4986 = vmatprep.subr.mxu0 0.0
    %4987 = vmatpush1.msra.mxu0 0.0
    %4988 = vmatprep.subr.mxu0 0.0
    %4989 = vmatpush1.msra.mxu0 0.0
    %4990 = vmatprep.subr.mxu0 0.0
    %4991 = vmatpush1.msra.mxu0 0.0
    %4992 = vmatprep.subr.mxu0 0.0
    %4993 = vmatpush1.msra.mxu0 0.0
    %4994 = vmatprep.subr.mxu0 0.0
    %4995 = vmatpush1.msra.mxu0 0.0
    %4996 = vmatprep.subr.mxu0 0.0
    %4997 = vmatpush1.msra.mxu0 0.0
    %4998 = vmatprep.subr.mxu0 0.0
    %4999 = vmatpush1.msra.mxu0 %v4974
    %5000 = vmatprep.subr.mxu0 0.0
    %5001 = vmatpush1.msra.mxu0 %v4973
    %5002 = vmatprep.subr.mxu0 0.0
    %5003 = vmatpush1.msra.mxu0 %v4972
    %5004 = vmatprep.subr.mxu0 0.0
    %5005 = vmatpush1.msra.mxu0 %v4971
    %5006 = vmatprep.subr.mxu0 0.0
    %5007 = vmatpush1.msra.mxu0 %v4970
    %5008 = vmatprep.subr.mxu0 0.0
    %5009 = vmatpush1.msra.mxu0 %v4969
    %5010 = vmatprep.subr.mxu0 0.0
    %5011 = vmatpush1.msra.mxu0 %v4968
    %5012 = vmatprep.subr.mxu0 0.0
    %5013 = vmatpush1.msra.mxu0 %v4967
    %5014 = vmatprep.subr.mxu0 0.0
    %5015 = vmatpush2.msra.mxu0 0.0
    %5016 = vmatprep.subr.mxu0 0.0
    %5017 = vmatpush2.msra.mxu0 0.0
    %5018 = vmatprep.subr.mxu0 0.0
    %5019 = vmatpush2.msra.mxu0 0.0
    %5020 = vmatprep.subr.mxu0 0.0
    %5021 = vmatpush2.msra.mxu0 0.0
    %5022 = vmatprep.subr.mxu0 0.0
    %5023 = vmatpush2.msra.mxu0 0.0
    %5024 = vmatprep.subr.mxu0 0.0
    %5025 = vmatpush2.msra.mxu0 0.0
    %5026 = vmatprep.subr.mxu0 0.0
    %5027 = vmatpush2.msra.mxu0 0.0
    %5028 = vmatprep.subr.mxu0 0.0
    %5029 = vmatpush2.msra.mxu0 0.0
    %5030 = vmatprep.subr.mxu0 0.0
    %5031 = vmatpush2.msra.mxu0 0.0
    %5032 = vmatprep.subr.mxu0 0.0
    %5033 = vmatpush2.msra.mxu0 0.0
    %5034 = vmatprep.subr.mxu0 0.0
    %5035 = vmatpush2.msra.mxu0 0.0
    %5036 = vmatprep.subr.mxu0 0.0
    %5037 = vmatpush2.msra.mxu0 0.0
    %5038 = vmatprep.subr.mxu0 0.0
    %5039 = vmatpush2.msra.mxu0 0.0
    %5040 = vmatprep.subr.mxu0 0.0
    %5041 = vmatpush2.msra.mxu0 0.0
    %5042 = vmatprep.subr.mxu0 0.0
    %5043 = vmatpush2.msra.mxu0 0.0
    %5044 = vmatprep.subr.mxu0 0.0
    %5045 = vmatpush2.msra.mxu0 0.0
    %5046 = vmatprep.mubr.f32.mxu0 0.0
    %5047 = vmatmul.mubr.f32.gmra.mxu0 %v4418
    %v5048 = vpop.f32.mrf.mxu0
    %v5049 = vadd.f32 %v4980, %v5048
    %v5050 = vpop.f32.mrf.mxu0
    %5051 = vdwg.mxu0
    %v5052 = vld [vmem:[%s1470] sm:$0xff]
    %v5053 = vld [vmem:[%s1470 + $0x8] sm:$0xff]
    %v5054 = vld [vmem:[%s1470 + $0x10] sm:$0xff]
    %v5055 = vld [vmem:[%s1470 + $0x18] sm:$0xff]
    %v5057 = vsel %vm995, %v5052, 0
    %v5060 = vsel %vm995, %v5053, 0
    %v5063 = vsel %vm995, %v5054, 0
    %v5066 = vsel %vm995, %v5055, 0
    %5068 = vmatprep.subr.mxu0 0.0
    %5069 = vmatpush1.msra.mxu0 0.0
    %5070 = vmatprep.subr.mxu0 0.0
    %5071 = vmatpush1.msra.mxu0 0.0
    %5072 = vmatprep.subr.mxu0 0.0
    %5073 = vmatpush1.msra.mxu0 0.0
    %5074 = vmatprep.subr.mxu0 0.0
    %5075 = vmatpush1.msra.mxu0 0.0
    %5076 = vmatprep.subr.mxu0 0.0
    %5077 = vmatpush1.msra.mxu0 0.0
    %5078 = vmatprep.subr.mxu0 0.0
    %5079 = vmatpush1.msra.mxu0 0.0
    %5080 = vmatprep.subr.mxu0 0.0
    %5081 = vmatpush1.msra.mxu0 0.0
    %5082 = vmatprep.subr.mxu0 0.0
    %5083 = vmatpush1.msra.mxu0 0.0
    %5084 = vmatprep.subr.mxu0 0.0
    %5085 = vmatpush1.msra.mxu0 0.0
    %5086 = vmatprep.subr.mxu0 0.0
    %5087 = vmatpush1.msra.mxu0 0.0
    %5088 = vmatprep.subr.mxu0 0.0
    %5089 = vmatpush1.msra.mxu0 0.0
    %5090 = vmatprep.subr.mxu0 0.0
    %5091 = vmatpush1.msra.mxu0 0.0
    %5092 = vmatprep.subr.mxu0 0.0
    %5093 = vmatpush1.msra.mxu0 0.0
    %5094 = vmatprep.subr.mxu0 0.0
    %5095 = vmatpush1.msra.mxu0 0.0
    %5096 = vmatprep.subr.mxu0 0.0
    %5097 = vmatpush1.msra.mxu0 0.0
    %5098 = vmatprep.subr.mxu0 0.0
    %5099 = vmatpush1.msra.mxu0 %v5049
    %5100 = vmatprep.subr.mxu0 0.0
    %5101 = vmatpush2.msra.mxu0 0.0
    %5102 = vmatprep.subr.mxu0 0.0
    %5103 = vmatpush2.msra.mxu0 0.0
    %5104 = vmatprep.subr.mxu0 0.0
    %5105 = vmatpush2.msra.mxu0 0.0
    %5106 = vmatprep.subr.mxu0 0.0
    %5107 = vmatpush2.msra.mxu0 0.0
    %5108 = vmatprep.subr.mxu0 0.0
    %5109 = vmatpush2.msra.mxu0 0.0
    %5110 = vmatprep.subr.mxu0 0.0
    %5111 = vmatpush2.msra.mxu0 0.0
    %5112 = vmatprep.subr.mxu0 0.0
    %5113 = vmatpush2.msra.mxu0 0.0
    %5114 = vmatprep.subr.mxu0 0.0
    %5115 = vmatpush2.msra.mxu0 0.0
    %5116 = vmatprep.subr.mxu0 0.0
    %5117 = vmatpush2.msra.mxu0 0.0
    %5118 = vmatprep.subr.mxu0 0.0
    %5119 = vmatpush2.msra.mxu0 0.0
    %5120 = vmatprep.subr.mxu0 0.0
    %5121 = vmatpush2.msra.mxu0 0.0
    %5122 = vmatprep.subr.mxu0 0.0
    %5123 = vmatpush2.msra.mxu0 0.0
    %5124 = vmatprep.subr.mxu0 0.0
    %5125 = vmatpush2.msra.mxu0 0.0
    %5126 = vmatprep.subr.mxu0 0.0
    %5127 = vmatpush2.msra.mxu0 0.0
    %5128 = vmatprep.subr.mxu0 0.0
    %5129 = vmatpush2.msra.mxu0 0.0
    %5130 = vmatprep.subr.mxu0 0.0
    %5131 = vmatpush2.msra.mxu0 0.0
    %5132 = vmatprep.mubr.f32.mxu0 0.0
    %5133 = vmatmul.mubr.f32.gmra.mxu0 %v5057
    %v5134 = vpop.f32.mrf.mxu0
    %v5135 = vadd.f32 0.0, %v5134
    %v5136 = vpop.f32.mrf.mxu0
    %5137 = vmatprep.mubr.f32.mxu0 0.0
    %5138 = vmatmul.mubr.f32.gmra.mxu0 %v5060
    %v5139 = vpop.f32.mrf.mxu0
    %v5140 = vadd.f32 0.0, %v5139
    %v5141 = vpop.f32.mrf.mxu0
    %5142 = vmatprep.mubr.f32.mxu0 0.0
    %5143 = vmatmul.mubr.f32.gmra.mxu0 %v5063
    %v5144 = vpop.f32.mrf.mxu0
    %v5145 = vadd.f32 0.0, %v5144
    %v5146 = vpop.f32.mrf.mxu0
    %5147 = vmatprep.mubr.f32.mxu0 0.0
    %5148 = vmatmul.mubr.f32.gmra.mxu0 %v5066
    %v5149 = vpop.f32.mrf.mxu0
    %v5150 = vadd.f32 0.0, %v5149
    %v5151 = vpop.f32.mrf.mxu0
    %5152 = vdwg.mxu0
    %v5153 = vadd.f32 %v4963, %v5135
    %v5154 = vadd.f32 %v4964, %v5140
    %v5155 = vadd.f32 %v4965, %v5145
    %v5156 = vadd.f32 %v4966, %v5150
    %v5157 = vld [vmem:[%s8] sm:$0xff]
    %v5158 = vld [vmem:[%s8 + $0x8] sm:$0xff]
    %v5159 = vld [vmem:[%s8 + $0x10] sm:$0xff]
    %v5160 = vld [vmem:[%s8 + $0x18] sm:$0xff]
    %v5161 = vld [vmem:[%s8 + $0x20] sm:$0xff]
    %v5162 = vld [vmem:[%s8 + $0x28] sm:$0xff]
    %v5163 = vld [vmem:[%s8 + $0x30] sm:$0xff]
    %v5164 = vld [vmem:[%s8 + $0x38] sm:$0xff]
    %v5165 = vld [vmem:[%s9] sm:$0x1]
    %v5167 = vlaneseq
    %v5168 = vshrl.u32 %v5167, 7
    %v5169 = vsub.s32 0, %v5168
    %v5170 = vrot.slane %v5165, %v5169
    %5172 = vmatprep.subr.mxu0 0.0
    %5173 = vmatpush1.msra.mxu0 0.0
    %5174 = vmatprep.subr.mxu0 0.0
    %5175 = vmatpush1.msra.mxu0 0.0
    %5176 = vmatprep.subr.mxu0 0.0
    %5177 = vmatpush1.msra.mxu0 0.0
    %5178 = vmatprep.subr.mxu0 0.0
    %5179 = vmatpush1.msra.mxu0 0.0
    %5180 = vmatprep.subr.mxu0 0.0
    %5181 = vmatpush1.msra.mxu0 0.0
    %5182 = vmatprep.subr.mxu0 0.0
    %5183 = vmatpush1.msra.mxu0 0.0
    %5184 = vmatprep.subr.mxu0 0.0
    %5185 = vmatpush1.msra.mxu0 0.0
    %5186 = vmatprep.subr.mxu0 0.0
    %5187 = vmatpush1.msra.mxu0 0.0
    %5188 = vmatprep.subr.mxu0 0.0
    %5189 = vmatpush1.msra.mxu0 %v5164
    %5190 = vmatprep.subr.mxu0 0.0
    %5191 = vmatpush1.msra.mxu0 %v5163
    %5192 = vmatprep.subr.mxu0 0.0
    %5193 = vmatpush1.msra.mxu0 %v5162
    %5194 = vmatprep.subr.mxu0 0.0
    %5195 = vmatpush1.msra.mxu0 %v5161
    %5196 = vmatprep.subr.mxu0 0.0
    %5197 = vmatpush1.msra.mxu0 %v5160
    %5198 = vmatprep.subr.mxu0 0.0
    %5199 = vmatpush1.msra.mxu0 %v5159
    %5200 = vmatprep.subr.mxu0 0.0
    %5201 = vmatpush1.msra.mxu0 %v5158
    %5202 = vmatprep.subr.mxu0 0.0
    %5203 = vmatpush1.msra.mxu0 %v5157
    %5204 = vmatprep.subr.mxu0 0.0
    %5205 = vmatpush2.msra.mxu0 0.0
    %5206 = vmatprep.subr.mxu0 0.0
    %5207 = vmatpush2.msra.mxu0 0.0
    %5208 = vmatprep.subr.mxu0 0.0
    %5209 = vmatpush2.msra.mxu0 0.0
    %5210 = vmatprep.subr.mxu0 0.0
    %5211 = vmatpush2.msra.mxu0 0.0
    %5212 = vmatprep.subr.mxu0 0.0
    %5213 = vmatpush2.msra.mxu0 0.0
    %5214 = vmatprep.subr.mxu0 0.0
    %5215 = vmatpush2.msra.mxu0 0.0
    %5216 = vmatprep.subr.mxu0 0.0
    %5217 = vmatpush2.msra.mxu0 0.0
    %5218 = vmatprep.subr.mxu0 0.0
    %5219 = vmatpush2.msra.mxu0 0.0
    %5220 = vmatprep.subr.mxu0 0.0
    %5221 = vmatpush2.msra.mxu0 0.0
    %5222 = vmatprep.subr.mxu0 0.0
    %5223 = vmatpush2.msra.mxu0 0.0
    %5224 = vmatprep.subr.mxu0 0.0
    %5225 = vmatpush2.msra.mxu0 0.0
    %5226 = vmatprep.subr.mxu0 0.0
    %5227 = vmatpush2.msra.mxu0 0.0
    %5228 = vmatprep.subr.mxu0 0.0
    %5229 = vmatpush2.msra.mxu0 0.0
    %5230 = vmatprep.subr.mxu0 0.0
    %5231 = vmatpush2.msra.mxu0 0.0
    %5232 = vmatprep.subr.mxu0 0.0
    %5233 = vmatpush2.msra.mxu0 0.0
    %5234 = vmatprep.subr.mxu0 0.0
    %5235 = vmatpush2.msra.mxu0 0.0
    %5236 = vmatprep.mubr.f32.mxu0 0.0
    %5237 = vmatmul.mubr.f32.gmra.mxu0 %v4418
    %v5238 = vpop.f32.mrf.mxu0
    %v5239 = vadd.f32 %v5170, %v5238
    %v5240 = vpop.f32.mrf.mxu0
    %5241 = vdwg.mxu0
    %v5242 = vld [vmem:[%s1661] sm:$0xff]
    %v5243 = vld [vmem:[%s1661 + $0x8] sm:$0xff]
    %v5244 = vld [vmem:[%s1661 + $0x10] sm:$0xff]
    %v5245 = vld [vmem:[%s1661 + $0x18] sm:$0xff]
    %v5246 = vld [vmem:[%s1661 + $0x20] sm:$0xff]
    %v5247 = vld [vmem:[%s1661 + $0x28] sm:$0xff]
    %v5248 = vld [vmem:[%s1661 + $0x30] sm:$0xff]
    %v5249 = vld [vmem:[%s1661 + $0x38] sm:$0xff]
    %v5250 = vld [vmem:[%s1670] sm:$0x1]
    %v5252 = vlaneseq
    %v5253 = vshrl.u32 %v5252, 7
    %v5254 = vsub.s32 0, %v5253
    %v5255 = vrot.slane %v5250, %v5254
    %5257 = vmatprep.subr.mxu0 0.0
    %5258 = vmatpush1.msra.mxu0 0.0
    %5259 = vmatprep.subr.mxu0 0.0
    %5260 = vmatpush1.msra.mxu0 0.0
    %5261 = vmatprep.subr.mxu0 0.0
    %5262 = vmatpush1.msra.mxu0 0.0
    %5263 = vmatprep.subr.mxu0 0.0
    %5264 = vmatpush1.msra.mxu0 0.0
    %5265 = vmatprep.subr.mxu0 0.0
    %5266 = vmatpush1.msra.mxu0 0.0
    %5267 = vmatprep.subr.mxu0 0.0
    %5268 = vmatpush1.msra.mxu0 0.0
    %5269 = vmatprep.subr.mxu0 0.0
    %5270 = vmatpush1.msra.mxu0 0.0
    %5271 = vmatprep.subr.mxu0 0.0
    %5272 = vmatpush1.msra.mxu0 0.0
    %5273 = vmatprep.subr.mxu0 0.0
    %5274 = vmatpush1.msra.mxu0 %v5249
    %5275 = vmatprep.subr.mxu0 0.0
    %5276 = vmatpush1.msra.mxu0 %v5248
    %5277 = vmatprep.subr.mxu0 0.0
    %5278 = vmatpush1.msra.mxu0 %v5247
    %5279 = vmatprep.subr.mxu0 0.0
    %5280 = vmatpush1.msra.mxu0 %v5246
    %5281 = vmatprep.subr.mxu0 0.0
    %5282 = vmatpush1.msra.mxu0 %v5245
    %5283 = vmatprep.subr.mxu0 0.0
    %5284 = vmatpush1.msra.mxu0 %v5244
    %5285 = vmatprep.subr.mxu0 0.0
    %5286 = vmatpush1.msra.mxu0 %v5243
    %5287 = vmatprep.subr.mxu0 0.0
    %5288 = vmatpush1.msra.mxu0 %v5242
    %5289 = vmatprep.subr.mxu0 0.0
    %5290 = vmatpush2.msra.mxu0 0.0
    %5291 = vmatprep.subr.mxu0 0.0
    %5292 = vmatpush2.msra.mxu0 0.0
    %5293 = vmatprep.subr.mxu0 0.0
    %5294 = vmatpush2.msra.mxu0 0.0
    %5295 = vmatprep.subr.mxu0 0.0
    %5296 = vmatpush2.msra.mxu0 0.0
    %5297 = vmatprep.subr.mxu0 0.0
    %5298 = vmatpush2.msra.mxu0 0.0
    %5299 = vmatprep.subr.mxu0 0.0
    %5300 = vmatpush2.msra.mxu0 0.0
    %5301 = vmatprep.subr.mxu0 0.0
    %5302 = vmatpush2.msra.mxu0 0.0
    %5303 = vmatprep.subr.mxu0 0.0
    %5304 = vmatpush2.msra.mxu0 0.0
    %5305 = vmatprep.subr.mxu0 0.0
    %5306 = vmatpush2.msra.mxu0 0.0
    %5307 = vmatprep.subr.mxu0 0.0
    %5308 = vmatpush2.msra.mxu0 0.0
    %5309 = vmatprep.subr.mxu0 0.0
    %5310 = vmatpush2.msra.mxu0 0.0
    %5311 = vmatprep.subr.mxu0 0.0
    %5312 = vmatpush2.msra.mxu0 0.0
    %5313 = vmatprep.subr.mxu0 0.0
    %5314 = vmatpush2.msra.mxu0 0.0
    %5315 = vmatprep.subr.mxu0 0.0
    %5316 = vmatpush2.msra.mxu0 0.0
    %5317 = vmatprep.subr.mxu0 0.0
    %5318 = vmatpush2.msra.mxu0 0.0
    %5319 = vmatprep.subr.mxu0 0.0
    %5320 = vmatpush2.msra.mxu0 0.0
    %5321 = vmatprep.mubr.f32.mxu0 0.0
    %5322 = vmatmul.mubr.f32.gmra.mxu0 %v4418
    %v5323 = vpop.f32.mrf.mxu0
    %v5324 = vadd.f32 %v5255, %v5323
    %v5325 = vpop.f32.mrf.mxu0
    %5326 = vdwg.mxu0
    %5327 = vmatprep.subr.mxu0 0.0
    %5328 = vmatpush1.msra.mxu0 0.0
    %5329 = vmatprep.subr.mxu0 0.0
    %5330 = vmatpush1.msra.mxu0 0.0
    %5331 = vmatprep.subr.mxu0 0.0
    %5332 = vmatpush1.msra.mxu0 0.0
    %5333 = vmatprep.subr.mxu0 0.0
    %5334 = vmatpush1.msra.mxu0 0.0
    %5335 = vmatprep.subr.mxu0 0.0
    %5336 = vmatpush1.msra.mxu0 0.0
    %5337 = vmatprep.subr.mxu0 0.0
    %5338 = vmatpush1.msra.mxu0 0.0
    %5339 = vmatprep.subr.mxu0 0.0
    %5340 = vmatpush1.msra.mxu0 0.0
    %5341 = vmatprep.subr.mxu0 0.0
    %5342 = vmatpush1.msra.mxu0 0.0
    %5343 = vmatprep.subr.mxu0 0.0
    %5344 = vmatpush1.msra.mxu0 0.0
    %5345 = vmatprep.subr.mxu0 0.0
    %5346 = vmatpush1.msra.mxu0 0.0
    %5347 = vmatprep.subr.mxu0 0.0
    %5348 = vmatpush1.msra.mxu0 0.0
    %5349 = vmatprep.subr.mxu0 0.0
    %5350 = vmatpush1.msra.mxu0 0.0
    %5351 = vmatprep.subr.mxu0 0.0
    %5352 = vmatpush1.msra.mxu0 0.0
    %5353 = vmatprep.subr.mxu0 0.0
    %5354 = vmatpush1.msra.mxu0 0.0
    %5355 = vmatprep.subr.mxu0 0.0
    %5356 = vmatpush1.msra.mxu0 0.0
    %5357 = vmatprep.subr.mxu0 0.0
    %5358 = vmatpush1.msra.mxu0 %v5324
    %5359 = vmatprep.subr.mxu0 0.0
    %5360 = vmatpush2.msra.mxu0 0.0
    %5361 = vmatprep.subr.mxu0 0.0
    %5362 = vmatpush2.msra.mxu0 0.0
    %5363 = vmatprep.subr.mxu0 0.0
    %5364 = vmatpush2.msra.mxu0 0.0
    %5365 = vmatprep.subr.mxu0 0.0
    %5366 = vmatpush2.msra.mxu0 0.0
    %5367 = vmatprep.subr.mxu0 0.0
    %5368 = vmatpush2.msra.mxu0 0.0
    %5369 = vmatprep.subr.mxu0 0.0
    %5370 = vmatpush2.msra.mxu0 0.0
    %5371 = vmatprep.subr.mxu0 0.0
    %5372 = vmatpush2.msra.mxu0 0.0
    %5373 = vmatprep.subr.mxu0 0.0
    %5374 = vmatpush2.msra.mxu0 0.0
    %5375 = vmatprep.subr.mxu0 0.0
    %5376 = vmatpush2.msra.mxu0 0.0
    %5377 = vmatprep.subr.mxu0 0.0
    %5378 = vmatpush2.msra.mxu0 0.0
    %5379 = vmatprep.subr.mxu0 0.0
    %5380 = vmatpush2.msra.mxu0 0.0
    %5381 = vmatprep.subr.mxu0 0.0
    %5382 = vmatpush2.msra.mxu0 0.0
    %5383 = vmatprep.subr.mxu0 0.0
    %5384 = vmatpush2.msra.mxu0 0.0
    %5385 = vmatprep.subr.mxu0 0.0
    %5386 = vmatpush2.msra.mxu0 0.0
    %5387 = vmatprep.subr.mxu0 0.0
    %5388 = vmatpush2.msra.mxu0 0.0
    %5389 = vmatprep.subr.mxu0 0.0
    %5390 = vmatpush2.msra.mxu0 0.0
    %5391 = vmatprep.mubr.f32.mxu0 0.0
    %5392 = vmatmul.mubr.f32.gmra.mxu0 %v4584
    %v5393 = vpop.f32.mrf.mxu0
    %v5394 = vadd.f32 0.0, %v5393
    %v5395 = vpop.f32.mrf.mxu0
    %5396 = vmatprep.mubr.f32.mxu0 0.0
    %5397 = vmatmul.mubr.f32.gmra.mxu0 %v4587
    %v5398 = vpop.f32.mrf.mxu0
    %v5399 = vadd.f32 0.0, %v5398
    %v5400 = vpop.f32.mrf.mxu0
    %5401 = vmatprep.mubr.f32.mxu0 0.0
    %5402 = vmatmul.mubr.f32.gmra.mxu0 %v4590
    %v5403 = vpop.f32.mrf.mxu0
    %v5404 = vadd.f32 0.0, %v5403
    %v5405 = vpop.f32.mrf.mxu0
    %5406 = vmatprep.mubr.f32.mxu0 0.0
    %5407 = vmatmul.mubr.f32.gmra.mxu0 %v4593
    %v5408 = vpop.f32.mrf.mxu0
    %v5409 = vadd.f32 0.0, %v5408
    %v5410 = vpop.f32.mrf.mxu0
    %5411 = vdwg.mxu0
    %5412 = vmatprep.subr.mxu0 0.0
    %5413 = vmatpush1.msra.mxu0 0.0
    %5414 = vmatprep.subr.mxu0 0.0
    %5415 = vmatpush1.msra.mxu0 0.0
    %5416 = vmatprep.subr.mxu0 0.0
    %5417 = vmatpush1.msra.mxu0 0.0
    %5418 = vmatprep.subr.mxu0 0.0
    %5419 = vmatpush1.msra.mxu0 0.0
    %5420 = vmatprep.subr.mxu0 0.0
    %5421 = vmatpush1.msra.mxu0 0.0
    %5422 = vmatprep.subr.mxu0 0.0
    %5423 = vmatpush1.msra.mxu0 0.0
    %5424 = vmatprep.subr.mxu0 0.0
    %5425 = vmatpush1.msra.mxu0 0.0
    %5426 = vmatprep.subr.mxu0 0.0
    %5427 = vmatpush1.msra.mxu0 0.0
    %5428 = vmatprep.subr.mxu0 0.0
    %5429 = vmatpush1.msra.mxu0 0.0
    %5430 = vmatprep.subr.mxu0 0.0
    %5431 = vmatpush1.msra.mxu0 0.0
    %5432 = vmatprep.subr.mxu0 0.0
    %5433 = vmatpush1.msra.mxu0 0.0
    %5434 = vmatprep.subr.mxu0 0.0
    %5435 = vmatpush1.msra.mxu0 0.0
    %5436 = vmatprep.subr.mxu0 0.0
    %5437 = vmatpush1.msra.mxu0 0.0
    %5438 = vmatprep.subr.mxu0 0.0
    %5439 = vmatpush1.msra.mxu0 0.0
    %5440 = vmatprep.subr.mxu0 0.0
    %5441 = vmatpush1.msra.mxu0 0.0
    %5442 = vmatprep.subr.mxu0 0.0
    %5443 = vmatpush1.msra.mxu0 %v5239
    %5444 = vmatprep.subr.mxu0 0.0
    %5445 = vmatpush2.msra.mxu0 0.0
    %5446 = vmatprep.subr.mxu0 0.0
    %5447 = vmatpush2.msra.mxu0 0.0
    %5448 = vmatprep.subr.mxu0 0.0
    %5449 = vmatpush2.msra.mxu0 0.0
    %5450 = vmatprep.subr.mxu0 0.0
    %5451 = vmatpush2.msra.mxu0 0.0
    %5452 = vmatprep.subr.mxu0 0.0
    %5453 = vmatpush2.msra.mxu0 0.0
    %5454 = vmatprep.subr.mxu0 0.0
    %5455 = vmatpush2.msra.mxu0 0.0
    %5456 = vmatprep.subr.mxu0 0.0
    %5457 = vmatpush2.msra.mxu0 0.0
    %5458 = vmatprep.subr.mxu0 0.0
    %5459 = vmatpush2.msra.mxu0 0.0
    %5460 = vmatprep.subr.mxu0 0.0
    %5461 = vmatpush2.msra.mxu0 0.0
    %5462 = vmatprep.subr.mxu0 0.0
    %5463 = vmatpush2.msra.mxu0 0.0
    %5464 = vmatprep.subr.mxu0 0.0
    %5465 = vmatpush2.msra.mxu0 0.0
    %5466 = vmatprep.subr.mxu0 0.0
    %5467 = vmatpush2.msra.mxu0 0.0
    %5468 = vmatprep.subr.mxu0 0.0
    %5469 = vmatpush2.msra.mxu0 0.0
    %5470 = vmatprep.subr.mxu0 0.0
    %5471 = vmatpush2.msra.mxu0 0.0
    %5472 = vmatprep.subr.mxu0 0.0
    %5473 = vmatpush2.msra.mxu0 0.0
    %5474 = vmatprep.subr.mxu0 0.0
    %5475 = vmatpush2.msra.mxu0 0.0
    %5476 = vmatprep.mubr.f32.mxu0 0.0
    %5477 = vmatmul.mubr.f32.gmra.mxu0 %v4681
    %v5478 = vpop.f32.mrf.mxu0
    %v5479 = vadd.f32 %v5394, %v5478
    %v5480 = vpop.f32.mrf.mxu0
    %5481 = vmatprep.mubr.f32.mxu0 0.0
    %5482 = vmatmul.mubr.f32.gmra.mxu0 %v4684
    %v5483 = vpop.f32.mrf.mxu0
    %v5484 = vadd.f32 %v5399, %v5483
    %v5485 = vpop.f32.mrf.mxu0
    %5486 = vmatprep.mubr.f32.mxu0 0.0
    %5487 = vmatmul.mubr.f32.gmra.mxu0 %v4687
    %v5488 = vpop.f32.mrf.mxu0
    %v5489 = vadd.f32 %v5404, %v5488
    %v5490 = vpop.f32.mrf.mxu0
    %5491 = vmatprep.mubr.f32.mxu0 0.0
    %5492 = vmatmul.mubr.f32.gmra.mxu0 %v4690
    %v5493 = vpop.f32.mrf.mxu0
    %v5494 = vadd.f32 %v5409, %v5493
    %v5495 = vpop.f32.mrf.mxu0
    %5496 = vdwg.mxu0
    %v5497 = vld [vmem:[%s1918] sm:$0xff]
    %v5498 = vld [vmem:[%s1918 + $0x8] sm:$0xff]
    %v5499 = vld [vmem:[%s1918 + $0x10] sm:$0xff]
    %v5500 = vld [vmem:[%s1918 + $0x18] sm:$0xff]
    %v5501 = vld [vmem:[%s1918 + $0x20] sm:$0xff]
    %v5502 = vld [vmem:[%s1918 + $0x28] sm:$0xff]
    %v5503 = vld [vmem:[%s1918 + $0x30] sm:$0xff]
    %v5504 = vld [vmem:[%s1918 + $0x38] sm:$0xff]
    %v5505 = vld [vmem:[%s1927] sm:$0x1]
    %v5507 = vlaneseq
    %v5508 = vshrl.u32 %v5507, 7
    %v5509 = vsub.s32 0, %v5508
    %v5510 = vrot.slane %v5505, %v5509
    %5512 = vmatprep.subr.mxu0 0.0
    %5513 = vmatpush1.msra.mxu0 0.0
    %5514 = vmatprep.subr.mxu0 0.0
    %5515 = vmatpush1.msra.mxu0 0.0
    %5516 = vmatprep.subr.mxu0 0.0
    %5517 = vmatpush1.msra.mxu0 0.0
    %5518 = vmatprep.subr.mxu0 0.0
    %5519 = vmatpush1.msra.mxu0 0.0
    %5520 = vmatprep.subr.mxu0 0.0
    %5521 = vmatpush1.msra.mxu0 0.0
    %5522 = vmatprep.subr.mxu0 0.0
    %5523 = vmatpush1.msra.mxu0 0.0
    %5524 = vmatprep.subr.mxu0 0.0
    %5525 = vmatpush1.msra.mxu0 0.0
    %5526 = vmatprep.subr.mxu0 0.0
    %5527 = vmatpush1.msra.mxu0 0.0
    %5528 = vmatprep.subr.mxu0 0.0
    %5529 = vmatpush1.msra.mxu0 %v5504
    %5530 = vmatprep.subr.mxu0 0.0
    %5531 = vmatpush1.msra.mxu0 %v5503
    %5532 = vmatprep.subr.mxu0 0.0
    %5533 = vmatpush1.msra.mxu0 %v5502
    %5534 = vmatprep.subr.mxu0 0.0
    %5535 = vmatpush1.msra.mxu0 %v5501
    %5536 = vmatprep.subr.mxu0 0.0
    %5537 = vmatpush1.msra.mxu0 %v5500
    %5538 = vmatprep.subr.mxu0 0.0
    %5539 = vmatpush1.msra.mxu0 %v5499
    %5540 = vmatprep.subr.mxu0 0.0
    %5541 = vmatpush1.msra.mxu0 %v5498
    %5542 = vmatprep.subr.mxu0 0.0
    %5543 = vmatpush1.msra.mxu0 %v5497
    %5544 = vmatprep.subr.mxu0 0.0
    %5545 = vmatpush2.msra.mxu0 0.0
    %5546 = vmatprep.subr.mxu0 0.0
    %5547 = vmatpush2.msra.mxu0 0.0
    %5548 = vmatprep.subr.mxu0 0.0
    %5549 = vmatpush2.msra.mxu0 0.0
    %5550 = vmatprep.subr.mxu0 0.0
    %5551 = vmatpush2.msra.mxu0 0.0
    %5552 = vmatprep.subr.mxu0 0.0
    %5553 = vmatpush2.msra.mxu0 0.0
    %5554 = vmatprep.subr.mxu0 0.0
    %5555 = vmatpush2.msra.mxu0 0.0
    %5556 = vmatprep.subr.mxu0 0.0
    %5557 = vmatpush2.msra.mxu0 0.0
    %5558 = vmatprep.subr.mxu0 0.0
    %5559 = vmatpush2.msra.mxu0 0.0
    %5560 = vmatprep.subr.mxu0 0.0
    %5561 = vmatpush2.msra.mxu0 0.0
    %5562 = vmatprep.subr.mxu0 0.0
    %5563 = vmatpush2.msra.mxu0 0.0
    %5564 = vmatprep.subr.mxu0 0.0
    %5565 = vmatpush2.msra.mxu0 0.0
    %5566 = vmatprep.subr.mxu0 0.0
    %5567 = vmatpush2.msra.mxu0 0.0
    %5568 = vmatprep.subr.mxu0 0.0
    %5569 = vmatpush2.msra.mxu0 0.0
    %5570 = vmatprep.subr.mxu0 0.0
    %5571 = vmatpush2.msra.mxu0 0.0
    %5572 = vmatprep.subr.mxu0 0.0
    %5573 = vmatpush2.msra.mxu0 0.0
    %5574 = vmatprep.subr.mxu0 0.0
    %5575 = vmatpush2.msra.mxu0 0.0
    %5576 = vmatprep.mubr.f32.mxu0 0.0
    %5577 = vmatmul.mubr.f32.gmra.mxu0 %v4418
    %v5578 = vpop.f32.mrf.mxu0
    %v5579 = vadd.f32 %v5510, %v5578
    %v5580 = vpop.f32.mrf.mxu0
    %5581 = vdwg.mxu0
    %5582 = vmatprep.subr.mxu0 0.0
    %5583 = vmatpush1.msra.mxu0 0.0
    %5584 = vmatprep.subr.mxu0 0.0
    %5585 = vmatpush1.msra.mxu0 0.0
    %5586 = vmatprep.subr.mxu0 0.0
    %5587 = vmatpush1.msra.mxu0 0.0
    %5588 = vmatprep.subr.mxu0 0.0
    %5589 = vmatpush1.msra.mxu0 0.0
    %5590 = vmatprep.subr.mxu0 0.0
    %5591 = vmatpush1.msra.mxu0 0.0
    %5592 = vmatprep.subr.mxu0 0.0
    %5593 = vmatpush1.msra.mxu0 0.0
    %5594 = vmatprep.subr.mxu0 0.0
    %5595 = vmatpush1.msra.mxu0 0.0
    %5596 = vmatprep.subr.mxu0 0.0
    %5597 = vmatpush1.msra.mxu0 0.0
    %5598 = vmatprep.subr.mxu0 0.0
    %5599 = vmatpush1.msra.mxu0 0.0
    %5600 = vmatprep.subr.mxu0 0.0
    %5601 = vmatpush1.msra.mxu0 0.0
    %5602 = vmatprep.subr.mxu0 0.0
    %5603 = vmatpush1.msra.mxu0 0.0
    %5604 = vmatprep.subr.mxu0 0.0
    %5605 = vmatpush1.msra.mxu0 0.0
    %5606 = vmatprep.subr.mxu0 0.0
    %5607 = vmatpush1.msra.mxu0 0.0
    %5608 = vmatprep.subr.mxu0 0.0
    %5609 = vmatpush1.msra.mxu0 0.0
    %5610 = vmatprep.subr.mxu0 0.0
    %5611 = vmatpush1.msra.mxu0 0.0
    %5612 = vmatprep.subr.mxu0 0.0
    %5613 = vmatpush1.msra.mxu0 %v5579
    %5614 = vmatprep.subr.mxu0 0.0
    %5615 = vmatpush2.msra.mxu0 0.0
    %5616 = vmatprep.subr.mxu0 0.0
    %5617 = vmatpush2.msra.mxu0 0.0
    %5618 = vmatprep.subr.mxu0 0.0
    %5619 = vmatpush2.msra.mxu0 0.0
    %5620 = vmatprep.subr.mxu0 0.0
    %5621 = vmatpush2.msra.mxu0 0.0
    %5622 = vmatprep.subr.mxu0 0.0
    %5623 = vmatpush2.msra.mxu0 0.0
    %5624 = vmatprep.subr.mxu0 0.0
    %5625 = vmatpush2.msra.mxu0 0.0
    %5626 = vmatprep.subr.mxu0 0.0
    %5627 = vmatpush2.msra.mxu0 0.0
    %5628 = vmatprep.subr.mxu0 0.0
    %5629 = vmatpush2.msra.mxu0 0.0
    %5630 = vmatprep.subr.mxu0 0.0
    %5631 = vmatpush2.msra.mxu0 0.0
    %5632 = vmatprep.subr.mxu0 0.0
    %5633 = vmatpush2.msra.mxu0 0.0
    %5634 = vmatprep.subr.mxu0 0.0
    %5635 = vmatpush2.msra.mxu0 0.0
    %5636 = vmatprep.subr.mxu0 0.0
    %5637 = vmatpush2.msra.mxu0 0.0
    %5638 = vmatprep.subr.mxu0 0.0
    %5639 = vmatpush2.msra.mxu0 0.0
    %5640 = vmatprep.subr.mxu0 0.0
    %5641 = vmatpush2.msra.mxu0 0.0
    %5642 = vmatprep.subr.mxu0 0.0
    %5643 = vmatpush2.msra.mxu0 0.0
    %5644 = vmatprep.subr.mxu0 0.0
    %5645 = vmatpush2.msra.mxu0 0.0
    %5646 = vmatprep.mubr.f32.mxu0 0.0
    %5647 = vmatmul.mubr.f32.gmra.mxu0 %v4867
    %v5648 = vpop.f32.mrf.mxu0
    %v5649 = vadd.f32 0.0, %v5648
    %v5650 = vpop.f32.mrf.mxu0
    %5651 = vmatprep.mubr.f32.mxu0 0.0
    %5652 = vmatmul.mubr.f32.gmra.mxu0 %v4870
    %v5653 = vpop.f32.mrf.mxu0
    %v5654 = vadd.f32 0.0, %v5653
    %v5655 = vpop.f32.mrf.mxu0
    %5656 = vmatprep.mubr.f32.mxu0 0.0
    %5657 = vmatmul.mubr.f32.gmra.mxu0 %v4873
    %v5658 = vpop.f32.mrf.mxu0
    %v5659 = vadd.f32 0.0, %v5658
    %v5660 = vpop.f32.mrf.mxu0
    %5661 = vmatprep.mubr.f32.mxu0 0.0
    %5662 = vmatmul.mubr.f32.gmra.mxu0 %v4876
    %v5663 = vpop.f32.mrf.mxu0
    %v5664 = vadd.f32 0.0, %v5663
    %v5665 = vpop.f32.mrf.mxu0
    %5666 = vdwg.mxu0
    %v5667 = vadd.f32 %v5479, %v5649
    %v5668 = vadd.f32 %v5484, %v5654
    %v5669 = vadd.f32 %v5489, %v5659
    %v5670 = vadd.f32 %v5494, %v5664
    %v5671 = vld [vmem:[%s2094] sm:$0xff]
    %v5672 = vld [vmem:[%s2094 + $0x8] sm:$0xff]
    %v5673 = vld [vmem:[%s2094 + $0x10] sm:$0xff]
    %v5674 = vld [vmem:[%s2094 + $0x18] sm:$0xff]
    %v5675 = vld [vmem:[%s2094 + $0x20] sm:$0xff]
    %v5676 = vld [vmem:[%s2094 + $0x28] sm:$0xff]
    %v5677 = vld [vmem:[%s2094 + $0x30] sm:$0xff]
    %v5678 = vld [vmem:[%s2094 + $0x38] sm:$0xff]
    %v5679 = vld [vmem:[%s2103] sm:$0x1]
    %v5681 = vlaneseq
    %v5682 = vshrl.u32 %v5681, 7
    %v5683 = vsub.s32 0, %v5682
    %v5684 = vrot.slane %v5679, %v5683
    %5686 = vmatprep.subr.mxu0 0.0
    %5687 = vmatpush1.msra.mxu0 0.0
    %5688 = vmatprep.subr.mxu0 0.0
    %5689 = vmatpush1.msra.mxu0 0.0
    %5690 = vmatprep.subr.mxu0 0.0
    %5691 = vmatpush1.msra.mxu0 0.0
    %5692 = vmatprep.subr.mxu0 0.0
    %5693 = vmatpush1.msra.mxu0 0.0
    %5694 = vmatprep.subr.mxu0 0.0
    %5695 = vmatpush1.msra.mxu0 0.0
    %5696 = vmatprep.subr.mxu0 0.0
    %5697 = vmatpush1.msra.mxu0 0.0
    %5698 = vmatprep.subr.mxu0 0.0
    %5699 = vmatpush1.msra.mxu0 0.0
    %5700 = vmatprep.subr.mxu0 0.0
    %5701 = vmatpush1.msra.mxu0 0.0
    %5702 = vmatprep.subr.mxu0 0.0
    %5703 = vmatpush1.msra.mxu0 %v5678
    %5704 = vmatprep.subr.mxu0 0.0
    %5705 = vmatpush1.msra.mxu0 %v5677
    %5706 = vmatprep.subr.mxu0 0.0
    %5707 = vmatpush1.msra.mxu0 %v5676
    %5708 = vmatprep.subr.mxu0 0.0
    %5709 = vmatpush1.msra.mxu0 %v5675
    %5710 = vmatprep.subr.mxu0 0.0
    %5711 = vmatpush1.msra.mxu0 %v5674
    %5712 = vmatprep.subr.mxu0 0.0
    %5713 = vmatpush1.msra.mxu0 %v5673
    %5714 = vmatprep.subr.mxu0 0.0
    %5715 = vmatpush1.msra.mxu0 %v5672
    %5716 = vmatprep.subr.mxu0 0.0
    %5717 = vmatpush1.msra.mxu0 %v5671
    %5718 = vmatprep.subr.mxu0 0.0
    %5719 = vmatpush2.msra.mxu0 0.0
    %5720 = vmatprep.subr.mxu0 0.0
    %5721 = vmatpush2.msra.mxu0 0.0
    %5722 = vmatprep.subr.mxu0 0.0
    %5723 = vmatpush2.msra.mxu0 0.0
    %5724 = vmatprep.subr.mxu0 0.0
    %5725 = vmatpush2.msra.mxu0 0.0
    %5726 = vmatprep.subr.mxu0 0.0
    %5727 = vmatpush2.msra.mxu0 0.0
    %5728 = vmatprep.subr.mxu0 0.0
    %5729 = vmatpush2.msra.mxu0 0.0
    %5730 = vmatprep.subr.mxu0 0.0
    %5731 = vmatpush2.msra.mxu0 0.0
    %5732 = vmatprep.subr.mxu0 0.0
    %5733 = vmatpush2.msra.mxu0 0.0
    %5734 = vmatprep.subr.mxu0 0.0
    %5735 = vmatpush2.msra.mxu0 0.0
    %5736 = vmatprep.subr.mxu0 0.0
    %5737 = vmatpush2.msra.mxu0 0.0
    %5738 = vmatprep.subr.mxu0 0.0
    %5739 = vmatpush2.msra.mxu0 0.0
    %5740 = vmatprep.subr.mxu0 0.0
    %5741 = vmatpush2.msra.mxu0 0.0
    %5742 = vmatprep.subr.mxu0 0.0
    %5743 = vmatpush2.msra.mxu0 0.0
    %5744 = vmatprep.subr.mxu0 0.0
    %5745 = vmatpush2.msra.mxu0 0.0
    %5746 = vmatprep.subr.mxu0 0.0
    %5747 = vmatpush2.msra.mxu0 0.0
    %5748 = vmatprep.subr.mxu0 0.0
    %5749 = vmatpush2.msra.mxu0 0.0
    %5750 = vmatprep.mubr.f32.mxu0 0.0
    %5751 = vmatmul.mubr.f32.gmra.mxu0 %v4418
    %v5752 = vpop.f32.mrf.mxu0
    %v5753 = vadd.f32 %v5684, %v5752
    %v5754 = vpop.f32.mrf.mxu0
    %5755 = vdwg.mxu0
    %5756 = vmatprep.subr.mxu0 0.0
    %5757 = vmatpush1.msra.mxu0 0.0
    %5758 = vmatprep.subr.mxu0 0.0
    %5759 = vmatpush1.msra.mxu0 0.0
    %5760 = vmatprep.subr.mxu0 0.0
    %5761 = vmatpush1.msra.mxu0 0.0
    %5762 = vmatprep.subr.mxu0 0.0
    %5763 = vmatpush1.msra.mxu0 0.0
    %5764 = vmatprep.subr.mxu0 0.0
    %5765 = vmatpush1.msra.mxu0 0.0
    %5766 = vmatprep.subr.mxu0 0.0
    %5767 = vmatpush1.msra.mxu0 0.0
    %5768 = vmatprep.subr.mxu0 0.0
    %5769 = vmatpush1.msra.mxu0 0.0
    %5770 = vmatprep.subr.mxu0 0.0
    %5771 = vmatpush1.msra.mxu0 0.0
    %5772 = vmatprep.subr.mxu0 0.0
    %5773 = vmatpush1.msra.mxu0 0.0
    %5774 = vmatprep.subr.mxu0 0.0
    %5775 = vmatpush1.msra.mxu0 0.0
    %5776 = vmatprep.subr.mxu0 0.0
    %5777 = vmatpush1.msra.mxu0 0.0
    %5778 = vmatprep.subr.mxu0 0.0
    %5779 = vmatpush1.msra.mxu0 0.0
    %5780 = vmatprep.subr.mxu0 0.0
    %5781 = vmatpush1.msra.mxu0 0.0
    %5782 = vmatprep.subr.mxu0 0.0
    %5783 = vmatpush1.msra.mxu0 0.0
    %5784 = vmatprep.subr.mxu0 0.0
    %5785 = vmatpush1.msra.mxu0 0.0
    %5786 = vmatprep.subr.mxu0 0.0
    %5787 = vmatpush1.msra.mxu0 %v5753
    %5788 = vmatprep.subr.mxu0 0.0
    %5789 = vmatpush2.msra.mxu0 0.0
    %5790 = vmatprep.subr.mxu0 0.0
    %5791 = vmatpush2.msra.mxu0 0.0
    %5792 = vmatprep.subr.mxu0 0.0
    %5793 = vmatpush2.msra.mxu0 0.0
    %5794 = vmatprep.subr.mxu0 0.0
    %5795 = vmatpush2.msra.mxu0 0.0
    %5796 = vmatprep.subr.mxu0 0.0
    %5797 = vmatpush2.msra.mxu0 0.0
    %5798 = vmatprep.subr.mxu0 0.0
    %5799 = vmatpush2.msra.mxu0 0.0
    %5800 = vmatprep.subr.mxu0 0.0
    %5801 = vmatpush2.msra.mxu0 0.0
    %5802 = vmatprep.subr.mxu0 0.0
    %5803 = vmatpush2.msra.mxu0 0.0
    %5804 = vmatprep.subr.mxu0 0.0
    %5805 = vmatpush2.msra.mxu0 0.0
    %5806 = vmatprep.subr.mxu0 0.0
    %5807 = vmatpush2.msra.mxu0 0.0
    %5808 = vmatprep.subr.mxu0 0.0
    %5809 = vmatpush2.msra.mxu0 0.0
    %5810 = vmatprep.subr.mxu0 0.0
    %5811 = vmatpush2.msra.mxu0 0.0
    %5812 = vmatprep.subr.mxu0 0.0
    %5813 = vmatpush2.msra.mxu0 0.0
    %5814 = vmatprep.subr.mxu0 0.0
    %5815 = vmatpush2.msra.mxu0 0.0
    %5816 = vmatprep.subr.mxu0 0.0
    %5817 = vmatpush2.msra.mxu0 0.0
    %5818 = vmatprep.subr.mxu0 0.0
    %5819 = vmatpush2.msra.mxu0 0.0
    %5820 = vmatprep.mubr.f32.mxu0 0.0
    %5821 = vmatmul.mubr.f32.gmra.mxu0 %v5057
    %v5822 = vpop.f32.mrf.mxu0
    %v5823 = vadd.f32 0.0, %v5822
    %v5824 = vpop.f32.mrf.mxu0
    %5825 = vmatprep.mubr.f32.mxu0 0.0
    %5826 = vmatmul.mubr.f32.gmra.mxu0 %v5060
    %v5827 = vpop.f32.mrf.mxu0
    %v5828 = vadd.f32 0.0, %v5827
    %v5829 = vpop.f32.mrf.mxu0
    %5830 = vmatprep.mubr.f32.mxu0 0.0
    %5831 = vmatmul.mubr.f32.gmra.mxu0 %v5063
    %v5832 = vpop.f32.mrf.mxu0
    %v5833 = vadd.f32 0.0, %v5832
    %v5834 = vpop.f32.mrf.mxu0
    %5835 = vmatprep.mubr.f32.mxu0 0.0
    %5836 = vmatmul.mubr.f32.gmra.mxu0 %v5066
    %v5837 = vpop.f32.mrf.mxu0
    %v5838 = vadd.f32 0.0, %v5837
    %v5839 = vpop.f32.mrf.mxu0
    %5840 = vdwg.mxu0
    %v5841 = vadd.f32 %v5667, %v5823
    %v5842 = vadd.f32 %v5668, %v5828
    %v5843 = vadd.f32 %v5669, %v5833
    %v5844 = vadd.f32 %v5670, %v5838
    %v5846 = vsel %vm2270, %v4034, 0
    %v5849 = vsel %vm2270, %v4039, 0
    %v5852 = vsel %vm2270, %v4044, 0
    %v5855 = vsel %vm2270, %v4049, 0
    %v5858 = vsel %vm2270, %v4384, 0
    %v5861 = vsel %vm2270, %v4389, 0
    %v5864 = vsel %vm2270, %v4394, 0
    %v5867 = vsel %vm2270, %v4399, 0
    %5869 = vmatprep.subr.mxu0 0.0
    %5870 = vmatpush1.xpose.msra.mxu0 0.0
    %5871 = vmatprep.subr.mxu0 0.0
    %5872 = vmatpush1.xpose.msra.mxu0 0.0
    %5873 = vmatprep.subr.mxu0 0.0
    %5874 = vmatpush1.xpose.msra.mxu0 0.0
    %5875 = vmatprep.subr.mxu0 0.0
    %5876 = vmatpush1.xpose.msra.mxu0 0.0
    %5877 = vmatprep.subr.mxu0 0.0
    %5878 = vmatpush1.xpose.msra.mxu0 0.0
    %5879 = vmatprep.subr.mxu0 0.0
    %5880 = vmatpush1.xpose.msra.mxu0 0.0
    %5881 = vmatprep.subr.mxu0 0.0
    %5882 = vmatpush1.xpose.msra.mxu0 0.0
    %5883 = vmatprep.subr.mxu0 0.0
    %5884 = vmatpush1.xpose.msra.mxu0 0.0
    %5885 = vmatprep.subr.mxu0 0.0
    %5886 = vmatpush1.xpose.msra.mxu0 0.0
    %5887 = vmatprep.subr.mxu0 0.0
    %5888 = vmatpush1.xpose.msra.mxu0 0.0
    %5889 = vmatprep.subr.mxu0 0.0
    %5890 = vmatpush1.xpose.msra.mxu0 0.0
    %5891 = vmatprep.subr.mxu0 0.0
    %5892 = vmatpush1.xpose.msra.mxu0 0.0
    %5893 = vmatprep.subr.mxu0 0.0
    %5894 = vmatpush1.xpose.msra.mxu0 %v5867
    %5895 = vmatprep.subr.mxu0 0.0
    %5896 = vmatpush1.xpose.msra.mxu0 %v5864
    %5897 = vmatprep.subr.mxu0 0.0
    %5898 = vmatpush1.xpose.msra.mxu0 %v5861
    %5899 = vmatprep.subr.mxu0 0.0
    %5900 = vmatpush1.xpose.msra.mxu0 %v5858
    %5901 = vmatprep.subr.mxu0 0.0
    %5902 = vmatpush2.xpose.msra.mxu0 0.0
    %5903 = vmatprep.subr.mxu0 0.0
    %5904 = vmatpush2.xpose.msra.mxu0 0.0
    %5905 = vmatprep.subr.mxu0 0.0
    %5906 = vmatpush2.xpose.msra.mxu0 0.0
    %5907 = vmatprep.subr.mxu0 0.0
    %5908 = vmatpush2.xpose.msra.mxu0 0.0
    %5909 = vmatprep.subr.mxu0 0.0
    %5910 = vmatpush2.xpose.msra.mxu0 0.0
    %5911 = vmatprep.subr.mxu0 0.0
    %5912 = vmatpush2.xpose.msra.mxu0 0.0
    %5913 = vmatprep.subr.mxu0 0.0
    %5914 = vmatpush2.xpose.msra.mxu0 0.0
    %5915 = vmatprep.subr.mxu0 0.0
    %5916 = vmatpush2.xpose.msra.mxu0 0.0
    %5917 = vmatprep.subr.mxu0 0.0
    %5918 = vmatpush2.xpose.msra.mxu0 0.0
    %5919 = vmatprep.subr.mxu0 0.0
    %5920 = vmatpush2.xpose.msra.mxu0 0.0
    %5921 = vmatprep.subr.mxu0 0.0
    %5922 = vmatpush2.xpose.msra.mxu0 0.0
    %5923 = vmatprep.subr.mxu0 0.0
    %5924 = vmatpush2.xpose.msra.mxu0 0.0
    %5925 = vmatprep.subr.mxu0 0.0
    %5926 = vmatpush2.xpose.msra.mxu0 0.0
    %5927 = vmatprep.subr.mxu0 0.0
    %5928 = vmatpush2.xpose.msra.mxu0 0.0
    %5929 = vmatprep.subr.mxu0 0.0
    %5930 = vmatpush2.xpose.msra.mxu0 0.0
    %5931 = vmatprep.subr.mxu0 0.0
    %5932 = vmatpush2.xpose.msra.mxu0 0.0
    %5933 = vmatprep.mubr.f32.mxu0 0.0
    %5934 = vmatmul.mubr.f32.gmra.mxu0 %v5846
    %v5935 = vpop.f32.mrf.mxu0
    %v5936 = vadd.f32 0.0, %v5935
    %v5937 = vpop.f32.mrf.mxu0
    %5938 = vmatprep.mubr.f32.mxu0 0.0
    %5939 = vmatmul.mubr.f32.gmra.mxu0 %v5849
    %v5940 = vpop.f32.mrf.mxu0
    %v5941 = vadd.f32 0.0, %v5940
    %v5942 = vpop.f32.mrf.mxu0
    %5943 = vmatprep.mubr.f32.mxu0 0.0
    %5944 = vmatmul.mubr.f32.gmra.mxu0 %v5852
    %v5945 = vpop.f32.mrf.mxu0
    %v5946 = vadd.f32 0.0, %v5945
    %v5947 = vpop.f32.mrf.mxu0
    %5948 = vmatprep.mubr.f32.mxu0 0.0
    %5949 = vmatmul.mubr.f32.gmra.mxu0 %v5855
    %v5950 = vpop.f32.mrf.mxu0
    %v5951 = vadd.f32 0.0, %v5950
    %v5952 = vpop.f32.mrf.mxu0
    %5953 = vdwg.mxu0
    %v5955 = vsel %vm2270, %v5936, 0
    %v5958 = vsel %vm2270, %v5941, 0
    %v5961 = vsel %vm2270, %v5946, 0
    %v5964 = vsel %vm2270, %v5951, 0
    %5966 = vmatprep.subr.mxu0 0.0
    %5967 = vmatpush1.msra.mxu0 0.0
    %5968 = vmatprep.subr.mxu0 0.0
    %5969 = vmatpush1.msra.mxu0 0.0
    %5970 = vmatprep.subr.mxu0 0.0
    %5971 = vmatpush1.msra.mxu0 0.0
    %5972 = vmatprep.subr.mxu0 0.0
    %5973 = vmatpush1.msra.mxu0 0.0
    %5974 = vmatprep.subr.mxu0 0.0
    %5975 = vmatpush1.msra.mxu0 0.0
    %5976 = vmatprep.subr.mxu0 0.0
    %5977 = vmatpush1.msra.mxu0 0.0
    %5978 = vmatprep.subr.mxu0 0.0
    %5979 = vmatpush1.msra.mxu0 0.0
    %5980 = vmatprep.subr.mxu0 0.0
    %5981 = vmatpush1.msra.mxu0 0.0
    %5982 = vmatprep.subr.mxu0 0.0
    %5983 = vmatpush1.msra.mxu0 0.0
    %5984 = vmatprep.subr.mxu0 0.0
    %5985 = vmatpush1.msra.mxu0 0.0
    %5986 = vmatprep.subr.mxu0 0.0
    %5987 = vmatpush1.msra.mxu0 0.0
    %5988 = vmatprep.subr.mxu0 0.0
    %5989 = vmatpush1.msra.mxu0 0.0
    %5990 = vmatprep.subr.mxu0 0.0
    %5991 = vmatpush1.msra.mxu0 %v5844
    %5992 = vmatprep.subr.mxu0 0.0
    %5993 = vmatpush1.msra.mxu0 %v5843
    %5994 = vmatprep.subr.mxu0 0.0
    %5995 = vmatpush1.msra.mxu0 %v5842
    %5996 = vmatprep.subr.mxu0 0.0
    %5997 = vmatpush1.msra.mxu0 %v5841
    %5998 = vmatprep.subr.mxu0 0.0
    %5999 = vmatpush2.msra.mxu0 0.0
    %6000 = vmatprep.subr.mxu0 0.0
    %6001 = vmatpush2.msra.mxu0 0.0
    %6002 = vmatprep.subr.mxu0 0.0
    %6003 = vmatpush2.msra.mxu0 0.0
    %6004 = vmatprep.subr.mxu0 0.0
    %6005 = vmatpush2.msra.mxu0 0.0
    %6006 = vmatprep.subr.mxu0 0.0
    %6007 = vmatpush2.msra.mxu0 0.0
    %6008 = vmatprep.subr.mxu0 0.0
    %6009 = vmatpush2.msra.mxu0 0.0
    %6010 = vmatprep.subr.mxu0 0.0
    %6011 = vmatpush2.msra.mxu0 0.0
    %6012 = vmatprep.subr.mxu0 0.0
    %6013 = vmatpush2.msra.mxu0 0.0
    %6014 = vmatprep.subr.mxu0 0.0
    %6015 = vmatpush2.msra.mxu0 0.0
    %6016 = vmatprep.subr.mxu0 0.0
    %6017 = vmatpush2.msra.mxu0 0.0
    %6018 = vmatprep.subr.mxu0 0.0
    %6019 = vmatpush2.msra.mxu0 0.0
    %6020 = vmatprep.subr.mxu0 0.0
    %6021 = vmatpush2.msra.mxu0 0.0
    %6022 = vmatprep.subr.mxu0 0.0
    %6023 = vmatpush2.msra.mxu0 0.0
    %6024 = vmatprep.subr.mxu0 0.0
    %6025 = vmatpush2.msra.mxu0 0.0
    %6026 = vmatprep.subr.mxu0 0.0
    %6027 = vmatpush2.msra.mxu0 0.0
    %6028 = vmatprep.subr.mxu0 0.0
    %6029 = vmatpush2.msra.mxu0 0.0
    %6030 = vmatprep.mubr.f32.mxu0 0.0
    %6031 = vmatmul.mubr.f32.gmra.mxu0 %v5955
    %v6032 = vpop.f32.mrf.mxu0
    %v6033 = vadd.f32 0.0, %v6032
    %v6034 = vpop.f32.mrf.mxu0
    %6035 = vmatprep.mubr.f32.mxu0 0.0
    %6036 = vmatmul.mubr.f32.gmra.mxu0 %v5958
    %v6037 = vpop.f32.mrf.mxu0
    %v6038 = vadd.f32 0.0, %v6037
    %v6039 = vpop.f32.mrf.mxu0
    %6040 = vmatprep.mubr.f32.mxu0 0.0
    %6041 = vmatmul.mubr.f32.gmra.mxu0 %v5961
    %v6042 = vpop.f32.mrf.mxu0
    %v6043 = vadd.f32 0.0, %v6042
    %v6044 = vpop.f32.mrf.mxu0
    %6045 = vmatprep.mubr.f32.mxu0 0.0
    %6046 = vmatmul.mubr.f32.gmra.mxu0 %v5964
    %v6047 = vpop.f32.mrf.mxu0
    %v6048 = vadd.f32 0.0, %v6047
    %v6049 = vpop.f32.mrf.mxu0
    %6050 = vdwg.mxu0
    %v6051 = vmul.f32 %v6033, 0.03125
    %v6052 = vmul.f32 %v6038, 0.03125
    %v6053 = vmul.f32 %v6043, 0.03125
    %v6054 = vmul.f32 %v6048, 0.03125
    %v6056 = vsel %vm264, %v5153, 0
    %v6059 = vsel %vm264, %v5154, 0
    %v6062 = vsel %vm264, %v5155, 0
    %v6065 = vsel %vm264, %v5156, 0
    %v6068 = vsel %vm264, %v5841, 0
    %v6071 = vsel %vm264, %v5842, 0
    %v6074 = vsel %vm264, %v5843, 0
    %v6077 = vsel %vm264, %v5844, 0
    %6079 = vmatprep.subr.mxu0 0.0
    %6080 = vmatpush1.xpose.msra.mxu0 0.0
    %6081 = vmatprep.subr.mxu0 0.0
    %6082 = vmatpush1.xpose.msra.mxu0 0.0
    %6083 = vmatprep.subr.mxu0 0.0
    %6084 = vmatpush1.xpose.msra.mxu0 0.0
    %6085 = vmatprep.subr.mxu0 0.0
    %6086 = vmatpush1.xpose.msra.mxu0 0.0
    %6087 = vmatprep.subr.mxu0 0.0
    %6088 = vmatpush1.xpose.msra.mxu0 0.0
    %6089 = vmatprep.subr.mxu0 0.0
    %6090 = vmatpush1.xpose.msra.mxu0 0.0
    %6091 = vmatprep.subr.mxu0 0.0
    %6092 = vmatpush1.xpose.msra.mxu0 0.0
    %6093 = vmatprep.subr.mxu0 0.0
    %6094 = vmatpush1.xpose.msra.mxu0 0.0
    %6095 = vmatprep.subr.mxu0 0.0
    %6096 = vmatpush1.xpose.msra.mxu0 0.0
    %6097 = vmatprep.subr.mxu0 0.0
    %6098 = vmatpush1.xpose.msra.mxu0 0.0
    %6099 = vmatprep.subr.mxu0 0.0
    %6100 = vmatpush1.xpose.msra.mxu0 0.0
    %6101 = vmatprep.subr.mxu0 0.0
    %6102 = vmatpush1.xpose.msra.mxu0 0.0
    %6103 = vmatprep.subr.mxu0 0.0
    %6104 = vmatpush1.xpose.msra.mxu0 %v6077
    %6105 = vmatprep.subr.mxu0 0.0
    %6106 = vmatpush1.xpose.msra.mxu0 %v6074
    %6107 = vmatprep.subr.mxu0 0.0
    %6108 = vmatpush1.xpose.msra.mxu0 %v6071
    %6109 = vmatprep.subr.mxu0 0.0
    %6110 = vmatpush1.xpose.msra.mxu0 %v6068
    %6111 = vmatprep.subr.mxu0 0.0
    %6112 = vmatpush2.xpose.msra.mxu0 0.0
    %6113 = vmatprep.subr.mxu0 0.0
    %6114 = vmatpush2.xpose.msra.mxu0 0.0
    %6115 = vmatprep.subr.mxu0 0.0
    %6116 = vmatpush2.xpose.msra.mxu0 0.0
    %6117 = vmatprep.subr.mxu0 0.0
    %6118 = vmatpush2.xpose.msra.mxu0 0.0
    %6119 = vmatprep.subr.mxu0 0.0
    %6120 = vmatpush2.xpose.msra.mxu0 0.0
    %6121 = vmatprep.subr.mxu0 0.0
    %6122 = vmatpush2.xpose.msra.mxu0 0.0
    %6123 = vmatprep.subr.mxu0 0.0
    %6124 = vmatpush2.xpose.msra.mxu0 0.0
    %6125 = vmatprep.subr.mxu0 0.0
    %6126 = vmatpush2.xpose.msra.mxu0 0.0
    %6127 = vmatprep.subr.mxu0 0.0
    %6128 = vmatpush2.xpose.msra.mxu0 0.0
    %6129 = vmatprep.subr.mxu0 0.0
    %6130 = vmatpush2.xpose.msra.mxu0 0.0
    %6131 = vmatprep.subr.mxu0 0.0
    %6132 = vmatpush2.xpose.msra.mxu0 0.0
    %6133 = vmatprep.subr.mxu0 0.0
    %6134 = vmatpush2.xpose.msra.mxu0 0.0
    %6135 = vmatprep.subr.mxu0 0.0
    %6136 = vmatpush2.xpose.msra.mxu0 0.0
    %6137 = vmatprep.subr.mxu0 0.0
    %6138 = vmatpush2.xpose.msra.mxu0 0.0
    %6139 = vmatprep.subr.mxu0 0.0
    %6140 = vmatpush2.xpose.msra.mxu0 0.0
    %6141 = vmatprep.subr.mxu0 0.0
    %6142 = vmatpush2.xpose.msra.mxu0 0.0
    %6143 = vmatprep.mubr.f32.mxu0 0.0
    %6144 = vmatmul.mubr.f32.gmra.mxu0 %v6056
    %v6145 = vpop.f32.mrf.mxu0
    %v6146 = vadd.f32 0.0, %v6145
    %v6147 = vpop.f32.mrf.mxu0
    %6148 = vmatprep.mubr.f32.mxu0 0.0
    %6149 = vmatmul.mubr.f32.gmra.mxu0 %v6059
    %v6150 = vpop.f32.mrf.mxu0
    %v6151 = vadd.f32 0.0, %v6150
    %v6152 = vpop.f32.mrf.mxu0
    %6153 = vmatprep.mubr.f32.mxu0 0.0
    %6154 = vmatmul.mubr.f32.gmra.mxu0 %v6062
    %v6155 = vpop.f32.mrf.mxu0
    %v6156 = vadd.f32 0.0, %v6155
    %v6157 = vpop.f32.mrf.mxu0
    %6158 = vmatprep.mubr.f32.mxu0 0.0
    %6159 = vmatmul.mubr.f32.gmra.mxu0 %v6065
    %v6160 = vpop.f32.mrf.mxu0
    %v6161 = vadd.f32 0.0, %v6160
    %v6162 = vpop.f32.mrf.mxu0
    %6163 = vdwg.mxu0
    %v6165 = vsel %vm2270, %v6146, 0
    %v6168 = vsel %vm2270, %v6151, 0
    %v6171 = vsel %vm2270, %v6156, 0
    %v6174 = vsel %vm2270, %v6161, 0
    %6176 = vmatprep.subr.mxu0 0.0
    %6177 = vmatpush1.msra.mxu0 0.0
    %6178 = vmatprep.subr.mxu0 0.0
    %6179 = vmatpush1.msra.mxu0 0.0
    %6180 = vmatprep.subr.mxu0 0.0
    %6181 = vmatpush1.msra.mxu0 0.0
    %6182 = vmatprep.subr.mxu0 0.0
    %6183 = vmatpush1.msra.mxu0 0.0
    %6184 = vmatprep.subr.mxu0 0.0
    %6185 = vmatpush1.msra.mxu0 0.0
    %6186 = vmatprep.subr.mxu0 0.0
    %6187 = vmatpush1.msra.mxu0 0.0
    %6188 = vmatprep.subr.mxu0 0.0
    %6189 = vmatpush1.msra.mxu0 0.0
    %6190 = vmatprep.subr.mxu0 0.0
    %6191 = vmatpush1.msra.mxu0 0.0
    %6192 = vmatprep.subr.mxu0 0.0
    %6193 = vmatpush1.msra.mxu0 0.0
    %6194 = vmatprep.subr.mxu0 0.0
    %6195 = vmatpush1.msra.mxu0 0.0
    %6196 = vmatprep.subr.mxu0 0.0
    %6197 = vmatpush1.msra.mxu0 0.0
    %6198 = vmatprep.subr.mxu0 0.0
    %6199 = vmatpush1.msra.mxu0 0.0
    %6200 = vmatprep.subr.mxu0 0.0
    %6201 = vmatpush1.msra.mxu0 %v4399
    %6202 = vmatprep.subr.mxu0 0.0
    %6203 = vmatpush1.msra.mxu0 %v4394
    %6204 = vmatprep.subr.mxu0 0.0
    %6205 = vmatpush1.msra.mxu0 %v4389
    %6206 = vmatprep.subr.mxu0 0.0
    %6207 = vmatpush1.msra.mxu0 %v4384
    %6208 = vmatprep.subr.mxu0 0.0
    %6209 = vmatpush2.msra.mxu0 0.0
    %6210 = vmatprep.subr.mxu0 0.0
    %6211 = vmatpush2.msra.mxu0 0.0
    %6212 = vmatprep.subr.mxu0 0.0
    %6213 = vmatpush2.msra.mxu0 0.0
    %6214 = vmatprep.subr.mxu0 0.0
    %6215 = vmatpush2.msra.mxu0 0.0
    %6216 = vmatprep.subr.mxu0 0.0
    %6217 = vmatpush2.msra.mxu0 0.0
    %6218 = vmatprep.subr.mxu0 0.0
    %6219 = vmatpush2.msra.mxu0 0.0
    %6220 = vmatprep.subr.mxu0 0.0
    %6221 = vmatpush2.msra.mxu0 0.0
    %6222 = vmatprep.subr.mxu0 0.0
    %6223 = vmatpush2.msra.mxu0 0.0
    %6224 = vmatprep.subr.mxu0 0.0
    %6225 = vmatpush2.msra.mxu0 0.0
    %6226 = vmatprep.subr.mxu0 0.0
    %6227 = vmatpush2.msra.mxu0 0.0
    %6228 = vmatprep.subr.mxu0 0.0
    %6229 = vmatpush2.msra.mxu0 0.0
    %6230 = vmatprep.subr.mxu0 0.0
    %6231 = vmatpush2.msra.mxu0 0.0
    %6232 = vmatprep.subr.mxu0 0.0
    %6233 = vmatpush2.msra.mxu0 0.0
    %6234 = vmatprep.subr.mxu0 0.0
    %6235 = vmatpush2.msra.mxu0 0.0
    %6236 = vmatprep.subr.mxu0 0.0
    %6237 = vmatpush2.msra.mxu0 0.0
    %6238 = vmatprep.subr.mxu0 0.0
    %6239 = vmatpush2.msra.mxu0 0.0
    %6240 = vmatprep.mubr.f32.mxu0 0.0
    %6241 = vmatmul.mubr.f32.gmra.mxu0 %v6165
    %v6242 = vpop.f32.mrf.mxu0
    %v6243 = vadd.f32 0.0, %v6242
    %v6244 = vpop.f32.mrf.mxu0
    %6245 = vmatprep.mubr.f32.mxu0 0.0
    %6246 = vmatmul.mubr.f32.gmra.mxu0 %v6168
    %v6247 = vpop.f32.mrf.mxu0
    %v6248 = vadd.f32 0.0, %v6247
    %v6249 = vpop.f32.mrf.mxu0
    %6250 = vmatprep.mubr.f32.mxu0 0.0
    %6251 = vmatmul.mubr.f32.gmra.mxu0 %v6171
    %v6252 = vpop.f32.mrf.mxu0
    %v6253 = vadd.f32 0.0, %v6252
    %v6254 = vpop.f32.mrf.mxu0
    %6255 = vmatprep.mubr.f32.mxu0 0.0
    %6256 = vmatmul.mubr.f32.gmra.mxu0 %v6174
    %v6257 = vpop.f32.mrf.mxu0
    %v6258 = vadd.f32 0.0, %v6257
    %v6259 = vpop.f32.mrf.mxu0
    %6260 = vdwg.mxu0
    %v6261 = vmul.f32 %v6243, 0.0625
    %v6262 = vmul.f32 %v6248, 0.0625
    %v6263 = vmul.f32 %v6253, 0.0625
    %v6264 = vmul.f32 %v6258, 0.0625
    %v6265 = vld [vmem:[%s11] sm:$0x1]
    %v6267 = vlaneseq
    %v6268 = vshrl.u32 %v6267, 7
    %v6269 = vsub.s32 0, %v6268
    %v6270 = vrot.slane %v6265, %v6269
    %v6272 = vadd.f32 %v3663, %v6270
    %v6273 = vld [vmem:[%s17] sm:$0xff]
    %v6275 = vsel %vm2270, %v6273, 0
    %6277 = vmatprep.subr.mxu0 0.0
    %6278 = vmatpush1.msra.mxu0 0.0
    %6279 = vmatprep.subr.mxu0 0.0
    %6280 = vmatpush1.msra.mxu0 0.0
    %6281 = vmatprep.subr.mxu0 0.0
    %6282 = vmatpush1.msra.mxu0 0.0
    %6283 = vmatprep.subr.mxu0 0.0
    %6284 = vmatpush1.msra.mxu0 0.0
    %6285 = vmatprep.subr.mxu0 0.0
    %6286 = vmatpush1.msra.mxu0 0.0
    %6287 = vmatprep.subr.mxu0 0.0
    %6288 = vmatpush1.msra.mxu0 0.0
    %6289 = vmatprep.subr.mxu0 0.0
    %6290 = vmatpush1.msra.mxu0 0.0
    %6291 = vmatprep.subr.mxu0 0.0
    %6292 = vmatpush1.msra.mxu0 0.0
    %6293 = vmatprep.subr.mxu0 0.0
    %6294 = vmatpush1.msra.mxu0 0.0
    %6295 = vmatprep.subr.mxu0 0.0
    %6296 = vmatpush1.msra.mxu0 0.0
    %6297 = vmatprep.subr.mxu0 0.0
    %6298 = vmatpush1.msra.mxu0 0.0
    %6299 = vmatprep.subr.mxu0 0.0
    %6300 = vmatpush1.msra.mxu0 0.0
    %6301 = vmatprep.subr.mxu0 0.0
    %6302 = vmatpush1.msra.mxu0 %v6054
    %6303 = vmatprep.subr.mxu0 0.0
    %6304 = vmatpush1.msra.mxu0 %v6053
    %6305 = vmatprep.subr.mxu0 0.0
    %6306 = vmatpush1.msra.mxu0 %v6052
    %6307 = vmatprep.subr.mxu0 0.0
    %6308 = vmatpush1.msra.mxu0 %v6051
    %6309 = vmatprep.subr.mxu0 0.0
    %6310 = vmatpush2.msra.mxu0 0.0
    %6311 = vmatprep.subr.mxu0 0.0
    %6312 = vmatpush2.msra.mxu0 0.0
    %6313 = vmatprep.subr.mxu0 0.0
    %6314 = vmatpush2.msra.mxu0 0.0
    %6315 = vmatprep.subr.mxu0 0.0
    %6316 = vmatpush2.msra.mxu0 0.0
    %6317 = vmatprep.subr.mxu0 0.0
    %6318 = vmatpush2.msra.mxu0 0.0
    %6319 = vmatprep.subr.mxu0 0.0
    %6320 = vmatpush2.msra.mxu0 0.0
    %6321 = vmatprep.subr.mxu0 0.0
    %6322 = vmatpush2.msra.mxu0 0.0
    %6323 = vmatprep.subr.mxu0 0.0
    %6324 = vmatpush2.msra.mxu0 0.0
    %6325 = vmatprep.subr.mxu0 0.0
    %6326 = vmatpush2.msra.mxu0 0.0
    %6327 = vmatprep.subr.mxu0 0.0
    %6328 = vmatpush2.msra.mxu0 0.0
    %6329 = vmatprep.subr.mxu0 0.0
    %6330 = vmatpush2.msra.mxu0 0.0
    %6331 = vmatprep.subr.mxu0 0.0
    %6332 = vmatpush2.msra.mxu0 0.0
    %6333 = vmatprep.subr.mxu0 0.0
    %6334 = vmatpush2.msra.mxu0 0.0
    %6335 = vmatprep.subr.mxu0 0.0
    %6336 = vmatpush2.msra.mxu0 0.0
    %6337 = vmatprep.subr.mxu0 0.0
    %6338 = vmatpush2.msra.mxu0 0.0
    %6339 = vmatprep.subr.mxu0 0.0
    %6340 = vmatpush2.msra.mxu0 0.0
    %6341 = vmatprep.mubr.f32.mxu0 0.0
    %6342 = vmatmul.mubr.f32.gmra.mxu0 %v6275
    %v6343 = vpop.f32.mrf.mxu0
    %v6344 = vadd.f32 0.0, %v6343
    %v6345 = vpop.f32.mrf.mxu0
    %6346 = vdwg.mxu0
    %v6347 = vld [vmem:[%s10] sm:$0xff]
    %v6348 = vld [vmem:[%s10 + $0x8] sm:$0xff]
    %v6350 = vsel %vm264, %v6344, 0
    %6352 = vmatprep.subr.mxu0 0.0
    %6353 = vmatpush1.msra.mxu0 0.0
    %6354 = vmatprep.subr.mxu0 0.0
    %6355 = vmatpush1.msra.mxu0 0.0
    %6356 = vmatprep.subr.mxu0 0.0
    %6357 = vmatpush1.msra.mxu0 0.0
    %6358 = vmatprep.subr.mxu0 0.0
    %6359 = vmatpush1.msra.mxu0 0.0
    %6360 = vmatprep.subr.mxu0 0.0
    %6361 = vmatpush1.msra.mxu0 0.0
    %6362 = vmatprep.subr.mxu0 0.0
    %6363 = vmatpush1.msra.mxu0 0.0
    %6364 = vmatprep.subr.mxu0 0.0
    %6365 = vmatpush1.msra.mxu0 0.0
    %6366 = vmatprep.subr.mxu0 0.0
    %6367 = vmatpush1.msra.mxu0 0.0
    %6368 = vmatprep.subr.mxu0 0.0
    %6369 = vmatpush1.msra.mxu0 0.0
    %6370 = vmatprep.subr.mxu0 0.0
    %6371 = vmatpush1.msra.mxu0 0.0
    %6372 = vmatprep.subr.mxu0 0.0
    %6373 = vmatpush1.msra.mxu0 0.0
    %6374 = vmatprep.subr.mxu0 0.0
    %6375 = vmatpush1.msra.mxu0 0.0
    %6376 = vmatprep.subr.mxu0 0.0
    %6377 = vmatpush1.msra.mxu0 0.0
    %6378 = vmatprep.subr.mxu0 0.0
    %6379 = vmatpush1.msra.mxu0 0.0
    %6380 = vmatprep.subr.mxu0 0.0
    %6381 = vmatpush1.msra.mxu0 %v6348
    %6382 = vmatprep.subr.mxu0 0.0
    %6383 = vmatpush1.msra.mxu0 %v6347
    %6384 = vmatprep.subr.mxu0 0.0
    %6385 = vmatpush2.msra.mxu0 0.0
    %6386 = vmatprep.subr.mxu0 0.0
    %6387 = vmatpush2.msra.mxu0 0.0
    %6388 = vmatprep.subr.mxu0 0.0
    %6389 = vmatpush2.msra.mxu0 0.0
    %6390 = vmatprep.subr.mxu0 0.0
    %6391 = vmatpush2.msra.mxu0 0.0
    %6392 = vmatprep.subr.mxu0 0.0
    %6393 = vmatpush2.msra.mxu0 0.0
    %6394 = vmatprep.subr.mxu0 0.0
    %6395 = vmatpush2.msra.mxu0 0.0
    %6396 = vmatprep.subr.mxu0 0.0
    %6397 = vmatpush2.msra.mxu0 0.0
    %6398 = vmatprep.subr.mxu0 0.0
    %6399 = vmatpush2.msra.mxu0 0.0
    %6400 = vmatprep.subr.mxu0 0.0
    %6401 = vmatpush2.msra.mxu0 0.0
    %6402 = vmatprep.subr.mxu0 0.0
    %6403 = vmatpush2.msra.mxu0 0.0
    %6404 = vmatprep.subr.mxu0 0.0
    %6405 = vmatpush2.msra.mxu0 0.0
    %6406 = vmatprep.subr.mxu0 0.0
    %6407 = vmatpush2.msra.mxu0 0.0
    %6408 = vmatprep.subr.mxu0 0.0
    %6409 = vmatpush2.msra.mxu0 0.0
    %6410 = vmatprep.subr.mxu0 0.0
    %6411 = vmatpush2.msra.mxu0 0.0
    %6412 = vmatprep.subr.mxu0 0.0
    %6413 = vmatpush2.msra.mxu0 0.0
    %6414 = vmatprep.subr.mxu0 0.0
    %6415 = vmatpush2.msra.mxu0 0.0
    %6416 = vmatprep.mubr.f32.mxu0 0.0
    %6417 = vmatmul.mubr.f32.gmra.mxu0 %v6350
    %v6418 = vpop.f32.mrf.mxu0
    %v6419 = vadd.f32 0.0, %v6418
    %v6420 = vpop.f32.mrf.mxu0
    %6421 = vdwg.mxu0
    %v6422 = vadd.f32 %v6272, %v6419
    %v6423 = vld [vmem:[%s2849] sm:$0xff]
    %v6425 = vsel %vm2270, %v6423, 0
    %6427 = vmatprep.subr.mxu0 0.0
    %6428 = vmatpush1.msra.mxu0 0.0
    %6429 = vmatprep.subr.mxu0 0.0
    %6430 = vmatpush1.msra.mxu0 0.0
    %6431 = vmatprep.subr.mxu0 0.0
    %6432 = vmatpush1.msra.mxu0 0.0
    %6433 = vmatprep.subr.mxu0 0.0
    %6434 = vmatpush1.msra.mxu0 0.0
    %6435 = vmatprep.subr.mxu0 0.0
    %6436 = vmatpush1.msra.mxu0 0.0
    %6437 = vmatprep.subr.mxu0 0.0
    %6438 = vmatpush1.msra.mxu0 0.0
    %6439 = vmatprep.subr.mxu0 0.0
    %6440 = vmatpush1.msra.mxu0 0.0
    %6441 = vmatprep.subr.mxu0 0.0
    %6442 = vmatpush1.msra.mxu0 0.0
    %6443 = vmatprep.subr.mxu0 0.0
    %6444 = vmatpush1.msra.mxu0 0.0
    %6445 = vmatprep.subr.mxu0 0.0
    %6446 = vmatpush1.msra.mxu0 0.0
    %6447 = vmatprep.subr.mxu0 0.0
    %6448 = vmatpush1.msra.mxu0 0.0
    %6449 = vmatprep.subr.mxu0 0.0
    %6450 = vmatpush1.msra.mxu0 0.0
    %6451 = vmatprep.subr.mxu0 0.0
    %6452 = vmatpush1.msra.mxu0 %v6054
    %6453 = vmatprep.subr.mxu0 0.0
    %6454 = vmatpush1.msra.mxu0 %v6053
    %6455 = vmatprep.subr.mxu0 0.0
    %6456 = vmatpush1.msra.mxu0 %v6052
    %6457 = vmatprep.subr.mxu0 0.0
    %6458 = vmatpush1.msra.mxu0 %v6051
    %6459 = vmatprep.subr.mxu0 0.0
    %6460 = vmatpush2.msra.mxu0 0.0
    %6461 = vmatprep.subr.mxu0 0.0
    %6462 = vmatpush2.msra.mxu0 0.0
    %6463 = vmatprep.subr.mxu0 0.0
    %6464 = vmatpush2.msra.mxu0 0.0
    %6465 = vmatprep.subr.mxu0 0.0
    %6466 = vmatpush2.msra.mxu0 0.0
    %6467 = vmatprep.subr.mxu0 0.0
    %6468 = vmatpush2.msra.mxu0 0.0
    %6469 = vmatprep.subr.mxu0 0.0
    %6470 = vmatpush2.msra.mxu0 0.0
    %6471 = vmatprep.subr.mxu0 0.0
    %6472 = vmatpush2.msra.mxu0 0.0
    %6473 = vmatprep.subr.mxu0 0.0
    %6474 = vmatpush2.msra.mxu0 0.0
    %6475 = vmatprep.subr.mxu0 0.0
    %6476 = vmatpush2.msra.mxu0 0.0
    %6477 = vmatprep.subr.mxu0 0.0
    %6478 = vmatpush2.msra.mxu0 0.0
    %6479 = vmatprep.subr.mxu0 0.0
    %6480 = vmatpush2.msra.mxu0 0.0
    %6481 = vmatprep.subr.mxu0 0.0
    %6482 = vmatpush2.msra.mxu0 0.0
    %6483 = vmatprep.subr.mxu0 0.0
    %6484 = vmatpush2.msra.mxu0 0.0
    %6485 = vmatprep.subr.mxu0 0.0
    %6486 = vmatpush2.msra.mxu0 0.0
    %6487 = vmatprep.subr.mxu0 0.0
    %6488 = vmatpush2.msra.mxu0 0.0
    %6489 = vmatprep.subr.mxu0 0.0
    %6490 = vmatpush2.msra.mxu0 0.0
    %6491 = vmatprep.mubr.f32.mxu0 0.0
    %6492 = vmatmul.mubr.f32.gmra.mxu0 %v6425
    %v6493 = vpop.f32.mrf.mxu0
    %v6494 = vadd.f32 0.0, %v6493
    %v6495 = vpop.f32.mrf.mxu0
    %6496 = vdwg.mxu0
    %v6497 = vld [vmem:[%s2924] sm:$0xff]
    %v6498 = vld [vmem:[%s2924 + $0x8] sm:$0xff]
    %v6500 = vsel %vm264, %v6494, 0
    %6502 = vmatprep.subr.mxu0 0.0
    %6503 = vmatpush1.msra.mxu0 0.0
    %6504 = vmatprep.subr.mxu0 0.0
    %6505 = vmatpush1.msra.mxu0 0.0
    %6506 = vmatprep.subr.mxu0 0.0
    %6507 = vmatpush1.msra.mxu0 0.0
    %6508 = vmatprep.subr.mxu0 0.0
    %6509 = vmatpush1.msra.mxu0 0.0
    %6510 = vmatprep.subr.mxu0 0.0
    %6511 = vmatpush1.msra.mxu0 0.0
    %6512 = vmatprep.subr.mxu0 0.0
    %6513 = vmatpush1.msra.mxu0 0.0
    %6514 = vmatprep.subr.mxu0 0.0
    %6515 = vmatpush1.msra.mxu0 0.0
    %6516 = vmatprep.subr.mxu0 0.0
    %6517 = vmatpush1.msra.mxu0 0.0
    %6518 = vmatprep.subr.mxu0 0.0
    %6519 = vmatpush1.msra.mxu0 0.0
    %6520 = vmatprep.subr.mxu0 0.0
    %6521 = vmatpush1.msra.mxu0 0.0
    %6522 = vmatprep.subr.mxu0 0.0
    %6523 = vmatpush1.msra.mxu0 0.0
    %6524 = vmatprep.subr.mxu0 0.0
    %6525 = vmatpush1.msra.mxu0 0.0
    %6526 = vmatprep.subr.mxu0 0.0
    %6527 = vmatpush1.msra.mxu0 0.0
    %6528 = vmatprep.subr.mxu0 0.0
    %6529 = vmatpush1.msra.mxu0 0.0
    %6530 = vmatprep.subr.mxu0 0.0
    %6531 = vmatpush1.msra.mxu0 %v6498
    %6532 = vmatprep.subr.mxu0 0.0
    %6533 = vmatpush1.msra.mxu0 %v6497
    %6534 = vmatprep.subr.mxu0 0.0
    %6535 = vmatpush2.msra.mxu0 0.0
    %6536 = vmatprep.subr.mxu0 0.0
    %6537 = vmatpush2.msra.mxu0 0.0
    %6538 = vmatprep.subr.mxu0 0.0
    %6539 = vmatpush2.msra.mxu0 0.0
    %6540 = vmatprep.subr.mxu0 0.0
    %6541 = vmatpush2.msra.mxu0 0.0
    %6542 = vmatprep.subr.mxu0 0.0
    %6543 = vmatpush2.msra.mxu0 0.0
    %6544 = vmatprep.subr.mxu0 0.0
    %6545 = vmatpush2.msra.mxu0 0.0
    %6546 = vmatprep.subr.mxu0 0.0
    %6547 = vmatpush2.msra.mxu0 0.0
    %6548 = vmatprep.subr.mxu0 0.0
    %6549 = vmatpush2.msra.mxu0 0.0
    %6550 = vmatprep.subr.mxu0 0.0
    %6551 = vmatpush2.msra.mxu0 0.0
    %6552 = vmatprep.subr.mxu0 0.0
    %6553 = vmatpush2.msra.mxu0 0.0
    %6554 = vmatprep.subr.mxu0 0.0
    %6555 = vmatpush2.msra.mxu0 0.0
    %6556 = vmatprep.subr.mxu0 0.0
    %6557 = vmatpush2.msra.mxu0 0.0
    %6558 = vmatprep.subr.mxu0 0.0
    %6559 = vmatpush2.msra.mxu0 0.0
    %6560 = vmatprep.subr.mxu0 0.0
    %6561 = vmatpush2.msra.mxu0 0.0
    %6562 = vmatprep.subr.mxu0 0.0
    %6563 = vmatpush2.msra.mxu0 0.0
    %6564 = vmatprep.subr.mxu0 0.0
    %6565 = vmatpush2.msra.mxu0 0.0
    %6566 = vmatprep.mubr.f32.mxu0 0.0
    %6567 = vmatmul.mubr.f32.gmra.mxu0 %v6500
    %v6568 = vpop.f32.mrf.mxu0
    %v6569 = vadd.f32 0.0, %v6568
    %v6570 = vpop.f32.mrf.mxu0
    %6571 = vdwg.mxu0
    %v6572 = vadd.f32 %v6422, %v6569
    %v6573 = vld [vmem:[%s3001] sm:$0xff]
    %v6575 = vsel %vm2270, %v6573, 0
    %6577 = vmatprep.subr.mxu0 0.0
    %6578 = vmatpush1.msra.mxu0 0.0
    %6579 = vmatprep.subr.mxu0 0.0
    %6580 = vmatpush1.msra.mxu0 0.0
    %6581 = vmatprep.subr.mxu0 0.0
    %6582 = vmatpush1.msra.mxu0 0.0
    %6583 = vmatprep.subr.mxu0 0.0
    %6584 = vmatpush1.msra.mxu0 0.0
    %6585 = vmatprep.subr.mxu0 0.0
    %6586 = vmatpush1.msra.mxu0 0.0
    %6587 = vmatprep.subr.mxu0 0.0
    %6588 = vmatpush1.msra.mxu0 0.0
    %6589 = vmatprep.subr.mxu0 0.0
    %6590 = vmatpush1.msra.mxu0 0.0
    %6591 = vmatprep.subr.mxu0 0.0
    %6592 = vmatpush1.msra.mxu0 0.0
    %6593 = vmatprep.subr.mxu0 0.0
    %6594 = vmatpush1.msra.mxu0 0.0
    %6595 = vmatprep.subr.mxu0 0.0
    %6596 = vmatpush1.msra.mxu0 0.0
    %6597 = vmatprep.subr.mxu0 0.0
    %6598 = vmatpush1.msra.mxu0 0.0
    %6599 = vmatprep.subr.mxu0 0.0
    %6600 = vmatpush1.msra.mxu0 0.0
    %6601 = vmatprep.subr.mxu0 0.0
    %6602 = vmatpush1.msra.mxu0 %v6054
    %6603 = vmatprep.subr.mxu0 0.0
    %6604 = vmatpush1.msra.mxu0 %v6053
    %6605 = vmatprep.subr.mxu0 0.0
    %6606 = vmatpush1.msra.mxu0 %v6052
    %6607 = vmatprep.subr.mxu0 0.0
    %6608 = vmatpush1.msra.mxu0 %v6051
    %6609 = vmatprep.subr.mxu0 0.0
    %6610 = vmatpush2.msra.mxu0 0.0
    %6611 = vmatprep.subr.mxu0 0.0
    %6612 = vmatpush2.msra.mxu0 0.0
    %6613 = vmatprep.subr.mxu0 0.0
    %6614 = vmatpush2.msra.mxu0 0.0
    %6615 = vmatprep.subr.mxu0 0.0
    %6616 = vmatpush2.msra.mxu0 0.0
    %6617 = vmatprep.subr.mxu0 0.0
    %6618 = vmatpush2.msra.mxu0 0.0
    %6619 = vmatprep.subr.mxu0 0.0
    %6620 = vmatpush2.msra.mxu0 0.0
    %6621 = vmatprep.subr.mxu0 0.0
    %6622 = vmatpush2.msra.mxu0 0.0
    %6623 = vmatprep.subr.mxu0 0.0
    %6624 = vmatpush2.msra.mxu0 0.0
    %6625 = vmatprep.subr.mxu0 0.0
    %6626 = vmatpush2.msra.mxu0 0.0
    %6627 = vmatprep.subr.mxu0 0.0
    %6628 = vmatpush2.msra.mxu0 0.0
    %6629 = vmatprep.subr.mxu0 0.0
    %6630 = vmatpush2.msra.mxu0 0.0
    %6631 = vmatprep.subr.mxu0 0.0
    %6632 = vmatpush2.msra.mxu0 0.0
    %6633 = vmatprep.subr.mxu0 0.0
    %6634 = vmatpush2.msra.mxu0 0.0
    %6635 = vmatprep.subr.mxu0 0.0
    %6636 = vmatpush2.msra.mxu0 0.0
    %6637 = vmatprep.subr.mxu0 0.0
    %6638 = vmatpush2.msra.mxu0 0.0
    %6639 = vmatprep.subr.mxu0 0.0
    %6640 = vmatpush2.msra.mxu0 0.0
    %6641 = vmatprep.mubr.f32.mxu0 0.0
    %6642 = vmatmul.mubr.f32.gmra.mxu0 %v6575
    %v6643 = vpop.f32.mrf.mxu0
    %v6644 = vadd.f32 0.0, %v6643
    %v6645 = vpop.f32.mrf.mxu0
    %6646 = vdwg.mxu0
    %v6647 = vld [vmem:[%s3076] sm:$0xff]
    %v6648 = vld [vmem:[%s3076 + $0x8] sm:$0xff]
    %v6650 = vsel %vm264, %v6644, 0
    %6652 = vmatprep.subr.mxu0 0.0
    %6653 = vmatpush1.msra.mxu0 0.0
    %6654 = vmatprep.subr.mxu0 0.0
    %6655 = vmatpush1.msra.mxu0 0.0
    %6656 = vmatprep.subr.mxu0 0.0
    %6657 = vmatpush1.msra.mxu0 0.0
    %6658 = vmatprep.subr.mxu0 0.0
    %6659 = vmatpush1.msra.mxu0 0.0
    %6660 = vmatprep.subr.mxu0 0.0
    %6661 = vmatpush1.msra.mxu0 0.0
    %6662 = vmatprep.subr.mxu0 0.0
    %6663 = vmatpush1.msra.mxu0 0.0
    %6664 = vmatprep.subr.mxu0 0.0
    %6665 = vmatpush1.msra.mxu0 0.0
    %6666 = vmatprep.subr.mxu0 0.0
    %6667 = vmatpush1.msra.mxu0 0.0
    %6668 = vmatprep.subr.mxu0 0.0
    %6669 = vmatpush1.msra.mxu0 0.0
    %6670 = vmatprep.subr.mxu0 0.0
    %6671 = vmatpush1.msra.mxu0 0.0
    %6672 = vmatprep.subr.mxu0 0.0
    %6673 = vmatpush1.msra.mxu0 0.0
    %6674 = vmatprep.subr.mxu0 0.0
    %6675 = vmatpush1.msra.mxu0 0.0
    %6676 = vmatprep.subr.mxu0 0.0
    %6677 = vmatpush1.msra.mxu0 0.0
    %6678 = vmatprep.subr.mxu0 0.0
    %6679 = vmatpush1.msra.mxu0 0.0
    %6680 = vmatprep.subr.mxu0 0.0
    %6681 = vmatpush1.msra.mxu0 %v6648
    %6682 = vmatprep.subr.mxu0 0.0
    %6683 = vmatpush1.msra.mxu0 %v6647
    %6684 = vmatprep.subr.mxu0 0.0
    %6685 = vmatpush2.msra.mxu0 0.0
    %6686 = vmatprep.subr.mxu0 0.0
    %6687 = vmatpush2.msra.mxu0 0.0
    %6688 = vmatprep.subr.mxu0 0.0
    %6689 = vmatpush2.msra.mxu0 0.0
    %6690 = vmatprep.subr.mxu0 0.0
    %6691 = vmatpush2.msra.mxu0 0.0
    %6692 = vmatprep.subr.mxu0 0.0
    %6693 = vmatpush2.msra.mxu0 0.0
    %6694 = vmatprep.subr.mxu0 0.0
    %6695 = vmatpush2.msra.mxu0 0.0
    %6696 = vmatprep.subr.mxu0 0.0
    %6697 = vmatpush2.msra.mxu0 0.0
    %6698 = vmatprep.subr.mxu0 0.0
    %6699 = vmatpush2.msra.mxu0 0.0
    %6700 = vmatprep.subr.mxu0 0.0
    %6701 = vmatpush2.msra.mxu0 0.0
    %6702 = vmatprep.subr.mxu0 0.0
    %6703 = vmatpush2.msra.mxu0 0.0
    %6704 = vmatprep.subr.mxu0 0.0
    %6705 = vmatpush2.msra.mxu0 0.0
    %6706 = vmatprep.subr.mxu0 0.0
    %6707 = vmatpush2.msra.mxu0 0.0
    %6708 = vmatprep.subr.mxu0 0.0
    %6709 = vmatpush2.msra.mxu0 0.0
    %6710 = vmatprep.subr.mxu0 0.0
    %6711 = vmatpush2.msra.mxu0 0.0
    %6712 = vmatprep.subr.mxu0 0.0
    %6713 = vmatpush2.msra.mxu0 0.0
    %6714 = vmatprep.subr.mxu0 0.0
    %6715 = vmatpush2.msra.mxu0 0.0
    %6716 = vmatprep.mubr.f32.mxu0 0.0
    %6717 = vmatmul.mubr.f32.gmra.mxu0 %v6650
    %v6718 = vpop.f32.mrf.mxu0
    %v6719 = vadd.f32 0.0, %v6718
    %v6720 = vpop.f32.mrf.mxu0
    %6721 = vdwg.mxu0
    %v6722 = vadd.f32 %v6572, %v6719
    %v6723 = vld [vmem:[%s3153] sm:$0xff]
    %v6725 = vsel %vm2270, %v6723, 0
    %6727 = vmatprep.subr.mxu0 0.0
    %6728 = vmatpush1.msra.mxu0 0.0
    %6729 = vmatprep.subr.mxu0 0.0
    %6730 = vmatpush1.msra.mxu0 0.0
    %6731 = vmatprep.subr.mxu0 0.0
    %6732 = vmatpush1.msra.mxu0 0.0
    %6733 = vmatprep.subr.mxu0 0.0
    %6734 = vmatpush1.msra.mxu0 0.0
    %6735 = vmatprep.subr.mxu0 0.0
    %6736 = vmatpush1.msra.mxu0 0.0
    %6737 = vmatprep.subr.mxu0 0.0
    %6738 = vmatpush1.msra.mxu0 0.0
    %6739 = vmatprep.subr.mxu0 0.0
    %6740 = vmatpush1.msra.mxu0 0.0
    %6741 = vmatprep.subr.mxu0 0.0
    %6742 = vmatpush1.msra.mxu0 0.0
    %6743 = vmatprep.subr.mxu0 0.0
    %6744 = vmatpush1.msra.mxu0 0.0
    %6745 = vmatprep.subr.mxu0 0.0
    %6746 = vmatpush1.msra.mxu0 0.0
    %6747 = vmatprep.subr.mxu0 0.0
    %6748 = vmatpush1.msra.mxu0 0.0
    %6749 = vmatprep.subr.mxu0 0.0
    %6750 = vmatpush1.msra.mxu0 0.0
    %6751 = vmatprep.subr.mxu0 0.0
    %6752 = vmatpush1.msra.mxu0 %v6054
    %6753 = vmatprep.subr.mxu0 0.0
    %6754 = vmatpush1.msra.mxu0 %v6053
    %6755 = vmatprep.subr.mxu0 0.0
    %6756 = vmatpush1.msra.mxu0 %v6052
    %6757 = vmatprep.subr.mxu0 0.0
    %6758 = vmatpush1.msra.mxu0 %v6051
    %6759 = vmatprep.subr.mxu0 0.0
    %6760 = vmatpush2.msra.mxu0 0.0
    %6761 = vmatprep.subr.mxu0 0.0
    %6762 = vmatpush2.msra.mxu0 0.0
    %6763 = vmatprep.subr.mxu0 0.0
    %6764 = vmatpush2.msra.mxu0 0.0
    %6765 = vmatprep.subr.mxu0 0.0
    %6766 = vmatpush2.msra.mxu0 0.0
    %6767 = vmatprep.subr.mxu0 0.0
    %6768 = vmatpush2.msra.mxu0 0.0
    %6769 = vmatprep.subr.mxu0 0.0
    %6770 = vmatpush2.msra.mxu0 0.0
    %6771 = vmatprep.subr.mxu0 0.0
    %6772 = vmatpush2.msra.mxu0 0.0
    %6773 = vmatprep.subr.mxu0 0.0
    %6774 = vmatpush2.msra.mxu0 0.0
    %6775 = vmatprep.subr.mxu0 0.0
    %6776 = vmatpush2.msra.mxu0 0.0
    %6777 = vmatprep.subr.mxu0 0.0
    %6778 = vmatpush2.msra.mxu0 0.0
    %6779 = vmatprep.subr.mxu0 0.0
    %6780 = vmatpush2.msra.mxu0 0.0
    %6781 = vmatprep.subr.mxu0 0.0
    %6782 = vmatpush2.msra.mxu0 0.0
    %6783 = vmatprep.subr.mxu0 0.0
    %6784 = vmatpush2.msra.mxu0 0.0
    %6785 = vmatprep.subr.mxu0 0.0
    %6786 = vmatpush2.msra.mxu0 0.0
    %6787 = vmatprep.subr.mxu0 0.0
    %6788 = vmatpush2.msra.mxu0 0.0
    %6789 = vmatprep.subr.mxu0 0.0
    %6790 = vmatpush2.msra.mxu0 0.0
    %6791 = vmatprep.mubr.f32.mxu0 0.0
    %6792 = vmatmul.mubr.f32.gmra.mxu0 %v6725
    %v6793 = vpop.f32.mrf.mxu0
    %v6794 = vadd.f32 0.0, %v6793
    %v6795 = vpop.f32.mrf.mxu0
    %6796 = vdwg.mxu0
    %v6797 = vld [vmem:[%s3228] sm:$0xff]
    %v6798 = vld [vmem:[%s3228 + $0x8] sm:$0xff]
    %v6800 = vsel %vm264, %v6794, 0
    %6802 = vmatprep.subr.mxu0 0.0
    %6803 = vmatpush1.msra.mxu0 0.0
    %6804 = vmatprep.subr.mxu0 0.0
    %6805 = vmatpush1.msra.mxu0 0.0
    %6806 = vmatprep.subr.mxu0 0.0
    %6807 = vmatpush1.msra.mxu0 0.0
    %6808 = vmatprep.subr.mxu0 0.0
    %6809 = vmatpush1.msra.mxu0 0.0
    %6810 = vmatprep.subr.mxu0 0.0
    %6811 = vmatpush1.msra.mxu0 0.0
    %6812 = vmatprep.subr.mxu0 0.0
    %6813 = vmatpush1.msra.mxu0 0.0
    %6814 = vmatprep.subr.mxu0 0.0
    %6815 = vmatpush1.msra.mxu0 0.0
    %6816 = vmatprep.subr.mxu0 0.0
    %6817 = vmatpush1.msra.mxu0 0.0
    %6818 = vmatprep.subr.mxu0 0.0
    %6819 = vmatpush1.msra.mxu0 0.0
    %6820 = vmatprep.subr.mxu0 0.0
    %6821 = vmatpush1.msra.mxu0 0.0
    %6822 = vmatprep.subr.mxu0 0.0
    %6823 = vmatpush1.msra.mxu0 0.0
    %6824 = vmatprep.subr.mxu0 0.0
    %6825 = vmatpush1.msra.mxu0 0.0
    %6826 = vmatprep.subr.mxu0 0.0
    %6827 = vmatpush1.msra.mxu0 0.0
    %6828 = vmatprep.subr.mxu0 0.0
    %6829 = vmatpush1.msra.mxu0 0.0
    %6830 = vmatprep.subr.mxu0 0.0
    %6831 = vmatpush1.msra.mxu0 %v6798
    %6832 = vmatprep.subr.mxu0 0.0
    %6833 = vmatpush1.msra.mxu0 %v6797
    %6834 = vmatprep.subr.mxu0 0.0
    %6835 = vmatpush2.msra.mxu0 0.0
    %6836 = vmatprep.subr.mxu0 0.0
    %6837 = vmatpush2.msra.mxu0 0.0
    %6838 = vmatprep.subr.mxu0 0.0
    %6839 = vmatpush2.msra.mxu0 0.0
    %6840 = vmatprep.subr.mxu0 0.0
    %6841 = vmatpush2.msra.mxu0 0.0
    %6842 = vmatprep.subr.mxu0 0.0
    %6843 = vmatpush2.msra.mxu0 0.0
    %6844 = vmatprep.subr.mxu0 0.0
    %6845 = vmatpush2.msra.mxu0 0.0
    %6846 = vmatprep.subr.mxu0 0.0
    %6847 = vmatpush2.msra.mxu0 0.0
    %6848 = vmatprep.subr.mxu0 0.0
    %6849 = vmatpush2.msra.mxu0 0.0
    %6850 = vmatprep.subr.mxu0 0.0
    %6851 = vmatpush2.msra.mxu0 0.0
    %6852 = vmatprep.subr.mxu0 0.0
    %6853 = vmatpush2.msra.mxu0 0.0
    %6854 = vmatprep.subr.mxu0 0.0
    %6855 = vmatpush2.msra.mxu0 0.0
    %6856 = vmatprep.subr.mxu0 0.0
    %6857 = vmatpush2.msra.mxu0 0.0
    %6858 = vmatprep.subr.mxu0 0.0
    %6859 = vmatpush2.msra.mxu0 0.0
    %6860 = vmatprep.subr.mxu0 0.0
    %6861 = vmatpush2.msra.mxu0 0.0
    %6862 = vmatprep.subr.mxu0 0.0
    %6863 = vmatpush2.msra.mxu0 0.0
    %6864 = vmatprep.subr.mxu0 0.0
    %6865 = vmatpush2.msra.mxu0 0.0
    %6866 = vmatprep.mubr.f32.mxu0 0.0
    %6867 = vmatmul.mubr.f32.gmra.mxu0 %v6800
    %v6868 = vpop.f32.mrf.mxu0
    %v6869 = vadd.f32 0.0, %v6868
    %v6870 = vpop.f32.mrf.mxu0
    %6871 = vdwg.mxu0
    %v6872 = vadd.f32 %v6722, %v6869
    %v6873 = vld [vmem:[%s13] sm:$0x1]
    %v6875 = vlaneseq
    %v6876 = vshrl.u32 %v6875, 7
    %v6877 = vsub.s32 0, %v6876
    %v6878 = vrot.slane %v6873, %v6877
    %v6880 = vadd.f32 %v3660, %v6878
    %v6881 = vadd.f32 %v3661, %v6878
    %v6882 = vld [vmem:[%s16] sm:$0xff]
    %v6883 = vld [vmem:[%s16 + $0x8] sm:$0xff]
    %v6885 = vsel %vm2270, %v6882, 0
    %v6888 = vsel %vm2270, %v6883, 0
    %6890 = vmatprep.subr.mxu0 0.0
    %6891 = vmatpush1.msra.mxu0 0.0
    %6892 = vmatprep.subr.mxu0 0.0
    %6893 = vmatpush1.msra.mxu0 0.0
    %6894 = vmatprep.subr.mxu0 0.0
    %6895 = vmatpush1.msra.mxu0 0.0
    %6896 = vmatprep.subr.mxu0 0.0
    %6897 = vmatpush1.msra.mxu0 0.0
    %6898 = vmatprep.subr.mxu0 0.0
    %6899 = vmatpush1.msra.mxu0 0.0
    %6900 = vmatprep.subr.mxu0 0.0
    %6901 = vmatpush1.msra.mxu0 0.0
    %6902 = vmatprep.subr.mxu0 0.0
    %6903 = vmatpush1.msra.mxu0 0.0
    %6904 = vmatprep.subr.mxu0 0.0
    %6905 = vmatpush1.msra.mxu0 0.0
    %6906 = vmatprep.subr.mxu0 0.0
    %6907 = vmatpush1.msra.mxu0 0.0
    %6908 = vmatprep.subr.mxu0 0.0
    %6909 = vmatpush1.msra.mxu0 0.0
    %6910 = vmatprep.subr.mxu0 0.0
    %6911 = vmatpush1.msra.mxu0 0.0
    %6912 = vmatprep.subr.mxu0 0.0
    %6913 = vmatpush1.msra.mxu0 0.0
    %6914 = vmatprep.subr.mxu0 0.0
    %6915 = vmatpush1.msra.mxu0 %v6264
    %6916 = vmatprep.subr.mxu0 0.0
    %6917 = vmatpush1.msra.mxu0 %v6263
    %6918 = vmatprep.subr.mxu0 0.0
    %6919 = vmatpush1.msra.mxu0 %v6262
    %6920 = vmatprep.subr.mxu0 0.0
    %6921 = vmatpush1.msra.mxu0 %v6261
    %6922 = vmatprep.subr.mxu0 0.0
    %6923 = vmatpush2.msra.mxu0 0.0
    %6924 = vmatprep.subr.mxu0 0.0
    %6925 = vmatpush2.msra.mxu0 0.0
    %6926 = vmatprep.subr.mxu0 0.0
    %6927 = vmatpush2.msra.mxu0 0.0
    %6928 = vmatprep.subr.mxu0 0.0
    %6929 = vmatpush2.msra.mxu0 0.0
    %6930 = vmatprep.subr.mxu0 0.0
    %6931 = vmatpush2.msra.mxu0 0.0
    %6932 = vmatprep.subr.mxu0 0.0
    %6933 = vmatpush2.msra.mxu0 0.0
    %6934 = vmatprep.subr.mxu0 0.0
    %6935 = vmatpush2.msra.mxu0 0.0
    %6936 = vmatprep.subr.mxu0 0.0
    %6937 = vmatpush2.msra.mxu0 0.0
    %6938 = vmatprep.subr.mxu0 0.0
    %6939 = vmatpush2.msra.mxu0 0.0
    %6940 = vmatprep.subr.mxu0 0.0
    %6941 = vmatpush2.msra.mxu0 0.0
    %6942 = vmatprep.subr.mxu0 0.0
    %6943 = vmatpush2.msra.mxu0 0.0
    %6944 = vmatprep.subr.mxu0 0.0
    %6945 = vmatpush2.msra.mxu0 0.0
    %6946 = vmatprep.subr.mxu0 0.0
    %6947 = vmatpush2.msra.mxu0 0.0
    %6948 = vmatprep.subr.mxu0 0.0
    %6949 = vmatpush2.msra.mxu0 0.0
    %6950 = vmatprep.subr.mxu0 0.0
    %6951 = vmatpush2.msra.mxu0 0.0
    %6952 = vmatprep.subr.mxu0 0.0
    %6953 = vmatpush2.msra.mxu0 0.0
    %6954 = vmatprep.mubr.f32.mxu0 0.0
    %6955 = vmatmul.mubr.f32.gmra.mxu0 %v6885
    %v6956 = vpop.f32.mrf.mxu0
    %v6957 = vadd.f32 0.0, %v6956
    %v6958 = vpop.f32.mrf.mxu0
    %6959 = vmatprep.mubr.f32.mxu0 0.0
    %6960 = vmatmul.mubr.f32.gmra.mxu0 %v6888
    %v6961 = vpop.f32.mrf.mxu0
    %v6962 = vadd.f32 0.0, %v6961
    %v6963 = vpop.f32.mrf.mxu0
    %6964 = vdwg.mxu0
    %v6965 = vld [vmem:[%s12] sm:$0xff]
    %v6966 = vld [vmem:[%s12 + $0x8] sm:$0xff]
    %v6967 = vld [vmem:[%s12 + $0x10] sm:$0xff]
    %v6968 = vld [vmem:[%s12 + $0x18] sm:$0xff]
    %v6970 = vsel %vm2270, %v6957, 0
    %v6973 = vsel %vm2270, %v6962, 0
    %6975 = vmatprep.subr.mxu0 0.0
    %6976 = vmatpush1.msra.mxu0 0.0
    %6977 = vmatprep.subr.mxu0 0.0
    %6978 = vmatpush1.msra.mxu0 0.0
    %6979 = vmatprep.subr.mxu0 0.0
    %6980 = vmatpush1.msra.mxu0 0.0
    %6981 = vmatprep.subr.mxu0 0.0
    %6982 = vmatpush1.msra.mxu0 0.0
    %6983 = vmatprep.subr.mxu0 0.0
    %6984 = vmatpush1.msra.mxu0 0.0
    %6985 = vmatprep.subr.mxu0 0.0
    %6986 = vmatpush1.msra.mxu0 0.0
    %6987 = vmatprep.subr.mxu0 0.0
    %6988 = vmatpush1.msra.mxu0 0.0
    %6989 = vmatprep.subr.mxu0 0.0
    %6990 = vmatpush1.msra.mxu0 0.0
    %6991 = vmatprep.subr.mxu0 0.0
    %6992 = vmatpush1.msra.mxu0 0.0
    %6993 = vmatprep.subr.mxu0 0.0
    %6994 = vmatpush1.msra.mxu0 0.0
    %6995 = vmatprep.subr.mxu0 0.0
    %6996 = vmatpush1.msra.mxu0 0.0
    %6997 = vmatprep.subr.mxu0 0.0
    %6998 = vmatpush1.msra.mxu0 0.0
    %6999 = vmatprep.subr.mxu0 0.0
    %7000 = vmatpush1.msra.mxu0 %v6968
    %7001 = vmatprep.subr.mxu0 0.0
    %7002 = vmatpush1.msra.mxu0 %v6967
    %7003 = vmatprep.subr.mxu0 0.0
    %7004 = vmatpush1.msra.mxu0 %v6966
    %7005 = vmatprep.subr.mxu0 0.0
    %7006 = vmatpush1.msra.mxu0 %v6965
    %7007 = vmatprep.subr.mxu0 0.0
    %7008 = vmatpush2.msra.mxu0 0.0
    %7009 = vmatprep.subr.mxu0 0.0
    %7010 = vmatpush2.msra.mxu0 0.0
    %7011 = vmatprep.subr.mxu0 0.0
    %7012 = vmatpush2.msra.mxu0 0.0
    %7013 = vmatprep.subr.mxu0 0.0
    %7014 = vmatpush2.msra.mxu0 0.0
    %7015 = vmatprep.subr.mxu0 0.0
    %7016 = vmatpush2.msra.mxu0 0.0
    %7017 = vmatprep.subr.mxu0 0.0
    %7018 = vmatpush2.msra.mxu0 0.0
    %7019 = vmatprep.subr.mxu0 0.0
    %7020 = vmatpush2.msra.mxu0 0.0
    %7021 = vmatprep.subr.mxu0 0.0
    %7022 = vmatpush2.msra.mxu0 0.0
    %7023 = vmatprep.subr.mxu0 0.0
    %7024 = vmatpush2.msra.mxu0 0.0
    %7025 = vmatprep.subr.mxu0 0.0
    %7026 = vmatpush2.msra.mxu0 0.0
    %7027 = vmatprep.subr.mxu0 0.0
    %7028 = vmatpush2.msra.mxu0 0.0
    %7029 = vmatprep.subr.mxu0 0.0
    %7030 = vmatpush2.msra.mxu0 0.0
    %7031 = vmatprep.subr.mxu0 0.0
    %7032 = vmatpush2.msra.mxu0 0.0
    %7033 = vmatprep.subr.mxu0 0.0
    %7034 = vmatpush2.msra.mxu0 0.0
    %7035 = vmatprep.subr.mxu0 0.0
    %7036 = vmatpush2.msra.mxu0 0.0
    %7037 = vmatprep.subr.mxu0 0.0
    %7038 = vmatpush2.msra.mxu0 0.0
    %7039 = vmatprep.mubr.f32.mxu0 0.0
    %7040 = vmatmul.mubr.f32.gmra.mxu0 %v6970
    %v7041 = vpop.f32.mrf.mxu0
    %v7042 = vadd.f32 0.0, %v7041
    %v7043 = vpop.f32.mrf.mxu0
    %7044 = vmatprep.mubr.f32.mxu0 0.0
    %7045 = vmatmul.mubr.f32.gmra.mxu0 %v6973
    %v7046 = vpop.f32.mrf.mxu0
    %v7047 = vadd.f32 0.0, %v7046
    %v7048 = vpop.f32.mrf.mxu0
    %7049 = vdwg.mxu0
    %v7050 = vadd.f32 %v6880, %v7042
    %v7051 = vadd.f32 %v6881, %v7047
    %v7052 = vld [vmem:[%s3484] sm:$0xff]
    %v7053 = vld [vmem:[%s3484 + $0x8] sm:$0xff]
    %v7055 = vsel %vm2270, %v7052, 0
    %v7058 = vsel %vm2270, %v7053, 0
    %7060 = vmatprep.subr.mxu0 0.0
    %7061 = vmatpush1.msra.mxu0 0.0
    %7062 = vmatprep.subr.mxu0 0.0
    %7063 = vmatpush1.msra.mxu0 0.0
    %7064 = vmatprep.subr.mxu0 0.0
    %7065 = vmatpush1.msra.mxu0 0.0
    %7066 = vmatprep.subr.mxu0 0.0
    %7067 = vmatpush1.msra.mxu0 0.0
    %7068 = vmatprep.subr.mxu0 0.0
    %7069 = vmatpush1.msra.mxu0 0.0
    %7070 = vmatprep.subr.mxu0 0.0
    %7071 = vmatpush1.msra.mxu0 0.0
    %7072 = vmatprep.subr.mxu0 0.0
    %7073 = vmatpush1.msra.mxu0 0.0
    %7074 = vmatprep.subr.mxu0 0.0
    %7075 = vmatpush1.msra.mxu0 0.0
    %7076 = vmatprep.subr.mxu0 0.0
    %7077 = vmatpush1.msra.mxu0 0.0
    %7078 = vmatprep.subr.mxu0 0.0
    %7079 = vmatpush1.msra.mxu0 0.0
    %7080 = vmatprep.subr.mxu0 0.0
    %7081 = vmatpush1.msra.mxu0 0.0
    %7082 = vmatprep.subr.mxu0 0.0
    %7083 = vmatpush1.msra.mxu0 0.0
    %7084 = vmatprep.subr.mxu0 0.0
    %7085 = vmatpush1.msra.mxu0 %v6264
    %7086 = vmatprep.subr.mxu0 0.0
    %7087 = vmatpush1.msra.mxu0 %v6263
    %7088 = vmatprep.subr.mxu0 0.0
    %7089 = vmatpush1.msra.mxu0 %v6262
    %7090 = vmatprep.subr.mxu0 0.0
    %7091 = vmatpush1.msra.mxu0 %v6261
    %7092 = vmatprep.subr.mxu0 0.0
    %7093 = vmatpush2.msra.mxu0 0.0
    %7094 = vmatprep.subr.mxu0 0.0
    %7095 = vmatpush2.msra.mxu0 0.0
    %7096 = vmatprep.subr.mxu0 0.0
    %7097 = vmatpush2.msra.mxu0 0.0
    %7098 = vmatprep.subr.mxu0 0.0
    %7099 = vmatpush2.msra.mxu0 0.0
    %7100 = vmatprep.subr.mxu0 0.0
    %7101 = vmatpush2.msra.mxu0 0.0
    %7102 = vmatprep.subr.mxu0 0.0
    %7103 = vmatpush2.msra.mxu0 0.0
    %7104 = vmatprep.subr.mxu0 0.0
    %7105 = vmatpush2.msra.mxu0 0.0
    %7106 = vmatprep.subr.mxu0 0.0
    %7107 = vmatpush2.msra.mxu0 0.0
    %7108 = vmatprep.subr.mxu0 0.0
    %7109 = vmatpush2.msra.mxu0 0.0
    %7110 = vmatprep.subr.mxu0 0.0
    %7111 = vmatpush2.msra.mxu0 0.0
    %7112 = vmatprep.subr.mxu0 0.0
    %7113 = vmatpush2.msra.mxu0 0.0
    %7114 = vmatprep.subr.mxu0 0.0
    %7115 = vmatpush2.msra.mxu0 0.0
    %7116 = vmatprep.subr.mxu0 0.0
    %7117 = vmatpush2.msra.mxu0 0.0
    %7118 = vmatprep.subr.mxu0 0.0
    %7119 = vmatpush2.msra.mxu0 0.0
    %7120 = vmatprep.subr.mxu0 0.0
    %7121 = vmatpush2.msra.mxu0 0.0
    %7122 = vmatprep.subr.mxu0 0.0
    %7123 = vmatpush2.msra.mxu0 0.0
    %7124 = vmatprep.mubr.f32.mxu0 0.0
    %7125 = vmatmul.mubr.f32.gmra.mxu0 %v7055
    %v7126 = vpop.f32.mrf.mxu0
    %v7127 = vadd.f32 0.0, %v7126
    %v7128 = vpop.f32.mrf.mxu0
    %7129 = vmatprep.mubr.f32.mxu0 0.0
    %7130 = vmatmul.mubr.f32.gmra.mxu0 %v7058
    %v7131 = vpop.f32.mrf.mxu0
    %v7132 = vadd.f32 0.0, %v7131
    %v7133 = vpop.f32.mrf.mxu0
    %7134 = vdwg.mxu0
    %v7135 = vld [vmem:[%s3568] sm:$0xff]
    %v7136 = vld [vmem:[%s3568 + $0x8] sm:$0xff]
    %v7137 = vld [vmem:[%s3568 + $0x10] sm:$0xff]
    %v7138 = vld [vmem:[%s3568 + $0x18] sm:$0xff]
    %v7140 = vsel %vm2270, %v7127, 0
    %v7143 = vsel %vm2270, %v7132, 0
    %7145 = vmatprep.subr.mxu0 0.0
    %7146 = vmatpush1.msra.mxu0 0.0
    %7147 = vmatprep.subr.mxu0 0.0
    %7148 = vmatpush1.msra.mxu0 0.0
    %7149 = vmatprep.subr.mxu0 0.0
    %7150 = vmatpush1.msra.mxu0 0.0
    %7151 = vmatprep.subr.mxu0 0.0
    %7152 = vmatpush1.msra.mxu0 0.0
    %7153 = vmatprep.subr.mxu0 0.0
    %7154 = vmatpush1.msra.mxu0 0.0
    %7155 = vmatprep.subr.mxu0 0.0
    %7156 = vmatpush1.msra.mxu0 0.0
    %7157 = vmatprep.subr.mxu0 0.0
    %7158 = vmatpush1.msra.mxu0 0.0
    %7159 = vmatprep.subr.mxu0 0.0
    %7160 = vmatpush1.msra.mxu0 0.0
    %7161 = vmatprep.subr.mxu0 0.0
    %7162 = vmatpush1.msra.mxu0 0.0
    %7163 = vmatprep.subr.mxu0 0.0
    %7164 = vmatpush1.msra.mxu0 0.0
    %7165 = vmatprep.subr.mxu0 0.0
    %7166 = vmatpush1.msra.mxu0 0.0
    %7167 = vmatprep.subr.mxu0 0.0
    %7168 = vmatpush1.msra.mxu0 0.0
    %7169 = vmatprep.subr.mxu0 0.0
    %7170 = vmatpush1.msra.mxu0 %v7138
    %7171 = vmatprep.subr.mxu0 0.0
    %7172 = vmatpush1.msra.mxu0 %v7137
    %7173 = vmatprep.subr.mxu0 0.0
    %7174 = vmatpush1.msra.mxu0 %v7136
    %7175 = vmatprep.subr.mxu0 0.0
    %7176 = vmatpush1.msra.mxu0 %v7135
    %7177 = vmatprep.subr.mxu0 0.0
    %7178 = vmatpush2.msra.mxu0 0.0
    %7179 = vmatprep.subr.mxu0 0.0
    %7180 = vmatpush2.msra.mxu0 0.0
    %7181 = vmatprep.subr.mxu0 0.0
    %7182 = vmatpush2.msra.mxu0 0.0
    %7183 = vmatprep.subr.mxu0 0.0
    %7184 = vmatpush2.msra.mxu0 0.0
    %7185 = vmatprep.subr.mxu0 0.0
    %7186 = vmatpush2.msra.mxu0 0.0
    %7187 = vmatprep.subr.mxu0 0.0
    %7188 = vmatpush2.msra.mxu0 0.0
    %7189 = vmatprep.subr.mxu0 0.0
    %7190 = vmatpush2.msra.mxu0 0.0
    %7191 = vmatprep.subr.mxu0 0.0
    %7192 = vmatpush2.msra.mxu0 0.0
    %7193 = vmatprep.subr.mxu0 0.0
    %7194 = vmatpush2.msra.mxu0 0.0
    %7195 = vmatprep.subr.mxu0 0.0
    %7196 = vmatpush2.msra.mxu0 0.0
    %7197 = vmatprep.subr.mxu0 0.0
    %7198 = vmatpush2.msra.mxu0 0.0
    %7199 = vmatprep.subr.mxu0 0.0
    %7200 = vmatpush2.msra.mxu0 0.0
    %7201 = vmatprep.subr.mxu0 0.0
    %7202 = vmatpush2.msra.mxu0 0.0
    %7203 = vmatprep.subr.mxu0 0.0
    %7204 = vmatpush2.msra.mxu0 0.0
    %7205 = vmatprep.subr.mxu0 0.0
    %7206 = vmatpush2.msra.mxu0 0.0
    %7207 = vmatprep.subr.mxu0 0.0
    %7208 = vmatpush2.msra.mxu0 0.0
    %7209 = vmatprep.mubr.f32.mxu0 0.0
    %7210 = vmatmul.mubr.f32.gmra.mxu0 %v7140
    %v7211 = vpop.f32.mrf.mxu0
    %v7212 = vadd.f32 0.0, %v7211
    %v7213 = vpop.f32.mrf.mxu0
    %7214 = vmatprep.mubr.f32.mxu0 0.0
    %7215 = vmatmul.mubr.f32.gmra.mxu0 %v7143
    %v7216 = vpop.f32.mrf.mxu0
    %v7217 = vadd.f32 0.0, %v7216
    %v7218 = vpop.f32.mrf.mxu0
    %7219 = vdwg.mxu0
    %v7220 = vadd.f32 %v7050, %v7212
    %v7221 = vadd.f32 %v7051, %v7217
    %s7222 = scalar_lea.vmem [#allocation4], 8
    %7223 = vst.msk [vmem:[%s7222] sm:$0xff] %vm81, %v6872
    %s7224 = scalar_lea.vmem [#allocation2], 16
    %7225 = vst.msk [vmem:[%s7224] sm:$0xff] %vm81, %v7220
    %7226 = vst.msk [vmem:[%s7224 + $0x8] sm:$0xff] %vm81, %v7221
    // Predicated region
    $region74: #{cross_block_forward.1} parent=1 // pred_check
      _
    $region75: #{cross_block_forward.1} parent=1 // pred_check_branch
      %7228 = sbr.rel (0) target = $region77
    $region76: #{cross_block_forward.1} parent=1 // pred_region
      %s7230 = ssub.s32 512, 512
      %7231 = vsyncadd [#allocation3], %s7230
      %s7232 = sshll.u32 [#allocation2], 4
      %s7233 = int_to_ptr.vmem [resolvable:$true] %s7232
      %7238 = dma.vmem_to_hbm [thread:$0]  %s7233, 512, %s18, [#allocation3], 128, 128, 8
    $region77: #{cross_block_forward.1} parent=1 // pred_fallthru
      _
    // Predicated region
    $region78: #{cross_block_forward.1} parent=1 // pred_check
      _
    $region79: #{cross_block_forward.1} parent=1 // pred_check_branch
      %7240 = sbr.rel (0) target = $region81
    $region80: #{cross_block_forward.1} parent=1 // pred_region
      %s7242 = ssub.s32 256, 256
      %7243 = vsyncadd [#allocation5], %s7242
      %s7244 = sshll.u32 [#allocation4], 4
      %s7245 = int_to_ptr.vmem [resolvable:$true] %s7244
      %7250 = dma.vmem_to_hbm [thread:$0]  %s7245, 256, %s19, [#allocation5], 128, 128, 8
    $region81: #{cross_block_forward.1} parent=1 // pred_fallthru
      _
    // Predicated region
    $region82: #{cross_block_forward.1} parent=1 // pred_check
      _
    $region83: #{cross_block_forward.1} parent=1 // pred_check_branch
      %7252 = sbr.rel (0) target = $region85
    $region84: #{cross_block_forward.1} parent=1 // pred_region
      %7253 = dma.done [#allocation3], 512
    $region85: #{cross_block_forward.1} parent=1 // pred_fallthru
      _
    // Predicated region
    $region86: #{cross_block_forward.1} parent=1 // pred_check
      _
    $region87: #{cross_block_forward.1} parent=1 // pred_check_branch
      %7255 = sbr.rel (0) target = $region89
    $region88: #{cross_block_forward.1} parent=1 // pred_region
      %7256 = dma.done [#allocation5], 256
    $region89: #{cross_block_forward.1} parent=1 // pred_fallthru
      _
    %7257 = vsyncpa [#allocation3], 1
    %7258 = vsyncpa [#allocation5], 1

</llo_original>
